<compile_context>
chip_gen: v6e
topology: v6e:2x2x1
jax: 0.10.0
libtpu: 0.0.40
codegen_flags: <defaults>
</compile_context>

<pallas_src>
import functools

import jax
import jax.numpy as jnp
from jax import lax
from jax.experimental import pallas as pl
from jax.experimental.pallas import tpu as pltpu

EPS = 1e-5
LANES = 128


def _round_up(n, m):
    return (n + m - 1) // m * m


def _pick_row_tile(H):
    """Largest row-tile in {64,32,16,8} that divides H with >=2 tiles/image."""
    for th in (64, 32, 16, 8):
        if H % th == 0 and H // th >= 2:
            return th
    return H


def _vmem_limit_bytes():
    """Generation-aware VMEM limit: ~100 MiB on v5e/v6e, ~48 MiB on v7x."""
    try:
        phys = int(pltpu.get_tpu_info().vmem_capacity_bytes)
    except Exception:
        phys = 64 * 1024 * 1024
    return max(32 * 1024 * 1024, min(phys - 16 * 1024 * 1024, 100 * 1024 * 1024))


# ---------------------------------------------------------------------------
# In-kernel helpers
# ---------------------------------------------------------------------------
def _fill_padded_tile(pad_ref, load_rows, rt, TH, W, RT):
    """Build the (TH+2, W+2, C) bf16 zero-padded tile for row-tile `rt`.

    `load_rows(row_start, n)` returns n bf16 rows (n, W, C) of the source
    activation (already BN+ReLU'd for pass 2).  Only the 1-pixel border is
    zeroed; interior + halo rows are overwritten every step, so the tile is
    valid regardless of how the parallel batch axis is scheduled across cores.
    """
    C = pad_ref.shape[-1]
    zrow = jnp.zeros((1, W + 2, C), pad_ref.dtype)
    zcol = jnp.zeros((TH + 2, 1, C), pad_ref.dtype)
    pad_ref[0:1, :, :] = zrow
    pad_ref[TH + 1:TH + 2, :, :] = zrow
    pad_ref[:, 0:1, :] = zcol
    pad_ref[:, W + 1:W + 2, :] = zcol

    r0 = pl.multiple_of(rt * TH, TH)
    pad_ref[1:TH + 1, 1:W + 1, :] = load_rows(r0, TH)

    if RT > 1:                                 # halo rows from adjacent tiles
        @pl.when(rt > 0)
        def _():
            pad_ref[0:1, 1:W + 1, :] = load_rows(rt * TH - 1, 1)

        @pl.when(rt < RT - 1)
        def _():
            pad_ref[TH + 1:TH + 2, 1:W + 1, :] = load_rows(rt * TH + TH, 1)


def _conv3x3_taps(pad_ref, w_ref, b_ref, TH, W, C):
    """3x3 'same' conv of a zero-padded bf16 tile via 9-tap MXU accumulation.

    pad_ref: (TH+2, W+2, C) bf16   zero-padded activation tile
    w_ref:   (9, C, Cp)     bf16   one (C, Cp) weight plane per tap
    b_ref:   (1, Cp)        f32
    returns  (TH*W, Cp)     f32
    """
    rows = TH * W
    cp = w_ref.shape[-1]
    acc = jnp.zeros((rows, cp), jnp.float32)
    for k in range(9):
        dh, dw = divmod(k, 3)
        tap = pad_ref[dh:dh + TH, dw:dw + W, :].reshape(rows, C)
        acc = acc + jnp.dot(tap, w_ref[k], preferred_element_type=jnp.float32)
    return acc + b_ref[...]


def _accumulate_stats(st_ref, v, rt):
    """Accumulate per-image (sum, sum-of-squares) in f32 across row tiles."""
    @pl.when(rt == 0)
    def _():
        st_ref[...] = jnp.zeros_like(st_ref)
    st_ref[0, 0:1, :] += jnp.sum(v, axis=0, keepdims=True)
    st_ref[0, 1:2, :] += jnp.sum(v * v, axis=0, keepdims=True)


# ---------------------------------------------------------------------------
# Pass 1: conv1 -> raw (pre-BN) bf16 output + BN1 stats partials
# ---------------------------------------------------------------------------
def _conv1_kernel(x_ref, w1_ref, b1_ref, y_ref, st_ref, pad_ref,
                  *, TH, W, RT, cin):
    rt = pl.program_id(1)

    def load_rows(r, n):
        return x_ref[0, pl.ds(r, n), :, :].astype(jnp.bfloat16)

    _fill_padded_tile(pad_ref, load_rows, rt, TH, W, RT)
    v = _conv3x3_taps(pad_ref, w1_ref, b1_ref, TH, W, cin)      # (TH*W, Cp) f32
    _accumulate_stats(st_ref, v, rt)                            # f32, pre-downcast
    y_ref[0] = v.reshape(TH, W, v.shape[-1]).astype(y_ref.dtype)


# ---------------------------------------------------------------------------
# Pass 2: BN1 + ReLU + conv2 -> raw (pre-BN) bf16 output + BN2 stats partials
# ---------------------------------------------------------------------------
def _conv2_kernel(y_ref, sc1_ref, sh1_ref, w2_ref, b2_ref, z_ref, st_ref,
                  pad_ref, *, TH, W, RT, cp):
    rt = pl.program_id(1)
    sc = sc1_ref[...]
    sh = sh1_ref[...]

    def load_rows(r, n):
        rows = y_ref[0, pl.ds(r, n), :, :].astype(jnp.float32)
        return jnp.maximum(rows * sc + sh, 0.0).astype(jnp.bfloat16)

    _fill_padded_tile(pad_ref, load_rows, rt, TH, W, RT)
    v = _conv3x3_taps(pad_ref, w2_ref, b2_ref, TH, W, cp)       # (TH*W, Cp) f32
    _accumulate_stats(st_ref, v, rt)
    z_ref[0] = v.reshape(TH, W, cp).astype(z_ref.dtype)


# ---------------------------------------------------------------------------
# Pass 3: BN2 affine (+ optional final ReLU), emits unpadded Cout channels
# ---------------------------------------------------------------------------
def _bn2_kernel(z_ref, sc2_ref, sh2_ref, o_ref, *, cout, final_activation):
    o = z_ref[0].astype(jnp.float32) * sc2_ref[...] + sh2_ref[...]
    if final_activation:
        o = jnp.maximum(o, 0.0)
    o_ref[0] = o[..., :cout]


# ---------------------------------------------------------------------------
# Wrapper
# ---------------------------------------------------------------------------
def _bn_scale_shift(stats, gamma_p, beta_p, n):
    """stats: (B, 2, Cp) per-image partial sums -> per-channel (scale, shift)."""
    tot = jnp.sum(stats, axis=0)                       # (2, Cp) f32
    mean = tot[0] / n
    var = jnp.maximum(tot[1] / n - mean * mean, 0.0)   # biased (training-mode)
    scale = gamma_p * lax.rsqrt(var + EPS)
    shift = beta_p - mean * scale
    return scale.reshape(1, -1), shift.reshape(1, -1)


@functools.partial(jax.jit, static_argnames=("final_activation",))
def double_conv_nhwc(x, params, *, final_activation=True):
    """x: (B, H, W, Cin) float32 NHWC. Returns (B, H, W, Cout) float32."""
    w1, b1, g1, be1, w2, b2, g2, be2 = params          # PyTorch layouts
    B, H, W, Cin = x.shape
    Cout = w1.shape[0]
    Cp = _round_up(Cout, LANES)                        # lane-dense channels
    TH = _pick_row_tile(H)
    RT = H // TH
    f32, bf16 = jnp.float32, jnp.bfloat16
    x = x.astype(f32)

    # --- weights: (Cout,Cin,3,3) -> (9, Cin, Cp) per-tap planes, bf16 ---
    w1f = jnp.transpose(w1, (2, 3, 1, 0)).reshape(9, Cin, Cout).astype(f32)
    w1p = jnp.zeros((9, Cin, Cp), f32).at[:, :, :Cout].set(w1f).astype(bf16)
    w2f = jnp.transpose(w2, (2, 3, 1, 0)).reshape(9, Cout, Cout).astype(f32)
    w2p = jnp.zeros((9, Cp, Cp), f32).at[:, :Cout, :Cout].set(w2f).astype(bf16)
    b1p = jnp.zeros((1, Cp), f32).at[0, :Cout].set(b1.astype(f32))
    b2p = jnp.zeros((1, Cp), f32).at[0, :Cout].set(b2.astype(f32))
    # gamma on padding channels = 0 so padded lanes stay exactly zero
    g1p = jnp.zeros((Cp,), f32).at[:Cout].set(g1.astype(f32))
    g2p = jnp.zeros((Cp,), f32).at[:Cout].set(g2.astype(f32))
    be1p = jnp.zeros((Cp,), f32).at[:Cout].set(be1.astype(f32))
    be2p = jnp.zeros((Cp,), f32).at[:Cout].set(be2.astype(f32))

    vmem = _vmem_limit_bytes()
    cparams_red = pltpu.CompilerParams(                # stats accumulate over rt
        dimension_semantics=("parallel", "arbitrary"), vmem_limit_bytes=vmem)
    cparams_par = pltpu.CompilerParams(
        dimension_semantics=("parallel", "parallel"), vmem_limit_bytes=vmem)

    # ---------------------- pass 1: conv1 + BN1 stats ----------------------
    y_raw, st1 = pl.pallas_call(
        functools.partial(_conv1_kernel, TH=TH, W=W, RT=RT, cin=Cin),
        grid=(B, RT),
        in_specs=[
            pl.BlockSpec((1, H, W, Cin), lambda b, t: (b, 0, 0, 0)),  # resident
            pl.BlockSpec((9, Cin, Cp), lambda b, t: (0, 0, 0)),
            pl.BlockSpec((1, Cp), lambda b, t: (0, 0)),
        ],
        out_specs=[
            pl.BlockSpec((1, TH, W, Cp), lambda b, t: (b, t, 0, 0)),
            pl.BlockSpec((1, 2, Cp), lambda b, t: (b, 0, 0)),         # accumulator
        ],
        out_shape=[
            jax.ShapeDtypeStruct((B, H, W, Cp), bf16),
            jax.ShapeDtypeStruct((B, 2, Cp), f32),
        ],
        scratch_shapes=[pltpu.VMEM((TH + 2, W + 2, Cin), bf16)],
        compiler_params=cparams_red,
        cost_estimate=pl.CostEstimate(
            flops=2 * B * H * W * 9 * Cin * Cp,
            transcendentals=0,
            bytes_accessed=(B * H * W * Cin * 4 + B * H * W * Cp * 2
                            + 9 * Cin * Cp * 2 + B * 2 * Cp * 4)),
    )(x, w1p, b1p)

    n = B * H * W
    sc1, sh1 = _bn_scale_shift(st1, g1p, be1p, n)

    # ----------------- pass 2: BN1 + ReLU + conv2 + BN2 stats --------------
    z_raw, st2 = pl.pallas_call(
        functools.partial(_conv2_kernel, TH=TH, W=W, RT=RT, cp=Cp),
        grid=(B, RT),
        in_specs=[
            pl.BlockSpec((1, H, W, Cp), lambda b, t: (b, 0, 0, 0)),   # resident
            pl.BlockSpec((1, Cp), lambda b, t: (0, 0)),
            pl.BlockSpec((1, Cp), lambda b, t: (0, 0)),
            pl.BlockSpec((9, Cp, Cp), lambda b, t: (0, 0, 0)),
            pl.BlockSpec((1, Cp), lambda b, t: (0, 0)),
        ],
        out_specs=[
            pl.BlockSpec((1, TH, W, Cp), lambda b, t: (b, t, 0, 0)),
            pl.BlockSpec((1, 2, Cp), lambda b, t: (b, 0, 0)),
        ],
        out_shape=[
            jax.ShapeDtypeStruct((B, H, W, Cp), bf16),
            jax.ShapeDtypeStruct((B, 2, Cp), f32),
        ],
        scratch_shapes=[pltpu.VMEM((TH + 2, W + 2, Cp), bf16)],
        compiler_params=cparams_red,
        cost_estimate=pl.CostEstimate(
            flops=2 * B * H * W * 9 * Cp * Cp,
            transcendentals=0,
            bytes_accessed=(2 * B * H * W * Cp * 2 + 9 * Cp * Cp * 2
                            + B * 2 * Cp * 4)),
    )(y_raw, sc1, sh1, w2p, b2p)

    sc2, sh2 = _bn_scale_shift(st2, g2p, be2p, n)

    # --------- pass 3: BN2 affine (+ final ReLU), unpadded output ----------
    out = pl.pallas_call(
        functools.partial(_bn2_kernel, cout=Cout,
                          final_activation=final_activation),
        grid=(B, RT),
        in_specs=[
            pl.BlockSpec((1, TH, W, Cp), lambda b, t: (b, t, 0, 0)),
            pl.BlockSpec((1, Cp), lambda b, t: (0, 0)),
            pl.BlockSpec((1, Cp), lambda b, t: (0, 0)),
        ],
        out_specs=pl.BlockSpec((1, TH, W, Cout), lambda b, t: (b, t, 0, 0)),
        out_shape=jax.ShapeDtypeStruct((B, H, W, Cout), f32),
        compiler_params=cparams_par,
        cost_estimate=pl.CostEstimate(
            flops=2 * B * H * W * Cp,
            transcendentals=0,
            bytes_accessed=B * H * W * (Cp * 2 + Cout * 4)),
    )(z_raw, sc2, sh2)

    return out


def double_conv(x_nchw, params, *, final_activation=True):
    """PyTorch-layout entry point: (B, Cin, H, W) -> (B, Cout, H, W).
    Callers that already hold NHWC data should call double_conv_nhwc directly
    and skip these boundary transposes."""
    x = jnp.transpose(x_nchw, (0, 2, 3, 1))
    out = double_conv_nhwc(x, params, final_activation=final_activation)
    return jnp.transpose(out, (0, 3, 1, 2))


# ---------------------------------------------------------------------------
# Deterministic parameters (PyTorch layouts) + pure-XLA reference
# ---------------------------------------------------------------------------
def init_params(key, in_channels, out_channels):
    k1, k2, k3, k4, k5, k6 = jax.random.split(key, 6)
    s1 = 1.0 / jnp.sqrt(in_channels * 9.0)
    s2 = 1.0 / jnp.sqrt(out_channels * 9.0)
    w1 = jax.random.uniform(k1, (out_channels, in_channels, 3, 3), jnp.float32, -s1, s1)
    b1 = jax.random.uniform(k2, (out_channels,), jnp.float32, -s1, s1)
    w2 = jax.random.uniform(k3, (out_channels, out_channels, 3, 3), jnp.float32, -s2, s2)
    b2 = jax.random.uniform(k4, (out_channels,), jnp.float32, -s2, s2)
    g1 = 1.0 + 0.1 * jax.random.normal(k5, (out_channels,), jnp.float32)
    be1 = jnp.zeros((out_channels,), jnp.float32)
    g2 = 1.0 + 0.1 * jax.random.normal(k6, (out_channels,), jnp.float32)
    be2 = jnp.zeros((out_channels,), jnp.float32)
    return (w1, b1, g1, be1, w2, b2, g2, be2)


def _reference(x_nchw, params, final_activation):
    """Pure-XLA f32 reference (training-mode BatchNorm)."""
    w1, b1, g1, be1, w2, b2, g2, be2 = params

    def conv(x, w, b):
        y = lax.conv_general_dilated(
            x, w, (1, 1), "SAME",
            dimension_numbers=("NCHW", "OIHW", "NCHW"),
            precision=lax.Precision.HIGHEST)
        return y + b[None, :, None, None]

    def bn(x, g, be):
        mean = jnp.mean(x, axis=(0, 2, 3), keepdims=True)
        var = jnp.mean((x - mean) ** 2, axis=(0, 2, 3), keepdims=True)
        return ((x - mean) * lax.rsqrt(var + EPS) * g[None, :, None, None]
                + be[None, :, None, None])

    y = jnp.maximum(bn(conv(x_nchw, w1, b1), g1, be1), 0.0)
    z = bn(conv(y, w2, b2), g2, be2)
    return jnp.maximum(z, 0.0) if final_activation else z


if __name__ == "__main__":
    key = jax.random.PRNGKey(0)
    kx, kp = jax.random.split(key)

    B, Cin, Cout, H, W = 2, 4, 8, 16, 16
    x = jax.random.normal(kx, (B, Cin, H, W), jnp.float32)
    params = init_params(kp, Cin, Cout)

    out = double_conv(x, params, final_activation=True)
    out = jax.block_until_ready(out)

    assert out.shape == (B, Cout, H, W), out.shape
    assert bool(jnp.all(jnp.isfinite(out)))

    # Sanity check vs. pure-XLA f32 reference (bf16 MXU operands and bf16
    # inter-pass activations => loose tolerance).
    ref = _reference(x, params, True)
    max_err = float(jnp.max(jnp.abs(out - ref)))
    mean_err = float(jnp.mean(jnp.abs(out - ref)))
    assert max_err < 0.3 and mean_err < 0.04, (max_err, mean_err)

    print("KERNEL_OK")
</pallas_src>

<mosaic_0001>
module attributes {stable_mosaic.version = 11 : i64} {
  func.func @_conv1_kernel(%arg0: i32, %arg1: i32, %arg2: memref<1x16x16x4xf32, #tpu.memory_space<vmem>>, %arg3: memref<9x4x128xbf16, #tpu.memory_space<vmem>>, %arg4: memref<1x128xf32, #tpu.memory_space<vmem>>, %arg5: memref<1x8x16x128xbf16, #tpu.memory_space<vmem>>, %arg6: memref<1x2x128xf32, #tpu.memory_space<vmem>>, %arg7: memref<10x18x4xbf16, #tpu.memory_space<vmem>>) attributes {dimension_semantics = [#tpu.dimension_semantics<parallel>, #tpu.dimension_semantics<arbitrary>], iteration_bounds = array<i64: 2, 2>, scalar_prefetch = 0 : i64, scratch_operands = 1 : i64, tpu.core_type = #tpu.core_type<tc>, window_params = [{transform_indices = @transform_0, window_bounds = array<i64: 1, 16, 16, 4>}, {pipeline_mode = #tpu.pipeline_mode<synchronous>, transform_indices = @transform_1, window_bounds = array<i64: 9, 4, 128>}, {pipeline_mode = #tpu.pipeline_mode<synchronous>, transform_indices = @transform_2, window_bounds = array<i64: 1, 128>}, {transform_indices = @transform_3, window_bounds = array<i64: 1, 8, 16, 128>}, {transform_indices = @transform_4, window_bounds = array<i64: 1, 2, 128>}]} {
    %cst = arith.constant 0.000000e+00 : bf16
    %0 = vector.broadcast %cst : bf16 to vector<1x18x4xbf16>
    %cst_0 = arith.constant 0.000000e+00 : bf16
    %1 = vector.broadcast %cst_0 : bf16 to vector<10x1x4xbf16>
    %c0 = arith.constant 0 : index
    %c0_1 = arith.constant 0 : index
    %c0_2 = arith.constant 0 : index
    %2 = vector.load %arg7[%c0, %c0_1, %c0_2] : memref<10x18x4xbf16, #tpu.memory_space<vmem>>, vector<1x18x4xbf16>
    tpu.vector_store %arg7[%c0, %c0_1, %c0_2], %0 {strides = array<i32>} : memref<10x18x4xbf16, #tpu.memory_space<vmem>>, vector<1x18x4xbf16>,
    %c9 = arith.constant 9 : index
    %c0_3 = arith.constant 0 : index
    %c0_4 = arith.constant 0 : index
    %3 = vector.load %arg7[%c9, %c0_3, %c0_4] : memref<10x18x4xbf16, #tpu.memory_space<vmem>>, vector<1x18x4xbf16>
    tpu.vector_store %arg7[%c9, %c0_3, %c0_4], %0 {strides = array<i32>} : memref<10x18x4xbf16, #tpu.memory_space<vmem>>, vector<1x18x4xbf16>,
    %c0_5 = arith.constant 0 : index
    %c0_6 = arith.constant 0 : index
    %c0_7 = arith.constant 0 : index
    %4 = vector.load %arg7[%c0_5, %c0_6, %c0_7] : memref<10x18x4xbf16, #tpu.memory_space<vmem>>, vector<10x1x4xbf16>
    tpu.vector_store %arg7[%c0_5, %c0_6, %c0_7], %1 {strides = array<i32>} : memref<10x18x4xbf16, #tpu.memory_space<vmem>>, vector<10x1x4xbf16>,
    %c0_8 = arith.constant 0 : index
    %c17 = arith.constant 17 : index
    %c0_9 = arith.constant 0 : index
    %5 = vector.load %arg7[%c0_8, %c17, %c0_9] : memref<10x18x4xbf16, #tpu.memory_space<vmem>>, vector<10x1x4xbf16>
    tpu.vector_store %arg7[%c0_8, %c17, %c0_9], %1 {strides = array<i32>} : memref<10x18x4xbf16, #tpu.memory_space<vmem>>, vector<10x1x4xbf16>,
    %c8_i32 = arith.constant 8 : i32
    %6 = arith.muli %arg1, %c8_i32 : i32
    %7 = tpu.assume_multiple %6, 8 : i32
    %c0_10 = arith.constant 0 : index
    %8 = arith.index_cast %7 : i32 to index
    %c0_11 = arith.constant 0 : index
    %c0_12 = arith.constant 0 : index
    %9 = vector.load %arg2[%c0_10, %8, %c0_11, %c0_12] : memref<1x16x16x4xf32, #tpu.memory_space<vmem>>, vector<1x8x16x4xf32>
    %10 = vector.shape_cast %9 : vector<1x8x16x4xf32> to vector<8x16x4xf32>
    %11 = arith.truncf %10 : vector<8x16x4xf32> to vector<8x16x4xbf16>
    %c1 = arith.constant 1 : index
    %c1_13 = arith.constant 1 : index
    %c0_14 = arith.constant 0 : index
    %12 = vector.load %arg7[%c1, %c1_13, %c0_14] : memref<10x18x4xbf16, #tpu.memory_space<vmem>>, vector<8x16x4xbf16>
    tpu.vector_store %arg7[%c1, %c1_13, %c0_14], %11 {strides = array<i32>} : memref<10x18x4xbf16, #tpu.memory_space<vmem>>, vector<8x16x4xbf16>,
    %c0_i32 = arith.constant 0 : i32
    %13 = arith.cmpi sgt, %arg1, %c0_i32 : i32
    %14 = arith.extui %13 : i1 to i32
    %c0_i32_15 = arith.constant 0 : i32
    %15 = arith.cmpi ne, %14, %c0_i32_15 : i32
    scf.if %15 {
      %c8_i32_96 = arith.constant 8 : i32
      %102 = arith.muli %arg1, %c8_i32_96 : i32
      %c1_i32_97 = arith.constant 1 : i32
      %103 = arith.subi %102, %c1_i32_97 : i32
      %c0_98 = arith.constant 0 : index
      %104 = arith.index_cast %103 : i32 to index
      %c0_99 = arith.constant 0 : index
      %c0_100 = arith.constant 0 : index
      %105 = vector.load %arg2[%c0_98, %104, %c0_99, %c0_100] : memref<1x16x16x4xf32, #tpu.memory_space<vmem>>, vector<1x1x16x4xf32>
      %106 = vector.shape_cast %105 : vector<1x1x16x4xf32> to vector<1x16x4xf32>
      %107 = arith.truncf %106 : vector<1x16x4xf32> to vector<1x16x4xbf16>
      %c0_101 = arith.constant 0 : index
      %c1_102 = arith.constant 1 : index
      %c0_103 = arith.constant 0 : index
      %108 = vector.load %arg7[%c0_101, %c1_102, %c0_103] : memref<10x18x4xbf16, #tpu.memory_space<vmem>>, vector<1x16x4xbf16>
      tpu.vector_store %arg7[%c0_101, %c1_102, %c0_103], %107 {strides = array<i32>} : memref<10x18x4xbf16, #tpu.memory_space<vmem>>, vector<1x16x4xbf16>,
    } else {
    }
    %c1_i32 = arith.constant 1 : i32
    %16 = arith.cmpi slt, %arg1, %c1_i32 : i32
    %17 = arith.extui %16 : i1 to i32
    %c0_i32_16 = arith.constant 0 : i32
    %18 = arith.cmpi ne, %17, %c0_i32_16 : i32
    scf.if %18 {
      %c8_i32_96 = arith.constant 8 : i32
      %102 = arith.muli %arg1, %c8_i32_96 : i32
      %c8_i32_97 = arith.constant 8 : i32
      %103 = arith.addi %102, %c8_i32_97 : i32
      %c0_98 = arith.constant 0 : index
      %104 = arith.index_cast %103 : i32 to index
      %c0_99 = arith.constant 0 : index
      %c0_100 = arith.constant 0 : index
      %105 = vector.load %arg2[%c0_98, %104, %c0_99, %c0_100] : memref<1x16x16x4xf32, #tpu.memory_space<vmem>>, vector<1x1x16x4xf32>
      %106 = vector.shape_cast %105 : vector<1x1x16x4xf32> to vector<1x16x4xf32>
      %107 = arith.truncf %106 : vector<1x16x4xf32> to vector<1x16x4xbf16>
      %c9_101 = arith.constant 9 : index
      %c1_102 = arith.constant 1 : index
      %c0_103 = arith.constant 0 : index
      %108 = vector.load %arg7[%c9_101, %c1_102, %c0_103] : memref<10x18x4xbf16, #tpu.memory_space<vmem>>, vector<1x16x4xbf16>
      tpu.vector_store %arg7[%c9_101, %c1_102, %c0_103], %107 {strides = array<i32>} : memref<10x18x4xbf16, #tpu.memory_space<vmem>>, vector<1x16x4xbf16>,
    } else {
    }
    %cst_17 = arith.constant 0.000000e+00 : f32
    %19 = vector.broadcast %cst_17 : f32 to vector<128x128xf32>
    %c0_18 = arith.constant 0 : index
    %c0_19 = arith.constant 0 : index
    %c0_20 = arith.constant 0 : index
    %20 = vector.load %arg7[%c0_18, %c0_19, %c0_20] : memref<10x18x4xbf16, #tpu.memory_space<vmem>>, vector<8x16x4xbf16>
    %21 = vector.shape_cast %20 : vector<8x16x4xbf16> to vector<128x4xbf16>
    %c0_21 = arith.constant 0 : index
    %c0_22 = arith.constant 0 : index
    %c0_23 = arith.constant 0 : index
    %22 = vector.load %arg3[%c0_21, %c0_22, %c0_23] : memref<9x4x128xbf16, #tpu.memory_space<vmem>>, vector<1x4x128xbf16>
    %23 = vector.shape_cast %22 : vector<1x4x128xbf16> to vector<4x128xbf16>
    %cst_24 = arith.constant dense<0.000000e+00> : vector<128x128xf32>
    %24 = tpu.matmul %21, %23, %cst_24 {dimension_numbers = #tpu.dot_dimension_numbers<[1], [0], [0], [1], [0, 0, 1, 1], [], []>} : vector<128x4xbf16>, vector<4x128xbf16>, vector<128x128xf32> -> vector<128x128xf32>
    %25 = arith.addf %19, %24 : vector<128x128xf32>
    %c0_25 = arith.constant 0 : index
    %c1_26 = arith.constant 1 : index
    %c0_27 = arith.constant 0 : index
    %26 = vector.load %arg7[%c0_25, %c1_26, %c0_27] : memref<10x18x4xbf16, #tpu.memory_space<vmem>>, vector<8x16x4xbf16>
    %27 = vector.shape_cast %26 : vector<8x16x4xbf16> to vector<128x4xbf16>
    %c1_28 = arith.constant 1 : index
    %c0_29 = arith.constant 0 : index
    %c0_30 = arith.constant 0 : index
    %28 = vector.load %arg3[%c1_28, %c0_29, %c0_30] : memref<9x4x128xbf16, #tpu.memory_space<vmem>>, vector<1x4x128xbf16>
    %29 = vector.shape_cast %28 : vector<1x4x128xbf16> to vector<4x128xbf16>
    %cst_31 = arith.constant dense<0.000000e+00> : vector<128x128xf32>
    %30 = tpu.matmul %27, %29, %cst_31 {dimension_numbers = #tpu.dot_dimension_numbers<[1], [0], [0], [1], [0, 0, 1, 1], [], []>} : vector<128x4xbf16>, vector<4x128xbf16>, vector<128x128xf32> -> vector<128x128xf32>
    %31 = arith.addf %25, %30 : vector<128x128xf32>
    %c0_32 = arith.constant 0 : index
    %c2 = arith.constant 2 : index
    %c0_33 = arith.constant 0 : index
    %32 = vector.load %arg7[%c0_32, %c2, %c0_33] : memref<10x18x4xbf16, #tpu.memory_space<vmem>>, vector<8x16x4xbf16>
    %33 = vector.shape_cast %32 : vector<8x16x4xbf16> to vector<128x4xbf16>
    %c2_34 = arith.constant 2 : index
    %c0_35 = arith.constant 0 : index
    %c0_36 = arith.constant 0 : index
    %34 = vector.load %arg3[%c2_34, %c0_35, %c0_36] : memref<9x4x128xbf16, #tpu.memory_space<vmem>>, vector<1x4x128xbf16>
    %35 = vector.shape_cast %34 : vector<1x4x128xbf16> to vector<4x128xbf16>
    %cst_37 = arith.constant dense<0.000000e+00> : vector<128x128xf32>
    %36 = tpu.matmul %33, %35, %cst_37 {dimension_numbers = #tpu.dot_dimension_numbers<[1], [0], [0], [1], [0, 0, 1, 1], [], []>} : vector<128x4xbf16>, vector<4x128xbf16>, vector<128x128xf32> -> vector<128x128xf32>
    %37 = arith.addf %31, %36 : vector<128x128xf32>
    %c1_38 = arith.constant 1 : index
    %c0_39 = arith.constant 0 : index
    %c0_40 = arith.constant 0 : index
    %38 = vector.load %arg7[%c1_38, %c0_39, %c0_40] : memref<10x18x4xbf16, #tpu.memory_space<vmem>>, vector<8x16x4xbf16>
    %39 = vector.shape_cast %38 : vector<8x16x4xbf16> to vector<128x4xbf16>
    %c3 = arith.constant 3 : index
    %c0_41 = arith.constant 0 : index
    %c0_42 = arith.constant 0 : index
    %40 = vector.load %arg3[%c3, %c0_41, %c0_42] : memref<9x4x128xbf16, #tpu.memory_space<vmem>>, vector<1x4x128xbf16>
    %41 = vector.shape_cast %40 : vector<1x4x128xbf16> to vector<4x128xbf16>
    %cst_43 = arith.constant dense<0.000000e+00> : vector<128x128xf32>
    %42 = tpu.matmul %39, %41, %cst_43 {dimension_numbers = #tpu.dot_dimension_numbers<[1], [0], [0], [1], [0, 0, 1, 1], [], []>} : vector<128x4xbf16>, vector<4x128xbf16>, vector<128x128xf32> -> vector<128x128xf32>
    %43 = arith.addf %37, %42 : vector<128x128xf32>
    %c1_44 = arith.constant 1 : index
    %c1_45 = arith.constant 1 : index
    %c0_46 = arith.constant 0 : index
    %44 = vector.load %arg7[%c1_44, %c1_45, %c0_46] : memref<10x18x4xbf16, #tpu.memory_space<vmem>>, vector<8x16x4xbf16>
    %45 = vector.shape_cast %44 : vector<8x16x4xbf16> to vector<128x4xbf16>
    %c4 = arith.constant 4 : index
    %c0_47 = arith.constant 0 : index
    %c0_48 = arith.constant 0 : index
    %46 = vector.load %arg3[%c4, %c0_47, %c0_48] : memref<9x4x128xbf16, #tpu.memory_space<vmem>>, vector<1x4x128xbf16>
    %47 = vector.shape_cast %46 : vector<1x4x128xbf16> to vector<4x128xbf16>
    %cst_49 = arith.constant dense<0.000000e+00> : vector<128x128xf32>
    %48 = tpu.matmul %45, %47, %cst_49 {dimension_numbers = #tpu.dot_dimension_numbers<[1], [0], [0], [1], [0, 0, 1, 1], [], []>} : vector<128x4xbf16>, vector<4x128xbf16>, vector<128x128xf32> -> vector<128x128xf32>
    %49 = arith.addf %43, %48 : vector<128x128xf32>
    %c1_50 = arith.constant 1 : index
    %c2_51 = arith.constant 2 : index
    %c0_52 = arith.constant 0 : index
    %50 = vector.load %arg7[%c1_50, %c2_51, %c0_52] : memref<10x18x4xbf16, #tpu.memory_space<vmem>>, vector<8x16x4xbf16>
    %51 = vector.shape_cast %50 : vector<8x16x4xbf16> to vector<128x4xbf16>
    %c5 = arith.constant 5 : index
    %c0_53 = arith.constant 0 : index
    %c0_54 = arith.constant 0 : index
    %52 = vector.load %arg3[%c5, %c0_53, %c0_54] : memref<9x4x128xbf16, #tpu.memory_space<vmem>>, vector<1x4x128xbf16>
    %53 = vector.shape_cast %52 : vector<1x4x128xbf16> to vector<4x128xbf16>
    %cst_55 = arith.constant dense<0.000000e+00> : vector<128x128xf32>
    %54 = tpu.matmul %51, %53, %cst_55 {dimension_numbers = #tpu.dot_dimension_numbers<[1], [0], [0], [1], [0, 0, 1, 1], [], []>} : vector<128x4xbf16>, vector<4x128xbf16>, vector<128x128xf32> -> vector<128x128xf32>
    %55 = arith.addf %49, %54 : vector<128x128xf32>
    %c2_56 = arith.constant 2 : index
    %c0_57 = arith.constant 0 : index
    %c0_58 = arith.constant 0 : index
    %56 = vector.load %arg7[%c2_56, %c0_57, %c0_58] : memref<10x18x4xbf16, #tpu.memory_space<vmem>>, vector<8x16x4xbf16>
    %57 = vector.shape_cast %56 : vector<8x16x4xbf16> to vector<128x4xbf16>
    %c6 = arith.constant 6 : index
    %c0_59 = arith.constant 0 : index
    %c0_60 = arith.constant 0 : index
    %58 = vector.load %arg3[%c6, %c0_59, %c0_60] : memref<9x4x128xbf16, #tpu.memory_space<vmem>>, vector<1x4x128xbf16>
    %59 = vector.shape_cast %58 : vector<1x4x128xbf16> to vector<4x128xbf16>
    %cst_61 = arith.constant dense<0.000000e+00> : vector<128x128xf32>
    %60 = tpu.matmul %57, %59, %cst_61 {dimension_numbers = #tpu.dot_dimension_numbers<[1], [0], [0], [1], [0, 0, 1, 1], [], []>} : vector<128x4xbf16>, vector<4x128xbf16>, vector<128x128xf32> -> vector<128x128xf32>
    %61 = arith.addf %55, %60 : vector<128x128xf32>
    %c2_62 = arith.constant 2 : index
    %c1_63 = arith.constant 1 : index
    %c0_64 = arith.constant 0 : index
    %62 = vector.load %arg7[%c2_62, %c1_63, %c0_64] : memref<10x18x4xbf16, #tpu.memory_space<vmem>>, vector<8x16x4xbf16>
    %63 = vector.shape_cast %62 : vector<8x16x4xbf16> to vector<128x4xbf16>
    %c7 = arith.constant 7 : index
    %c0_65 = arith.constant 0 : index
    %c0_66 = arith.constant 0 : index
    %64 = vector.load %arg3[%c7, %c0_65, %c0_66] : memref<9x4x128xbf16, #tpu.memory_space<vmem>>, vector<1x4x128xbf16>
    %65 = vector.shape_cast %64 : vector<1x4x128xbf16> to vector<4x128xbf16>
    %cst_67 = arith.constant dense<0.000000e+00> : vector<128x128xf32>
    %66 = tpu.matmul %63, %65, %cst_67 {dimension_numbers = #tpu.dot_dimension_numbers<[1], [0], [0], [1], [0, 0, 1, 1], [], []>} : vector<128x4xbf16>, vector<4x128xbf16>, vector<128x128xf32> -> vector<128x128xf32>
    %67 = arith.addf %61, %66 : vector<128x128xf32>
    %c2_68 = arith.constant 2 : index
    %c2_69 = arith.constant 2 : index
    %c0_70 = arith.constant 0 : index
    %68 = vector.load %arg7[%c2_68, %c2_69, %c0_70] : memref<10x18x4xbf16, #tpu.memory_space<vmem>>, vector<8x16x4xbf16>
    %69 = vector.shape_cast %68 : vector<8x16x4xbf16> to vector<128x4xbf16>
    %c8 = arith.constant 8 : index
    %c0_71 = arith.constant 0 : index
    %c0_72 = arith.constant 0 : index
    %70 = vector.load %arg3[%c8, %c0_71, %c0_72] : memref<9x4x128xbf16, #tpu.memory_space<vmem>>, vector<1x4x128xbf16>
    %71 = vector.shape_cast %70 : vector<1x4x128xbf16> to vector<4x128xbf16>
    %cst_73 = arith.constant dense<0.000000e+00> : vector<128x128xf32>
    %72 = tpu.matmul %69, %71, %cst_73 {dimension_numbers = #tpu.dot_dimension_numbers<[1], [0], [0], [1], [0, 0, 1, 1], [], []>} : vector<128x4xbf16>, vector<4x128xbf16>, vector<128x128xf32> -> vector<128x128xf32>
    %73 = arith.addf %67, %72 : vector<128x128xf32>
    %c0_74 = arith.constant 0 : index
    %c0_75 = arith.constant 0 : index
    %74 = vector.load %arg4[%c0_74, %c0_75] : memref<1x128xf32, #tpu.memory_space<vmem>>, vector<1x128xf32>
    %75 = vector.broadcast %74 : vector<1x128xf32> to vector<128x128xf32>
    %76 = arith.addf %73, %75 : vector<128x128xf32>
    %c0_i32_76 = arith.constant 0 : i32
    %77 = arith.cmpi eq, %arg1, %c0_i32_76 : i32
    %78 = arith.extui %77 : i1 to i32
    %c0_i32_77 = arith.constant 0 : i32
    %79 = arith.cmpi ne, %78, %c0_i32_77 : i32
    scf.if %79 {
      %cst_96 = arith.constant 0.000000e+00 : f32
      %102 = vector.broadcast %cst_96 : f32 to vector<1x2x128xf32>
      %c0_97 = arith.constant 0 : index
      %c0_98 = arith.constant 0 : index
      %c0_99 = arith.constant 0 : index
      %103 = vector.load %arg6[%c0_97, %c0_98, %c0_99] : memref<1x2x128xf32, #tpu.memory_space<vmem>>, vector<1x2x128xf32>
      tpu.vector_store %arg6[%c0_97, %c0_98, %c0_99], %102 {strides = array<i32>} : memref<1x2x128xf32, #tpu.memory_space<vmem>>, vector<1x2x128xf32>,
    } else {
    }
    %c0_78 = arith.constant 0 : index
    %c0_79 = arith.constant 0 : index
    %c0_80 = arith.constant 0 : index
    %80 = vector.load %arg6[%c0_78, %c0_79, %c0_80] : memref<1x2x128xf32, #tpu.memory_space<vmem>>, vector<1x1x128xf32>
    %81 = vector.shape_cast %80 : vector<1x1x128xf32> to vector<1x128xf32>
    %cst_81 = arith.constant dense<0.000000e+00> : vector<128xf32>
    %82 = vector.multi_reduction <add>, %76, %cst_81 [0] : vector<128x128xf32> to vector<128xf32>
    %83 = vector.shape_cast %82 : vector<128xf32> to vector<1x128xf32>
    %84 = arith.addf %81, %83 : vector<1x128xf32>
    %c0_82 = arith.constant 0 : index
    %c0_83 = arith.constant 0 : index
    %c0_84 = arith.constant 0 : index
    %85 = vector.load %arg6[%c0_82, %c0_83, %c0_84] : memref<1x2x128xf32, #tpu.memory_space<vmem>>, vector<1x1x128xf32>
    %86 = vector.shape_cast %85 : vector<1x1x128xf32> to vector<1x128xf32>
    %87 = vector.shape_cast %84 : vector<1x128xf32> to vector<1x1x128xf32>
    tpu.vector_store %arg6[%c0_82, %c0_83, %c0_84], %87 {strides = array<i32>} : memref<1x2x128xf32, #tpu.memory_space<vmem>>, vector<1x1x128xf32>,
    %c0_85 = arith.constant 0 : index
    %c1_86 = arith.constant 1 : index
    %c0_87 = arith.constant 0 : index
    %88 = vector.load %arg6[%c0_85, %c1_86, %c0_87] : memref<1x2x128xf32, #tpu.memory_space<vmem>>, vector<1x1x128xf32>
    %89 = vector.shape_cast %88 : vector<1x1x128xf32> to vector<1x128xf32>
    %90 = arith.mulf %76, %76 : vector<128x128xf32>
    %cst_88 = arith.constant dense<0.000000e+00> : vector<128xf32>
    %91 = vector.multi_reduction <add>, %90, %cst_88 [0] : vector<128x128xf32> to vector<128xf32>
    %92 = vector.shape_cast %91 : vector<128xf32> to vector<1x128xf32>
    %93 = arith.addf %89, %92 : vector<1x128xf32>
    %c0_89 = arith.constant 0 : index
    %c1_90 = arith.constant 1 : index
    %c0_91 = arith.constant 0 : index
    %94 = vector.load %arg6[%c0_89, %c1_90, %c0_91] : memref<1x2x128xf32, #tpu.memory_space<vmem>>, vector<1x1x128xf32>
    %95 = vector.shape_cast %94 : vector<1x1x128xf32> to vector<1x128xf32>
    %96 = vector.shape_cast %93 : vector<1x128xf32> to vector<1x1x128xf32>
    tpu.vector_store %arg6[%c0_89, %c1_90, %c0_91], %96 {strides = array<i32>} : memref<1x2x128xf32, #tpu.memory_space<vmem>>, vector<1x1x128xf32>,
    %97 = vector.shape_cast %76 : vector<128x128xf32> to vector<8x16x128xf32>
    %98 = arith.truncf %97 : vector<8x16x128xf32> to vector<8x16x128xbf16>
    %c0_92 = arith.constant 0 : index
    %c0_93 = arith.constant 0 : index
    %c0_94 = arith.constant 0 : index
    %c0_95 = arith.constant 0 : index
    %99 = vector.load %arg5[%c0_92, %c0_93, %c0_94, %c0_95] : memref<1x8x16x128xbf16, #tpu.memory_space<vmem>>, vector<1x8x16x128xbf16>
    %100 = vector.shape_cast %99 : vector<1x8x16x128xbf16> to vector<8x16x128xbf16>
    %101 = vector.shape_cast %98 : vector<8x16x128xbf16> to vector<1x8x16x128xbf16>
    tpu.vector_store %arg5[%c0_92, %c0_93, %c0_94, %c0_95], %101 {strides = array<i32>} : memref<1x8x16x128xbf16, #tpu.memory_space<vmem>>, vector<1x8x16x128xbf16>,
    return
  }
  func.func @transform_0(%arg0: i32, %arg1: i32) -> (i32, i32, i32, i32) {
    %c0_i32 = arith.constant 0 : i32
    %c0_i32_0 = arith.constant 0 : i32
    %c0_i32_1 = arith.constant 0 : i32
    %c0_i32_2 = arith.constant 0 : i32
    return %arg0, %c0_i32, %c0_i32_0, %c0_i32_1 : i32, i32, i32, i32
  }
  func.func @transform_1(%arg0: i32, %arg1: i32) -> (i32, i32, i32) {
    %c0_i32 = arith.constant 0 : i32
    %c0_i32_0 = arith.constant 0 : i32
    %c0_i32_1 = arith.constant 0 : i32
    %c0_i32_2 = arith.constant 0 : i32
    return %c0_i32, %c0_i32_0, %c0_i32_1 : i32, i32, i32
  }
  func.func @transform_2(%arg0: i32, %arg1: i32) -> (i32, i32) {
    %c0_i32 = arith.constant 0 : i32
    %c0_i32_0 = arith.constant 0 : i32
    %c0_i32_1 = arith.constant 0 : i32
    return %c0_i32, %c0_i32_0 : i32, i32
  }
  func.func @transform_3(%arg0: i32, %arg1: i32) -> (i32, i32, i32, i32) {
    %c0_i32 = arith.constant 0 : i32
    %c0_i32_0 = arith.constant 0 : i32
    %c0_i32_1 = arith.constant 0 : i32
    return %arg0, %arg1, %c0_i32, %c0_i32_0 : i32, i32, i32, i32
  }
  func.func @transform_4(%arg0: i32, %arg1: i32) -> (i32, i32, i32) {
    %c0_i32 = arith.constant 0 : i32
    %c0_i32_0 = arith.constant 0 : i32
    %c0_i32_1 = arith.constant 0 : i32
    return %arg0, %c0_i32, %c0_i32_0 : i32, i32, i32
  }
}

module attributes {stable_mosaic.version = 11 : i64} {
  func.func @_conv2_kernel(%arg0: i32, %arg1: i32, %arg2: memref<1x16x16x128xbf16, #tpu.memory_space<vmem>>, %arg3: memref<1x128xf32, #tpu.memory_space<vmem>>, %arg4: memref<1x128xf32, #tpu.memory_space<vmem>>, %arg5: memref<9x128x128xbf16, #tpu.memory_space<vmem>>, %arg6: memref<1x128xf32, #tpu.memory_space<vmem>>, %arg7: memref<1x8x16x128xbf16, #tpu.memory_space<vmem>>, %arg8: memref<1x2x128xf32, #tpu.memory_space<vmem>>, %arg9: memref<10x18x128xbf16, #tpu.memory_space<vmem>>) attributes {dimension_semantics = [#tpu.dimension_semantics<parallel>, #tpu.dimension_semantics<arbitrary>], iteration_bounds = array<i64: 2, 2>, scalar_prefetch = 0 : i64, scratch_operands = 1 : i64, tpu.core_type = #tpu.core_type<tc>, window_params = [{transform_indices = @transform_0, window_bounds = array<i64: 1, 16, 16, 128>}, {pipeline_mode = #tpu.pipeline_mode<synchronous>, transform_indices = @transform_1, window_bounds = array<i64: 1, 128>}, {pipeline_mode = #tpu.pipeline_mode<synchronous>, transform_indices = @transform_2, window_bounds = array<i64: 1, 128>}, {pipeline_mode = #tpu.pipeline_mode<synchronous>, transform_indices = @transform_3, window_bounds = array<i64: 9, 128, 128>}, {pipeline_mode = #tpu.pipeline_mode<synchronous>, transform_indices = @transform_4, window_bounds = array<i64: 1, 128>}, {transform_indices = @transform_5, window_bounds = array<i64: 1, 8, 16, 128>}, {transform_indices = @transform_6, window_bounds = array<i64: 1, 2, 128>}]} {
    %c0 = arith.constant 0 : index
    %c0_0 = arith.constant 0 : index
    %0 = vector.load %arg3[%c0, %c0_0] : memref<1x128xf32, #tpu.memory_space<vmem>>, vector<1x128xf32>
    %c0_1 = arith.constant 0 : index
    %c0_2 = arith.constant 0 : index
    %1 = vector.load %arg4[%c0_1, %c0_2] : memref<1x128xf32, #tpu.memory_space<vmem>>, vector<1x128xf32>
    %cst = arith.constant 0.000000e+00 : bf16
    %2 = vector.broadcast %cst : bf16 to vector<1x18x128xbf16>
    %cst_3 = arith.constant 0.000000e+00 : bf16
    %3 = vector.broadcast %cst_3 : bf16 to vector<10x1x128xbf16>
    %c0_4 = arith.constant 0 : index
    %c0_5 = arith.constant 0 : index
    %c0_6 = arith.constant 0 : index
    %4 = vector.load %arg9[%c0_4, %c0_5, %c0_6] : memref<10x18x128xbf16, #tpu.memory_space<vmem>>, vector<1x18x128xbf16>
    tpu.vector_store %arg9[%c0_4, %c0_5, %c0_6], %2 {strides = array<i32>} : memref<10x18x128xbf16, #tpu.memory_space<vmem>>, vector<1x18x128xbf16>,
    %c9 = arith.constant 9 : index
    %c0_7 = arith.constant 0 : index
    %c0_8 = arith.constant 0 : index
    %5 = vector.load %arg9[%c9, %c0_7, %c0_8] : memref<10x18x128xbf16, #tpu.memory_space<vmem>>, vector<1x18x128xbf16>
    tpu.vector_store %arg9[%c9, %c0_7, %c0_8], %2 {strides = array<i32>} : memref<10x18x128xbf16, #tpu.memory_space<vmem>>, vector<1x18x128xbf16>,
    %c0_9 = arith.constant 0 : index
    %c0_10 = arith.constant 0 : index
    %c0_11 = arith.constant 0 : index
    %6 = vector.load %arg9[%c0_9, %c0_10, %c0_11] : memref<10x18x128xbf16, #tpu.memory_space<vmem>>, vector<10x1x128xbf16>
    tpu.vector_store %arg9[%c0_9, %c0_10, %c0_11], %3 {strides = array<i32>} : memref<10x18x128xbf16, #tpu.memory_space<vmem>>, vector<10x1x128xbf16>,
    %c0_12 = arith.constant 0 : index
    %c17 = arith.constant 17 : index
    %c0_13 = arith.constant 0 : index
    %7 = vector.load %arg9[%c0_12, %c17, %c0_13] : memref<10x18x128xbf16, #tpu.memory_space<vmem>>, vector<10x1x128xbf16>
    tpu.vector_store %arg9[%c0_12, %c17, %c0_13], %3 {strides = array<i32>} : memref<10x18x128xbf16, #tpu.memory_space<vmem>>, vector<10x1x128xbf16>,
    %c8_i32 = arith.constant 8 : i32
    %8 = arith.muli %arg1, %c8_i32 : i32
    %9 = tpu.assume_multiple %8, 8 : i32
    %c0_14 = arith.constant 0 : index
    %10 = arith.index_cast %9 : i32 to index
    %c0_15 = arith.constant 0 : index
    %c0_16 = arith.constant 0 : index
    %11 = vector.load %arg2[%c0_14, %10, %c0_15, %c0_16] : memref<1x16x16x128xbf16, #tpu.memory_space<vmem>>, vector<1x8x16x128xbf16>
    %12 = vector.shape_cast %11 : vector<1x8x16x128xbf16> to vector<8x16x128xbf16>
    %13 = arith.extf %12 : vector<8x16x128xbf16> to vector<8x16x128xf32>
    %14 = vector.shape_cast %0 : vector<1x128xf32> to vector<1x1x128xf32>
    %15 = vector.broadcast %14 : vector<1x1x128xf32> to vector<8x16x128xf32>
    %16 = arith.mulf %13, %15 : vector<8x16x128xf32>
    %17 = vector.shape_cast %1 : vector<1x128xf32> to vector<1x1x128xf32>
    %18 = vector.broadcast %17 : vector<1x1x128xf32> to vector<8x16x128xf32>
    %19 = arith.addf %16, %18 : vector<8x16x128xf32>
    %cst_17 = arith.constant 0.000000e+00 : f32
    %20 = vector.broadcast %cst_17 : f32 to vector<8x16x128xf32>
    %21 = arith.maximumf %19, %20 : vector<8x16x128xf32>
    %22 = arith.truncf %21 : vector<8x16x128xf32> to vector<8x16x128xbf16>
    %c1 = arith.constant 1 : index
    %c1_18 = arith.constant 1 : index
    %c0_19 = arith.constant 0 : index
    %23 = vector.load %arg9[%c1, %c1_18, %c0_19] : memref<10x18x128xbf16, #tpu.memory_space<vmem>>, vector<8x16x128xbf16>
    tpu.vector_store %arg9[%c1, %c1_18, %c0_19], %22 {strides = array<i32>} : memref<10x18x128xbf16, #tpu.memory_space<vmem>>, vector<8x16x128xbf16>,
    %c0_i32 = arith.constant 0 : i32
    %24 = arith.cmpi sgt, %arg1, %c0_i32 : i32
    %25 = arith.extui %24 : i1 to i32
    %c0_i32_20 = arith.constant 0 : i32
    %26 = arith.cmpi ne, %25, %c0_i32_20 : i32
    scf.if %26 {
      %c8_i32_101 = arith.constant 8 : i32
      %113 = arith.muli %arg1, %c8_i32_101 : i32
      %c1_i32_102 = arith.constant 1 : i32
      %114 = arith.subi %113, %c1_i32_102 : i32
      %c0_103 = arith.constant 0 : index
      %115 = arith.index_cast %114 : i32 to index
      %c0_104 = arith.constant 0 : index
      %c0_105 = arith.constant 0 : index
      %116 = vector.load %arg2[%c0_103, %115, %c0_104, %c0_105] : memref<1x16x16x128xbf16, #tpu.memory_space<vmem>>, vector<1x1x16x128xbf16>
      %117 = vector.shape_cast %116 : vector<1x1x16x128xbf16> to vector<1x16x128xbf16>
      %118 = arith.extf %117 : vector<1x16x128xbf16> to vector<1x16x128xf32>
      %119 = vector.shape_cast %0 : vector<1x128xf32> to vector<1x1x128xf32>
      %120 = vector.broadcast %119 : vector<1x1x128xf32> to vector<1x16x128xf32>
      %121 = arith.mulf %118, %120 : vector<1x16x128xf32>
      %122 = vector.shape_cast %1 : vector<1x128xf32> to vector<1x1x128xf32>
      %123 = vector.broadcast %122 : vector<1x1x128xf32> to vector<1x16x128xf32>
      %124 = arith.addf %121, %123 : vector<1x16x128xf32>
      %cst_106 = arith.constant 0.000000e+00 : f32
      %125 = vector.broadcast %cst_106 : f32 to vector<1x16x128xf32>
      %126 = arith.maximumf %124, %125 : vector<1x16x128xf32>
      %127 = arith.truncf %126 : vector<1x16x128xf32> to vector<1x16x128xbf16>
      %c0_107 = arith.constant 0 : index
      %c1_108 = arith.constant 1 : index
      %c0_109 = arith.constant 0 : index
      %128 = vector.load %arg9[%c0_107, %c1_108, %c0_109] : memref<10x18x128xbf16, #tpu.memory_space<vmem>>, vector<1x16x128xbf16>
      tpu.vector_store %arg9[%c0_107, %c1_108, %c0_109], %127 {strides = array<i32>} : memref<10x18x128xbf16, #tpu.memory_space<vmem>>, vector<1x16x128xbf16>,
    } else {
    }
    %c1_i32 = arith.constant 1 : i32
    %27 = arith.cmpi slt, %arg1, %c1_i32 : i32
    %28 = arith.extui %27 : i1 to i32
    %c0_i32_21 = arith.constant 0 : i32
    %29 = arith.cmpi ne, %28, %c0_i32_21 : i32
    scf.if %29 {
      %c8_i32_101 = arith.constant 8 : i32
      %113 = arith.muli %arg1, %c8_i32_101 : i32
      %c8_i32_102 = arith.constant 8 : i32
      %114 = arith.addi %113, %c8_i32_102 : i32
      %c0_103 = arith.constant 0 : index
      %115 = arith.index_cast %114 : i32 to index
      %c0_104 = arith.constant 0 : index
      %c0_105 = arith.constant 0 : index
      %116 = vector.load %arg2[%c0_103, %115, %c0_104, %c0_105] : memref<1x16x16x128xbf16, #tpu.memory_space<vmem>>, vector<1x1x16x128xbf16>
      %117 = vector.shape_cast %116 : vector<1x1x16x128xbf16> to vector<1x16x128xbf16>
      %118 = arith.extf %117 : vector<1x16x128xbf16> to vector<1x16x128xf32>
      %119 = vector.shape_cast %0 : vector<1x128xf32> to vector<1x1x128xf32>
      %120 = vector.broadcast %119 : vector<1x1x128xf32> to vector<1x16x128xf32>
      %121 = arith.mulf %118, %120 : vector<1x16x128xf32>
      %122 = vector.shape_cast %1 : vector<1x128xf32> to vector<1x1x128xf32>
      %123 = vector.broadcast %122 : vector<1x1x128xf32> to vector<1x16x128xf32>
      %124 = arith.addf %121, %123 : vector<1x16x128xf32>
      %cst_106 = arith.constant 0.000000e+00 : f32
      %125 = vector.broadcast %cst_106 : f32 to vector<1x16x128xf32>
      %126 = arith.maximumf %124, %125 : vector<1x16x128xf32>
      %127 = arith.truncf %126 : vector<1x16x128xf32> to vector<1x16x128xbf16>
      %c9_107 = arith.constant 9 : index
      %c1_108 = arith.constant 1 : index
      %c0_109 = arith.constant 0 : index
      %128 = vector.load %arg9[%c9_107, %c1_108, %c0_109] : memref<10x18x128xbf16, #tpu.memory_space<vmem>>, vector<1x16x128xbf16>
      tpu.vector_store %arg9[%c9_107, %c1_108, %c0_109], %127 {strides = array<i32>} : memref<10x18x128xbf16, #tpu.memory_space<vmem>>, vector<1x16x128xbf16>,
    } else {
    }
    %cst_22 = arith.constant 0.000000e+00 : f32
    %30 = vector.broadcast %cst_22 : f32 to vector<128x128xf32>
    %c0_23 = arith.constant 0 : index
    %c0_24 = arith.constant 0 : index
    %c0_25 = arith.constant 0 : index
    %31 = vector.load %arg9[%c0_23, %c0_24, %c0_25] : memref<10x18x128xbf16, #tpu.memory_space<vmem>>, vector<8x16x128xbf16>
    %32 = vector.shape_cast %31 : vector<8x16x128xbf16> to vector<128x128xbf16>
    %c0_26 = arith.constant 0 : index
    %c0_27 = arith.constant 0 : index
    %c0_28 = arith.constant 0 : index
    %33 = vector.load %arg5[%c0_26, %c0_27, %c0_28] : memref<9x128x128xbf16, #tpu.memory_space<vmem>>, vector<1x128x128xbf16>
    %34 = vector.shape_cast %33 : vector<1x128x128xbf16> to vector<128x128xbf16>
    %cst_29 = arith.constant dense<0.000000e+00> : vector<128x128xf32>
    %35 = tpu.matmul %32, %34, %cst_29 {dimension_numbers = #tpu.dot_dimension_numbers<[1], [0], [0], [1], [0, 0, 1, 1], [], []>} : vector<128x128xbf16>, vector<128x128xbf16>, vector<128x128xf32> -> vector<128x128xf32>
    %36 = arith.addf %30, %35 : vector<128x128xf32>
    %c0_30 = arith.constant 0 : index
    %c1_31 = arith.constant 1 : index
    %c0_32 = arith.constant 0 : index
    %37 = vector.load %arg9[%c0_30, %c1_31, %c0_32] : memref<10x18x128xbf16, #tpu.memory_space<vmem>>, vector<8x16x128xbf16>
    %38 = vector.shape_cast %37 : vector<8x16x128xbf16> to vector<128x128xbf16>
    %c1_33 = arith.constant 1 : index
    %c0_34 = arith.constant 0 : index
    %c0_35 = arith.constant 0 : index
    %39 = vector.load %arg5[%c1_33, %c0_34, %c0_35] : memref<9x128x128xbf16, #tpu.memory_space<vmem>>, vector<1x128x128xbf16>
    %40 = vector.shape_cast %39 : vector<1x128x128xbf16> to vector<128x128xbf16>
    %cst_36 = arith.constant dense<0.000000e+00> : vector<128x128xf32>
    %41 = tpu.matmul %38, %40, %cst_36 {dimension_numbers = #tpu.dot_dimension_numbers<[1], [0], [0], [1], [0, 0, 1, 1], [], []>} : vector<128x128xbf16>, vector<128x128xbf16>, vector<128x128xf32> -> vector<128x128xf32>
    %42 = arith.addf %36, %41 : vector<128x128xf32>
    %c0_37 = arith.constant 0 : index
    %c2 = arith.constant 2 : index
    %c0_38 = arith.constant 0 : index
    %43 = vector.load %arg9[%c0_37, %c2, %c0_38] : memref<10x18x128xbf16, #tpu.memory_space<vmem>>, vector<8x16x128xbf16>
    %44 = vector.shape_cast %43 : vector<8x16x128xbf16> to vector<128x128xbf16>
    %c2_39 = arith.constant 2 : index
    %c0_40 = arith.constant 0 : index
    %c0_41 = arith.constant 0 : index
    %45 = vector.load %arg5[%c2_39, %c0_40, %c0_41] : memref<9x128x128xbf16, #tpu.memory_space<vmem>>, vector<1x128x128xbf16>
    %46 = vector.shape_cast %45 : vector<1x128x128xbf16> to vector<128x128xbf16>
    %cst_42 = arith.constant dense<0.000000e+00> : vector<128x128xf32>
    %47 = tpu.matmul %44, %46, %cst_42 {dimension_numbers = #tpu.dot_dimension_numbers<[1], [0], [0], [1], [0, 0, 1, 1], [], []>} : vector<128x128xbf16>, vector<128x128xbf16>, vector<128x128xf32> -> vector<128x128xf32>
    %48 = arith.addf %42, %47 : vector<128x128xf32>
    %c1_43 = arith.constant 1 : index
    %c0_44 = arith.constant 0 : index
    %c0_45 = arith.constant 0 : index
    %49 = vector.load %arg9[%c1_43, %c0_44, %c0_45] : memref<10x18x128xbf16, #tpu.memory_space<vmem>>, vector<8x16x128xbf16>
    %50 = vector.shape_cast %49 : vector<8x16x128xbf16> to vector<128x128xbf16>
    %c3 = arith.constant 3 : index
    %c0_46 = arith.constant 0 : index
    %c0_47 = arith.constant 0 : index
    %51 = vector.load %arg5[%c3, %c0_46, %c0_47] : memref<9x128x128xbf16, #tpu.memory_space<vmem>>, vector<1x128x128xbf16>
    %52 = vector.shape_cast %51 : vector<1x128x128xbf16> to vector<128x128xbf16>
    %cst_48 = arith.constant dense<0.000000e+00> : vector<128x128xf32>
    %53 = tpu.matmul %50, %52, %cst_48 {dimension_numbers = #tpu.dot_dimension_numbers<[1], [0], [0], [1], [0, 0, 1, 1], [], []>} : vector<128x128xbf16>, vector<128x128xbf16>, vector<128x128xf32> -> vector<128x128xf32>
    %54 = arith.addf %48, %53 : vector<128x128xf32>
    %c1_49 = arith.constant 1 : index
    %c1_50 = arith.constant 1 : index
    %c0_51 = arith.constant 0 : index
    %55 = vector.load %arg9[%c1_49, %c1_50, %c0_51] : memref<10x18x128xbf16, #tpu.memory_space<vmem>>, vector<8x16x128xbf16>
    %56 = vector.shape_cast %55 : vector<8x16x128xbf16> to vector<128x128xbf16>
    %c4 = arith.constant 4 : index
    %c0_52 = arith.constant 0 : index
    %c0_53 = arith.constant 0 : index
    %57 = vector.load %arg5[%c4, %c0_52, %c0_53] : memref<9x128x128xbf16, #tpu.memory_space<vmem>>, vector<1x128x128xbf16>
    %58 = vector.shape_cast %57 : vector<1x128x128xbf16> to vector<128x128xbf16>
    %cst_54 = arith.constant dense<0.000000e+00> : vector<128x128xf32>
    %59 = tpu.matmul %56, %58, %cst_54 {dimension_numbers = #tpu.dot_dimension_numbers<[1], [0], [0], [1], [0, 0, 1, 1], [], []>} : vector<128x128xbf16>, vector<128x128xbf16>, vector<128x128xf32> -> vector<128x128xf32>
    %60 = arith.addf %54, %59 : vector<128x128xf32>
    %c1_55 = arith.constant 1 : index
    %c2_56 = arith.constant 2 : index
    %c0_57 = arith.constant 0 : index
    %61 = vector.load %arg9[%c1_55, %c2_56, %c0_57] : memref<10x18x128xbf16, #tpu.memory_space<vmem>>, vector<8x16x128xbf16>
    %62 = vector.shape_cast %61 : vector<8x16x128xbf16> to vector<128x128xbf16>
    %c5 = arith.constant 5 : index
    %c0_58 = arith.constant 0 : index
    %c0_59 = arith.constant 0 : index
    %63 = vector.load %arg5[%c5, %c0_58, %c0_59] : memref<9x128x128xbf16, #tpu.memory_space<vmem>>, vector<1x128x128xbf16>
    %64 = vector.shape_cast %63 : vector<1x128x128xbf16> to vector<128x128xbf16>
    %cst_60 = arith.constant dense<0.000000e+00> : vector<128x128xf32>
    %65 = tpu.matmul %62, %64, %cst_60 {dimension_numbers = #tpu.dot_dimension_numbers<[1], [0], [0], [1], [0, 0, 1, 1], [], []>} : vector<128x128xbf16>, vector<128x128xbf16>, vector<128x128xf32> -> vector<128x128xf32>
    %66 = arith.addf %60, %65 : vector<128x128xf32>
    %c2_61 = arith.constant 2 : index
    %c0_62 = arith.constant 0 : index
    %c0_63 = arith.constant 0 : index
    %67 = vector.load %arg9[%c2_61, %c0_62, %c0_63] : memref<10x18x128xbf16, #tpu.memory_space<vmem>>, vector<8x16x128xbf16>
    %68 = vector.shape_cast %67 : vector<8x16x128xbf16> to vector<128x128xbf16>
    %c6 = arith.constant 6 : index
    %c0_64 = arith.constant 0 : index
    %c0_65 = arith.constant 0 : index
    %69 = vector.load %arg5[%c6, %c0_64, %c0_65] : memref<9x128x128xbf16, #tpu.memory_space<vmem>>, vector<1x128x128xbf16>
    %70 = vector.shape_cast %69 : vector<1x128x128xbf16> to vector<128x128xbf16>
    %cst_66 = arith.constant dense<0.000000e+00> : vector<128x128xf32>
    %71 = tpu.matmul %68, %70, %cst_66 {dimension_numbers = #tpu.dot_dimension_numbers<[1], [0], [0], [1], [0, 0, 1, 1], [], []>} : vector<128x128xbf16>, vector<128x128xbf16>, vector<128x128xf32> -> vector<128x128xf32>
    %72 = arith.addf %66, %71 : vector<128x128xf32>
    %c2_67 = arith.constant 2 : index
    %c1_68 = arith.constant 1 : index
    %c0_69 = arith.constant 0 : index
    %73 = vector.load %arg9[%c2_67, %c1_68, %c0_69] : memref<10x18x128xbf16, #tpu.memory_space<vmem>>, vector<8x16x128xbf16>
    %74 = vector.shape_cast %73 : vector<8x16x128xbf16> to vector<128x128xbf16>
    %c7 = arith.constant 7 : index
    %c0_70 = arith.constant 0 : index
    %c0_71 = arith.constant 0 : index
    %75 = vector.load %arg5[%c7, %c0_70, %c0_71] : memref<9x128x128xbf16, #tpu.memory_space<vmem>>, vector<1x128x128xbf16>
    %76 = vector.shape_cast %75 : vector<1x128x128xbf16> to vector<128x128xbf16>
    %cst_72 = arith.constant dense<0.000000e+00> : vector<128x128xf32>
    %77 = tpu.matmul %74, %76, %cst_72 {dimension_numbers = #tpu.dot_dimension_numbers<[1], [0], [0], [1], [0, 0, 1, 1], [], []>} : vector<128x128xbf16>, vector<128x128xbf16>, vector<128x128xf32> -> vector<128x128xf32>
    %78 = arith.addf %72, %77 : vector<128x128xf32>
    %c2_73 = arith.constant 2 : index
    %c2_74 = arith.constant 2 : index
    %c0_75 = arith.constant 0 : index
    %79 = vector.load %arg9[%c2_73, %c2_74, %c0_75] : memref<10x18x128xbf16, #tpu.memory_space<vmem>>, vector<8x16x128xbf16>
    %80 = vector.shape_cast %79 : vector<8x16x128xbf16> to vector<128x128xbf16>
    %c8 = arith.constant 8 : index
    %c0_76 = arith.constant 0 : index
    %c0_77 = arith.constant 0 : index
    %81 = vector.load %arg5[%c8, %c0_76, %c0_77] : memref<9x128x128xbf16, #tpu.memory_space<vmem>>, vector<1x128x128xbf16>
    %82 = vector.shape_cast %81 : vector<1x128x128xbf16> to vector<128x128xbf16>
    %cst_78 = arith.constant dense<0.000000e+00> : vector<128x128xf32>
    %83 = tpu.matmul %80, %82, %cst_78 {dimension_numbers = #tpu.dot_dimension_numbers<[1], [0], [0], [1], [0, 0, 1, 1], [], []>} : vector<128x128xbf16>, vector<128x128xbf16>, vector<128x128xf32> -> vector<128x128xf32>
    %84 = arith.addf %78, %83 : vector<128x128xf32>
    %c0_79 = arith.constant 0 : index
    %c0_80 = arith.constant 0 : index
    %85 = vector.load %arg6[%c0_79, %c0_80] : memref<1x128xf32, #tpu.memory_space<vmem>>, vector<1x128xf32>
    %86 = vector.broadcast %85 : vector<1x128xf32> to vector<128x128xf32>
    %87 = arith.addf %84, %86 : vector<128x128xf32>
    %c0_i32_81 = arith.constant 0 : i32
    %88 = arith.cmpi eq, %arg1, %c0_i32_81 : i32
    %89 = arith.extui %88 : i1 to i32
    %c0_i32_82 = arith.constant 0 : i32
    %90 = arith.cmpi ne, %89, %c0_i32_82 : i32
    scf.if %90 {
      %cst_101 = arith.constant 0.000000e+00 : f32
      %113 = vector.broadcast %cst_101 : f32 to vector<1x2x128xf32>
      %c0_102 = arith.constant 0 : index
      %c0_103 = arith.constant 0 : index
      %c0_104 = arith.constant 0 : index
      %114 = vector.load %arg8[%c0_102, %c0_103, %c0_104] : memref<1x2x128xf32, #tpu.memory_space<vmem>>, vector<1x2x128xf32>
      tpu.vector_store %arg8[%c0_102, %c0_103, %c0_104], %113 {strides = array<i32>} : memref<1x2x128xf32, #tpu.memory_space<vmem>>, vector<1x2x128xf32>,
    } else {
    }
    %c0_83 = arith.constant 0 : index
    %c0_84 = arith.constant 0 : index
    %c0_85 = arith.constant 0 : index
    %91 = vector.load %arg8[%c0_83, %c0_84, %c0_85] : memref<1x2x128xf32, #tpu.memory_space<vmem>>, vector<1x1x128xf32>
    %92 = vector.shape_cast %91 : vector<1x1x128xf32> to vector<1x128xf32>
    %cst_86 = arith.constant dense<0.000000e+00> : vector<128xf32>
    %93 = vector.multi_reduction <add>, %87, %cst_86 [0] : vector<128x128xf32> to vector<128xf32>
    %94 = vector.shape_cast %93 : vector<128xf32> to vector<1x128xf32>
    %95 = arith.addf %92, %94 : vector<1x128xf32>
    %c0_87 = arith.constant 0 : index
    %c0_88 = arith.constant 0 : index
    %c0_89 = arith.constant 0 : index
    %96 = vector.load %arg8[%c0_87, %c0_88, %c0_89] : memref<1x2x128xf32, #tpu.memory_space<vmem>>, vector<1x1x128xf32>
    %97 = vector.shape_cast %96 : vector<1x1x128xf32> to vector<1x128xf32>
    %98 = vector.shape_cast %95 : vector<1x128xf32> to vector<1x1x128xf32>
    tpu.vector_store %arg8[%c0_87, %c0_88, %c0_89], %98 {strides = array<i32>} : memref<1x2x128xf32, #tpu.memory_space<vmem>>, vector<1x1x128xf32>,
    %c0_90 = arith.constant 0 : index
    %c1_91 = arith.constant 1 : index
    %c0_92 = arith.constant 0 : index
    %99 = vector.load %arg8[%c0_90, %c1_91, %c0_92] : memref<1x2x128xf32, #tpu.memory_space<vmem>>, vector<1x1x128xf32>
    %100 = vector.shape_cast %99 : vector<1x1x128xf32> to vector<1x128xf32>
    %101 = arith.mulf %87, %87 : vector<128x128xf32>
    %cst_93 = arith.constant dense<0.000000e+00> : vector<128xf32>
    %102 = vector.multi_reduction <add>, %101, %cst_93 [0] : vector<128x128xf32> to vector<128xf32>
    %103 = vector.shape_cast %102 : vector<128xf32> to vector<1x128xf32>
    %104 = arith.addf %100, %103 : vector<1x128xf32>
    %c0_94 = arith.constant 0 : index
    %c1_95 = arith.constant 1 : index
    %c0_96 = arith.constant 0 : index
    %105 = vector.load %arg8[%c0_94, %c1_95, %c0_96] : memref<1x2x128xf32, #tpu.memory_space<vmem>>, vector<1x1x128xf32>
    %106 = vector.shape_cast %105 : vector<1x1x128xf32> to vector<1x128xf32>
    %107 = vector.shape_cast %104 : vector<1x128xf32> to vector<1x1x128xf32>
    tpu.vector_store %arg8[%c0_94, %c1_95, %c0_96], %107 {strides = array<i32>} : memref<1x2x128xf32, #tpu.memory_space<vmem>>, vector<1x1x128xf32>,
    %108 = vector.shape_cast %87 : vector<128x128xf32> to vector<8x16x128xf32>
    %109 = arith.truncf %108 : vector<8x16x128xf32> to vector<8x16x128xbf16>
    %c0_97 = arith.constant 0 : index
    %c0_98 = arith.constant 0 : index
    %c0_99 = arith.constant 0 : index
    %c0_100 = arith.constant 0 : index
    %110 = vector.load %arg7[%c0_97, %c0_98, %c0_99, %c0_100] : memref<1x8x16x128xbf16, #tpu.memory_space<vmem>>, vector<1x8x16x128xbf16>
    %111 = vector.shape_cast %110 : vector<1x8x16x128xbf16> to vector<8x16x128xbf16>
    %112 = vector.shape_cast %109 : vector<8x16x128xbf16> to vector<1x8x16x128xbf16>
    tpu.vector_store %arg7[%c0_97, %c0_98, %c0_99, %c0_100], %112 {strides = array<i32>} : memref<1x8x16x128xbf16, #tpu.memory_space<vmem>>, vector<1x8x16x128xbf16>,
    return
  }
  func.func @transform_0(%arg0: i32, %arg1: i32) -> (i32, i32, i32, i32) {
    %c0_i32 = arith.constant 0 : i32
    %c0_i32_0 = arith.constant 0 : i32
    %c0_i32_1 = arith.constant 0 : i32
    %c0_i32_2 = arith.constant 0 : i32
    return %arg0, %c0_i32, %c0_i32_0, %c0_i32_1 : i32, i32, i32, i32
  }
  func.func @transform_1(%arg0: i32, %arg1: i32) -> (i32, i32) {
    %c0_i32 = arith.constant 0 : i32
    %c0_i32_0 = arith.constant 0 : i32
    %c0_i32_1 = arith.constant 0 : i32
    return %c0_i32, %c0_i32_0 : i32, i32
  }
  func.func @transform_2(%arg0: i32, %arg1: i32) -> (i32, i32) {
    %c0_i32 = arith.constant 0 : i32
    %c0_i32_0 = arith.constant 0 : i32
    %c0_i32_1 = arith.constant 0 : i32
    return %c0_i32, %c0_i32_0 : i32, i32
  }
  func.func @transform_3(%arg0: i32, %arg1: i32) -> (i32, i32, i32) {
    %c0_i32 = arith.constant 0 : i32
    %c0_i32_0 = arith.constant 0 : i32
    %c0_i32_1 = arith.constant 0 : i32
    %c0_i32_2 = arith.constant 0 : i32
    return %c0_i32, %c0_i32_0, %c0_i32_1 : i32, i32, i32
  }
  func.func @transform_4(%arg0: i32, %arg1: i32) -> (i32, i32) {
    %c0_i32 = arith.constant 0 : i32
    %c0_i32_0 = arith.constant 0 : i32
    %c0_i32_1 = arith.constant 0 : i32
    return %c0_i32, %c0_i32_0 : i32, i32
  }
  func.func @transform_5(%arg0: i32, %arg1: i32) -> (i32, i32, i32, i32) {
    %c0_i32 = arith.constant 0 : i32
    %c0_i32_0 = arith.constant 0 : i32
    %c0_i32_1 = arith.constant 0 : i32
    return %arg0, %arg1, %c0_i32, %c0_i32_0 : i32, i32, i32, i32
  }
  func.func @transform_6(%arg0: i32, %arg1: i32) -> (i32, i32, i32) {
    %c0_i32 = arith.constant 0 : i32
    %c0_i32_0 = arith.constant 0 : i32
    %c0_i32_1 = arith.constant 0 : i32
    return %arg0, %c0_i32, %c0_i32_0 : i32, i32, i32
  }
}

module attributes {stable_mosaic.version = 11 : i64} {
  func.func @_bn2_kernel(%arg0: i32, %arg1: i32, %arg2: memref<1x8x16x128xbf16, #tpu.memory_space<vmem>>, %arg3: memref<1x128xf32, #tpu.memory_space<vmem>>, %arg4: memref<1x128xf32, #tpu.memory_space<vmem>>, %arg5: memref<1x8x16x8xf32, #tpu.memory_space<vmem>>) attributes {dimension_semantics = [#tpu.dimension_semantics<parallel>, #tpu.dimension_semantics<parallel>], iteration_bounds = array<i64: 2, 2>, scalar_prefetch = 0 : i64, scratch_operands = 0 : i64, tpu.core_type = #tpu.core_type<tc>, window_params = [{transform_indices = @transform_0, window_bounds = array<i64: 1, 8, 16, 128>}, {pipeline_mode = #tpu.pipeline_mode<synchronous>, transform_indices = @transform_1, window_bounds = array<i64: 1, 128>}, {pipeline_mode = #tpu.pipeline_mode<synchronous>, transform_indices = @transform_2, window_bounds = array<i64: 1, 128>}, {transform_indices = @transform_3, window_bounds = array<i64: 1, 8, 16, 8>}]} {
    %c0 = arith.constant 0 : index
    %c0_0 = arith.constant 0 : index
    %c0_1 = arith.constant 0 : index
    %c0_2 = arith.constant 0 : index
    %0 = vector.load %arg2[%c0, %c0_0, %c0_1, %c0_2] : memref<1x8x16x128xbf16, #tpu.memory_space<vmem>>, vector<1x8x16x128xbf16>
    %1 = vector.shape_cast %0 : vector<1x8x16x128xbf16> to vector<8x16x128xbf16>
    %2 = arith.extf %1 : vector<8x16x128xbf16> to vector<8x16x128xf32>
    %c0_3 = arith.constant 0 : index
    %c0_4 = arith.constant 0 : index
    %3 = vector.load %arg3[%c0_3, %c0_4] : memref<1x128xf32, #tpu.memory_space<vmem>>, vector<1x128xf32>
    %4 = vector.shape_cast %3 : vector<1x128xf32> to vector<1x1x128xf32>
    %5 = vector.broadcast %4 : vector<1x1x128xf32> to vector<8x16x128xf32>
    %6 = arith.mulf %2, %5 : vector<8x16x128xf32>
    %c0_5 = arith.constant 0 : index
    %c0_6 = arith.constant 0 : index
    %7 = vector.load %arg4[%c0_5, %c0_6] : memref<1x128xf32, #tpu.memory_space<vmem>>, vector<1x128xf32>
    %8 = vector.shape_cast %7 : vector<1x128xf32> to vector<1x1x128xf32>
    %9 = vector.broadcast %8 : vector<1x1x128xf32> to vector<8x16x128xf32>
    %10 = arith.addf %6, %9 : vector<8x16x128xf32>
    %cst = arith.constant 0.000000e+00 : f32
    %11 = vector.broadcast %cst : f32 to vector<8x16x128xf32>
    %12 = arith.maximumf %10, %11 : vector<8x16x128xf32>
    %13 = vector.extract_strided_slice %12 {offsets = [0, 0, 0], sizes = [8, 16, 8], strides = [1, 1, 1]} : vector<8x16x128xf32> to vector<8x16x8xf32>
    %c0_7 = arith.constant 0 : index
    %c0_8 = arith.constant 0 : index
    %c0_9 = arith.constant 0 : index
    %c0_10 = arith.constant 0 : index
    %14 = vector.load %arg5[%c0_7, %c0_8, %c0_9, %c0_10] : memref<1x8x16x8xf32, #tpu.memory_space<vmem>>, vector<1x8x16x8xf32>
    %15 = vector.shape_cast %14 : vector<1x8x16x8xf32> to vector<8x16x8xf32>
    %16 = vector.shape_cast %13 : vector<8x16x8xf32> to vector<1x8x16x8xf32>
    tpu.vector_store %arg5[%c0_7, %c0_8, %c0_9, %c0_10], %16 {strides = array<i32>} : memref<1x8x16x8xf32, #tpu.memory_space<vmem>>, vector<1x8x16x8xf32>,
    return
  }
  func.func @transform_0(%arg0: i32, %arg1: i32) -> (i32, i32, i32, i32) {
    %c0_i32 = arith.constant 0 : i32
    %c0_i32_0 = arith.constant 0 : i32
    %c0_i32_1 = arith.constant 0 : i32
    return %arg0, %arg1, %c0_i32, %c0_i32_0 : i32, i32, i32, i32
  }
  func.func @transform_1(%arg0: i32, %arg1: i32) -> (i32, i32) {
    %c0_i32 = arith.constant 0 : i32
    %c0_i32_0 = arith.constant 0 : i32
    %c0_i32_1 = arith.constant 0 : i32
    return %c0_i32, %c0_i32_0 : i32, i32
  }
  func.func @transform_2(%arg0: i32, %arg1: i32) -> (i32, i32) {
    %c0_i32 = arith.constant 0 : i32
    %c0_i32_0 = arith.constant 0 : i32
    %c0_i32_1 = arith.constant 0 : i32
    return %c0_i32, %c0_i32_0 : i32, i32
  }
  func.func @transform_3(%arg0: i32, %arg1: i32) -> (i32, i32, i32, i32) {
    %c0_i32 = arith.constant 0 : i32
    %c0_i32_0 = arith.constant 0 : i32
    %c0_i32_1 = arith.constant 0 : i32
    return %arg0, %arg1, %c0_i32, %c0_i32_0 : i32, i32, i32, i32
  }
}

</mosaic_0001>

<llo_original>
// kernel: double_conv_nhwc.5
$region0: #{double_conv_nhwc.5}
  #allocation0 [shape = 'u32[]', space=smem, size = 0x4, offset = 0x4, fixed_abs, tag = 'smem constant byte address 0x4 - core index']
  #allocation1 [shape = 'u32[144,128]{1,0:T(1,128)}', space=vmem, size = 0x12000, scoped, tag = 'internal scratch']
  %s0 = inlined_call_operand.vmem [shape: bf16[2,16,16,128], index: 0, kind: input, shape index: {}]
  %s1 = inlined_call_operand.vmem [shape: f32[1,128], index: 1, kind: input, shape index: {}]
  %s2 = inlined_call_operand.vmem [shape: f32[1,128], index: 2, kind: input, shape index: {}]
  %s3 = inlined_call_operand.vmem [shape: f32[2,16,16,8], index: 3, kind: output, shape index: {}]
  %s4 = sld [smem:[#allocation0]]
  $region45: #{double_conv_nhwc.5} parent=0
    _
  %s6 = ssub.s32 1, %s4
  %s7 = scalar_select 0, %s6, %s4
  loop: start=0, step=1, limit=6
  $region2: #{double_conv_nhwc.5} parent=0 // loop_pre_header
    _
  $region3: #{double_conv_nhwc.5} parent=0 // loop_header
    %s9 = sphi 0, %s13
    %p10 = scmp.ge.s32.totalorder %s9, 6
    %s16 = sphi 0, %s28
    %s17 = sphi 0, %s24
    %s18 = sphi 0, %s16
    %s19 = sphi 0, %s17
    %s20 = sphi 0, %s18
    %s21 = sphi 0, %s19
    %s33 = sphi 0, %s35
    %s36 = sphi 0, %s33
    %s37 = sphi 0, %s36
    %s53 = sphi 0, %s37
    %s57 = sphi 0, %s57
    %s59 = sphi 0, %s57
    %s60 = sphi 0, %s59
    %s74 = sphi 0, %s60
    %s78 = sphi 0, %s78
    %s80 = sphi 0, %s78
    %s81 = sphi 0, %s80
    %s95 = sphi 0, %s81
    %s103 = sphi 0, %s105
    %s106 = sphi 0, %s103
    %s107 = sphi 0, %s106
    %s123 = sphi 0, %s107
  $region4: #{double_conv_nhwc.5} parent=0 // loop_header_branch
    %12 = sbr.rel (%p10) target = $region8
  $region5: #{double_conv_nhwc.5} parent=0 // loop_body
    %s14 = ssub.s32 %s9, 1
    %s15 = ssub.s32 %s9, 2
    %s22 = sadd.s32 1, %s17
    %p23 = scmp.ge.s32.totalorder %s22, 2
    %s24 = scalar_select %p23, 0, %s22
    %s25 = sadd.s32 1, %s16
    %s26 = scalar_select %p23, %s25, %s16
    %p27 = scmp.ge.s32.totalorder %s26, 2
    %s28 = scalar_select %p27, 0, %s26
    %s29 = ssub.s32 %s16, %s28
    %s30 = ssub.s32 %s17, %s24
    %s31 = sor.u32 %s29, %s30
    %p32 = scmp.eq.s32.totalorder %s31, 0
    %s34 = sadd.s32 %s33, 1
    %s35 = scalar_select %p32, %s33, %s34
    %p38 = pneg %p32
    %p39 = scmp.eq.s32.totalorder %s9, 3
    %p40 = por %p38, %p39
    %p41 = scmp.ne.s32.totalorder %s33, %s36
    %p42 = scmp.eq.s32.totalorder %s9, 0
    %p43 = por %p41, %p42
    %p44 = scmp.ne.s32.totalorder %s33, %s36
    %p45 = scmp.eq.s32.totalorder %s14, 3
    %p46 = por %p44, %p45
    %p47 = scmp.ne.s32.totalorder %s36, %s37
    %p48 = scmp.eq.s32.totalorder %s14, 0
    %p49 = por %p47, %p48
    %p50 = scmp.ne.s32.totalorder %s36, %s37
    %p51 = scmp.eq.s32.totalorder %s15, 3
    %p52 = por %p50, %p51
    %p54 = scmp.ne.s32.totalorder %s37, %s53
    %p55 = scmp.eq.s32.totalorder %s15, 0
    %p56 = por %p54, %p55
    %s58 = sadd.s32 %s57, 1
    %p61 = scmp.eq.s32.totalorder %s9, 3
    %p62 = scmp.ne.s32.totalorder %s57, %s59
    %p63 = scmp.eq.s32.totalorder %s9, 0
    %p64 = por %p62, %p63
    %p65 = scmp.ne.s32.totalorder %s57, %s59
    %p66 = scmp.eq.s32.totalorder %s14, 3
    %p67 = por %p65, %p66
    %p68 = scmp.ne.s32.totalorder %s59, %s60
    %p69 = scmp.eq.s32.totalorder %s14, 0
    %p70 = por %p68, %p69
    %p71 = scmp.ne.s32.totalorder %s59, %s60
    %p72 = scmp.eq.s32.totalorder %s15, 3
    %p73 = por %p71, %p72
    %p75 = scmp.ne.s32.totalorder %s60, %s74
    %p76 = scmp.eq.s32.totalorder %s15, 0
    %p77 = por %p75, %p76
    %s79 = sadd.s32 %s78, 1
    %p82 = scmp.eq.s32.totalorder %s9, 3
    %p83 = scmp.ne.s32.totalorder %s78, %s80
    %p84 = scmp.eq.s32.totalorder %s9, 0
    %p85 = por %p83, %p84
    %p86 = scmp.ne.s32.totalorder %s78, %s80
    %p87 = scmp.eq.s32.totalorder %s14, 3
    %p88 = por %p86, %p87
    %p89 = scmp.ne.s32.totalorder %s80, %s81
    %p90 = scmp.eq.s32.totalorder %s14, 0
    %p91 = por %p89, %p90
    %p92 = scmp.ne.s32.totalorder %s80, %s81
    %p93 = scmp.eq.s32.totalorder %s15, 3
    %p94 = por %p92, %p93
    %p96 = scmp.ne.s32.totalorder %s81, %s95
    %p97 = scmp.eq.s32.totalorder %s15, 0
    %p98 = por %p96, %p97
    %s99 = ssub.s32 %s16, %s28
    %s100 = ssub.s32 %s17, %s24
    %s101 = sor.u32 %s99, %s100
    %p102 = scmp.eq.s32.totalorder %s101, 0
    %s104 = sadd.s32 %s103, 1
    %s105 = scalar_select %p102, %s103, %s104
    %p108 = pneg %p102
    %p109 = scmp.eq.s32.totalorder %s9, 3
    %p110 = por %p108, %p109
    %p111 = scmp.ne.s32.totalorder %s103, %s106
    %p112 = scmp.eq.s32.totalorder %s9, 0
    %p113 = por %p111, %p112
    %p114 = scmp.ne.s32.totalorder %s103, %s106
    %p115 = scmp.eq.s32.totalorder %s14, 3
    %p116 = por %p114, %p115
    %p117 = scmp.ne.s32.totalorder %s106, %s107
    %p118 = scmp.eq.s32.totalorder %s14, 0
    %p119 = por %p117, %p118
    %p120 = scmp.ne.s32.totalorder %s106, %s107
    %p121 = scmp.eq.s32.totalorder %s15, 3
    %p122 = por %p120, %p121
    %p124 = scmp.ne.s32.totalorder %s107, %s123
    %p125 = scmp.eq.s32.totalorder %s15, 0
    %p126 = por %p124, %p125
    %p127 = scmp.le.s32.totalorder 1, %s9
    %p128 = scmp.lt.s32.totalorder %s9, 5
    %p129 = pnand %p127, %p128
    %p130 = pneg %p129
    // Predicated region
    $region9: #{double_conv_nhwc.5} parent=5 // pred_check
      _
    $region10: #{double_conv_nhwc.5} parent=5 // pred_check_branch
      %132 = sbr.rel (%p129) target = $region12
    $region11: #{double_conv_nhwc.5} parent=5 // pred_region
      %s133 = ssub.s32 %s9, 1
      // Predicated region
      $region13: #{double_conv_nhwc.5} parent=11 // pred_check
        %p134 = pneg %p70
      $region14: #{double_conv_nhwc.5} parent=11 // pred_check_branch
        %136 = sbr.rel (%p134) target = $region16
      $region15: #{double_conv_nhwc.5} parent=11 // pred_region
        _
      $region16: #{double_conv_nhwc.5} parent=11 // pred_fallthru
        _
      // Predicated region
      $region17: #{double_conv_nhwc.5} parent=11 // pred_check
        %p137 = pneg %p91
      $region18: #{double_conv_nhwc.5} parent=11 // pred_check_branch
        %139 = sbr.rel (%p137) target = $region20
      $region19: #{double_conv_nhwc.5} parent=11 // pred_region
        _
      $region20: #{double_conv_nhwc.5} parent=11 // pred_fallthru
        _
    $region12: #{double_conv_nhwc.5} parent=5 // pred_fallthru
      _
    %p140 = scmp.lt.s32.totalorder %s9, 4
    // Predicated region
    $region21: #{double_conv_nhwc.5} parent=5 // pred_check
      %p141 = pneg %p140
    $region22: #{double_conv_nhwc.5} parent=5 // pred_check_branch
      %143 = sbr.rel (%p141) target = $region24
    $region23: #{double_conv_nhwc.5} parent=5 // pred_region
      // Predicated region
      $region25: #{double_conv_nhwc.5} parent=23 // pred_check
        %p144 = pneg %p43
      $region26: #{double_conv_nhwc.5} parent=23 // pred_check_branch
        %146 = sbr.rel (%p144) target = $region28
      $region27: #{double_conv_nhwc.5} parent=23 // pred_region
        %s147 = smul.u32 8, %s17
        %p148 = scmp.lt.s32.totalorder %s16, 1
        %s149 = scalar_select %p148, %s16, 1
        %p150 = scmp.lt.s32.totalorder %s147, 15
        %s151 = scalar_select %p150, %s147, 15
        %s152 = smul.addr %s151, 2
        %s153 = smul.addr %s149, 32
        %s154 = sadd.s32 %s152, %s153
        %s155 = smul.addr %s154, 4
        %s156 = scalar_lea.vmem %s0, %s155
        %s157 = smul.u32 8, %s17
      $region28: #{double_conv_nhwc.5} parent=23 // pred_fallthru
        _
    $region24: #{double_conv_nhwc.5} parent=5 // pred_fallthru
      _
    %p158 = scmp.le.s32.totalorder 1, %s9
    %p159 = scmp.lt.s32.totalorder %s9, 5
    %p160 = pnand %p158, %p159
    %p161 = pneg %p160
    // Predicated region
    $region29: #{double_conv_nhwc.5} parent=5 // pred_check
      _
    $region30: #{double_conv_nhwc.5} parent=5 // pred_check_branch
      %163 = sbr.rel (%p160) target = $region32
    $region31: #{double_conv_nhwc.5} parent=5 // pred_region
      %s164 = ssub.s32 %s9, 1
      %s165 = smul.u32 8, %s19
      %p166 = scmp.lt.s32.totalorder %s18, 1
      %s167 = scalar_select %p166, %s18, 1
      %p168 = scmp.lt.s32.totalorder %s165, 15
      %s169 = scalar_select %p168, %s165, 15
      %s170 = smul.addr %s169, 2
      %s171 = smul.addr %s167, 32
      %s172 = sadd.s32 %s170, %s171
      %s173 = smul.addr %s172, 4
      %s174 = scalar_lea.vmem %s0, %s173
      %p175 = pneg %p49
      %p176 = pneg %p46
      %p177 = pneg %p70
      %p178 = pneg %p67
      %p179 = pneg %p91
      %p180 = pneg %p88
      %p181 = pneg %p119
      %p182 = pneg %p116
      %s183 = smul.u32 8, %s19
      %p184 = scmp.lt.s32.totalorder %s18, 1
      %s185 = scalar_select %p184, %s18, 1
      %p186 = scmp.lt.s32.totalorder %s183, 15
      %s187 = scalar_select %p186, %s183, 15
      %s188 = smul.addr %s187, 2
      %s189 = smul.addr %s185, 32
      %s190 = sadd.s32 %s188, %s189
      %s191 = smul.addr %s190, 8
      %s192 = scalar_lea.vmem %s3, %s191
      %s193 = smul.u32 8, %s19
      %p194 = scmp.lt.s32.totalorder %s18, 1
      %s195 = scalar_select %p194, %s18, 1
      %p196 = scmp.lt.s32.totalorder %s193, 15
      %s197 = scalar_select %p196, %s193, 15
      %s198 = smul.addr %s197, 2
      %s199 = smul.addr %s195, 32
      %s200 = sadd.s32 %s198, %s199
      %s201 = smul.addr %s200, 4
      %s202 = scalar_lea.vmem %s0, %s201
      %s203 = smul.u32 8, %s19
      %s204 = smul.u32 8, %s19
      %p205 = scmp.lt.s32.totalorder %s18, 1
      %s206 = scalar_select %p205, %s18, 1
      %p207 = scmp.lt.s32.totalorder %s204, 15
      %s208 = scalar_select %p207, %s204, 15
      %s209 = smul.addr %s208, 2
      %s210 = smul.addr %s206, 32
      %s211 = sadd.s32 %s209, %s210
      %s212 = smul.addr %s211, 8
      %s213 = scalar_lea.vmem %s3, %s212
      %s214 = smul.u32 8, %s19
      %v215 = vld [vmem:[%s202] sm:$0xf]
      %v216 = vld [vmem:[%s202 + $0x4] sm:$0xf]
      %v217 = vld [vmem:[%s202 + $0x8] sm:$0xf]
      %v218 = vld [vmem:[%s202 + $0xc] sm:$0xf]
      %v219 = vld [vmem:[%s202 + $0x10] sm:$0xf]
      %v220 = vld [vmem:[%s202 + $0x14] sm:$0xf]
      %v221 = vld [vmem:[%s202 + $0x18] sm:$0xf]
      %v222 = vld [vmem:[%s202 + $0x1c] sm:$0xf]
      %v223 = vld [vmem:[%s202 + $0x20] sm:$0xf]
      %v224 = vld [vmem:[%s202 + $0x24] sm:$0xf]
      %v225 = vld [vmem:[%s202 + $0x28] sm:$0xf]
      %v226 = vld [vmem:[%s202 + $0x2c] sm:$0xf]
      %v227 = vld [vmem:[%s202 + $0x30] sm:$0xf]
      %v228 = vld [vmem:[%s202 + $0x34] sm:$0xf]
      %v229 = vld [vmem:[%s202 + $0x38] sm:$0xf]
      %v230 = vld [vmem:[%s202 + $0x3c] sm:$0xf]
      %v231 = vunpack.c.l.bf16 %v215
      %v232 = vunpack.c.l.bf16 %v216
      %v233 = vunpack.c.l.bf16 %v217
      %v234 = vunpack.c.l.bf16 %v218
      %v235 = vunpack.c.l.bf16 %v219
      %v236 = vunpack.c.l.bf16 %v220
      %v237 = vunpack.c.l.bf16 %v221
      %v238 = vunpack.c.l.bf16 %v222
      %v239 = vunpack.c.l.bf16 %v223
      %v240 = vunpack.c.l.bf16 %v224
      %v241 = vunpack.c.l.bf16 %v225
      %v242 = vunpack.c.l.bf16 %v226
      %v243 = vunpack.c.l.bf16 %v227
      %v244 = vunpack.c.l.bf16 %v228
      %v245 = vunpack.c.l.bf16 %v229
      %v246 = vunpack.c.l.bf16 %v230
      %v247 = vld [vmem:[%s1] sm:$0x1]
      %v249 = vlaneseq
      %v250 = vshrl.u32 %v249, 7
      %v251 = vsub.s32 0, %v250
      %v252 = vrot.slane %v247, %v251
      %v254 = vmul.f32 %v231, %v252
      %v255 = vmul.f32 %v232, %v252
      %v256 = vmul.f32 %v233, %v252
      %v257 = vmul.f32 %v234, %v252
      %v258 = vmul.f32 %v235, %v252
      %v259 = vmul.f32 %v236, %v252
      %v260 = vmul.f32 %v237, %v252
      %v261 = vmul.f32 %v238, %v252
      %v262 = vmul.f32 %v239, %v252
      %v263 = vmul.f32 %v240, %v252
      %v264 = vmul.f32 %v241, %v252
      %v265 = vmul.f32 %v242, %v252
      %v266 = vmul.f32 %v243, %v252
      %v267 = vmul.f32 %v244, %v252
      %v268 = vmul.f32 %v245, %v252
      %v269 = vmul.f32 %v246, %v252
      %v270 = vld [vmem:[%s2] sm:$0x1]
      %v272 = vlaneseq
      %v273 = vshrl.u32 %v272, 7
      %v274 = vsub.s32 0, %v273
      %v275 = vrot.slane %v270, %v274
      %v277 = vadd.f32 %v254, %v275
      %v278 = vadd.f32 %v255, %v275
      %v279 = vadd.f32 %v256, %v275
      %v280 = vadd.f32 %v257, %v275
      %v281 = vadd.f32 %v258, %v275
      %v282 = vadd.f32 %v259, %v275
      %v283 = vadd.f32 %v260, %v275
      %v284 = vadd.f32 %v261, %v275
      %v285 = vadd.f32 %v262, %v275
      %v286 = vadd.f32 %v263, %v275
      %v287 = vadd.f32 %v264, %v275
      %v288 = vadd.f32 %v265, %v275
      %v289 = vadd.f32 %v266, %v275
      %v290 = vadd.f32 %v267, %v275
      %v291 = vadd.f32 %v268, %v275
      %v292 = vadd.f32 %v269, %v275
      %v293 = vmax.f32 %v277, 0.0
      %v294 = vmax.f32 %v278, 0.0
      %v295 = vmax.f32 %v279, 0.0
      %v296 = vmax.f32 %v280, 0.0
      %v297 = vmax.f32 %v281, 0.0
      %v298 = vmax.f32 %v282, 0.0
      %v299 = vmax.f32 %v283, 0.0
      %v300 = vmax.f32 %v284, 0.0
      %v301 = vmax.f32 %v285, 0.0
      %v302 = vmax.f32 %v286, 0.0
      %v303 = vmax.f32 %v287, 0.0
      %v304 = vmax.f32 %v288, 0.0
      %v305 = vmax.f32 %v289, 0.0
      %v306 = vmax.f32 %v290, 0.0
      %v307 = vmax.f32 %v291, 0.0
      %v308 = vmax.f32 %v292, 0.0
      %vm309 = vcmask 64512
      %310 = vst.msk [vmem:[%s213] sm:$0xff] %vm309, %v293
      %311 = vst.msk [vmem:[%s213 + $0x8] sm:$0xff] %vm309, %v294
      %312 = vst.msk [vmem:[%s213 + $0x10] sm:$0xff] %vm309, %v295
      %313 = vst.msk [vmem:[%s213 + $0x18] sm:$0xff] %vm309, %v296
      %314 = vst.msk [vmem:[%s213 + $0x20] sm:$0xff] %vm309, %v297
      %315 = vst.msk [vmem:[%s213 + $0x28] sm:$0xff] %vm309, %v298
      %316 = vst.msk [vmem:[%s213 + $0x30] sm:$0xff] %vm309, %v299
      %317 = vst.msk [vmem:[%s213 + $0x38] sm:$0xff] %vm309, %v300
      %318 = vst.msk [vmem:[%s213 + $0x40] sm:$0xff] %vm309, %v301
      %319 = vst.msk [vmem:[%s213 + $0x48] sm:$0xff] %vm309, %v302
      %320 = vst.msk [vmem:[%s213 + $0x50] sm:$0xff] %vm309, %v303
      %321 = vst.msk [vmem:[%s213 + $0x58] sm:$0xff] %vm309, %v304
      %322 = vst.msk [vmem:[%s213 + $0x60] sm:$0xff] %vm309, %v305
      %323 = vst.msk [vmem:[%s213 + $0x68] sm:$0xff] %vm309, %v306
      %324 = vst.msk [vmem:[%s213 + $0x70] sm:$0xff] %vm309, %v307
      %325 = vst.msk [vmem:[%s213 + $0x78] sm:$0xff] %vm309, %v308
      %s326 = smul.u32 8, %s19
      %p327 = scmp.lt.s32.totalorder %s18, 1
      %s328 = scalar_select %p327, %s18, 1
      %p329 = scmp.lt.s32.totalorder %s326, 15
      %s330 = scalar_select %p329, %s326, 15
      %s331 = smul.addr %s330, 2
      %s332 = smul.addr %s328, 32
      %s333 = sadd.s32 %s331, %s332
      %s334 = smul.addr %s333, 8
      %s335 = scalar_lea.vmem %s3, %s334
      // Predicated region
      $region33: #{double_conv_nhwc.5} parent=31 // pred_check
        %p336 = pneg %p116
      $region34: #{double_conv_nhwc.5} parent=31 // pred_check_branch
        %338 = sbr.rel (%p336) target = $region36
      $region35: #{double_conv_nhwc.5} parent=31 // pred_region
        %s339 = smul.u32 8, %s19
      $region36: #{double_conv_nhwc.5} parent=31 // pred_fallthru
        _
    $region32: #{double_conv_nhwc.5} parent=5 // pred_fallthru
      _
    %p340 = scmp.le.s32.totalorder 2, %s9
    // Predicated region
    $region37: #{double_conv_nhwc.5} parent=5 // pred_check
      %p341 = pneg %p340
    $region38: #{double_conv_nhwc.5} parent=5 // pred_check_branch
      %343 = sbr.rel (%p341) target = $region40
    $region39: #{double_conv_nhwc.5} parent=5 // pred_region
      %s344 = ssub.s32 %s9, 2
      // Predicated region
      $region41: #{double_conv_nhwc.5} parent=39 // pred_check
        %p345 = pneg %p122
      $region42: #{double_conv_nhwc.5} parent=39 // pred_check_branch
        %347 = sbr.rel (%p345) target = $region44
      $region43: #{double_conv_nhwc.5} parent=39 // pred_region
        %s348 = smul.u32 8, %s21
        %p349 = scmp.lt.s32.totalorder %s20, 1
        %s350 = scalar_select %p349, %s20, 1
        %p351 = scmp.lt.s32.totalorder %s348, 15
        %s352 = scalar_select %p351, %s348, 15
        %s353 = smul.addr %s352, 2
        %s354 = smul.addr %s350, 32
        %s355 = sadd.s32 %s353, %s354
        %s356 = smul.addr %s355, 8
        %s357 = scalar_lea.vmem %s3, %s356
      $region44: #{double_conv_nhwc.5} parent=39 // pred_fallthru
        _
    $region40: #{double_conv_nhwc.5} parent=5 // pred_fallthru
      _
  $region6: #{double_conv_nhwc.5} parent=0 // loop_footer
    %s13 = sadd.s32 1, %s9
  $region7: #{double_conv_nhwc.5} parent=0 // loop_footer_branch
    %8 = sbr.rel target = $region3
  $region8: #{double_conv_nhwc.5} parent=0 // loop_exit
    _

// kernel: double_conv_nhwc.3
$region0: #{double_conv_nhwc.3}
  #allocation0 [shape = 'u32[]', space=smem, size = 0x4, offset = 0x4, fixed_abs, tag = 'smem constant byte address 0x4 - core index']
  #allocation1 [shape = 'u32[144,128]{1,0:T(1,128)}', space=vmem, size = 0x12000, scoped, tag = 'internal scratch']
  #allocation2 [shape = 'bf16[10,18,4]{2,1,0:T(8,128)(2,1)}', space=vmem, size = 0xf000, scoped, tag = 'scratch operand']
  %s0 = inlined_call_operand.vmem [shape: f32[2,16,16,4], index: 0, kind: input, shape index: {}]
  %s1 = inlined_call_operand.vmem [shape: bf16[9,4,128], index: 1, kind: input, shape index: {}]
  %s2 = inlined_call_operand.vmem [shape: f32[1,128], index: 2, kind: input, shape index: {}]
  %s3 = inlined_call_operand.vmem [shape: bf16[2,16,16,128], index: 3, kind: output, shape index: {0}]
  %s4 = inlined_call_operand.vmem [shape: f32[2,2,128], index: 4, kind: output, shape index: {1}]
  %5 = xla_tuple %s3, %s4
  %s6 = sld [smem:[#allocation0]]
  $region65: #{double_conv_nhwc.3} parent=0
    _
  %s8 = ssub.s32 1, %s6
  %s9 = scalar_select 0, %s8, %s6
  loop: start=0, step=1, limit=6
  $region2: #{double_conv_nhwc.3} parent=0 // loop_pre_header
    _
  $region3: #{double_conv_nhwc.3} parent=0 // loop_header
    %s11 = sphi 0, %s15
    %p12 = scmp.ge.s32.totalorder %s11, 6
    %s18 = sphi 0, %s30
    %s19 = sphi 0, %s26
    %s20 = sphi 0, %s18
    %s21 = sphi 0, %s19
    %s22 = sphi 0, %s20
    %s23 = sphi 0, %s21
    %s33 = sphi 0, %s35
    %s36 = sphi 0, %s33
    %s37 = sphi 0, %s36
    %s53 = sphi 0, %s37
    %s57 = sphi 0, %s57
    %s59 = sphi 0, %s57
    %s60 = sphi 0, %s59
    %s74 = sphi 0, %s60
    %s78 = sphi 0, %s78
    %s80 = sphi 0, %s78
    %s81 = sphi 0, %s80
    %s95 = sphi 0, %s81
    %s103 = sphi 0, %s105
    %s106 = sphi 0, %s103
    %s107 = sphi 0, %s106
    %s123 = sphi 0, %s107
    %s129 = sphi 0, %s131
    %s132 = sphi 0, %s129
    %s133 = sphi 0, %s132
    %s149 = sphi 0, %s133
  $region4: #{double_conv_nhwc.3} parent=0 // loop_header_branch
    %14 = sbr.rel (%p12) target = $region8
  $region5: #{double_conv_nhwc.3} parent=0 // loop_body
    %s16 = ssub.s32 %s11, 1
    %s17 = ssub.s32 %s11, 2
    %s24 = sadd.s32 1, %s19
    %p25 = scmp.ge.s32.totalorder %s24, 2
    %s26 = scalar_select %p25, 0, %s24
    %s27 = sadd.s32 1, %s18
    %s28 = scalar_select %p25, %s27, %s18
    %p29 = scmp.ge.s32.totalorder %s28, 2
    %s30 = scalar_select %p29, 0, %s28
    %s31 = ssub.s32 %s18, %s30
    %p32 = scmp.eq.s32.totalorder %s31, 0
    %s34 = sadd.s32 %s33, 1
    %s35 = scalar_select %p32, %s33, %s34
    %p38 = pneg %p32
    %p39 = scmp.eq.s32.totalorder %s11, 3
    %p40 = por %p38, %p39
    %p41 = scmp.ne.s32.totalorder %s33, %s36
    %p42 = scmp.eq.s32.totalorder %s11, 0
    %p43 = por %p41, %p42
    %p44 = scmp.ne.s32.totalorder %s33, %s36
    %p45 = scmp.eq.s32.totalorder %s16, 3
    %p46 = por %p44, %p45
    %p47 = scmp.ne.s32.totalorder %s36, %s37
    %p48 = scmp.eq.s32.totalorder %s16, 0
    %p49 = por %p47, %p48
    %p50 = scmp.ne.s32.totalorder %s36, %s37
    %p51 = scmp.eq.s32.totalorder %s17, 3
    %p52 = por %p50, %p51
    %p54 = scmp.ne.s32.totalorder %s37, %s53
    %p55 = scmp.eq.s32.totalorder %s17, 0
    %p56 = por %p54, %p55
    %s58 = sadd.s32 %s57, 1
    %p61 = scmp.eq.s32.totalorder %s11, 3
    %p62 = scmp.ne.s32.totalorder %s57, %s59
    %p63 = scmp.eq.s32.totalorder %s11, 0
    %p64 = por %p62, %p63
    %p65 = scmp.ne.s32.totalorder %s57, %s59
    %p66 = scmp.eq.s32.totalorder %s16, 3
    %p67 = por %p65, %p66
    %p68 = scmp.ne.s32.totalorder %s59, %s60
    %p69 = scmp.eq.s32.totalorder %s16, 0
    %p70 = por %p68, %p69
    %p71 = scmp.ne.s32.totalorder %s59, %s60
    %p72 = scmp.eq.s32.totalorder %s17, 3
    %p73 = por %p71, %p72
    %p75 = scmp.ne.s32.totalorder %s60, %s74
    %p76 = scmp.eq.s32.totalorder %s17, 0
    %p77 = por %p75, %p76
    %s79 = sadd.s32 %s78, 1
    %p82 = scmp.eq.s32.totalorder %s11, 3
    %p83 = scmp.ne.s32.totalorder %s78, %s80
    %p84 = scmp.eq.s32.totalorder %s11, 0
    %p85 = por %p83, %p84
    %p86 = scmp.ne.s32.totalorder %s78, %s80
    %p87 = scmp.eq.s32.totalorder %s16, 3
    %p88 = por %p86, %p87
    %p89 = scmp.ne.s32.totalorder %s80, %s81
    %p90 = scmp.eq.s32.totalorder %s16, 0
    %p91 = por %p89, %p90
    %p92 = scmp.ne.s32.totalorder %s80, %s81
    %p93 = scmp.eq.s32.totalorder %s17, 3
    %p94 = por %p92, %p93
    %p96 = scmp.ne.s32.totalorder %s81, %s95
    %p97 = scmp.eq.s32.totalorder %s17, 0
    %p98 = por %p96, %p97
    %s99 = ssub.s32 %s18, %s30
    %s100 = ssub.s32 %s19, %s26
    %s101 = sor.u32 %s99, %s100
    %p102 = scmp.eq.s32.totalorder %s101, 0
    %s104 = sadd.s32 %s103, 1
    %s105 = scalar_select %p102, %s103, %s104
    %p108 = pneg %p102
    %p109 = scmp.eq.s32.totalorder %s11, 3
    %p110 = por %p108, %p109
    %p111 = scmp.ne.s32.totalorder %s103, %s106
    %p112 = scmp.eq.s32.totalorder %s11, 0
    %p113 = por %p111, %p112
    %p114 = scmp.ne.s32.totalorder %s103, %s106
    %p115 = scmp.eq.s32.totalorder %s16, 3
    %p116 = por %p114, %p115
    %p117 = scmp.ne.s32.totalorder %s106, %s107
    %p118 = scmp.eq.s32.totalorder %s16, 0
    %p119 = por %p117, %p118
    %p120 = scmp.ne.s32.totalorder %s106, %s107
    %p121 = scmp.eq.s32.totalorder %s17, 3
    %p122 = por %p120, %p121
    %p124 = scmp.ne.s32.totalorder %s107, %s123
    %p125 = scmp.eq.s32.totalorder %s17, 0
    %p126 = por %p124, %p125
    %s127 = ssub.s32 %s18, %s30
    %p128 = scmp.eq.s32.totalorder %s127, 0
    %s130 = sadd.s32 %s129, 1
    %s131 = scalar_select %p128, %s129, %s130
    %p134 = pneg %p128
    %p135 = scmp.eq.s32.totalorder %s11, 3
    %p136 = por %p134, %p135
    %p137 = scmp.ne.s32.totalorder %s129, %s132
    %p138 = scmp.eq.s32.totalorder %s11, 0
    %p139 = por %p137, %p138
    %p140 = scmp.ne.s32.totalorder %s129, %s132
    %p141 = scmp.eq.s32.totalorder %s16, 3
    %p142 = por %p140, %p141
    %p143 = scmp.ne.s32.totalorder %s132, %s133
    %p144 = scmp.eq.s32.totalorder %s16, 0
    %p145 = por %p143, %p144
    %p146 = scmp.ne.s32.totalorder %s132, %s133
    %p147 = scmp.eq.s32.totalorder %s17, 3
    %p148 = por %p146, %p147
    %p150 = scmp.ne.s32.totalorder %s133, %s149
    %p151 = scmp.eq.s32.totalorder %s17, 0
    %p152 = por %p150, %p151
    %p153 = scmp.le.s32.totalorder 1, %s11
    %p154 = scmp.lt.s32.totalorder %s11, 5
    %p155 = pnand %p153, %p154
    %p156 = pneg %p155
    // Predicated region
    $region9: #{double_conv_nhwc.3} parent=5 // pred_check
      _
    $region10: #{double_conv_nhwc.3} parent=5 // pred_check_branch
      %158 = sbr.rel (%p155) target = $region12
    $region11: #{double_conv_nhwc.3} parent=5 // pred_region
      %s159 = ssub.s32 %s11, 1
      // Predicated region
      $region13: #{double_conv_nhwc.3} parent=11 // pred_check
        %p160 = pneg %p70
      $region14: #{double_conv_nhwc.3} parent=11 // pred_check_branch
        %162 = sbr.rel (%p160) target = $region16
      $region15: #{double_conv_nhwc.3} parent=11 // pred_region
        _
      $region16: #{double_conv_nhwc.3} parent=11 // pred_fallthru
        _
      // Predicated region
      $region17: #{double_conv_nhwc.3} parent=11 // pred_check
        %p163 = pneg %p91
      $region18: #{double_conv_nhwc.3} parent=11 // pred_check_branch
        %165 = sbr.rel (%p163) target = $region20
      $region19: #{double_conv_nhwc.3} parent=11 // pred_region
        _
      $region20: #{double_conv_nhwc.3} parent=11 // pred_fallthru
        _
    $region12: #{double_conv_nhwc.3} parent=5 // pred_fallthru
      _
    %p166 = scmp.lt.s32.totalorder %s11, 4
    // Predicated region
    $region21: #{double_conv_nhwc.3} parent=5 // pred_check
      %p167 = pneg %p166
    $region22: #{double_conv_nhwc.3} parent=5 // pred_check_branch
      %169 = sbr.rel (%p167) target = $region24
    $region23: #{double_conv_nhwc.3} parent=5 // pred_region
      // Predicated region
      $region25: #{double_conv_nhwc.3} parent=23 // pred_check
        %p170 = pneg %p43
      $region26: #{double_conv_nhwc.3} parent=23 // pred_check_branch
        %172 = sbr.rel (%p170) target = $region28
      $region27: #{double_conv_nhwc.3} parent=23 // pred_region
        %p173 = scmp.lt.s32.totalorder %s18, 1
        %s174 = scalar_select %p173, %s18, 1
        %s175 = smul.addr %s174, 32
        %s176 = smul.addr %s175, 8
        %s177 = scalar_lea.vmem %s0, %s176
      $region28: #{double_conv_nhwc.3} parent=23 // pred_fallthru
        _
    $region24: #{double_conv_nhwc.3} parent=5 // pred_fallthru
      _
    %p178 = scmp.le.s32.totalorder 1, %s11
    %p179 = scmp.lt.s32.totalorder %s11, 5
    %p180 = pnand %p178, %p179
    %p181 = pneg %p180
    // Predicated region
    $region29: #{double_conv_nhwc.3} parent=5 // pred_check
      _
    $region30: #{double_conv_nhwc.3} parent=5 // pred_check_branch
      %183 = sbr.rel (%p180) target = $region32
    $region31: #{double_conv_nhwc.3} parent=5 // pred_region
      %s184 = ssub.s32 %s11, 1
      %p185 = scmp.lt.s32.totalorder %s20, 1
      %s186 = scalar_select %p185, %s20, 1
      %s187 = smul.addr %s186, 32
      %s188 = smul.addr %s187, 8
      %s189 = scalar_lea.vmem %s0, %s188
      %p190 = pneg %p49
      %p191 = pneg %p46
      %p192 = pneg %p70
      %p193 = pneg %p67
      %p194 = pneg %p91
      %p195 = pneg %p88
      %p196 = pneg %p119
      %p197 = pneg %p116
      %s198 = smul.u32 8, %s21
      %p199 = scmp.lt.s32.totalorder %s20, 1
      %s200 = scalar_select %p199, %s20, 1
      %p201 = scmp.lt.s32.totalorder %s198, 15
      %s202 = scalar_select %p201, %s198, 15
      %s203 = smul.addr %s202, 2
      %s204 = smul.addr %s200, 32
      %s205 = sadd.s32 %s203, %s204
      %s206 = smul.addr %s205, 4
      %s207 = scalar_lea.vmem %s3, %s206
      %p208 = pneg %p145
      %p209 = pneg %p142
      %p210 = scmp.lt.s32.totalorder %s20, 1
      %s211 = scalar_select %p210, %s20, 1
      %s212 = smul.addr %s211, 2
      %s213 = scalar_lea.vmem %s4, %s212
      %p214 = scmp.lt.s32.totalorder %s20, 1
      %s215 = scalar_select %p214, %s20, 1
      %s216 = smul.addr %s215, 32
      %s217 = smul.addr %s216, 8
      %s218 = scalar_lea.vmem %s0, %s217
      %s219 = smul.u32 8, %s21
      %p220 = scmp.lt.s32.totalorder %s20, 1
      %s221 = scalar_select %p220, %s20, 1
      %p222 = scmp.lt.s32.totalorder %s219, 15
      %s223 = scalar_select %p222, %s219, 15
      %s224 = smul.addr %s223, 2
      %s225 = smul.addr %s221, 32
      %s226 = sadd.s32 %s224, %s225
      %s227 = smul.addr %s226, 4
      %s228 = scalar_lea.vmem %s3, %s227
      %s229 = smul.u32 8, %s21
      %p230 = scmp.lt.s32.totalorder %s20, 1
      %s231 = scalar_select %p230, %s20, 1
      %s232 = smul.addr %s231, 2
      %s233 = scalar_lea.vmem %s4, %s232
      %vm235 = vcmask 27648
      %236 = vst.msk [vmem:[#allocation2] sm:$0xf] %vm235, 0
      %237 = vst.msk [vmem:[#allocation2 + $0x4] sm:$0xf] %vm235, 0
      %vm238 = vcmask 24576
      %239 = vst.msk [vmem:[#allocation2 + $0x8] sm:$0x1] %vm238, 0
      %s240 = scalar_lea.vmem [#allocation2], 108
      %241 = vst.msk [vmem:[%s240] sm:$0xf] %vm235, 0
      %242 = vst.msk [vmem:[%s240 + $0x4] sm:$0xf] %vm235, 0
      %243 = vst.msk [vmem:[%s240 + $0x8] sm:$0x1] %vm238, 0
      %vm244 = vcmask 24576
      %vm245 = vsmask.f32 256
      %vm246 = vmand %vm244, %vm245
      %v247 = vld [vmem:[#allocation2] sm:$0x1]
      %v248 = vsel %vm246, 0, %v247
      %249 = vst [vmem:[#allocation2] sm:$0x1] %v248
      %v250 = vld [vmem:[#allocation2 + $0xc] sm:$0x1]
      %v251 = vsel %vm246, 0, %v250
      %252 = vst [vmem:[#allocation2 + $0xc] sm:$0x1] %v251
      %v253 = vld [vmem:[#allocation2 + $0x18] sm:$0x1]
      %v254 = vsel %vm246, 0, %v253
      %255 = vst [vmem:[#allocation2 + $0x18] sm:$0x1] %v254
      %v256 = vld [vmem:[#allocation2 + $0x24] sm:$0x1]
      %v257 = vsel %vm246, 0, %v256
      %258 = vst [vmem:[#allocation2 + $0x24] sm:$0x1] %v257
      %v259 = vld [vmem:[#allocation2 + $0x30] sm:$0x1]
      %v260 = vsel %vm246, 0, %v259
      %261 = vst [vmem:[#allocation2 + $0x30] sm:$0x1] %v260
      %v262 = vld [vmem:[#allocation2 + $0x3c] sm:$0x1]
      %v263 = vsel %vm246, 0, %v262
      %264 = vst [vmem:[#allocation2 + $0x3c] sm:$0x1] %v263
      %v265 = vld [vmem:[#allocation2 + $0x48] sm:$0x1]
      %v266 = vsel %vm246, 0, %v265
      %267 = vst [vmem:[#allocation2 + $0x48] sm:$0x1] %v266
      %v268 = vld [vmem:[#allocation2 + $0x54] sm:$0x1]
      %v269 = vsel %vm246, 0, %v268
      %270 = vst [vmem:[#allocation2 + $0x54] sm:$0x1] %v269
      %v271 = vld [vmem:[#allocation2 + $0x60] sm:$0x1]
      %v272 = vsel %vm246, 0, %v271
      %273 = vst [vmem:[#allocation2 + $0x60] sm:$0x1] %v272
      %v274 = vld [vmem:[#allocation2 + $0x6c] sm:$0x1]
      %v275 = vsel %vm246, 0, %v274
      %276 = vst [vmem:[#allocation2 + $0x6c] sm:$0x1] %v275
      %vm277 = vsmask.f32 7938
      %vm278 = vmand %vm244, %vm277
      %v279 = vld [vmem:[#allocation2 + $0x8] sm:$0x1]
      %v280 = vsel %vm278, 0, %v279
      %281 = vst [vmem:[#allocation2 + $0x8] sm:$0x1] %v280
      %v282 = vld [vmem:[#allocation2 + $0x14] sm:$0x1]
      %v283 = vsel %vm278, 0, %v282
      %284 = vst [vmem:[#allocation2 + $0x14] sm:$0x1] %v283
      %v285 = vld [vmem:[#allocation2 + $0x20] sm:$0x1]
      %v286 = vsel %vm278, 0, %v285
      %287 = vst [vmem:[#allocation2 + $0x20] sm:$0x1] %v286
      %v288 = vld [vmem:[#allocation2 + $0x2c] sm:$0x1]
      %v289 = vsel %vm278, 0, %v288
      %290 = vst [vmem:[#allocation2 + $0x2c] sm:$0x1] %v289
      %v291 = vld [vmem:[#allocation2 + $0x38] sm:$0x1]
      %v292 = vsel %vm278, 0, %v291
      %293 = vst [vmem:[#allocation2 + $0x38] sm:$0x1] %v292
      %v294 = vld [vmem:[#allocation2 + $0x44] sm:$0x1]
      %v295 = vsel %vm278, 0, %v294
      %296 = vst [vmem:[#allocation2 + $0x44] sm:$0x1] %v295
      %v297 = vld [vmem:[#allocation2 + $0x50] sm:$0x1]
      %v298 = vsel %vm278, 0, %v297
      %299 = vst [vmem:[#allocation2 + $0x50] sm:$0x1] %v298
      %v300 = vld [vmem:[#allocation2 + $0x5c] sm:$0x1]
      %v301 = vsel %vm278, 0, %v300
      %302 = vst [vmem:[#allocation2 + $0x5c] sm:$0x1] %v301
      %v303 = vld [vmem:[#allocation2 + $0x68] sm:$0x1]
      %v304 = vsel %vm278, 0, %v303
      %305 = vst [vmem:[#allocation2 + $0x68] sm:$0x1] %v304
      %v306 = vld [vmem:[#allocation2 + $0x74] sm:$0x1]
      %v307 = vsel %vm278, 0, %v306
      %308 = vst [vmem:[#allocation2 + $0x74] sm:$0x1] %v307
      %s309 = smul.u32 %s21, 8
      %s310 = smul.u32 %s309, 16
      %s311 = scalar_lea.vmem %s218, %s310
      %v312 = vld [vmem:[%s311] sm:$0xff]
      %v313 = vld [vmem:[%s311 + $0x8] sm:$0xff]
      %v314 = vld [vmem:[%s311 + $0x10] sm:$0xff]
      %v315 = vld [vmem:[%s311 + $0x18] sm:$0xff]
      %v316 = vld [vmem:[%s311 + $0x20] sm:$0xff]
      %v317 = vld [vmem:[%s311 + $0x28] sm:$0xff]
      %v318 = vld [vmem:[%s311 + $0x30] sm:$0xff]
      %v319 = vld [vmem:[%s311 + $0x38] sm:$0xff]
      %v320 = vld [vmem:[%s311 + $0x40] sm:$0xff]
      %v321 = vld [vmem:[%s311 + $0x48] sm:$0xff]
      %v322 = vld [vmem:[%s311 + $0x50] sm:$0xff]
      %v323 = vld [vmem:[%s311 + $0x58] sm:$0xff]
      %v324 = vld [vmem:[%s311 + $0x60] sm:$0xff]
      %v325 = vld [vmem:[%s311 + $0x68] sm:$0xff]
      %v326 = vld [vmem:[%s311 + $0x70] sm:$0xff]
      %v327 = vld [vmem:[%s311 + $0x78] sm:$0xff]
      %v328 = vpack.c.bf16 %v313, %v312
      %v329 = vpack.c.bf16 %v315, %v314
      %v330 = vpack.c.bf16 %v317, %v316
      %v331 = vpack.c.bf16 %v319, %v318
      %v332 = vpack.c.bf16 %v321, %v320
      %v333 = vpack.c.bf16 %v323, %v322
      %v334 = vpack.c.bf16 %v325, %v324
      %v335 = vpack.c.bf16 %v327, %v326
      %v344 = vunpack.c.l.b16 %v328
      %v345 = vunpack.c.h.b16 %v328
      %v346 = vunpack.c.l.b16 %v329
      %v347 = vunpack.c.h.b16 %v329
      %v348 = vunpack.c.l.b16 %v330
      %v349 = vunpack.c.h.b16 %v330
      %v350 = vunpack.c.l.b16 %v331
      %v351 = vunpack.c.h.b16 %v331
      %v352 = vunpack.c.l.b16 %v332
      %v353 = vunpack.c.h.b16 %v332
      %v354 = vunpack.c.l.b16 %v333
      %v355 = vunpack.c.h.b16 %v333
      %v356 = vunpack.c.l.b16 %v334
      %v357 = vunpack.c.h.b16 %v334
      %v358 = vunpack.c.l.b16 %v335
      %v359 = vunpack.c.h.b16 %v335
      %v360 = vpack.c.b16 %v344, %v344
      %v361 = vpack.c.b16 %v345, %v345
      %v362 = vpack.c.b16 %v346, %v346
      %v363 = vpack.c.b16 %v347, %v347
      %v364 = vpack.c.b16 %v348, %v348
      %v365 = vpack.c.b16 %v349, %v349
      %v366 = vpack.c.b16 %v350, %v350
      %v367 = vpack.c.b16 %v351, %v351
      %v368 = vpack.c.b16 %v352, %v352
      %v369 = vpack.c.b16 %v353, %v353
      %v370 = vpack.c.b16 %v354, %v354
      %v371 = vpack.c.b16 %v355, %v355
      %v372 = vpack.c.b16 %v356, %v356
      %v373 = vpack.c.b16 %v357, %v357
      %v374 = vpack.c.b16 %v358, %v358
      %v375 = vpack.c.b16 %v359, %v359
      %vm376 = vsmask.f32 4368
      %vm377 = vmor %vm245, %vm376
      %v379 = vshrl.u32 %v360, 16
      %v381 = vrot.slane %v379, 7
      %v382 = vshll.u32 %v360, 16
      %v384 = vor.u32 %v381, %v382
      %v385 = vrot.slane %v381, 4
      %v387 = vshrl.u32 %v361, 16
      %v389 = vrot.slane %v387, 7
      %v390 = vshll.u32 %v361, 16
      %v392 = vor.u32 %v389, %v390
      %v393 = vsel %vm377, %v385, %v392
      %v394 = vrot.slane %v389, 4
      %v396 = vshrl.u32 %v362, 16
      %v398 = vrot.slane %v396, 7
      %v399 = vshll.u32 %v362, 16
      %v401 = vor.u32 %v398, %v399
      %v402 = vrot.slane %v398, 4
      %v404 = vshrl.u32 %v363, 16
      %v406 = vrot.slane %v404, 7
      %v407 = vshll.u32 %v363, 16
      %v409 = vor.u32 %v406, %v407
      %v410 = vsel %vm377, %v402, %v409
      %v411 = vrot.slane %v406, 4
      %v413 = vshrl.u32 %v364, 16
      %v415 = vrot.slane %v413, 7
      %v416 = vshll.u32 %v364, 16
      %v418 = vor.u32 %v415, %v416
      %v419 = vrot.slane %v415, 4
      %v421 = vshrl.u32 %v365, 16
      %v423 = vrot.slane %v421, 7
      %v424 = vshll.u32 %v365, 16
      %v426 = vor.u32 %v423, %v424
      %v427 = vsel %vm377, %v419, %v426
      %v428 = vrot.slane %v423, 4
      %v430 = vshrl.u32 %v366, 16
      %v432 = vrot.slane %v430, 7
      %v433 = vshll.u32 %v366, 16
      %v435 = vor.u32 %v432, %v433
      %v436 = vrot.slane %v432, 4
      %v438 = vshrl.u32 %v367, 16
      %v440 = vrot.slane %v438, 7
      %v441 = vshll.u32 %v367, 16
      %v443 = vor.u32 %v440, %v441
      %v444 = vsel %vm377, %v436, %v443
      %v445 = vrot.slane %v440, 4
      %v447 = vshrl.u32 %v368, 16
      %v449 = vrot.slane %v447, 7
      %v450 = vshll.u32 %v368, 16
      %v452 = vor.u32 %v449, %v450
      %v453 = vrot.slane %v449, 4
      %v455 = vshrl.u32 %v369, 16
      %v457 = vrot.slane %v455, 7
      %v458 = vshll.u32 %v369, 16
      %v460 = vor.u32 %v457, %v458
      %v461 = vsel %vm377, %v453, %v460
      %v462 = vrot.slane %v457, 4
      %v464 = vshrl.u32 %v370, 16
      %v466 = vrot.slane %v464, 7
      %v467 = vshll.u32 %v370, 16
      %v469 = vor.u32 %v466, %v467
      %v470 = vrot.slane %v466, 4
      %v472 = vshrl.u32 %v371, 16
      %v474 = vrot.slane %v472, 7
      %v475 = vshll.u32 %v371, 16
      %v477 = vor.u32 %v474, %v475
      %v478 = vsel %vm377, %v470, %v477
      %v479 = vrot.slane %v474, 4
      %v481 = vshrl.u32 %v372, 16
      %v483 = vrot.slane %v481, 7
      %v484 = vshll.u32 %v372, 16
      %v486 = vor.u32 %v483, %v484
      %v487 = vrot.slane %v483, 4
      %v489 = vshrl.u32 %v373, 16
      %v491 = vrot.slane %v489, 7
      %v492 = vshll.u32 %v373, 16
      %v494 = vor.u32 %v491, %v492
      %v495 = vsel %vm377, %v487, %v494
      %v496 = vrot.slane %v491, 4
      %v498 = vshrl.u32 %v374, 16
      %v500 = vrot.slane %v498, 7
      %v501 = vshll.u32 %v374, 16
      %v503 = vor.u32 %v500, %v501
      %v504 = vrot.slane %v500, 4
      %v506 = vshrl.u32 %v375, 16
      %v508 = vrot.slane %v506, 7
      %v509 = vshll.u32 %v375, 16
      %v511 = vor.u32 %v508, %v509
      %v512 = vsel %vm377, %v504, %v511
      %v513 = vrot.slane %v508, 4
      %s538 = scalar_lea.vmem [#allocation2], 12
      %vm539 = vcmask 27648
      %vm540 = vmand %vm539, %vm277
      %v541 = vld [vmem:[%s538] sm:$0xf]
      %v542 = vsel %vm540, %v384, %v541
      %543 = vst [vmem:[%s538] sm:$0xf] %v542
      %544 = vst.msk [vmem:[%s538 + $0x4] sm:$0xf] %vm235, %v393
      %v545 = vld [vmem:[%s538 + $0x8] sm:$0x1]
      %v546 = vsel %vm246, %v394, %v545
      %547 = vst [vmem:[%s538 + $0x8] sm:$0x1] %v546
      %v548 = vld [vmem:[%s538 + $0xc] sm:$0xf]
      %v549 = vsel %vm540, %v401, %v548
      %550 = vst [vmem:[%s538 + $0xc] sm:$0xf] %v549
      %551 = vst.msk [vmem:[%s538 + $0x10] sm:$0xf] %vm235, %v410
      %v552 = vld [vmem:[%s538 + $0x14] sm:$0x1]
      %v553 = vsel %vm246, %v411, %v552
      %554 = vst [vmem:[%s538 + $0x14] sm:$0x1] %v553
      %v555 = vld [vmem:[%s538 + $0x18] sm:$0xf]
      %v556 = vsel %vm540, %v418, %v555
      %557 = vst [vmem:[%s538 + $0x18] sm:$0xf] %v556
      %558 = vst.msk [vmem:[%s538 + $0x1c] sm:$0xf] %vm235, %v427
      %v559 = vld [vmem:[%s538 + $0x20] sm:$0x1]
      %v560 = vsel %vm246, %v428, %v559
      %561 = vst [vmem:[%s538 + $0x20] sm:$0x1] %v560
      %v562 = vld [vmem:[%s538 + $0x24] sm:$0xf]
      %v563 = vsel %vm540, %v435, %v562
      %564 = vst [vmem:[%s538 + $0x24] sm:$0xf] %v563
      %565 = vst.msk [vmem:[%s538 + $0x28] sm:$0xf] %vm235, %v444
      %v566 = vld [vmem:[%s538 + $0x2c] sm:$0x1]
      %v567 = vsel %vm246, %v445, %v566
      %568 = vst [vmem:[%s538 + $0x2c] sm:$0x1] %v567
      %v569 = vld [vmem:[%s538 + $0x30] sm:$0xf]
      %v570 = vsel %vm540, %v452, %v569
      %571 = vst [vmem:[%s538 + $0x30] sm:$0xf] %v570
      %572 = vst.msk [vmem:[%s538 + $0x34] sm:$0xf] %vm235, %v461
      %v573 = vld [vmem:[%s538 + $0x38] sm:$0x1]
      %v574 = vsel %vm246, %v462, %v573
      %575 = vst [vmem:[%s538 + $0x38] sm:$0x1] %v574
      %v576 = vld [vmem:[%s538 + $0x3c] sm:$0xf]
      %v577 = vsel %vm540, %v469, %v576
      %578 = vst [vmem:[%s538 + $0x3c] sm:$0xf] %v577
      %579 = vst.msk [vmem:[%s538 + $0x40] sm:$0xf] %vm235, %v478
      %v580 = vld [vmem:[%s538 + $0x44] sm:$0x1]
      %v581 = vsel %vm246, %v479, %v580
      %582 = vst [vmem:[%s538 + $0x44] sm:$0x1] %v581
      %v583 = vld [vmem:[%s538 + $0x48] sm:$0xf]
      %v584 = vsel %vm540, %v486, %v583
      %585 = vst [vmem:[%s538 + $0x48] sm:$0xf] %v584
      %586 = vst.msk [vmem:[%s538 + $0x4c] sm:$0xf] %vm235, %v495
      %v587 = vld [vmem:[%s538 + $0x50] sm:$0x1]
      %v588 = vsel %vm246, %v496, %v587
      %589 = vst [vmem:[%s538 + $0x50] sm:$0x1] %v588
      %v590 = vld [vmem:[%s538 + $0x54] sm:$0xf]
      %v591 = vsel %vm540, %v503, %v590
      %592 = vst [vmem:[%s538 + $0x54] sm:$0xf] %v591
      %593 = vst.msk [vmem:[%s538 + $0x58] sm:$0xf] %vm235, %v512
      %v594 = vld [vmem:[%s538 + $0x5c] sm:$0x1]
      %v595 = vsel %vm246, %v513, %v594
      %596 = vst [vmem:[%s538 + $0x5c] sm:$0x1] %v595
      %p597 = scmp.gt.s32.totalorder %s21, 0
      // Predicated region
      $region33: #{double_conv_nhwc.3} parent=31 // pred_check
        %p598 = pneg %p597
      $region34: #{double_conv_nhwc.3} parent=31 // pred_check_branch
        %600 = sbr.rel (%p598) target = $region36
      $region35: #{double_conv_nhwc.3} parent=31 // pred_region
        %s601 = ssub.s32 %s309, 1
        %s602 = smul.u32 %s601, 16
        %s603 = scalar_lea.vmem %s218, %s602
        %v604 = vld [vmem:[%s603] sm:$0xff]
        %v605 = vld [vmem:[%s603 + $0x8] sm:$0xff]
        %v606 = vpack.c.bf16 %v605, %v604
        %v608 = vunpack.c.l.b16 %v606
        %v609 = vunpack.c.h.b16 %v606
        %v610 = vpack.c.b16 %v608, %v608
        %v611 = vpack.c.b16 %v609, %v609
        %v613 = vshrl.u32 %v610, 16
        %v615 = vrot.slane %v613, 7
        %v616 = vshll.u32 %v610, 16
        %v618 = vor.u32 %v615, %v616
        %v619 = vrot.slane %v615, 4
        %v621 = vshrl.u32 %v611, 16
        %v623 = vrot.slane %v621, 7
        %v624 = vshll.u32 %v611, 16
        %v626 = vor.u32 %v623, %v624
        %v627 = vsel %vm377, %v619, %v626
        %v628 = vrot.slane %v623, 4
        %v632 = vld [vmem:[#allocation2] sm:$0xf]
        %v633 = vsel %vm540, %v618, %v632
        %634 = vst [vmem:[#allocation2] sm:$0xf] %v633
        %635 = vst.msk [vmem:[#allocation2 + $0x4] sm:$0xf] %vm235, %v627
        %v636 = vld [vmem:[#allocation2 + $0x8] sm:$0x1]
        %v637 = vsel %vm246, %v628, %v636
        %638 = vst [vmem:[#allocation2 + $0x8] sm:$0x1] %v637
      $region36: #{double_conv_nhwc.3} parent=31 // pred_fallthru
        _
      %p639 = scmp.lt.s32.totalorder %s21, 1
      // Predicated region
      $region37: #{double_conv_nhwc.3} parent=31 // pred_check
        %p640 = pneg %p639
      $region38: #{double_conv_nhwc.3} parent=31 // pred_check_branch
        %642 = sbr.rel (%p640) target = $region40
      $region39: #{double_conv_nhwc.3} parent=31 // pred_region
        %s643 = sadd.s32 %s309, 8
        %s644 = smul.u32 %s643, 16
        %s645 = scalar_lea.vmem %s218, %s644
        %v646 = vld [vmem:[%s645] sm:$0xff]
        %v647 = vld [vmem:[%s645 + $0x8] sm:$0xff]
        %v648 = vpack.c.bf16 %v647, %v646
        %v650 = vunpack.c.l.b16 %v648
        %v651 = vunpack.c.h.b16 %v648
        %v652 = vpack.c.b16 %v650, %v650
        %v653 = vpack.c.b16 %v651, %v651
        %v655 = vshrl.u32 %v652, 16
        %v657 = vrot.slane %v655, 7
        %v658 = vshll.u32 %v652, 16
        %v660 = vor.u32 %v657, %v658
        %v661 = vrot.slane %v657, 4
        %v663 = vshrl.u32 %v653, 16
        %v665 = vrot.slane %v663, 7
        %v666 = vshll.u32 %v653, 16
        %v668 = vor.u32 %v665, %v666
        %v669 = vsel %vm377, %v661, %v668
        %v670 = vrot.slane %v665, 4
        %v674 = vld [vmem:[%s240] sm:$0xf]
        %v675 = vsel %vm540, %v660, %v674
        %676 = vst [vmem:[%s240] sm:$0xf] %v675
        %677 = vst.msk [vmem:[%s240 + $0x4] sm:$0xf] %vm235, %v669
        %v678 = vld [vmem:[%s240 + $0x8] sm:$0x1]
        %v679 = vsel %vm246, %v670, %v678
        %680 = vst [vmem:[%s240 + $0x8] sm:$0x1] %v679
      $region40: #{double_conv_nhwc.3} parent=31 // pred_fallthru
        _
      %v681 = vld [vmem:[#allocation2] sm:$0xf]
      %v682 = vld [vmem:[#allocation2 + $0x4] sm:$0xf]
      %v683 = vld [vmem:[#allocation2 + $0xc] sm:$0xf]
      %v684 = vld [vmem:[#allocation2 + $0x10] sm:$0xf]
      %v685 = vld [vmem:[#allocation2 + $0x18] sm:$0xf]
      %v686 = vld [vmem:[#allocation2 + $0x1c] sm:$0xf]
      %v687 = vld [vmem:[#allocation2 + $0x24] sm:$0xf]
      %v688 = vld [vmem:[#allocation2 + $0x28] sm:$0xf]
      %v689 = vld [vmem:[#allocation2 + $0x30] sm:$0xf]
      %v690 = vld [vmem:[#allocation2 + $0x34] sm:$0xf]
      %v691 = vld [vmem:[#allocation2 + $0x3c] sm:$0xf]
      %v692 = vld [vmem:[#allocation2 + $0x40] sm:$0xf]
      %v693 = vld [vmem:[#allocation2 + $0x48] sm:$0xf]
      %v694 = vld [vmem:[#allocation2 + $0x4c] sm:$0xf]
      %v695 = vld [vmem:[#allocation2 + $0x54] sm:$0xf]
      %v696 = vld [vmem:[#allocation2 + $0x58] sm:$0xf]
      %v697 = vld [vmem:[%s1] sm:$0x3]
      %v698 = vld [vmem:[#allocation2 + $0x8] sm:$0x1]
      %v699 = vld [vmem:[#allocation2 + $0x14] sm:$0x1]
      %v700 = vld [vmem:[#allocation2 + $0x20] sm:$0x1]
      %v701 = vld [vmem:[#allocation2 + $0x2c] sm:$0x1]
      %v702 = vld [vmem:[#allocation2 + $0x38] sm:$0x1]
      %v703 = vld [vmem:[#allocation2 + $0x44] sm:$0x1]
      %v704 = vld [vmem:[#allocation2 + $0x50] sm:$0x1]
      %v705 = vld [vmem:[#allocation2 + $0x5c] sm:$0x1]
      %vm706 = vsmask.f32 3328
      %vm707 = vsmask.f32 7440
      %vm708 = vmor %vm706, %vm707
      %v710 = vshrl.u32 %v681, 16
      %v712 = vrot.slane %v710, 4
      %v713 = vshll.u32 %v681, 16
      %v715 = vrot.slane %v713, 5
      %v716 = vor.u32 %v712, %v715
      %v717 = vrot.slane %v716, 4
      %v719 = vshll.u32 %v682, 16
      %v721 = vrot.slane %v719, 5
      %v722 = vsel %vm708, %v717, %v721
      %v723 = vshrl.u32 %v682, 16
      %v725 = vrot.slane %v723, 4
      %v726 = vor.u32 %v725, %v721
      %v727 = vrot.slane %v726, 4
      %v729 = vshll.u32 %v698, 16
      %v731 = vrot.slane %v729, 5
      %v732 = vsel %vm708, %v727, %v731
      %v734 = vshrl.u32 %v683, 16
      %v736 = vrot.slane %v734, 4
      %v737 = vshll.u32 %v683, 16
      %v739 = vrot.slane %v737, 5
      %v740 = vor.u32 %v736, %v739
      %v741 = vrot.slane %v740, 4
      %v743 = vshll.u32 %v684, 16
      %v745 = vrot.slane %v743, 5
      %v746 = vsel %vm708, %v741, %v745
      %v747 = vshrl.u32 %v684, 16
      %v749 = vrot.slane %v747, 4
      %v750 = vor.u32 %v749, %v745
      %v751 = vrot.slane %v750, 4
      %v753 = vshll.u32 %v699, 16
      %v755 = vrot.slane %v753, 5
      %v756 = vsel %vm708, %v751, %v755
      %v758 = vshrl.u32 %v685, 16
      %v760 = vrot.slane %v758, 4
      %v761 = vshll.u32 %v685, 16
      %v763 = vrot.slane %v761, 5
      %v764 = vor.u32 %v760, %v763
      %v765 = vrot.slane %v764, 4
      %v767 = vshll.u32 %v686, 16
      %v769 = vrot.slane %v767, 5
      %v770 = vsel %vm708, %v765, %v769
      %v771 = vshrl.u32 %v686, 16
      %v773 = vrot.slane %v771, 4
      %v774 = vor.u32 %v773, %v769
      %v775 = vrot.slane %v774, 4
      %v777 = vshll.u32 %v700, 16
      %v779 = vrot.slane %v777, 5
      %v780 = vsel %vm708, %v775, %v779
      %v782 = vshrl.u32 %v687, 16
      %v784 = vrot.slane %v782, 4
      %v785 = vshll.u32 %v687, 16
      %v787 = vrot.slane %v785, 5
      %v788 = vor.u32 %v784, %v787
      %v789 = vrot.slane %v788, 4
      %v791 = vshll.u32 %v688, 16
      %v793 = vrot.slane %v791, 5
      %v794 = vsel %vm708, %v789, %v793
      %v795 = vshrl.u32 %v688, 16
      %v797 = vrot.slane %v795, 4
      %v798 = vor.u32 %v797, %v793
      %v799 = vrot.slane %v798, 4
      %v801 = vshll.u32 %v701, 16
      %v803 = vrot.slane %v801, 5
      %v804 = vsel %vm708, %v799, %v803
      %v806 = vshrl.u32 %v689, 16
      %v808 = vrot.slane %v806, 4
      %v809 = vshll.u32 %v689, 16
      %v811 = vrot.slane %v809, 5
      %v812 = vor.u32 %v808, %v811
      %v813 = vrot.slane %v812, 4
      %v815 = vshll.u32 %v690, 16
      %v817 = vrot.slane %v815, 5
      %v818 = vsel %vm708, %v813, %v817
      %v819 = vshrl.u32 %v690, 16
      %v821 = vrot.slane %v819, 4
      %v822 = vor.u32 %v821, %v817
      %v823 = vrot.slane %v822, 4
      %v825 = vshll.u32 %v702, 16
      %v827 = vrot.slane %v825, 5
      %v828 = vsel %vm708, %v823, %v827
      %v830 = vshrl.u32 %v691, 16
      %v832 = vrot.slane %v830, 4
      %v833 = vshll.u32 %v691, 16
      %v835 = vrot.slane %v833, 5
      %v836 = vor.u32 %v832, %v835
      %v837 = vrot.slane %v836, 4
      %v839 = vshll.u32 %v692, 16
      %v841 = vrot.slane %v839, 5
      %v842 = vsel %vm708, %v837, %v841
      %v843 = vshrl.u32 %v692, 16
      %v845 = vrot.slane %v843, 4
      %v846 = vor.u32 %v845, %v841
      %v847 = vrot.slane %v846, 4
      %v849 = vshll.u32 %v703, 16
      %v851 = vrot.slane %v849, 5
      %v852 = vsel %vm708, %v847, %v851
      %v854 = vshrl.u32 %v693, 16
      %v856 = vrot.slane %v854, 4
      %v857 = vshll.u32 %v693, 16
      %v859 = vrot.slane %v857, 5
      %v860 = vor.u32 %v856, %v859
      %v861 = vrot.slane %v860, 4
      %v863 = vshll.u32 %v694, 16
      %v865 = vrot.slane %v863, 5
      %v866 = vsel %vm708, %v861, %v865
      %v867 = vshrl.u32 %v694, 16
      %v869 = vrot.slane %v867, 4
      %v870 = vor.u32 %v869, %v865
      %v871 = vrot.slane %v870, 4
      %v873 = vshll.u32 %v704, 16
      %v875 = vrot.slane %v873, 5
      %v876 = vsel %vm708, %v871, %v875
      %v878 = vshrl.u32 %v695, 16
      %v880 = vrot.slane %v878, 4
      %v881 = vshll.u32 %v695, 16
      %v883 = vrot.slane %v881, 5
      %v884 = vor.u32 %v880, %v883
      %v885 = vrot.slane %v884, 4
      %v887 = vshll.u32 %v696, 16
      %v889 = vrot.slane %v887, 5
      %v890 = vsel %vm708, %v885, %v889
      %v891 = vshrl.u32 %v696, 16
      %v893 = vrot.slane %v891, 4
      %v894 = vor.u32 %v893, %v889
      %v895 = vrot.slane %v894, 4
      %v897 = vshll.u32 %v705, 16
      %v899 = vrot.slane %v897, 5
      %v900 = vsel %vm708, %v895, %v899
      %s901 = scalar_lea.vmem %s1, 2
      %v902 = vld [vmem:[%s901] sm:$0x3]
      %v903 = vunpack.c.l.b16 %v722
      %v904 = vunpack.c.l.b16 %v732
      %v905 = vunpack.c.l.b16 %v746
      %v906 = vunpack.c.l.b16 %v756
      %v907 = vunpack.c.l.b16 %v770
      %v908 = vunpack.c.l.b16 %v780
      %v909 = vunpack.c.l.b16 %v794
      %v910 = vunpack.c.l.b16 %v804
      %v911 = vunpack.c.l.b16 %v818
      %v912 = vunpack.c.l.b16 %v828
      %v913 = vunpack.c.l.b16 %v842
      %v914 = vunpack.c.l.b16 %v852
      %v915 = vunpack.c.l.b16 %v866
      %v916 = vunpack.c.l.b16 %v876
      %v917 = vunpack.c.l.b16 %v890
      %v918 = vunpack.c.l.b16 %v900
      %v919 = vpack.c.b16 %v904, %v903
      %v920 = vpack.c.b16 %v906, %v905
      %v921 = vpack.c.b16 %v908, %v907
      %v922 = vpack.c.b16 %v910, %v909
      %v923 = vpack.c.b16 %v912, %v911
      %v924 = vpack.c.b16 %v914, %v913
      %v925 = vpack.c.b16 %v916, %v915
      %v926 = vpack.c.b16 %v918, %v917
      %vm927 = vcmask 31744
      %v929 = vsel %vm927, %v919, 0
      %v932 = vsel %vm927, %v920, 0
      %v935 = vsel %vm927, %v921, 0
      %v938 = vsel %vm927, %v922, 0
      %v941 = vsel %vm927, %v923, 0
      %v944 = vsel %vm927, %v924, 0
      %v947 = vsel %vm927, %v925, 0
      %v950 = vsel %vm927, %v926, 0
      %vm952 = vcmask 1041408
      %v954 = vsel %vm952, %v902, 0
      %956 = vmatprep.subr.bf16.mxu0 0
      %957 = vmatpush1.bf16.msra.mxu0 0
      %958 = vmatprep.subr.bf16.mxu0 0
      %959 = vmatpush1.bf16.msra.mxu0 0
      %960 = vmatprep.subr.bf16.mxu0 0
      %961 = vmatpush1.bf16.msra.mxu0 0
      %962 = vmatprep.subr.bf16.mxu0 0
      %963 = vmatpush1.bf16.msra.mxu0 0
      %964 = vmatprep.subr.bf16.mxu0 0
      %965 = vmatpush1.bf16.msra.mxu0 0
      %966 = vmatprep.subr.bf16.mxu0 0
      %967 = vmatpush1.bf16.msra.mxu0 0
      %968 = vmatprep.subr.bf16.mxu0 0
      %969 = vmatpush1.bf16.msra.mxu0 0
      %970 = vmatprep.subr.bf16.mxu0 0
      %971 = vmatpush1.bf16.msra.mxu0 %v954
      %972 = vmatprep.subr.bf16.mxu0 0
      %973 = vmatpush2.bf16.msra.mxu0 0
      %974 = vmatprep.subr.bf16.mxu0 0
      %975 = vmatpush2.bf16.msra.mxu0 0
      %976 = vmatprep.subr.bf16.mxu0 0
      %977 = vmatpush2.bf16.msra.mxu0 0
      %978 = vmatprep.subr.bf16.mxu0 0
      %979 = vmatpush2.bf16.msra.mxu0 0
      %980 = vmatprep.subr.bf16.mxu0 0
      %981 = vmatpush2.bf16.msra.mxu0 0
      %982 = vmatprep.subr.bf16.mxu0 0
      %983 = vmatpush2.bf16.msra.mxu0 0
      %984 = vmatprep.subr.bf16.mxu0 0
      %985 = vmatpush2.bf16.msra.mxu0 0
      %986 = vmatprep.subr.bf16.mxu0 0
      %987 = vmatpush2.bf16.msra.mxu0 0
      %988 = vmatprep.mubr.bf16.mxu0 0
      %989 = vmatmul.mubr.bf16.gmra.mxu0 %v929
      %v990 = vpop.f32.mrf.mxu0
      %v991 = vadd.f32 0.0, %v990
      %v992 = vpop.f32.mrf.mxu0
      %v993 = vpop.f32.mrf.mxu0
      %v994 = vadd.f32 0.0, %v993
      %v995 = vpop.f32.mrf.mxu0
      %996 = vmatprep.mubr.bf16.mxu0 0
      %997 = vmatmul.mubr.bf16.gmra.mxu0 %v932
      %v998 = vpop.f32.mrf.mxu0
      %v999 = vadd.f32 0.0, %v998
      %v1000 = vpop.f32.mrf.mxu0
      %v1001 = vpop.f32.mrf.mxu0
      %v1002 = vadd.f32 0.0, %v1001
      %v1003 = vpop.f32.mrf.mxu0
      %1004 = vmatprep.mubr.bf16.mxu0 0
      %1005 = vmatmul.mubr.bf16.gmra.mxu0 %v935
      %v1006 = vpop.f32.mrf.mxu0
      %v1007 = vadd.f32 0.0, %v1006
      %v1008 = vpop.f32.mrf.mxu0
      %v1009 = vpop.f32.mrf.mxu0
      %v1010 = vadd.f32 0.0, %v1009
      %v1011 = vpop.f32.mrf.mxu0
      %1012 = vmatprep.mubr.bf16.mxu0 0
      %1013 = vmatmul.mubr.bf16.gmra.mxu0 %v938
      %v1014 = vpop.f32.mrf.mxu0
      %v1015 = vadd.f32 0.0, %v1014
      %v1016 = vpop.f32.mrf.mxu0
      %v1017 = vpop.f32.mrf.mxu0
      %v1018 = vadd.f32 0.0, %v1017
      %v1019 = vpop.f32.mrf.mxu0
      %1020 = vmatprep.mubr.bf16.mxu0 0
      %1021 = vmatmul.mubr.bf16.gmra.mxu0 %v941
      %v1022 = vpop.f32.mrf.mxu0
      %v1023 = vadd.f32 0.0, %v1022
      %v1024 = vpop.f32.mrf.mxu0
      %v1025 = vpop.f32.mrf.mxu0
      %v1026 = vadd.f32 0.0, %v1025
      %v1027 = vpop.f32.mrf.mxu0
      %1028 = vmatprep.mubr.bf16.mxu0 0
      %1029 = vmatmul.mubr.bf16.gmra.mxu0 %v944
      %v1030 = vpop.f32.mrf.mxu0
      %v1031 = vadd.f32 0.0, %v1030
      %v1032 = vpop.f32.mrf.mxu0
      %v1033 = vpop.f32.mrf.mxu0
      %v1034 = vadd.f32 0.0, %v1033
      %v1035 = vpop.f32.mrf.mxu0
      %1036 = vmatprep.mubr.bf16.mxu0 0
      %1037 = vmatmul.mubr.bf16.gmra.mxu0 %v947
      %v1038 = vpop.f32.mrf.mxu0
      %v1039 = vadd.f32 0.0, %v1038
      %v1040 = vpop.f32.mrf.mxu0
      %v1041 = vpop.f32.mrf.mxu0
      %v1042 = vadd.f32 0.0, %v1041
      %v1043 = vpop.f32.mrf.mxu0
      %1044 = vmatprep.mubr.bf16.mxu0 0
      %1045 = vmatmul.mubr.bf16.gmra.mxu0 %v950
      %v1046 = vpop.f32.mrf.mxu0
      %v1047 = vadd.f32 0.0, %v1046
      %v1048 = vpop.f32.mrf.mxu0
      %v1049 = vpop.f32.mrf.mxu0
      %v1050 = vadd.f32 0.0, %v1049
      %v1051 = vpop.f32.mrf.mxu0
      %1052 = vdwg.mxu0
      %v1069 = vunpack.c.l.b16 %v681
      %v1070 = vunpack.c.l.b16 %v682
      %v1071 = vunpack.c.l.b16 %v683
      %v1072 = vunpack.c.l.b16 %v684
      %v1073 = vunpack.c.l.b16 %v685
      %v1074 = vunpack.c.l.b16 %v686
      %v1075 = vunpack.c.l.b16 %v687
      %v1076 = vunpack.c.l.b16 %v688
      %v1077 = vunpack.c.l.b16 %v689
      %v1078 = vunpack.c.l.b16 %v690
      %v1079 = vunpack.c.l.b16 %v691
      %v1080 = vunpack.c.l.b16 %v692
      %v1081 = vunpack.c.l.b16 %v693
      %v1082 = vunpack.c.l.b16 %v694
      %v1083 = vunpack.c.l.b16 %v695
      %v1084 = vunpack.c.l.b16 %v696
      %v1085 = vpack.c.b16 %v1070, %v1069
      %v1086 = vpack.c.b16 %v1072, %v1071
      %v1087 = vpack.c.b16 %v1074, %v1073
      %v1088 = vpack.c.b16 %v1076, %v1075
      %v1089 = vpack.c.b16 %v1078, %v1077
      %v1090 = vpack.c.b16 %v1080, %v1079
      %v1091 = vpack.c.b16 %v1082, %v1081
      %v1092 = vpack.c.b16 %v1084, %v1083
      %v1094 = vsel %vm927, %v1085, 0
      %v1097 = vsel %vm927, %v1086, 0
      %v1100 = vsel %vm927, %v1087, 0
      %v1103 = vsel %vm927, %v1088, 0
      %v1106 = vsel %vm927, %v1089, 0
      %v1109 = vsel %vm927, %v1090, 0
      %v1112 = vsel %vm927, %v1091, 0
      %v1115 = vsel %vm927, %v1092, 0
      %v1118 = vsel %vm952, %v697, 0
      %1120 = vmatprep.subr.bf16.mxu0 0
      %1121 = vmatpush1.bf16.msra.mxu0 0
      %1122 = vmatprep.subr.bf16.mxu0 0
      %1123 = vmatpush1.bf16.msra.mxu0 0
      %1124 = vmatprep.subr.bf16.mxu0 0
      %1125 = vmatpush1.bf16.msra.mxu0 0
      %1126 = vmatprep.subr.bf16.mxu0 0
      %1127 = vmatpush1.bf16.msra.mxu0 0
      %1128 = vmatprep.subr.bf16.mxu0 0
      %1129 = vmatpush1.bf16.msra.mxu0 0
      %1130 = vmatprep.subr.bf16.mxu0 0
      %1131 = vmatpush1.bf16.msra.mxu0 0
      %1132 = vmatprep.subr.bf16.mxu0 0
      %1133 = vmatpush1.bf16.msra.mxu0 0
      %1134 = vmatprep.subr.bf16.mxu0 0
      %1135 = vmatpush1.bf16.msra.mxu0 %v1118
      %1136 = vmatprep.subr.bf16.mxu0 0
      %1137 = vmatpush2.bf16.msra.mxu0 0
      %1138 = vmatprep.subr.bf16.mxu0 0
      %1139 = vmatpush2.bf16.msra.mxu0 0
      %1140 = vmatprep.subr.bf16.mxu0 0
      %1141 = vmatpush2.bf16.msra.mxu0 0
      %1142 = vmatprep.subr.bf16.mxu0 0
      %1143 = vmatpush2.bf16.msra.mxu0 0
      %1144 = vmatprep.subr.bf16.mxu0 0
      %1145 = vmatpush2.bf16.msra.mxu0 0
      %1146 = vmatprep.subr.bf16.mxu0 0
      %1147 = vmatpush2.bf16.msra.mxu0 0
      %1148 = vmatprep.subr.bf16.mxu0 0
      %1149 = vmatpush2.bf16.msra.mxu0 0
      %1150 = vmatprep.subr.bf16.mxu0 0
      %1151 = vmatpush2.bf16.msra.mxu0 0
      %1152 = vmatprep.mubr.bf16.mxu0 0
      %1153 = vmatmul.mubr.bf16.gmra.mxu0 %v1094
      %v1154 = vpop.f32.mrf.mxu0
      %v1155 = vadd.f32 %v991, %v1154
      %v1156 = vpop.f32.mrf.mxu0
      %v1157 = vpop.f32.mrf.mxu0
      %v1158 = vadd.f32 %v994, %v1157
      %v1159 = vpop.f32.mrf.mxu0
      %1160 = vmatprep.mubr.bf16.mxu0 0
      %1161 = vmatmul.mubr.bf16.gmra.mxu0 %v1097
      %v1162 = vpop.f32.mrf.mxu0
      %v1163 = vadd.f32 %v999, %v1162
      %v1164 = vpop.f32.mrf.mxu0
      %v1165 = vpop.f32.mrf.mxu0
      %v1166 = vadd.f32 %v1002, %v1165
      %v1167 = vpop.f32.mrf.mxu0
      %1168 = vmatprep.mubr.bf16.mxu0 0
      %1169 = vmatmul.mubr.bf16.gmra.mxu0 %v1100
      %v1170 = vpop.f32.mrf.mxu0
      %v1171 = vadd.f32 %v1007, %v1170
      %v1172 = vpop.f32.mrf.mxu0
      %v1173 = vpop.f32.mrf.mxu0
      %v1174 = vadd.f32 %v1010, %v1173
      %v1175 = vpop.f32.mrf.mxu0
      %1176 = vmatprep.mubr.bf16.mxu0 0
      %1177 = vmatmul.mubr.bf16.gmra.mxu0 %v1103
      %v1178 = vpop.f32.mrf.mxu0
      %v1179 = vadd.f32 %v1015, %v1178
      %v1180 = vpop.f32.mrf.mxu0
      %v1181 = vpop.f32.mrf.mxu0
      %v1182 = vadd.f32 %v1018, %v1181
      %v1183 = vpop.f32.mrf.mxu0
      %1184 = vmatprep.mubr.bf16.mxu0 0
      %1185 = vmatmul.mubr.bf16.gmra.mxu0 %v1106
      %v1186 = vpop.f32.mrf.mxu0
      %v1187 = vadd.f32 %v1023, %v1186
      %v1188 = vpop.f32.mrf.mxu0
      %v1189 = vpop.f32.mrf.mxu0
      %v1190 = vadd.f32 %v1026, %v1189
      %v1191 = vpop.f32.mrf.mxu0
      %1192 = vmatprep.mubr.bf16.mxu0 0
      %1193 = vmatmul.mubr.bf16.gmra.mxu0 %v1109
      %v1194 = vpop.f32.mrf.mxu0
      %v1195 = vadd.f32 %v1031, %v1194
      %v1196 = vpop.f32.mrf.mxu0
      %v1197 = vpop.f32.mrf.mxu0
      %v1198 = vadd.f32 %v1034, %v1197
      %v1199 = vpop.f32.mrf.mxu0
      %1200 = vmatprep.mubr.bf16.mxu0 0
      %1201 = vmatmul.mubr.bf16.gmra.mxu0 %v1112
      %v1202 = vpop.f32.mrf.mxu0
      %v1203 = vadd.f32 %v1039, %v1202
      %v1204 = vpop.f32.mrf.mxu0
      %v1205 = vpop.f32.mrf.mxu0
      %v1206 = vadd.f32 %v1042, %v1205
      %v1207 = vpop.f32.mrf.mxu0
      %1208 = vmatprep.mubr.bf16.mxu0 0
      %1209 = vmatmul.mubr.bf16.gmra.mxu0 %v1115
      %v1210 = vpop.f32.mrf.mxu0
      %v1211 = vadd.f32 %v1047, %v1210
      %v1212 = vpop.f32.mrf.mxu0
      %v1213 = vpop.f32.mrf.mxu0
      %v1214 = vadd.f32 %v1050, %v1213
      %v1215 = vpop.f32.mrf.mxu0
      %1216 = vdwg.mxu0
      %v1217 = vld [vmem:[#allocation2] sm:$0xe]
      %v1218 = vld [vmem:[#allocation2 + $0xc] sm:$0xe]
      %v1219 = vld [vmem:[#allocation2 + $0x18] sm:$0xe]
      %v1220 = vld [vmem:[#allocation2 + $0x24] sm:$0xe]
      %v1221 = vld [vmem:[#allocation2 + $0x30] sm:$0xe]
      %v1222 = vld [vmem:[#allocation2 + $0x3c] sm:$0xe]
      %v1223 = vld [vmem:[#allocation2 + $0x48] sm:$0xe]
      %v1224 = vld [vmem:[#allocation2 + $0x54] sm:$0xe]
      %vm1241 = vcmask 1042432
      %vm1242 = vcmask 1046532
      %vm1243 = vmor %vm1241, %vm1242
      %v1244 = vrot.slane %v1217, 5
      %v1245 = vrot.slane %v1244, 4
      %v1246 = vrot.slane %v682, 5
      %v1247 = vsel %vm1243, %v1245, %v1246
      %v1248 = vrot.slane %v1246, 4
      %v1249 = vrot.slane %v698, 5
      %v1250 = vsel %vm1243, %v1248, %v1249
      %v1251 = vrot.slane %v1218, 5
      %v1252 = vrot.slane %v1251, 4
      %v1253 = vrot.slane %v684, 5
      %v1254 = vsel %vm1243, %v1252, %v1253
      %v1255 = vrot.slane %v1253, 4
      %v1256 = vrot.slane %v699, 5
      %v1257 = vsel %vm1243, %v1255, %v1256
      %v1258 = vrot.slane %v1219, 5
      %v1259 = vrot.slane %v1258, 4
      %v1260 = vrot.slane %v686, 5
      %v1261 = vsel %vm1243, %v1259, %v1260
      %v1262 = vrot.slane %v1260, 4
      %v1263 = vrot.slane %v700, 5
      %v1264 = vsel %vm1243, %v1262, %v1263
      %v1265 = vrot.slane %v1220, 5
      %v1266 = vrot.slane %v1265, 4
      %v1267 = vrot.slane %v688, 5
      %v1268 = vsel %vm1243, %v1266, %v1267
      %v1269 = vrot.slane %v1267, 4
      %v1270 = vrot.slane %v701, 5
      %v1271 = vsel %vm1243, %v1269, %v1270
      %v1272 = vrot.slane %v1221, 5
      %v1273 = vrot.slane %v1272, 4
      %v1274 = vrot.slane %v690, 5
      %v1275 = vsel %vm1243, %v1273, %v1274
      %v1276 = vrot.slane %v1274, 4
      %v1277 = vrot.slane %v702, 5
      %v1278 = vsel %vm1243, %v1276, %v1277
      %v1279 = vrot.slane %v1222, 5
      %v1280 = vrot.slane %v1279, 4
      %v1281 = vrot.slane %v692, 5
      %v1282 = vsel %vm1243, %v1280, %v1281
      %v1283 = vrot.slane %v1281, 4
      %v1284 = vrot.slane %v703, 5
      %v1285 = vsel %vm1243, %v1283, %v1284
      %v1286 = vrot.slane %v1223, 5
      %v1287 = vrot.slane %v1286, 4
      %v1288 = vrot.slane %v694, 5
      %v1289 = vsel %vm1243, %v1287, %v1288
      %v1290 = vrot.slane %v1288, 4
      %v1291 = vrot.slane %v704, 5
      %v1292 = vsel %vm1243, %v1290, %v1291
      %v1293 = vrot.slane %v1224, 5
      %v1294 = vrot.slane %v1293, 4
      %v1295 = vrot.slane %v696, 5
      %v1296 = vsel %vm1243, %v1294, %v1295
      %v1297 = vrot.slane %v1295, 4
      %v1298 = vrot.slane %v705, 5
      %v1299 = vsel %vm1243, %v1297, %v1298
      %s1300 = scalar_lea.vmem %s1, 4
      %v1301 = vld [vmem:[%s1300] sm:$0x3]
      %v1302 = vunpack.c.l.b16 %v1247
      %v1303 = vunpack.c.l.b16 %v1250
      %v1304 = vunpack.c.l.b16 %v1254
      %v1305 = vunpack.c.l.b16 %v1257
      %v1306 = vunpack.c.l.b16 %v1261
      %v1307 = vunpack.c.l.b16 %v1264
      %v1308 = vunpack.c.l.b16 %v1268
      %v1309 = vunpack.c.l.b16 %v1271
      %v1310 = vunpack.c.l.b16 %v1275
      %v1311 = vunpack.c.l.b16 %v1278
      %v1312 = vunpack.c.l.b16 %v1282
      %v1313 = vunpack.c.l.b16 %v1285
      %v1314 = vunpack.c.l.b16 %v1289
      %v1315 = vunpack.c.l.b16 %v1292
      %v1316 = vunpack.c.l.b16 %v1296
      %v1317 = vunpack.c.l.b16 %v1299
      %v1318 = vpack.c.b16 %v1303, %v1302
      %v1319 = vpack.c.b16 %v1305, %v1304
      %v1320 = vpack.c.b16 %v1307, %v1306
      %v1321 = vpack.c.b16 %v1309, %v1308
      %v1322 = vpack.c.b16 %v1311, %v1310
      %v1323 = vpack.c.b16 %v1313, %v1312
      %v1324 = vpack.c.b16 %v1315, %v1314
      %v1325 = vpack.c.b16 %v1317, %v1316
      %v1327 = vsel %vm927, %v1318, 0
      %v1330 = vsel %vm927, %v1319, 0
      %v1333 = vsel %vm927, %v1320, 0
      %v1336 = vsel %vm927, %v1321, 0
      %v1339 = vsel %vm927, %v1322, 0
      %v1342 = vsel %vm927, %v1323, 0
      %v1345 = vsel %vm927, %v1324, 0
      %v1348 = vsel %vm927, %v1325, 0
      %v1351 = vsel %vm952, %v1301, 0
      %1353 = vmatprep.subr.bf16.mxu0 0
      %1354 = vmatpush1.bf16.msra.mxu0 0
      %1355 = vmatprep.subr.bf16.mxu0 0
      %1356 = vmatpush1.bf16.msra.mxu0 0
      %1357 = vmatprep.subr.bf16.mxu0 0
      %1358 = vmatpush1.bf16.msra.mxu0 0
      %1359 = vmatprep.subr.bf16.mxu0 0
      %1360 = vmatpush1.bf16.msra.mxu0 0
      %1361 = vmatprep.subr.bf16.mxu0 0
      %1362 = vmatpush1.bf16.msra.mxu0 0
      %1363 = vmatprep.subr.bf16.mxu0 0
      %1364 = vmatpush1.bf16.msra.mxu0 0
      %1365 = vmatprep.subr.bf16.mxu0 0
      %1366 = vmatpush1.bf16.msra.mxu0 0
      %1367 = vmatprep.subr.bf16.mxu0 0
      %1368 = vmatpush1.bf16.msra.mxu0 %v1351
      %1369 = vmatprep.subr.bf16.mxu0 0
      %1370 = vmatpush2.bf16.msra.mxu0 0
      %1371 = vmatprep.subr.bf16.mxu0 0
      %1372 = vmatpush2.bf16.msra.mxu0 0
      %1373 = vmatprep.subr.bf16.mxu0 0
      %1374 = vmatpush2.bf16.msra.mxu0 0
      %1375 = vmatprep.subr.bf16.mxu0 0
      %1376 = vmatpush2.bf16.msra.mxu0 0
      %1377 = vmatprep.subr.bf16.mxu0 0
      %1378 = vmatpush2.bf16.msra.mxu0 0
      %1379 = vmatprep.subr.bf16.mxu0 0
      %1380 = vmatpush2.bf16.msra.mxu0 0
      %1381 = vmatprep.subr.bf16.mxu0 0
      %1382 = vmatpush2.bf16.msra.mxu0 0
      %1383 = vmatprep.subr.bf16.mxu0 0
      %1384 = vmatpush2.bf16.msra.mxu0 0
      %1385 = vmatprep.mubr.bf16.mxu0 0
      %1386 = vmatmul.mubr.bf16.gmra.mxu0 %v1327
      %v1387 = vpop.f32.mrf.mxu0
      %v1388 = vadd.f32 0.0, %v1387
      %v1389 = vpop.f32.mrf.mxu0
      %v1390 = vpop.f32.mrf.mxu0
      %v1391 = vadd.f32 0.0, %v1390
      %v1392 = vpop.f32.mrf.mxu0
      %1393 = vmatprep.mubr.bf16.mxu0 0
      %1394 = vmatmul.mubr.bf16.gmra.mxu0 %v1330
      %v1395 = vpop.f32.mrf.mxu0
      %v1396 = vadd.f32 0.0, %v1395
      %v1397 = vpop.f32.mrf.mxu0
      %v1398 = vpop.f32.mrf.mxu0
      %v1399 = vadd.f32 0.0, %v1398
      %v1400 = vpop.f32.mrf.mxu0
      %1401 = vmatprep.mubr.bf16.mxu0 0
      %1402 = vmatmul.mubr.bf16.gmra.mxu0 %v1333
      %v1403 = vpop.f32.mrf.mxu0
      %v1404 = vadd.f32 0.0, %v1403
      %v1405 = vpop.f32.mrf.mxu0
      %v1406 = vpop.f32.mrf.mxu0
      %v1407 = vadd.f32 0.0, %v1406
      %v1408 = vpop.f32.mrf.mxu0
      %1409 = vmatprep.mubr.bf16.mxu0 0
      %1410 = vmatmul.mubr.bf16.gmra.mxu0 %v1336
      %v1411 = vpop.f32.mrf.mxu0
      %v1412 = vadd.f32 0.0, %v1411
      %v1413 = vpop.f32.mrf.mxu0
      %v1414 = vpop.f32.mrf.mxu0
      %v1415 = vadd.f32 0.0, %v1414
      %v1416 = vpop.f32.mrf.mxu0
      %1417 = vmatprep.mubr.bf16.mxu0 0
      %1418 = vmatmul.mubr.bf16.gmra.mxu0 %v1339
      %v1419 = vpop.f32.mrf.mxu0
      %v1420 = vadd.f32 0.0, %v1419
      %v1421 = vpop.f32.mrf.mxu0
      %v1422 = vpop.f32.mrf.mxu0
      %v1423 = vadd.f32 0.0, %v1422
      %v1424 = vpop.f32.mrf.mxu0
      %1425 = vmatprep.mubr.bf16.mxu0 0
      %1426 = vmatmul.mubr.bf16.gmra.mxu0 %v1342
      %v1427 = vpop.f32.mrf.mxu0
      %v1428 = vadd.f32 0.0, %v1427
      %v1429 = vpop.f32.mrf.mxu0
      %v1430 = vpop.f32.mrf.mxu0
      %v1431 = vadd.f32 0.0, %v1430
      %v1432 = vpop.f32.mrf.mxu0
      %1433 = vmatprep.mubr.bf16.mxu0 0
      %1434 = vmatmul.mubr.bf16.gmra.mxu0 %v1345
      %v1435 = vpop.f32.mrf.mxu0
      %v1436 = vadd.f32 0.0, %v1435
      %v1437 = vpop.f32.mrf.mxu0
      %v1438 = vpop.f32.mrf.mxu0
      %v1439 = vadd.f32 0.0, %v1438
      %v1440 = vpop.f32.mrf.mxu0
      %1441 = vmatprep.mubr.bf16.mxu0 0
      %1442 = vmatmul.mubr.bf16.gmra.mxu0 %v1348
      %v1443 = vpop.f32.mrf.mxu0
      %v1444 = vadd.f32 0.0, %v1443
      %v1445 = vpop.f32.mrf.mxu0
      %v1446 = vpop.f32.mrf.mxu0
      %v1447 = vadd.f32 0.0, %v1446
      %v1448 = vpop.f32.mrf.mxu0
      %1449 = vdwg.mxu0
      %v1450 = vadd.f32 %v1155, %v1388
      %v1451 = vadd.f32 %v1158, %v1391
      %v1452 = vadd.f32 %v1163, %v1396
      %v1453 = vadd.f32 %v1166, %v1399
      %v1454 = vadd.f32 %v1171, %v1404
      %v1455 = vadd.f32 %v1174, %v1407
      %v1456 = vadd.f32 %v1179, %v1412
      %v1457 = vadd.f32 %v1182, %v1415
      %v1458 = vadd.f32 %v1187, %v1420
      %v1459 = vadd.f32 %v1190, %v1423
      %v1460 = vadd.f32 %v1195, %v1428
      %v1461 = vadd.f32 %v1198, %v1431
      %v1462 = vadd.f32 %v1203, %v1436
      %v1463 = vadd.f32 %v1206, %v1439
      %v1464 = vadd.f32 %v1211, %v1444
      %v1465 = vadd.f32 %v1214, %v1447
      %v1466 = vld [vmem:[%s538] sm:$0xf]
      %v1467 = vld [vmem:[%s538 + $0x4] sm:$0xf]
      %v1468 = vld [vmem:[%s538 + $0xc] sm:$0xf]
      %v1469 = vld [vmem:[%s538 + $0x10] sm:$0xf]
      %v1470 = vld [vmem:[%s538 + $0x18] sm:$0xf]
      %v1471 = vld [vmem:[%s538 + $0x1c] sm:$0xf]
      %v1472 = vld [vmem:[%s538 + $0x24] sm:$0xf]
      %v1473 = vld [vmem:[%s538 + $0x28] sm:$0xf]
      %v1474 = vld [vmem:[%s538 + $0x30] sm:$0xf]
      %v1475 = vld [vmem:[%s538 + $0x34] sm:$0xf]
      %v1476 = vld [vmem:[%s538 + $0x3c] sm:$0xf]
      %v1477 = vld [vmem:[%s538 + $0x40] sm:$0xf]
      %v1478 = vld [vmem:[%s538 + $0x48] sm:$0xf]
      %v1479 = vld [vmem:[%s538 + $0x4c] sm:$0xf]
      %v1480 = vld [vmem:[%s538 + $0x54] sm:$0xf]
      %v1481 = vld [vmem:[%s538 + $0x58] sm:$0xf]
      %s1482 = scalar_lea.vmem %s1, 6
      %v1483 = vld [vmem:[%s1482] sm:$0x3]
      %v1500 = vunpack.c.l.b16 %v1466
      %v1501 = vunpack.c.l.b16 %v1467
      %v1502 = vunpack.c.l.b16 %v1468
      %v1503 = vunpack.c.l.b16 %v1469
      %v1504 = vunpack.c.l.b16 %v1470
      %v1505 = vunpack.c.l.b16 %v1471
      %v1506 = vunpack.c.l.b16 %v1472
      %v1507 = vunpack.c.l.b16 %v1473
      %v1508 = vunpack.c.l.b16 %v1474
      %v1509 = vunpack.c.l.b16 %v1475
      %v1510 = vunpack.c.l.b16 %v1476
      %v1511 = vunpack.c.l.b16 %v1477
      %v1512 = vunpack.c.l.b16 %v1478
      %v1513 = vunpack.c.l.b16 %v1479
      %v1514 = vunpack.c.l.b16 %v1480
      %v1515 = vunpack.c.l.b16 %v1481
      %v1516 = vpack.c.b16 %v1501, %v1500
      %v1517 = vpack.c.b16 %v1503, %v1502
      %v1518 = vpack.c.b16 %v1505, %v1504
      %v1519 = vpack.c.b16 %v1507, %v1506
      %v1520 = vpack.c.b16 %v1509, %v1508
      %v1521 = vpack.c.b16 %v1511, %v1510
      %v1522 = vpack.c.b16 %v1513, %v1512
      %v1523 = vpack.c.b16 %v1515, %v1514
      %v1525 = vsel %vm927, %v1516, 0
      %v1528 = vsel %vm927, %v1517, 0
      %v1531 = vsel %vm927, %v1518, 0
      %v1534 = vsel %vm927, %v1519, 0
      %v1537 = vsel %vm927, %v1520, 0
      %v1540 = vsel %vm927, %v1521, 0
      %v1543 = vsel %vm927, %v1522, 0
      %v1546 = vsel %vm927, %v1523, 0
      %v1549 = vsel %vm952, %v1483, 0
      %1551 = vmatprep.subr.bf16.mxu0 0
      %1552 = vmatpush1.bf16.msra.mxu0 0
      %1553 = vmatprep.subr.bf16.mxu0 0
      %1554 = vmatpush1.bf16.msra.mxu0 0
      %1555 = vmatprep.subr.bf16.mxu0 0
      %1556 = vmatpush1.bf16.msra.mxu0 0
      %1557 = vmatprep.subr.bf16.mxu0 0
      %1558 = vmatpush1.bf16.msra.mxu0 0
      %1559 = vmatprep.subr.bf16.mxu0 0
      %1560 = vmatpush1.bf16.msra.mxu0 0
      %1561 = vmatprep.subr.bf16.mxu0 0
      %1562 = vmatpush1.bf16.msra.mxu0 0
      %1563 = vmatprep.subr.bf16.mxu0 0
      %1564 = vmatpush1.bf16.msra.mxu0 0
      %1565 = vmatprep.subr.bf16.mxu0 0
      %1566 = vmatpush1.bf16.msra.mxu0 %v1549
      %1567 = vmatprep.subr.bf16.mxu0 0
      %1568 = vmatpush2.bf16.msra.mxu0 0
      %1569 = vmatprep.subr.bf16.mxu0 0
      %1570 = vmatpush2.bf16.msra.mxu0 0
      %1571 = vmatprep.subr.bf16.mxu0 0
      %1572 = vmatpush2.bf16.msra.mxu0 0
      %1573 = vmatprep.subr.bf16.mxu0 0
      %1574 = vmatpush2.bf16.msra.mxu0 0
      %1575 = vmatprep.subr.bf16.mxu0 0
      %1576 = vmatpush2.bf16.msra.mxu0 0
      %1577 = vmatprep.subr.bf16.mxu0 0
      %1578 = vmatpush2.bf16.msra.mxu0 0
      %1579 = vmatprep.subr.bf16.mxu0 0
      %1580 = vmatpush2.bf16.msra.mxu0 0
      %1581 = vmatprep.subr.bf16.mxu0 0
      %1582 = vmatpush2.bf16.msra.mxu0 0
      %1583 = vmatprep.mubr.bf16.mxu0 0
      %1584 = vmatmul.mubr.bf16.gmra.mxu0 %v1525
      %v1585 = vpop.f32.mrf.mxu0
      %v1586 = vadd.f32 0.0, %v1585
      %v1587 = vpop.f32.mrf.mxu0
      %v1588 = vpop.f32.mrf.mxu0
      %v1589 = vadd.f32 0.0, %v1588
      %v1590 = vpop.f32.mrf.mxu0
      %1591 = vmatprep.mubr.bf16.mxu0 0
      %1592 = vmatmul.mubr.bf16.gmra.mxu0 %v1528
      %v1593 = vpop.f32.mrf.mxu0
      %v1594 = vadd.f32 0.0, %v1593
      %v1595 = vpop.f32.mrf.mxu0
      %v1596 = vpop.f32.mrf.mxu0
      %v1597 = vadd.f32 0.0, %v1596
      %v1598 = vpop.f32.mrf.mxu0
      %1599 = vmatprep.mubr.bf16.mxu0 0
      %1600 = vmatmul.mubr.bf16.gmra.mxu0 %v1531
      %v1601 = vpop.f32.mrf.mxu0
      %v1602 = vadd.f32 0.0, %v1601
      %v1603 = vpop.f32.mrf.mxu0
      %v1604 = vpop.f32.mrf.mxu0
      %v1605 = vadd.f32 0.0, %v1604
      %v1606 = vpop.f32.mrf.mxu0
      %1607 = vmatprep.mubr.bf16.mxu0 0
      %1608 = vmatmul.mubr.bf16.gmra.mxu0 %v1534
      %v1609 = vpop.f32.mrf.mxu0
      %v1610 = vadd.f32 0.0, %v1609
      %v1611 = vpop.f32.mrf.mxu0
      %v1612 = vpop.f32.mrf.mxu0
      %v1613 = vadd.f32 0.0, %v1612
      %v1614 = vpop.f32.mrf.mxu0
      %1615 = vmatprep.mubr.bf16.mxu0 0
      %1616 = vmatmul.mubr.bf16.gmra.mxu0 %v1537
      %v1617 = vpop.f32.mrf.mxu0
      %v1618 = vadd.f32 0.0, %v1617
      %v1619 = vpop.f32.mrf.mxu0
      %v1620 = vpop.f32.mrf.mxu0
      %v1621 = vadd.f32 0.0, %v1620
      %v1622 = vpop.f32.mrf.mxu0
      %1623 = vmatprep.mubr.bf16.mxu0 0
      %1624 = vmatmul.mubr.bf16.gmra.mxu0 %v1540
      %v1625 = vpop.f32.mrf.mxu0
      %v1626 = vadd.f32 0.0, %v1625
      %v1627 = vpop.f32.mrf.mxu0
      %v1628 = vpop.f32.mrf.mxu0
      %v1629 = vadd.f32 0.0, %v1628
      %v1630 = vpop.f32.mrf.mxu0
      %1631 = vmatprep.mubr.bf16.mxu0 0
      %1632 = vmatmul.mubr.bf16.gmra.mxu0 %v1543
      %v1633 = vpop.f32.mrf.mxu0
      %v1634 = vadd.f32 0.0, %v1633
      %v1635 = vpop.f32.mrf.mxu0
      %v1636 = vpop.f32.mrf.mxu0
      %v1637 = vadd.f32 0.0, %v1636
      %v1638 = vpop.f32.mrf.mxu0
      %1639 = vmatprep.mubr.bf16.mxu0 0
      %1640 = vmatmul.mubr.bf16.gmra.mxu0 %v1546
      %v1641 = vpop.f32.mrf.mxu0
      %v1642 = vadd.f32 0.0, %v1641
      %v1643 = vpop.f32.mrf.mxu0
      %v1644 = vpop.f32.mrf.mxu0
      %v1645 = vadd.f32 0.0, %v1644
      %v1646 = vpop.f32.mrf.mxu0
      %1647 = vdwg.mxu0
      %v1648 = vadd.f32 %v1450, %v1586
      %v1649 = vadd.f32 %v1451, %v1589
      %v1650 = vadd.f32 %v1452, %v1594
      %v1651 = vadd.f32 %v1453, %v1597
      %v1652 = vadd.f32 %v1454, %v1602
      %v1653 = vadd.f32 %v1455, %v1605
      %v1654 = vadd.f32 %v1456, %v1610
      %v1655 = vadd.f32 %v1457, %v1613
      %v1656 = vadd.f32 %v1458, %v1618
      %v1657 = vadd.f32 %v1459, %v1621
      %v1658 = vadd.f32 %v1460, %v1626
      %v1659 = vadd.f32 %v1461, %v1629
      %v1660 = vadd.f32 %v1462, %v1634
      %v1661 = vadd.f32 %v1463, %v1637
      %v1662 = vadd.f32 %v1464, %v1642
      %v1663 = vadd.f32 %v1465, %v1645
      %v1664 = vld [vmem:[%s538] sm:$0xf]
      %v1665 = vld [vmem:[%s538 + $0x4] sm:$0xf]
      %v1666 = vld [vmem:[%s538 + $0x8] sm:$0x1]
      %v1667 = vld [vmem:[%s538 + $0xc] sm:$0xf]
      %v1668 = vld [vmem:[%s538 + $0x10] sm:$0xf]
      %v1669 = vld [vmem:[%s538 + $0x14] sm:$0x1]
      %v1670 = vld [vmem:[%s538 + $0x18] sm:$0xf]
      %v1671 = vld [vmem:[%s538 + $0x1c] sm:$0xf]
      %v1672 = vld [vmem:[%s538 + $0x20] sm:$0x1]
      %v1673 = vld [vmem:[%s538 + $0x24] sm:$0xf]
      %v1674 = vld [vmem:[%s538 + $0x28] sm:$0xf]
      %v1675 = vld [vmem:[%s538 + $0x2c] sm:$0x1]
      %v1676 = vld [vmem:[%s538 + $0x30] sm:$0xf]
      %v1677 = vld [vmem:[%s538 + $0x34] sm:$0xf]
      %v1678 = vld [vmem:[%s538 + $0x38] sm:$0x1]
      %v1679 = vld [vmem:[%s538 + $0x3c] sm:$0xf]
      %v1680 = vld [vmem:[%s538 + $0x40] sm:$0xf]
      %v1681 = vld [vmem:[%s538 + $0x44] sm:$0x1]
      %v1682 = vld [vmem:[%s538 + $0x48] sm:$0xf]
      %v1683 = vld [vmem:[%s538 + $0x4c] sm:$0xf]
      %v1684 = vld [vmem:[%s538 + $0x50] sm:$0x1]
      %v1685 = vld [vmem:[%s538 + $0x54] sm:$0xf]
      %v1686 = vld [vmem:[%s538 + $0x58] sm:$0xf]
      %v1687 = vld [vmem:[%s538 + $0x5c] sm:$0x1]
      %v1689 = vshrl.u32 %v1664, 16
      %v1691 = vrot.slane %v1689, 4
      %v1692 = vshll.u32 %v1664, 16
      %v1694 = vrot.slane %v1692, 5
      %v1695 = vor.u32 %v1691, %v1694
      %v1696 = vrot.slane %v1695, 4
      %v1698 = vshll.u32 %v1665, 16
      %v1700 = vrot.slane %v1698, 5
      %v1701 = vsel %vm708, %v1696, %v1700
      %v1702 = vshrl.u32 %v1665, 16
      %v1704 = vrot.slane %v1702, 4
      %v1705 = vor.u32 %v1704, %v1700
      %v1706 = vrot.slane %v1705, 4
      %v1708 = vshll.u32 %v1666, 16
      %v1710 = vrot.slane %v1708, 5
      %v1711 = vsel %vm708, %v1706, %v1710
      %v1713 = vshrl.u32 %v1667, 16
      %v1715 = vrot.slane %v1713, 4
      %v1716 = vshll.u32 %v1667, 16
      %v1718 = vrot.slane %v1716, 5
      %v1719 = vor.u32 %v1715, %v1718
      %v1720 = vrot.slane %v1719, 4
      %v1722 = vshll.u32 %v1668, 16
      %v1724 = vrot.slane %v1722, 5
      %v1725 = vsel %vm708, %v1720, %v1724
      %v1726 = vshrl.u32 %v1668, 16
      %v1728 = vrot.slane %v1726, 4
      %v1729 = vor.u32 %v1728, %v1724
      %v1730 = vrot.slane %v1729, 4
      %v1732 = vshll.u32 %v1669, 16
      %v1734 = vrot.slane %v1732, 5
      %v1735 = vsel %vm708, %v1730, %v1734
      %v1737 = vshrl.u32 %v1670, 16
      %v1739 = vrot.slane %v1737, 4
      %v1740 = vshll.u32 %v1670, 16
      %v1742 = vrot.slane %v1740, 5
      %v1743 = vor.u32 %v1739, %v1742
      %v1744 = vrot.slane %v1743, 4
      %v1746 = vshll.u32 %v1671, 16
      %v1748 = vrot.slane %v1746, 5
      %v1749 = vsel %vm708, %v1744, %v1748
      %v1750 = vshrl.u32 %v1671, 16
      %v1752 = vrot.slane %v1750, 4
      %v1753 = vor.u32 %v1752, %v1748
      %v1754 = vrot.slane %v1753, 4
      %v1756 = vshll.u32 %v1672, 16
      %v1758 = vrot.slane %v1756, 5
      %v1759 = vsel %vm708, %v1754, %v1758
      %v1761 = vshrl.u32 %v1673, 16
      %v1763 = vrot.slane %v1761, 4
      %v1764 = vshll.u32 %v1673, 16
      %v1766 = vrot.slane %v1764, 5
      %v1767 = vor.u32 %v1763, %v1766
      %v1768 = vrot.slane %v1767, 4
      %v1770 = vshll.u32 %v1674, 16
      %v1772 = vrot.slane %v1770, 5
      %v1773 = vsel %vm708, %v1768, %v1772
      %v1774 = vshrl.u32 %v1674, 16
      %v1776 = vrot.slane %v1774, 4
      %v1777 = vor.u32 %v1776, %v1772
      %v1778 = vrot.slane %v1777, 4
      %v1780 = vshll.u32 %v1675, 16
      %v1782 = vrot.slane %v1780, 5
      %v1783 = vsel %vm708, %v1778, %v1782
      %v1785 = vshrl.u32 %v1676, 16
      %v1787 = vrot.slane %v1785, 4
      %v1788 = vshll.u32 %v1676, 16
      %v1790 = vrot.slane %v1788, 5
      %v1791 = vor.u32 %v1787, %v1790
      %v1792 = vrot.slane %v1791, 4
      %v1794 = vshll.u32 %v1677, 16
      %v1796 = vrot.slane %v1794, 5
      %v1797 = vsel %vm708, %v1792, %v1796
      %v1798 = vshrl.u32 %v1677, 16
      %v1800 = vrot.slane %v1798, 4
      %v1801 = vor.u32 %v1800, %v1796
      %v1802 = vrot.slane %v1801, 4
      %v1804 = vshll.u32 %v1678, 16
      %v1806 = vrot.slane %v1804, 5
      %v1807 = vsel %vm708, %v1802, %v1806
      %v1809 = vshrl.u32 %v1679, 16
      %v1811 = vrot.slane %v1809, 4
      %v1812 = vshll.u32 %v1679, 16
      %v1814 = vrot.slane %v1812, 5
      %v1815 = vor.u32 %v1811, %v1814
      %v1816 = vrot.slane %v1815, 4
      %v1818 = vshll.u32 %v1680, 16
      %v1820 = vrot.slane %v1818, 5
      %v1821 = vsel %vm708, %v1816, %v1820
      %v1822 = vshrl.u32 %v1680, 16
      %v1824 = vrot.slane %v1822, 4
      %v1825 = vor.u32 %v1824, %v1820
      %v1826 = vrot.slane %v1825, 4
      %v1828 = vshll.u32 %v1681, 16
      %v1830 = vrot.slane %v1828, 5
      %v1831 = vsel %vm708, %v1826, %v1830
      %v1833 = vshrl.u32 %v1682, 16
      %v1835 = vrot.slane %v1833, 4
      %v1836 = vshll.u32 %v1682, 16
      %v1838 = vrot.slane %v1836, 5
      %v1839 = vor.u32 %v1835, %v1838
      %v1840 = vrot.slane %v1839, 4
      %v1842 = vshll.u32 %v1683, 16
      %v1844 = vrot.slane %v1842, 5
      %v1845 = vsel %vm708, %v1840, %v1844
      %v1846 = vshrl.u32 %v1683, 16
      %v1848 = vrot.slane %v1846, 4
      %v1849 = vor.u32 %v1848, %v1844
      %v1850 = vrot.slane %v1849, 4
      %v1852 = vshll.u32 %v1684, 16
      %v1854 = vrot.slane %v1852, 5
      %v1855 = vsel %vm708, %v1850, %v1854
      %v1857 = vshrl.u32 %v1685, 16
      %v1859 = vrot.slane %v1857, 4
      %v1860 = vshll.u32 %v1685, 16
      %v1862 = vrot.slane %v1860, 5
      %v1863 = vor.u32 %v1859, %v1862
      %v1864 = vrot.slane %v1863, 4
      %v1866 = vshll.u32 %v1686, 16
      %v1868 = vrot.slane %v1866, 5
      %v1869 = vsel %vm708, %v1864, %v1868
      %v1870 = vshrl.u32 %v1686, 16
      %v1872 = vrot.slane %v1870, 4
      %v1873 = vor.u32 %v1872, %v1868
      %v1874 = vrot.slane %v1873, 4
      %v1876 = vshll.u32 %v1687, 16
      %v1878 = vrot.slane %v1876, 5
      %v1879 = vsel %vm708, %v1874, %v1878
      %s1880 = scalar_lea.vmem %s1, 8
      %v1881 = vld [vmem:[%s1880] sm:$0x3]
      %v1882 = vunpack.c.l.b16 %v1701
      %v1883 = vunpack.c.l.b16 %v1711
      %v1884 = vunpack.c.l.b16 %v1725
      %v1885 = vunpack.c.l.b16 %v1735
      %v1886 = vunpack.c.l.b16 %v1749
      %v1887 = vunpack.c.l.b16 %v1759
      %v1888 = vunpack.c.l.b16 %v1773
      %v1889 = vunpack.c.l.b16 %v1783
      %v1890 = vunpack.c.l.b16 %v1797
      %v1891 = vunpack.c.l.b16 %v1807
      %v1892 = vunpack.c.l.b16 %v1821
      %v1893 = vunpack.c.l.b16 %v1831
      %v1894 = vunpack.c.l.b16 %v1845
      %v1895 = vunpack.c.l.b16 %v1855
      %v1896 = vunpack.c.l.b16 %v1869
      %v1897 = vunpack.c.l.b16 %v1879
      %v1898 = vpack.c.b16 %v1883, %v1882
      %v1899 = vpack.c.b16 %v1885, %v1884
      %v1900 = vpack.c.b16 %v1887, %v1886
      %v1901 = vpack.c.b16 %v1889, %v1888
      %v1902 = vpack.c.b16 %v1891, %v1890
      %v1903 = vpack.c.b16 %v1893, %v1892
      %v1904 = vpack.c.b16 %v1895, %v1894
      %v1905 = vpack.c.b16 %v1897, %v1896
      %v1907 = vsel %vm927, %v1898, 0
      %v1910 = vsel %vm927, %v1899, 0
      %v1913 = vsel %vm927, %v1900, 0
      %v1916 = vsel %vm927, %v1901, 0
      %v1919 = vsel %vm927, %v1902, 0
      %v1922 = vsel %vm927, %v1903, 0
      %v1925 = vsel %vm927, %v1904, 0
      %v1928 = vsel %vm927, %v1905, 0
      %v1931 = vsel %vm952, %v1881, 0
      %1933 = vmatprep.subr.bf16.mxu0 0
      %1934 = vmatpush1.bf16.msra.mxu0 0
      %1935 = vmatprep.subr.bf16.mxu0 0
      %1936 = vmatpush1.bf16.msra.mxu0 0
      %1937 = vmatprep.subr.bf16.mxu0 0
      %1938 = vmatpush1.bf16.msra.mxu0 0
      %1939 = vmatprep.subr.bf16.mxu0 0
      %1940 = vmatpush1.bf16.msra.mxu0 0
      %1941 = vmatprep.subr.bf16.mxu0 0
      %1942 = vmatpush1.bf16.msra.mxu0 0
      %1943 = vmatprep.subr.bf16.mxu0 0
      %1944 = vmatpush1.bf16.msra.mxu0 0
      %1945 = vmatprep.subr.bf16.mxu0 0
      %1946 = vmatpush1.bf16.msra.mxu0 0
      %1947 = vmatprep.subr.bf16.mxu0 0
      %1948 = vmatpush1.bf16.msra.mxu0 %v1931
      %1949 = vmatprep.subr.bf16.mxu0 0
      %1950 = vmatpush2.bf16.msra.mxu0 0
      %1951 = vmatprep.subr.bf16.mxu0 0
      %1952 = vmatpush2.bf16.msra.mxu0 0
      %1953 = vmatprep.subr.bf16.mxu0 0
      %1954 = vmatpush2.bf16.msra.mxu0 0
      %1955 = vmatprep.subr.bf16.mxu0 0
      %1956 = vmatpush2.bf16.msra.mxu0 0
      %1957 = vmatprep.subr.bf16.mxu0 0
      %1958 = vmatpush2.bf16.msra.mxu0 0
      %1959 = vmatprep.subr.bf16.mxu0 0
      %1960 = vmatpush2.bf16.msra.mxu0 0
      %1961 = vmatprep.subr.bf16.mxu0 0
      %1962 = vmatpush2.bf16.msra.mxu0 0
      %1963 = vmatprep.subr.bf16.mxu0 0
      %1964 = vmatpush2.bf16.msra.mxu0 0
      %1965 = vmatprep.mubr.bf16.mxu0 0
      %1966 = vmatmul.mubr.bf16.gmra.mxu0 %v1907
      %v1967 = vpop.f32.mrf.mxu0
      %v1968 = vadd.f32 0.0, %v1967
      %v1969 = vpop.f32.mrf.mxu0
      %v1970 = vpop.f32.mrf.mxu0
      %v1971 = vadd.f32 0.0, %v1970
      %v1972 = vpop.f32.mrf.mxu0
      %1973 = vmatprep.mubr.bf16.mxu0 0
      %1974 = vmatmul.mubr.bf16.gmra.mxu0 %v1910
      %v1975 = vpop.f32.mrf.mxu0
      %v1976 = vadd.f32 0.0, %v1975
      %v1977 = vpop.f32.mrf.mxu0
      %v1978 = vpop.f32.mrf.mxu0
      %v1979 = vadd.f32 0.0, %v1978
      %v1980 = vpop.f32.mrf.mxu0
      %1981 = vmatprep.mubr.bf16.mxu0 0
      %1982 = vmatmul.mubr.bf16.gmra.mxu0 %v1913
      %v1983 = vpop.f32.mrf.mxu0
      %v1984 = vadd.f32 0.0, %v1983
      %v1985 = vpop.f32.mrf.mxu0
      %v1986 = vpop.f32.mrf.mxu0
      %v1987 = vadd.f32 0.0, %v1986
      %v1988 = vpop.f32.mrf.mxu0
      %1989 = vmatprep.mubr.bf16.mxu0 0
      %1990 = vmatmul.mubr.bf16.gmra.mxu0 %v1916
      %v1991 = vpop.f32.mrf.mxu0
      %v1992 = vadd.f32 0.0, %v1991
      %v1993 = vpop.f32.mrf.mxu0
      %v1994 = vpop.f32.mrf.mxu0
      %v1995 = vadd.f32 0.0, %v1994
      %v1996 = vpop.f32.mrf.mxu0
      %1997 = vmatprep.mubr.bf16.mxu0 0
      %1998 = vmatmul.mubr.bf16.gmra.mxu0 %v1919
      %v1999 = vpop.f32.mrf.mxu0
      %v2000 = vadd.f32 0.0, %v1999
      %v2001 = vpop.f32.mrf.mxu0
      %v2002 = vpop.f32.mrf.mxu0
      %v2003 = vadd.f32 0.0, %v2002
      %v2004 = vpop.f32.mrf.mxu0
      %2005 = vmatprep.mubr.bf16.mxu0 0
      %2006 = vmatmul.mubr.bf16.gmra.mxu0 %v1922
      %v2007 = vpop.f32.mrf.mxu0
      %v2008 = vadd.f32 0.0, %v2007
      %v2009 = vpop.f32.mrf.mxu0
      %v2010 = vpop.f32.mrf.mxu0
      %v2011 = vadd.f32 0.0, %v2010
      %v2012 = vpop.f32.mrf.mxu0
      %2013 = vmatprep.mubr.bf16.mxu0 0
      %2014 = vmatmul.mubr.bf16.gmra.mxu0 %v1925
      %v2015 = vpop.f32.mrf.mxu0
      %v2016 = vadd.f32 0.0, %v2015
      %v2017 = vpop.f32.mrf.mxu0
      %v2018 = vpop.f32.mrf.mxu0
      %v2019 = vadd.f32 0.0, %v2018
      %v2020 = vpop.f32.mrf.mxu0
      %2021 = vmatprep.mubr.bf16.mxu0 0
      %2022 = vmatmul.mubr.bf16.gmra.mxu0 %v1928
      %v2023 = vpop.f32.mrf.mxu0
      %v2024 = vadd.f32 0.0, %v2023
      %v2025 = vpop.f32.mrf.mxu0
      %v2026 = vpop.f32.mrf.mxu0
      %v2027 = vadd.f32 0.0, %v2026
      %v2028 = vpop.f32.mrf.mxu0
      %2029 = vdwg.mxu0
      %v2030 = vadd.f32 %v1648, %v1968
      %v2031 = vadd.f32 %v1649, %v1971
      %v2032 = vadd.f32 %v1650, %v1976
      %v2033 = vadd.f32 %v1651, %v1979
      %v2034 = vadd.f32 %v1652, %v1984
      %v2035 = vadd.f32 %v1653, %v1987
      %v2036 = vadd.f32 %v1654, %v1992
      %v2037 = vadd.f32 %v1655, %v1995
      %v2038 = vadd.f32 %v1656, %v2000
      %v2039 = vadd.f32 %v1657, %v2003
      %v2040 = vadd.f32 %v1658, %v2008
      %v2041 = vadd.f32 %v1659, %v2011
      %v2042 = vadd.f32 %v1660, %v2016
      %v2043 = vadd.f32 %v1661, %v2019
      %v2044 = vadd.f32 %v1662, %v2024
      %v2045 = vadd.f32 %v1663, %v2027
      %v2046 = vld [vmem:[%s538] sm:$0xe]
      %v2047 = vld [vmem:[%s538 + $0xc] sm:$0xe]
      %v2048 = vld [vmem:[%s538 + $0x18] sm:$0xe]
      %v2049 = vld [vmem:[%s538 + $0x24] sm:$0xe]
      %v2050 = vld [vmem:[%s538 + $0x30] sm:$0xe]
      %v2051 = vld [vmem:[%s538 + $0x3c] sm:$0xe]
      %v2052 = vld [vmem:[%s538 + $0x48] sm:$0xe]
      %v2053 = vld [vmem:[%s538 + $0x54] sm:$0xe]
      %v2078 = vrot.slane %v2046, 5
      %v2079 = vrot.slane %v2078, 4
      %v2080 = vrot.slane %v1665, 5
      %v2081 = vsel %vm1243, %v2079, %v2080
      %v2082 = vrot.slane %v2080, 4
      %v2083 = vrot.slane %v1666, 5
      %v2084 = vsel %vm1243, %v2082, %v2083
      %v2085 = vrot.slane %v2047, 5
      %v2086 = vrot.slane %v2085, 4
      %v2087 = vrot.slane %v1668, 5
      %v2088 = vsel %vm1243, %v2086, %v2087
      %v2089 = vrot.slane %v2087, 4
      %v2090 = vrot.slane %v1669, 5
      %v2091 = vsel %vm1243, %v2089, %v2090
      %v2092 = vrot.slane %v2048, 5
      %v2093 = vrot.slane %v2092, 4
      %v2094 = vrot.slane %v1671, 5
      %v2095 = vsel %vm1243, %v2093, %v2094
      %v2096 = vrot.slane %v2094, 4
      %v2097 = vrot.slane %v1672, 5
      %v2098 = vsel %vm1243, %v2096, %v2097
      %v2099 = vrot.slane %v2049, 5
      %v2100 = vrot.slane %v2099, 4
      %v2101 = vrot.slane %v1674, 5
      %v2102 = vsel %vm1243, %v2100, %v2101
      %v2103 = vrot.slane %v2101, 4
      %v2104 = vrot.slane %v1675, 5
      %v2105 = vsel %vm1243, %v2103, %v2104
      %v2106 = vrot.slane %v2050, 5
      %v2107 = vrot.slane %v2106, 4
      %v2108 = vrot.slane %v1677, 5
      %v2109 = vsel %vm1243, %v2107, %v2108
      %v2110 = vrot.slane %v2108, 4
      %v2111 = vrot.slane %v1678, 5
      %v2112 = vsel %vm1243, %v2110, %v2111
      %v2113 = vrot.slane %v2051, 5
      %v2114 = vrot.slane %v2113, 4
      %v2115 = vrot.slane %v1680, 5
      %v2116 = vsel %vm1243, %v2114, %v2115
      %v2117 = vrot.slane %v2115, 4
      %v2118 = vrot.slane %v1681, 5
      %v2119 = vsel %vm1243, %v2117, %v2118
      %v2120 = vrot.slane %v2052, 5
      %v2121 = vrot.slane %v2120, 4
      %v2122 = vrot.slane %v1683, 5
      %v2123 = vsel %vm1243, %v2121, %v2122
      %v2124 = vrot.slane %v2122, 4
      %v2125 = vrot.slane %v1684, 5
      %v2126 = vsel %vm1243, %v2124, %v2125
      %v2127 = vrot.slane %v2053, 5
      %v2128 = vrot.slane %v2127, 4
      %v2129 = vrot.slane %v1686, 5
      %v2130 = vsel %vm1243, %v2128, %v2129
      %v2131 = vrot.slane %v2129, 4
      %v2132 = vrot.slane %v1687, 5
      %v2133 = vsel %vm1243, %v2131, %v2132
      %s2134 = scalar_lea.vmem %s1, 10
      %v2135 = vld [vmem:[%s2134] sm:$0x3]
      %v2136 = vunpack.c.l.b16 %v2081
      %v2137 = vunpack.c.l.b16 %v2084
      %v2138 = vunpack.c.l.b16 %v2088
      %v2139 = vunpack.c.l.b16 %v2091
      %v2140 = vunpack.c.l.b16 %v2095
      %v2141 = vunpack.c.l.b16 %v2098
      %v2142 = vunpack.c.l.b16 %v2102
      %v2143 = vunpack.c.l.b16 %v2105
      %v2144 = vunpack.c.l.b16 %v2109
      %v2145 = vunpack.c.l.b16 %v2112
      %v2146 = vunpack.c.l.b16 %v2116
      %v2147 = vunpack.c.l.b16 %v2119
      %v2148 = vunpack.c.l.b16 %v2123
      %v2149 = vunpack.c.l.b16 %v2126
      %v2150 = vunpack.c.l.b16 %v2130
      %v2151 = vunpack.c.l.b16 %v2133
      %v2152 = vpack.c.b16 %v2137, %v2136
      %v2153 = vpack.c.b16 %v2139, %v2138
      %v2154 = vpack.c.b16 %v2141, %v2140
      %v2155 = vpack.c.b16 %v2143, %v2142
      %v2156 = vpack.c.b16 %v2145, %v2144
      %v2157 = vpack.c.b16 %v2147, %v2146
      %v2158 = vpack.c.b16 %v2149, %v2148
      %v2159 = vpack.c.b16 %v2151, %v2150
      %v2161 = vsel %vm927, %v2152, 0
      %v2164 = vsel %vm927, %v2153, 0
      %v2167 = vsel %vm927, %v2154, 0
      %v2170 = vsel %vm927, %v2155, 0
      %v2173 = vsel %vm927, %v2156, 0
      %v2176 = vsel %vm927, %v2157, 0
      %v2179 = vsel %vm927, %v2158, 0
      %v2182 = vsel %vm927, %v2159, 0
      %v2185 = vsel %vm952, %v2135, 0
      %2187 = vmatprep.subr.bf16.mxu0 0
      %2188 = vmatpush1.bf16.msra.mxu0 0
      %2189 = vmatprep.subr.bf16.mxu0 0
      %2190 = vmatpush1.bf16.msra.mxu0 0
      %2191 = vmatprep.subr.bf16.mxu0 0
      %2192 = vmatpush1.bf16.msra.mxu0 0
      %2193 = vmatprep.subr.bf16.mxu0 0
      %2194 = vmatpush1.bf16.msra.mxu0 0
      %2195 = vmatprep.subr.bf16.mxu0 0
      %2196 = vmatpush1.bf16.msra.mxu0 0
      %2197 = vmatprep.subr.bf16.mxu0 0
      %2198 = vmatpush1.bf16.msra.mxu0 0
      %2199 = vmatprep.subr.bf16.mxu0 0
      %2200 = vmatpush1.bf16.msra.mxu0 0
      %2201 = vmatprep.subr.bf16.mxu0 0
      %2202 = vmatpush1.bf16.msra.mxu0 %v2185
      %2203 = vmatprep.subr.bf16.mxu0 0
      %2204 = vmatpush2.bf16.msra.mxu0 0
      %2205 = vmatprep.subr.bf16.mxu0 0
      %2206 = vmatpush2.bf16.msra.mxu0 0
      %2207 = vmatprep.subr.bf16.mxu0 0
      %2208 = vmatpush2.bf16.msra.mxu0 0
      %2209 = vmatprep.subr.bf16.mxu0 0
      %2210 = vmatpush2.bf16.msra.mxu0 0
      %2211 = vmatprep.subr.bf16.mxu0 0
      %2212 = vmatpush2.bf16.msra.mxu0 0
      %2213 = vmatprep.subr.bf16.mxu0 0
      %2214 = vmatpush2.bf16.msra.mxu0 0
      %2215 = vmatprep.subr.bf16.mxu0 0
      %2216 = vmatpush2.bf16.msra.mxu0 0
      %2217 = vmatprep.subr.bf16.mxu0 0
      %2218 = vmatpush2.bf16.msra.mxu0 0
      %2219 = vmatprep.mubr.bf16.mxu0 0
      %2220 = vmatmul.mubr.bf16.gmra.mxu0 %v2161
      %v2221 = vpop.f32.mrf.mxu0
      %v2222 = vadd.f32 0.0, %v2221
      %v2223 = vpop.f32.mrf.mxu0
      %v2224 = vpop.f32.mrf.mxu0
      %v2225 = vadd.f32 0.0, %v2224
      %v2226 = vpop.f32.mrf.mxu0
      %2227 = vmatprep.mubr.bf16.mxu0 0
      %2228 = vmatmul.mubr.bf16.gmra.mxu0 %v2164
      %v2229 = vpop.f32.mrf.mxu0
      %v2230 = vadd.f32 0.0, %v2229
      %v2231 = vpop.f32.mrf.mxu0
      %v2232 = vpop.f32.mrf.mxu0
      %v2233 = vadd.f32 0.0, %v2232
      %v2234 = vpop.f32.mrf.mxu0
      %2235 = vmatprep.mubr.bf16.mxu0 0
      %2236 = vmatmul.mubr.bf16.gmra.mxu0 %v2167
      %v2237 = vpop.f32.mrf.mxu0
      %v2238 = vadd.f32 0.0, %v2237
      %v2239 = vpop.f32.mrf.mxu0
      %v2240 = vpop.f32.mrf.mxu0
      %v2241 = vadd.f32 0.0, %v2240
      %v2242 = vpop.f32.mrf.mxu0
      %2243 = vmatprep.mubr.bf16.mxu0 0
      %2244 = vmatmul.mubr.bf16.gmra.mxu0 %v2170
      %v2245 = vpop.f32.mrf.mxu0
      %v2246 = vadd.f32 0.0, %v2245
      %v2247 = vpop.f32.mrf.mxu0
      %v2248 = vpop.f32.mrf.mxu0
      %v2249 = vadd.f32 0.0, %v2248
      %v2250 = vpop.f32.mrf.mxu0
      %2251 = vmatprep.mubr.bf16.mxu0 0
      %2252 = vmatmul.mubr.bf16.gmra.mxu0 %v2173
      %v2253 = vpop.f32.mrf.mxu0
      %v2254 = vadd.f32 0.0, %v2253
      %v2255 = vpop.f32.mrf.mxu0
      %v2256 = vpop.f32.mrf.mxu0
      %v2257 = vadd.f32 0.0, %v2256
      %v2258 = vpop.f32.mrf.mxu0
      %2259 = vmatprep.mubr.bf16.mxu0 0
      %2260 = vmatmul.mubr.bf16.gmra.mxu0 %v2176
      %v2261 = vpop.f32.mrf.mxu0
      %v2262 = vadd.f32 0.0, %v2261
      %v2263 = vpop.f32.mrf.mxu0
      %v2264 = vpop.f32.mrf.mxu0
      %v2265 = vadd.f32 0.0, %v2264
      %v2266 = vpop.f32.mrf.mxu0
      %2267 = vmatprep.mubr.bf16.mxu0 0
      %2268 = vmatmul.mubr.bf16.gmra.mxu0 %v2179
      %v2269 = vpop.f32.mrf.mxu0
      %v2270 = vadd.f32 0.0, %v2269
      %v2271 = vpop.f32.mrf.mxu0
      %v2272 = vpop.f32.mrf.mxu0
      %v2273 = vadd.f32 0.0, %v2272
      %v2274 = vpop.f32.mrf.mxu0
      %2275 = vmatprep.mubr.bf16.mxu0 0
      %2276 = vmatmul.mubr.bf16.gmra.mxu0 %v2182
      %v2277 = vpop.f32.mrf.mxu0
      %v2278 = vadd.f32 0.0, %v2277
      %v2279 = vpop.f32.mrf.mxu0
      %v2280 = vpop.f32.mrf.mxu0
      %v2281 = vadd.f32 0.0, %v2280
      %v2282 = vpop.f32.mrf.mxu0
      %2283 = vdwg.mxu0
      %v2284 = vadd.f32 %v2030, %v2222
      %v2285 = vadd.f32 %v2031, %v2225
      %v2286 = vadd.f32 %v2032, %v2230
      %v2287 = vadd.f32 %v2033, %v2233
      %v2288 = vadd.f32 %v2034, %v2238
      %v2289 = vadd.f32 %v2035, %v2241
      %v2290 = vadd.f32 %v2036, %v2246
      %v2291 = vadd.f32 %v2037, %v2249
      %v2292 = vadd.f32 %v2038, %v2254
      %v2293 = vadd.f32 %v2039, %v2257
      %v2294 = vadd.f32 %v2040, %v2262
      %v2295 = vadd.f32 %v2041, %v2265
      %v2296 = vadd.f32 %v2042, %v2270
      %v2297 = vadd.f32 %v2043, %v2273
      %v2298 = vadd.f32 %v2044, %v2278
      %v2299 = vadd.f32 %v2045, %v2281
      %s2300 = scalar_lea.vmem [#allocation2], 24
      %v2301 = vld [vmem:[%s2300] sm:$0xf]
      %v2302 = vld [vmem:[%s2300 + $0x4] sm:$0xf]
      %v2303 = vld [vmem:[%s2300 + $0xc] sm:$0xf]
      %v2304 = vld [vmem:[%s2300 + $0x10] sm:$0xf]
      %v2305 = vld [vmem:[%s2300 + $0x18] sm:$0xf]
      %v2306 = vld [vmem:[%s2300 + $0x1c] sm:$0xf]
      %v2307 = vld [vmem:[%s2300 + $0x24] sm:$0xf]
      %v2308 = vld [vmem:[%s2300 + $0x28] sm:$0xf]
      %v2309 = vld [vmem:[%s2300 + $0x30] sm:$0xf]
      %v2310 = vld [vmem:[%s2300 + $0x34] sm:$0xf]
      %v2311 = vld [vmem:[%s2300 + $0x3c] sm:$0xf]
      %v2312 = vld [vmem:[%s2300 + $0x40] sm:$0xf]
      %v2313 = vld [vmem:[%s2300 + $0x48] sm:$0xf]
      %v2314 = vld [vmem:[%s2300 + $0x4c] sm:$0xf]
      %v2315 = vld [vmem:[%s2300 + $0x54] sm:$0xf]
      %v2316 = vld [vmem:[%s2300 + $0x58] sm:$0xf]
      %s2317 = scalar_lea.vmem %s1, 12
      %v2318 = vld [vmem:[%s2317] sm:$0x3]
      %v2335 = vunpack.c.l.b16 %v2301
      %v2336 = vunpack.c.l.b16 %v2302
      %v2337 = vunpack.c.l.b16 %v2303
      %v2338 = vunpack.c.l.b16 %v2304
      %v2339 = vunpack.c.l.b16 %v2305
      %v2340 = vunpack.c.l.b16 %v2306
      %v2341 = vunpack.c.l.b16 %v2307
      %v2342 = vunpack.c.l.b16 %v2308
      %v2343 = vunpack.c.l.b16 %v2309
      %v2344 = vunpack.c.l.b16 %v2310
      %v2345 = vunpack.c.l.b16 %v2311
      %v2346 = vunpack.c.l.b16 %v2312
      %v2347 = vunpack.c.l.b16 %v2313
      %v2348 = vunpack.c.l.b16 %v2314
      %v2349 = vunpack.c.l.b16 %v2315
      %v2350 = vunpack.c.l.b16 %v2316
      %v2351 = vpack.c.b16 %v2336, %v2335
      %v2352 = vpack.c.b16 %v2338, %v2337
      %v2353 = vpack.c.b16 %v2340, %v2339
      %v2354 = vpack.c.b16 %v2342, %v2341
      %v2355 = vpack.c.b16 %v2344, %v2343
      %v2356 = vpack.c.b16 %v2346, %v2345
      %v2357 = vpack.c.b16 %v2348, %v2347
      %v2358 = vpack.c.b16 %v2350, %v2349
      %v2360 = vsel %vm927, %v2351, 0
      %v2363 = vsel %vm927, %v2352, 0
      %v2366 = vsel %vm927, %v2353, 0
      %v2369 = vsel %vm927, %v2354, 0
      %v2372 = vsel %vm927, %v2355, 0
      %v2375 = vsel %vm927, %v2356, 0
      %v2378 = vsel %vm927, %v2357, 0
      %v2381 = vsel %vm927, %v2358, 0
      %v2384 = vsel %vm952, %v2318, 0
      %2386 = vmatprep.subr.bf16.mxu0 0
      %2387 = vmatpush1.bf16.msra.mxu0 0
      %2388 = vmatprep.subr.bf16.mxu0 0
      %2389 = vmatpush1.bf16.msra.mxu0 0
      %2390 = vmatprep.subr.bf16.mxu0 0
      %2391 = vmatpush1.bf16.msra.mxu0 0
      %2392 = vmatprep.subr.bf16.mxu0 0
      %2393 = vmatpush1.bf16.msra.mxu0 0
      %2394 = vmatprep.subr.bf16.mxu0 0
      %2395 = vmatpush1.bf16.msra.mxu0 0
      %2396 = vmatprep.subr.bf16.mxu0 0
      %2397 = vmatpush1.bf16.msra.mxu0 0
      %2398 = vmatprep.subr.bf16.mxu0 0
      %2399 = vmatpush1.bf16.msra.mxu0 0
      %2400 = vmatprep.subr.bf16.mxu0 0
      %2401 = vmatpush1.bf16.msra.mxu0 %v2384
      %2402 = vmatprep.subr.bf16.mxu0 0
      %2403 = vmatpush2.bf16.msra.mxu0 0
      %2404 = vmatprep.subr.bf16.mxu0 0
      %2405 = vmatpush2.bf16.msra.mxu0 0
      %2406 = vmatprep.subr.bf16.mxu0 0
      %2407 = vmatpush2.bf16.msra.mxu0 0
      %2408 = vmatprep.subr.bf16.mxu0 0
      %2409 = vmatpush2.bf16.msra.mxu0 0
      %2410 = vmatprep.subr.bf16.mxu0 0
      %2411 = vmatpush2.bf16.msra.mxu0 0
      %2412 = vmatprep.subr.bf16.mxu0 0
      %2413 = vmatpush2.bf16.msra.mxu0 0
      %2414 = vmatprep.subr.bf16.mxu0 0
      %2415 = vmatpush2.bf16.msra.mxu0 0
      %2416 = vmatprep.subr.bf16.mxu0 0
      %2417 = vmatpush2.bf16.msra.mxu0 0
      %2418 = vmatprep.mubr.bf16.mxu0 0
      %2419 = vmatmul.mubr.bf16.gmra.mxu0 %v2360
      %v2420 = vpop.f32.mrf.mxu0
      %v2421 = vadd.f32 0.0, %v2420
      %v2422 = vpop.f32.mrf.mxu0
      %v2423 = vpop.f32.mrf.mxu0
      %v2424 = vadd.f32 0.0, %v2423
      %v2425 = vpop.f32.mrf.mxu0
      %2426 = vmatprep.mubr.bf16.mxu0 0
      %2427 = vmatmul.mubr.bf16.gmra.mxu0 %v2363
      %v2428 = vpop.f32.mrf.mxu0
      %v2429 = vadd.f32 0.0, %v2428
      %v2430 = vpop.f32.mrf.mxu0
      %v2431 = vpop.f32.mrf.mxu0
      %v2432 = vadd.f32 0.0, %v2431
      %v2433 = vpop.f32.mrf.mxu0
      %2434 = vmatprep.mubr.bf16.mxu0 0
      %2435 = vmatmul.mubr.bf16.gmra.mxu0 %v2366
      %v2436 = vpop.f32.mrf.mxu0
      %v2437 = vadd.f32 0.0, %v2436
      %v2438 = vpop.f32.mrf.mxu0
      %v2439 = vpop.f32.mrf.mxu0
      %v2440 = vadd.f32 0.0, %v2439
      %v2441 = vpop.f32.mrf.mxu0
      %2442 = vmatprep.mubr.bf16.mxu0 0
      %2443 = vmatmul.mubr.bf16.gmra.mxu0 %v2369
      %v2444 = vpop.f32.mrf.mxu0
      %v2445 = vadd.f32 0.0, %v2444
      %v2446 = vpop.f32.mrf.mxu0
      %v2447 = vpop.f32.mrf.mxu0
      %v2448 = vadd.f32 0.0, %v2447
      %v2449 = vpop.f32.mrf.mxu0
      %2450 = vmatprep.mubr.bf16.mxu0 0
      %2451 = vmatmul.mubr.bf16.gmra.mxu0 %v2372
      %v2452 = vpop.f32.mrf.mxu0
      %v2453 = vadd.f32 0.0, %v2452
      %v2454 = vpop.f32.mrf.mxu0
      %v2455 = vpop.f32.mrf.mxu0
      %v2456 = vadd.f32 0.0, %v2455
      %v2457 = vpop.f32.mrf.mxu0
      %2458 = vmatprep.mubr.bf16.mxu0 0
      %2459 = vmatmul.mubr.bf16.gmra.mxu0 %v2375
      %v2460 = vpop.f32.mrf.mxu0
      %v2461 = vadd.f32 0.0, %v2460
      %v2462 = vpop.f32.mrf.mxu0
      %v2463 = vpop.f32.mrf.mxu0
      %v2464 = vadd.f32 0.0, %v2463
      %v2465 = vpop.f32.mrf.mxu0
      %2466 = vmatprep.mubr.bf16.mxu0 0
      %2467 = vmatmul.mubr.bf16.gmra.mxu0 %v2378
      %v2468 = vpop.f32.mrf.mxu0
      %v2469 = vadd.f32 0.0, %v2468
      %v2470 = vpop.f32.mrf.mxu0
      %v2471 = vpop.f32.mrf.mxu0
      %v2472 = vadd.f32 0.0, %v2471
      %v2473 = vpop.f32.mrf.mxu0
      %2474 = vmatprep.mubr.bf16.mxu0 0
      %2475 = vmatmul.mubr.bf16.gmra.mxu0 %v2381
      %v2476 = vpop.f32.mrf.mxu0
      %v2477 = vadd.f32 0.0, %v2476
      %v2478 = vpop.f32.mrf.mxu0
      %v2479 = vpop.f32.mrf.mxu0
      %v2480 = vadd.f32 0.0, %v2479
      %v2481 = vpop.f32.mrf.mxu0
      %2482 = vdwg.mxu0
      %v2483 = vadd.f32 %v2284, %v2421
      %v2484 = vadd.f32 %v2285, %v2424
      %v2485 = vadd.f32 %v2286, %v2429
      %v2486 = vadd.f32 %v2287, %v2432
      %v2487 = vadd.f32 %v2288, %v2437
      %v2488 = vadd.f32 %v2289, %v2440
      %v2489 = vadd.f32 %v2290, %v2445
      %v2490 = vadd.f32 %v2291, %v2448
      %v2491 = vadd.f32 %v2292, %v2453
      %v2492 = vadd.f32 %v2293, %v2456
      %v2493 = vadd.f32 %v2294, %v2461
      %v2494 = vadd.f32 %v2295, %v2464
      %v2495 = vadd.f32 %v2296, %v2469
      %v2496 = vadd.f32 %v2297, %v2472
      %v2497 = vadd.f32 %v2298, %v2477
      %v2498 = vadd.f32 %v2299, %v2480
      %v2499 = vld [vmem:[%s2300] sm:$0xf]
      %v2500 = vld [vmem:[%s2300 + $0x4] sm:$0xf]
      %v2501 = vld [vmem:[%s2300 + $0x8] sm:$0x1]
      %v2502 = vld [vmem:[%s2300 + $0xc] sm:$0xf]
      %v2503 = vld [vmem:[%s2300 + $0x10] sm:$0xf]
      %v2504 = vld [vmem:[%s2300 + $0x14] sm:$0x1]
      %v2505 = vld [vmem:[%s2300 + $0x18] sm:$0xf]
      %v2506 = vld [vmem:[%s2300 + $0x1c] sm:$0xf]
      %v2507 = vld [vmem:[%s2300 + $0x20] sm:$0x1]
      %v2508 = vld [vmem:[%s2300 + $0x24] sm:$0xf]
      %v2509 = vld [vmem:[%s2300 + $0x28] sm:$0xf]
      %v2510 = vld [vmem:[%s2300 + $0x2c] sm:$0x1]
      %v2511 = vld [vmem:[%s2300 + $0x30] sm:$0xf]
      %v2512 = vld [vmem:[%s2300 + $0x34] sm:$0xf]
      %v2513 = vld [vmem:[%s2300 + $0x38] sm:$0x1]
      %v2514 = vld [vmem:[%s2300 + $0x3c] sm:$0xf]
      %v2515 = vld [vmem:[%s2300 + $0x40] sm:$0xf]
      %v2516 = vld [vmem:[%s2300 + $0x44] sm:$0x1]
      %v2517 = vld [vmem:[%s2300 + $0x48] sm:$0xf]
      %v2518 = vld [vmem:[%s2300 + $0x4c] sm:$0xf]
      %v2519 = vld [vmem:[%s2300 + $0x50] sm:$0x1]
      %v2520 = vld [vmem:[%s2300 + $0x54] sm:$0xf]
      %v2521 = vld [vmem:[%s2300 + $0x58] sm:$0xf]
      %v2522 = vld [vmem:[%s2300 + $0x5c] sm:$0x1]
      %v2524 = vshrl.u32 %v2499, 16
      %v2526 = vrot.slane %v2524, 4
      %v2527 = vshll.u32 %v2499, 16
      %v2529 = vrot.slane %v2527, 5
      %v2530 = vor.u32 %v2526, %v2529
      %v2531 = vrot.slane %v2530, 4
      %v2533 = vshll.u32 %v2500, 16
      %v2535 = vrot.slane %v2533, 5
      %v2536 = vsel %vm708, %v2531, %v2535
      %v2537 = vshrl.u32 %v2500, 16
      %v2539 = vrot.slane %v2537, 4
      %v2540 = vor.u32 %v2539, %v2535
      %v2541 = vrot.slane %v2540, 4
      %v2543 = vshll.u32 %v2501, 16
      %v2545 = vrot.slane %v2543, 5
      %v2546 = vsel %vm708, %v2541, %v2545
      %v2548 = vshrl.u32 %v2502, 16
      %v2550 = vrot.slane %v2548, 4
      %v2551 = vshll.u32 %v2502, 16
      %v2553 = vrot.slane %v2551, 5
      %v2554 = vor.u32 %v2550, %v2553
      %v2555 = vrot.slane %v2554, 4
      %v2557 = vshll.u32 %v2503, 16
      %v2559 = vrot.slane %v2557, 5
      %v2560 = vsel %vm708, %v2555, %v2559
      %v2561 = vshrl.u32 %v2503, 16
      %v2563 = vrot.slane %v2561, 4
      %v2564 = vor.u32 %v2563, %v2559
      %v2565 = vrot.slane %v2564, 4
      %v2567 = vshll.u32 %v2504, 16
      %v2569 = vrot.slane %v2567, 5
      %v2570 = vsel %vm708, %v2565, %v2569
      %v2572 = vshrl.u32 %v2505, 16
      %v2574 = vrot.slane %v2572, 4
      %v2575 = vshll.u32 %v2505, 16
      %v2577 = vrot.slane %v2575, 5
      %v2578 = vor.u32 %v2574, %v2577
      %v2579 = vrot.slane %v2578, 4
      %v2581 = vshll.u32 %v2506, 16
      %v2583 = vrot.slane %v2581, 5
      %v2584 = vsel %vm708, %v2579, %v2583
      %v2585 = vshrl.u32 %v2506, 16
      %v2587 = vrot.slane %v2585, 4
      %v2588 = vor.u32 %v2587, %v2583
      %v2589 = vrot.slane %v2588, 4
      %v2591 = vshll.u32 %v2507, 16
      %v2593 = vrot.slane %v2591, 5
      %v2594 = vsel %vm708, %v2589, %v2593
      %v2596 = vshrl.u32 %v2508, 16
      %v2598 = vrot.slane %v2596, 4
      %v2599 = vshll.u32 %v2508, 16
      %v2601 = vrot.slane %v2599, 5
      %v2602 = vor.u32 %v2598, %v2601
      %v2603 = vrot.slane %v2602, 4
      %v2605 = vshll.u32 %v2509, 16
      %v2607 = vrot.slane %v2605, 5
      %v2608 = vsel %vm708, %v2603, %v2607
      %v2609 = vshrl.u32 %v2509, 16
      %v2611 = vrot.slane %v2609, 4
      %v2612 = vor.u32 %v2611, %v2607
      %v2613 = vrot.slane %v2612, 4
      %v2615 = vshll.u32 %v2510, 16
      %v2617 = vrot.slane %v2615, 5
      %v2618 = vsel %vm708, %v2613, %v2617
      %v2620 = vshrl.u32 %v2511, 16
      %v2622 = vrot.slane %v2620, 4
      %v2623 = vshll.u32 %v2511, 16
      %v2625 = vrot.slane %v2623, 5
      %v2626 = vor.u32 %v2622, %v2625
      %v2627 = vrot.slane %v2626, 4
      %v2629 = vshll.u32 %v2512, 16
      %v2631 = vrot.slane %v2629, 5
      %v2632 = vsel %vm708, %v2627, %v2631
      %v2633 = vshrl.u32 %v2512, 16
      %v2635 = vrot.slane %v2633, 4
      %v2636 = vor.u32 %v2635, %v2631
      %v2637 = vrot.slane %v2636, 4
      %v2639 = vshll.u32 %v2513, 16
      %v2641 = vrot.slane %v2639, 5
      %v2642 = vsel %vm708, %v2637, %v2641
      %v2644 = vshrl.u32 %v2514, 16
      %v2646 = vrot.slane %v2644, 4
      %v2647 = vshll.u32 %v2514, 16
      %v2649 = vrot.slane %v2647, 5
      %v2650 = vor.u32 %v2646, %v2649
      %v2651 = vrot.slane %v2650, 4
      %v2653 = vshll.u32 %v2515, 16
      %v2655 = vrot.slane %v2653, 5
      %v2656 = vsel %vm708, %v2651, %v2655
      %v2657 = vshrl.u32 %v2515, 16
      %v2659 = vrot.slane %v2657, 4
      %v2660 = vor.u32 %v2659, %v2655
      %v2661 = vrot.slane %v2660, 4
      %v2663 = vshll.u32 %v2516, 16
      %v2665 = vrot.slane %v2663, 5
      %v2666 = vsel %vm708, %v2661, %v2665
      %v2668 = vshrl.u32 %v2517, 16
      %v2670 = vrot.slane %v2668, 4
      %v2671 = vshll.u32 %v2517, 16
      %v2673 = vrot.slane %v2671, 5
      %v2674 = vor.u32 %v2670, %v2673
      %v2675 = vrot.slane %v2674, 4
      %v2677 = vshll.u32 %v2518, 16
      %v2679 = vrot.slane %v2677, 5
      %v2680 = vsel %vm708, %v2675, %v2679
      %v2681 = vshrl.u32 %v2518, 16
      %v2683 = vrot.slane %v2681, 4
      %v2684 = vor.u32 %v2683, %v2679
      %v2685 = vrot.slane %v2684, 4
      %v2687 = vshll.u32 %v2519, 16
      %v2689 = vrot.slane %v2687, 5
      %v2690 = vsel %vm708, %v2685, %v2689
      %v2692 = vshrl.u32 %v2520, 16
      %v2694 = vrot.slane %v2692, 4
      %v2695 = vshll.u32 %v2520, 16
      %v2697 = vrot.slane %v2695, 5
      %v2698 = vor.u32 %v2694, %v2697
      %v2699 = vrot.slane %v2698, 4
      %v2701 = vshll.u32 %v2521, 16
      %v2703 = vrot.slane %v2701, 5
      %v2704 = vsel %vm708, %v2699, %v2703
      %v2705 = vshrl.u32 %v2521, 16
      %v2707 = vrot.slane %v2705, 4
      %v2708 = vor.u32 %v2707, %v2703
      %v2709 = vrot.slane %v2708, 4
      %v2711 = vshll.u32 %v2522, 16
      %v2713 = vrot.slane %v2711, 5
      %v2714 = vsel %vm708, %v2709, %v2713
      %s2715 = scalar_lea.vmem %s1, 14
      %v2716 = vld [vmem:[%s2715] sm:$0x3]
      %v2717 = vunpack.c.l.b16 %v2536
      %v2718 = vunpack.c.l.b16 %v2546
      %v2719 = vunpack.c.l.b16 %v2560
      %v2720 = vunpack.c.l.b16 %v2570
      %v2721 = vunpack.c.l.b16 %v2584
      %v2722 = vunpack.c.l.b16 %v2594
      %v2723 = vunpack.c.l.b16 %v2608
      %v2724 = vunpack.c.l.b16 %v2618
      %v2725 = vunpack.c.l.b16 %v2632
      %v2726 = vunpack.c.l.b16 %v2642
      %v2727 = vunpack.c.l.b16 %v2656
      %v2728 = vunpack.c.l.b16 %v2666
      %v2729 = vunpack.c.l.b16 %v2680
      %v2730 = vunpack.c.l.b16 %v2690
      %v2731 = vunpack.c.l.b16 %v2704
      %v2732 = vunpack.c.l.b16 %v2714
      %v2733 = vpack.c.b16 %v2718, %v2717
      %v2734 = vpack.c.b16 %v2720, %v2719
      %v2735 = vpack.c.b16 %v2722, %v2721
      %v2736 = vpack.c.b16 %v2724, %v2723
      %v2737 = vpack.c.b16 %v2726, %v2725
      %v2738 = vpack.c.b16 %v2728, %v2727
      %v2739 = vpack.c.b16 %v2730, %v2729
      %v2740 = vpack.c.b16 %v2732, %v2731
      %v2742 = vsel %vm927, %v2733, 0
      %v2745 = vsel %vm927, %v2734, 0
      %v2748 = vsel %vm927, %v2735, 0
      %v2751 = vsel %vm927, %v2736, 0
      %v2754 = vsel %vm927, %v2737, 0
      %v2757 = vsel %vm927, %v2738, 0
      %v2760 = vsel %vm927, %v2739, 0
      %v2763 = vsel %vm927, %v2740, 0
      %v2766 = vsel %vm952, %v2716, 0
      %2768 = vmatprep.subr.bf16.mxu0 0
      %2769 = vmatpush1.bf16.msra.mxu0 0
      %2770 = vmatprep.subr.bf16.mxu0 0
      %2771 = vmatpush1.bf16.msra.mxu0 0
      %2772 = vmatprep.subr.bf16.mxu0 0
      %2773 = vmatpush1.bf16.msra.mxu0 0
      %2774 = vmatprep.subr.bf16.mxu0 0
      %2775 = vmatpush1.bf16.msra.mxu0 0
      %2776 = vmatprep.subr.bf16.mxu0 0
      %2777 = vmatpush1.bf16.msra.mxu0 0
      %2778 = vmatprep.subr.bf16.mxu0 0
      %2779 = vmatpush1.bf16.msra.mxu0 0
      %2780 = vmatprep.subr.bf16.mxu0 0
      %2781 = vmatpush1.bf16.msra.mxu0 0
      %2782 = vmatprep.subr.bf16.mxu0 0
      %2783 = vmatpush1.bf16.msra.mxu0 %v2766
      %2784 = vmatprep.subr.bf16.mxu0 0
      %2785 = vmatpush2.bf16.msra.mxu0 0
      %2786 = vmatprep.subr.bf16.mxu0 0
      %2787 = vmatpush2.bf16.msra.mxu0 0
      %2788 = vmatprep.subr.bf16.mxu0 0
      %2789 = vmatpush2.bf16.msra.mxu0 0
      %2790 = vmatprep.subr.bf16.mxu0 0
      %2791 = vmatpush2.bf16.msra.mxu0 0
      %2792 = vmatprep.subr.bf16.mxu0 0
      %2793 = vmatpush2.bf16.msra.mxu0 0
      %2794 = vmatprep.subr.bf16.mxu0 0
      %2795 = vmatpush2.bf16.msra.mxu0 0
      %2796 = vmatprep.subr.bf16.mxu0 0
      %2797 = vmatpush2.bf16.msra.mxu0 0
      %2798 = vmatprep.subr.bf16.mxu0 0
      %2799 = vmatpush2.bf16.msra.mxu0 0
      %2800 = vmatprep.mubr.bf16.mxu0 0
      %2801 = vmatmul.mubr.bf16.gmra.mxu0 %v2742
      %v2802 = vpop.f32.mrf.mxu0
      %v2803 = vadd.f32 0.0, %v2802
      %v2804 = vpop.f32.mrf.mxu0
      %v2805 = vpop.f32.mrf.mxu0
      %v2806 = vadd.f32 0.0, %v2805
      %v2807 = vpop.f32.mrf.mxu0
      %2808 = vmatprep.mubr.bf16.mxu0 0
      %2809 = vmatmul.mubr.bf16.gmra.mxu0 %v2745
      %v2810 = vpop.f32.mrf.mxu0
      %v2811 = vadd.f32 0.0, %v2810
      %v2812 = vpop.f32.mrf.mxu0
      %v2813 = vpop.f32.mrf.mxu0
      %v2814 = vadd.f32 0.0, %v2813
      %v2815 = vpop.f32.mrf.mxu0
      %2816 = vmatprep.mubr.bf16.mxu0 0
      %2817 = vmatmul.mubr.bf16.gmra.mxu0 %v2748
      %v2818 = vpop.f32.mrf.mxu0
      %v2819 = vadd.f32 0.0, %v2818
      %v2820 = vpop.f32.mrf.mxu0
      %v2821 = vpop.f32.mrf.mxu0
      %v2822 = vadd.f32 0.0, %v2821
      %v2823 = vpop.f32.mrf.mxu0
      %2824 = vmatprep.mubr.bf16.mxu0 0
      %2825 = vmatmul.mubr.bf16.gmra.mxu0 %v2751
      %v2826 = vpop.f32.mrf.mxu0
      %v2827 = vadd.f32 0.0, %v2826
      %v2828 = vpop.f32.mrf.mxu0
      %v2829 = vpop.f32.mrf.mxu0
      %v2830 = vadd.f32 0.0, %v2829
      %v2831 = vpop.f32.mrf.mxu0
      %2832 = vmatprep.mubr.bf16.mxu0 0
      %2833 = vmatmul.mubr.bf16.gmra.mxu0 %v2754
      %v2834 = vpop.f32.mrf.mxu0
      %v2835 = vadd.f32 0.0, %v2834
      %v2836 = vpop.f32.mrf.mxu0
      %v2837 = vpop.f32.mrf.mxu0
      %v2838 = vadd.f32 0.0, %v2837
      %v2839 = vpop.f32.mrf.mxu0
      %2840 = vmatprep.mubr.bf16.mxu0 0
      %2841 = vmatmul.mubr.bf16.gmra.mxu0 %v2757
      %v2842 = vpop.f32.mrf.mxu0
      %v2843 = vadd.f32 0.0, %v2842
      %v2844 = vpop.f32.mrf.mxu0
      %v2845 = vpop.f32.mrf.mxu0
      %v2846 = vadd.f32 0.0, %v2845
      %v2847 = vpop.f32.mrf.mxu0
      %2848 = vmatprep.mubr.bf16.mxu0 0
      %2849 = vmatmul.mubr.bf16.gmra.mxu0 %v2760
      %v2850 = vpop.f32.mrf.mxu0
      %v2851 = vadd.f32 0.0, %v2850
      %v2852 = vpop.f32.mrf.mxu0
      %v2853 = vpop.f32.mrf.mxu0
      %v2854 = vadd.f32 0.0, %v2853
      %v2855 = vpop.f32.mrf.mxu0
      %2856 = vmatprep.mubr.bf16.mxu0 0
      %2857 = vmatmul.mubr.bf16.gmra.mxu0 %v2763
      %v2858 = vpop.f32.mrf.mxu0
      %v2859 = vadd.f32 0.0, %v2858
      %v2860 = vpop.f32.mrf.mxu0
      %v2861 = vpop.f32.mrf.mxu0
      %v2862 = vadd.f32 0.0, %v2861
      %v2863 = vpop.f32.mrf.mxu0
      %2864 = vdwg.mxu0
      %v2865 = vadd.f32 %v2483, %v2803
      %v2866 = vadd.f32 %v2484, %v2806
      %v2867 = vadd.f32 %v2485, %v2811
      %v2868 = vadd.f32 %v2486, %v2814
      %v2869 = vadd.f32 %v2487, %v2819
      %v2870 = vadd.f32 %v2488, %v2822
      %v2871 = vadd.f32 %v2489, %v2827
      %v2872 = vadd.f32 %v2490, %v2830
      %v2873 = vadd.f32 %v2491, %v2835
      %v2874 = vadd.f32 %v2492, %v2838
      %v2875 = vadd.f32 %v2493, %v2843
      %v2876 = vadd.f32 %v2494, %v2846
      %v2877 = vadd.f32 %v2495, %v2851
      %v2878 = vadd.f32 %v2496, %v2854
      %v2879 = vadd.f32 %v2497, %v2859
      %v2880 = vadd.f32 %v2498, %v2862
      %v2881 = vld [vmem:[%s2300] sm:$0xe]
      %v2882 = vld [vmem:[%s2300 + $0xc] sm:$0xe]
      %v2883 = vld [vmem:[%s2300 + $0x18] sm:$0xe]
      %v2884 = vld [vmem:[%s2300 + $0x24] sm:$0xe]
      %v2885 = vld [vmem:[%s2300 + $0x30] sm:$0xe]
      %v2886 = vld [vmem:[%s2300 + $0x3c] sm:$0xe]
      %v2887 = vld [vmem:[%s2300 + $0x48] sm:$0xe]
      %v2888 = vld [vmem:[%s2300 + $0x54] sm:$0xe]
      %v2913 = vrot.slane %v2881, 5
      %v2914 = vrot.slane %v2913, 4
      %v2915 = vrot.slane %v2500, 5
      %v2916 = vsel %vm1243, %v2914, %v2915
      %v2917 = vrot.slane %v2915, 4
      %v2918 = vrot.slane %v2501, 5
      %v2919 = vsel %vm1243, %v2917, %v2918
      %v2920 = vrot.slane %v2882, 5
      %v2921 = vrot.slane %v2920, 4
      %v2922 = vrot.slane %v2503, 5
      %v2923 = vsel %vm1243, %v2921, %v2922
      %v2924 = vrot.slane %v2922, 4
      %v2925 = vrot.slane %v2504, 5
      %v2926 = vsel %vm1243, %v2924, %v2925
      %v2927 = vrot.slane %v2883, 5
      %v2928 = vrot.slane %v2927, 4
      %v2929 = vrot.slane %v2506, 5
      %v2930 = vsel %vm1243, %v2928, %v2929
      %v2931 = vrot.slane %v2929, 4
      %v2932 = vrot.slane %v2507, 5
      %v2933 = vsel %vm1243, %v2931, %v2932
      %v2934 = vrot.slane %v2884, 5
      %v2935 = vrot.slane %v2934, 4
      %v2936 = vrot.slane %v2509, 5
      %v2937 = vsel %vm1243, %v2935, %v2936
      %v2938 = vrot.slane %v2936, 4
      %v2939 = vrot.slane %v2510, 5
      %v2940 = vsel %vm1243, %v2938, %v2939
      %v2941 = vrot.slane %v2885, 5
      %v2942 = vrot.slane %v2941, 4
      %v2943 = vrot.slane %v2512, 5
      %v2944 = vsel %vm1243, %v2942, %v2943
      %v2945 = vrot.slane %v2943, 4
      %v2946 = vrot.slane %v2513, 5
      %v2947 = vsel %vm1243, %v2945, %v2946
      %v2948 = vrot.slane %v2886, 5
      %v2949 = vrot.slane %v2948, 4
      %v2950 = vrot.slane %v2515, 5
      %v2951 = vsel %vm1243, %v2949, %v2950
      %v2952 = vrot.slane %v2950, 4
      %v2953 = vrot.slane %v2516, 5
      %v2954 = vsel %vm1243, %v2952, %v2953
      %v2955 = vrot.slane %v2887, 5
      %v2956 = vrot.slane %v2955, 4
      %v2957 = vrot.slane %v2518, 5
      %v2958 = vsel %vm1243, %v2956, %v2957
      %v2959 = vrot.slane %v2957, 4
      %v2960 = vrot.slane %v2519, 5
      %v2961 = vsel %vm1243, %v2959, %v2960
      %v2962 = vrot.slane %v2888, 5
      %v2963 = vrot.slane %v2962, 4
      %v2964 = vrot.slane %v2521, 5
      %v2965 = vsel %vm1243, %v2963, %v2964
      %v2966 = vrot.slane %v2964, 4
      %v2967 = vrot.slane %v2522, 5
      %v2968 = vsel %vm1243, %v2966, %v2967
      %s2969 = scalar_lea.vmem %s1, 16
      %v2970 = vld [vmem:[%s2969] sm:$0x3]
      %v2971 = vunpack.c.l.b16 %v2916
      %v2972 = vunpack.c.l.b16 %v2919
      %v2973 = vunpack.c.l.b16 %v2923
      %v2974 = vunpack.c.l.b16 %v2926
      %v2975 = vunpack.c.l.b16 %v2930
      %v2976 = vunpack.c.l.b16 %v2933
      %v2977 = vunpack.c.l.b16 %v2937
      %v2978 = vunpack.c.l.b16 %v2940
      %v2979 = vunpack.c.l.b16 %v2944
      %v2980 = vunpack.c.l.b16 %v2947
      %v2981 = vunpack.c.l.b16 %v2951
      %v2982 = vunpack.c.l.b16 %v2954
      %v2983 = vunpack.c.l.b16 %v2958
      %v2984 = vunpack.c.l.b16 %v2961
      %v2985 = vunpack.c.l.b16 %v2965
      %v2986 = vunpack.c.l.b16 %v2968
      %v2987 = vpack.c.b16 %v2972, %v2971
      %v2988 = vpack.c.b16 %v2974, %v2973
      %v2989 = vpack.c.b16 %v2976, %v2975
      %v2990 = vpack.c.b16 %v2978, %v2977
      %v2991 = vpack.c.b16 %v2980, %v2979
      %v2992 = vpack.c.b16 %v2982, %v2981
      %v2993 = vpack.c.b16 %v2984, %v2983
      %v2994 = vpack.c.b16 %v2986, %v2985
      %v2996 = vsel %vm927, %v2987, 0
      %v2999 = vsel %vm927, %v2988, 0
      %v3002 = vsel %vm927, %v2989, 0
      %v3005 = vsel %vm927, %v2990, 0
      %v3008 = vsel %vm927, %v2991, 0
      %v3011 = vsel %vm927, %v2992, 0
      %v3014 = vsel %vm927, %v2993, 0
      %v3017 = vsel %vm927, %v2994, 0
      %v3020 = vsel %vm952, %v2970, 0
      %3022 = vmatprep.subr.bf16.mxu0 0
      %3023 = vmatpush1.bf16.msra.mxu0 0
      %3024 = vmatprep.subr.bf16.mxu0 0
      %3025 = vmatpush1.bf16.msra.mxu0 0
      %3026 = vmatprep.subr.bf16.mxu0 0
      %3027 = vmatpush1.bf16.msra.mxu0 0
      %3028 = vmatprep.subr.bf16.mxu0 0
      %3029 = vmatpush1.bf16.msra.mxu0 0
      %3030 = vmatprep.subr.bf16.mxu0 0
      %3031 = vmatpush1.bf16.msra.mxu0 0
      %3032 = vmatprep.subr.bf16.mxu0 0
      %3033 = vmatpush1.bf16.msra.mxu0 0
      %3034 = vmatprep.subr.bf16.mxu0 0
      %3035 = vmatpush1.bf16.msra.mxu0 0
      %3036 = vmatprep.subr.bf16.mxu0 0
      %3037 = vmatpush1.bf16.msra.mxu0 %v3020
      %3038 = vmatprep.subr.bf16.mxu0 0
      %3039 = vmatpush2.bf16.msra.mxu0 0
      %3040 = vmatprep.subr.bf16.mxu0 0
      %3041 = vmatpush2.bf16.msra.mxu0 0
      %3042 = vmatprep.subr.bf16.mxu0 0
      %3043 = vmatpush2.bf16.msra.mxu0 0
      %3044 = vmatprep.subr.bf16.mxu0 0
      %3045 = vmatpush2.bf16.msra.mxu0 0
      %3046 = vmatprep.subr.bf16.mxu0 0
      %3047 = vmatpush2.bf16.msra.mxu0 0
      %3048 = vmatprep.subr.bf16.mxu0 0
      %3049 = vmatpush2.bf16.msra.mxu0 0
      %3050 = vmatprep.subr.bf16.mxu0 0
      %3051 = vmatpush2.bf16.msra.mxu0 0
      %3052 = vmatprep.subr.bf16.mxu0 0
      %3053 = vmatpush2.bf16.msra.mxu0 0
      %3054 = vmatprep.mubr.bf16.mxu0 0
      %3055 = vmatmul.mubr.bf16.gmra.mxu0 %v2996
      %v3056 = vpop.f32.mrf.mxu0
      %v3057 = vadd.f32 0.0, %v3056
      %v3058 = vpop.f32.mrf.mxu0
      %v3059 = vpop.f32.mrf.mxu0
      %v3060 = vadd.f32 0.0, %v3059
      %v3061 = vpop.f32.mrf.mxu0
      %3062 = vmatprep.mubr.bf16.mxu0 0
      %3063 = vmatmul.mubr.bf16.gmra.mxu0 %v2999
      %v3064 = vpop.f32.mrf.mxu0
      %v3065 = vadd.f32 0.0, %v3064
      %v3066 = vpop.f32.mrf.mxu0
      %v3067 = vpop.f32.mrf.mxu0
      %v3068 = vadd.f32 0.0, %v3067
      %v3069 = vpop.f32.mrf.mxu0
      %3070 = vmatprep.mubr.bf16.mxu0 0
      %3071 = vmatmul.mubr.bf16.gmra.mxu0 %v3002
      %v3072 = vpop.f32.mrf.mxu0
      %v3073 = vadd.f32 0.0, %v3072
      %v3074 = vpop.f32.mrf.mxu0
      %v3075 = vpop.f32.mrf.mxu0
      %v3076 = vadd.f32 0.0, %v3075
      %v3077 = vpop.f32.mrf.mxu0
      %3078 = vmatprep.mubr.bf16.mxu0 0
      %3079 = vmatmul.mubr.bf16.gmra.mxu0 %v3005
      %v3080 = vpop.f32.mrf.mxu0
      %v3081 = vadd.f32 0.0, %v3080
      %v3082 = vpop.f32.mrf.mxu0
      %v3083 = vpop.f32.mrf.mxu0
      %v3084 = vadd.f32 0.0, %v3083
      %v3085 = vpop.f32.mrf.mxu0
      %3086 = vmatprep.mubr.bf16.mxu0 0
      %3087 = vmatmul.mubr.bf16.gmra.mxu0 %v3008
      %v3088 = vpop.f32.mrf.mxu0
      %v3089 = vadd.f32 0.0, %v3088
      %v3090 = vpop.f32.mrf.mxu0
      %v3091 = vpop.f32.mrf.mxu0
      %v3092 = vadd.f32 0.0, %v3091
      %v3093 = vpop.f32.mrf.mxu0
      %3094 = vmatprep.mubr.bf16.mxu0 0
      %3095 = vmatmul.mubr.bf16.gmra.mxu0 %v3011
      %v3096 = vpop.f32.mrf.mxu0
      %v3097 = vadd.f32 0.0, %v3096
      %v3098 = vpop.f32.mrf.mxu0
      %v3099 = vpop.f32.mrf.mxu0
      %v3100 = vadd.f32 0.0, %v3099
      %v3101 = vpop.f32.mrf.mxu0
      %3102 = vmatprep.mubr.bf16.mxu0 0
      %3103 = vmatmul.mubr.bf16.gmra.mxu0 %v3014
      %v3104 = vpop.f32.mrf.mxu0
      %v3105 = vadd.f32 0.0, %v3104
      %v3106 = vpop.f32.mrf.mxu0
      %v3107 = vpop.f32.mrf.mxu0
      %v3108 = vadd.f32 0.0, %v3107
      %v3109 = vpop.f32.mrf.mxu0
      %3110 = vmatprep.mubr.bf16.mxu0 0
      %3111 = vmatmul.mubr.bf16.gmra.mxu0 %v3017
      %v3112 = vpop.f32.mrf.mxu0
      %v3113 = vadd.f32 0.0, %v3112
      %v3114 = vpop.f32.mrf.mxu0
      %v3115 = vpop.f32.mrf.mxu0
      %v3116 = vadd.f32 0.0, %v3115
      %v3117 = vpop.f32.mrf.mxu0
      %3118 = vdwg.mxu0
      %v3119 = vadd.f32 %v2865, %v3057
      %v3120 = vadd.f32 %v2866, %v3060
      %v3121 = vadd.f32 %v2867, %v3065
      %v3122 = vadd.f32 %v2868, %v3068
      %v3123 = vadd.f32 %v2869, %v3073
      %v3124 = vadd.f32 %v2870, %v3076
      %v3125 = vadd.f32 %v2871, %v3081
      %v3126 = vadd.f32 %v2872, %v3084
      %v3127 = vadd.f32 %v2873, %v3089
      %v3128 = vadd.f32 %v2874, %v3092
      %v3129 = vadd.f32 %v2875, %v3097
      %v3130 = vadd.f32 %v2876, %v3100
      %v3131 = vadd.f32 %v2877, %v3105
      %v3132 = vadd.f32 %v2878, %v3108
      %v3133 = vadd.f32 %v2879, %v3113
      %v3134 = vadd.f32 %v2880, %v3116
      %v3135 = vld [vmem:[%s2] sm:$0x1]
      %v3137 = vlaneseq
      %v3138 = vshrl.u32 %v3137, 7
      %v3139 = vsub.s32 0, %v3138
      %v3140 = vrot.slane %v3135, %v3139
      %v3142 = vadd.f32 %v3119, %v3140
      %v3143 = vadd.f32 %v3120, %v3140
      %v3144 = vadd.f32 %v3121, %v3140
      %v3145 = vadd.f32 %v3122, %v3140
      %v3146 = vadd.f32 %v3123, %v3140
      %v3147 = vadd.f32 %v3124, %v3140
      %v3148 = vadd.f32 %v3125, %v3140
      %v3149 = vadd.f32 %v3126, %v3140
      %v3150 = vadd.f32 %v3127, %v3140
      %v3151 = vadd.f32 %v3128, %v3140
      %v3152 = vadd.f32 %v3129, %v3140
      %v3153 = vadd.f32 %v3130, %v3140
      %v3154 = vadd.f32 %v3131, %v3140
      %v3155 = vadd.f32 %v3132, %v3140
      %v3156 = vadd.f32 %v3133, %v3140
      %v3157 = vadd.f32 %v3134, %v3140
      %p3158 = scmp.eq.s32.totalorder %s21, 0
      // Predicated region
      $region41: #{double_conv_nhwc.3} parent=31 // pred_check
        %p3159 = pneg %p3158
      $region42: #{double_conv_nhwc.3} parent=31 // pred_check_branch
        %3161 = sbr.rel (%p3159) target = $region44
      $region43: #{double_conv_nhwc.3} parent=31 // pred_region
        %3162 = vst [vmem:[%s233] sm:$0x3] 0.0
      $region44: #{double_conv_nhwc.3} parent=31 // pred_fallthru
        _
      %v3163 = vld [vmem:[%s233] sm:$0x1]
      %v3164 = vadd.f32 %v3142, %v3143
      %v3165 = vadd.f32 %v3164, %v3144
      %v3166 = vadd.f32 %v3165, %v3145
      %v3167 = vadd.f32 %v3166, %v3146
      %v3168 = vadd.f32 %v3167, %v3147
      %v3169 = vadd.f32 %v3168, %v3148
      %v3170 = vadd.f32 %v3169, %v3149
      %v3171 = vadd.f32 %v3170, %v3150
      %v3172 = vadd.f32 %v3171, %v3151
      %v3173 = vadd.f32 %v3172, %v3152
      %v3174 = vadd.f32 %v3173, %v3153
      %v3175 = vadd.f32 %v3174, %v3154
      %v3176 = vadd.f32 %v3175, %v3155
      %v3177 = vadd.f32 %v3176, %v3156
      %v3178 = vadd.f32 %v3177, %v3157
      %v3179 = vrot.slane %v3178, 4
      %v3180 = vadd.f32 %v3178, %v3179
      %v3181 = vrot.slane %v3180, 2
      %v3182 = vadd.f32 %v3180, %v3181
      %v3183 = vrot.slane %v3182, 1
      %v3184 = vadd.f32 %v3182, %v3183
      %v3185 = vadd.f32 %v3163, %v3184
      %3186 = vst [vmem:[%s233] sm:$0x1] %v3185
      %v3187 = vld [vmem:[%s233 + $0x1] sm:$0x1]
      %v3188 = vmul.f32 %v3142, %v3142
      %v3189 = vmul.f32 %v3143, %v3143
      %v3190 = vmul.f32 %v3144, %v3144
      %v3191 = vmul.f32 %v3145, %v3145
      %v3192 = vmul.f32 %v3146, %v3146
      %v3193 = vmul.f32 %v3147, %v3147
      %v3194 = vmul.f32 %v3148, %v3148
      %v3195 = vmul.f32 %v3149, %v3149
      %v3196 = vmul.f32 %v3150, %v3150
      %v3197 = vmul.f32 %v3151, %v3151
      %v3198 = vmul.f32 %v3152, %v3152
      %v3199 = vmul.f32 %v3153, %v3153
      %v3200 = vmul.f32 %v3154, %v3154
      %v3201 = vmul.f32 %v3155, %v3155
      %v3202 = vmul.f32 %v3156, %v3156
      %v3203 = vmul.f32 %v3157, %v3157
      %v3204 = vadd.f32 %v3188, %v3189
      %v3205 = vadd.f32 %v3204, %v3190
      %v3206 = vadd.f32 %v3205, %v3191
      %v3207 = vadd.f32 %v3206, %v3192
      %v3208 = vadd.f32 %v3207, %v3193
      %v3209 = vadd.f32 %v3208, %v3194
      %v3210 = vadd.f32 %v3209, %v3195
      %v3211 = vadd.f32 %v3210, %v3196
      %v3212 = vadd.f32 %v3211, %v3197
      %v3213 = vadd.f32 %v3212, %v3198
      %v3214 = vadd.f32 %v3213, %v3199
      %v3215 = vadd.f32 %v3214, %v3200
      %v3216 = vadd.f32 %v3215, %v3201
      %v3217 = vadd.f32 %v3216, %v3202
      %v3218 = vadd.f32 %v3217, %v3203
      %v3219 = vrot.slane %v3218, 4
      %v3220 = vadd.f32 %v3218, %v3219
      %v3221 = vrot.slane %v3220, 2
      %v3222 = vadd.f32 %v3220, %v3221
      %v3223 = vrot.slane %v3222, 1
      %v3224 = vadd.f32 %v3222, %v3223
      %v3225 = vadd.f32 %v3187, %v3224
      %3226 = vst [vmem:[%s233 + $0x1] sm:$0x1] %v3225
      %v3227 = vpack.c.bf16 %v3143, %v3142
      %v3228 = vpack.c.bf16 %v3145, %v3144
      %v3229 = vpack.c.bf16 %v3147, %v3146
      %v3230 = vpack.c.bf16 %v3149, %v3148
      %v3231 = vpack.c.bf16 %v3151, %v3150
      %v3232 = vpack.c.bf16 %v3153, %v3152
      %v3233 = vpack.c.bf16 %v3155, %v3154
      %v3234 = vpack.c.bf16 %v3157, %v3156
      %v3243 = vunpack.c.l.b16 %v3227
      %v3244 = vunpack.c.h.b16 %v3227
      %v3245 = vunpack.c.l.b16 %v3228
      %v3246 = vunpack.c.h.b16 %v3228
      %v3247 = vunpack.c.l.b16 %v3229
      %v3248 = vunpack.c.h.b16 %v3229
      %v3249 = vunpack.c.l.b16 %v3230
      %v3250 = vunpack.c.h.b16 %v3230
      %v3251 = vunpack.c.l.b16 %v3231
      %v3252 = vunpack.c.h.b16 %v3231
      %v3253 = vunpack.c.l.b16 %v3232
      %v3254 = vunpack.c.h.b16 %v3232
      %v3255 = vunpack.c.l.b16 %v3233
      %v3256 = vunpack.c.h.b16 %v3233
      %v3257 = vunpack.c.l.b16 %v3234
      %v3258 = vunpack.c.h.b16 %v3234
      %v3259 = vpack.c.b16 %v3243, %v3243
      %v3260 = vpack.c.b16 %v3244, %v3244
      %v3261 = vpack.c.b16 %v3245, %v3245
      %v3262 = vpack.c.b16 %v3246, %v3246
      %v3263 = vpack.c.b16 %v3247, %v3247
      %v3264 = vpack.c.b16 %v3248, %v3248
      %v3265 = vpack.c.b16 %v3249, %v3249
      %v3266 = vpack.c.b16 %v3250, %v3250
      %v3267 = vpack.c.b16 %v3251, %v3251
      %v3268 = vpack.c.b16 %v3252, %v3252
      %v3269 = vpack.c.b16 %v3253, %v3253
      %v3270 = vpack.c.b16 %v3254, %v3254
      %v3271 = vpack.c.b16 %v3255, %v3255
      %v3272 = vpack.c.b16 %v3256, %v3256
      %v3273 = vpack.c.b16 %v3257, %v3257
      %v3274 = vpack.c.b16 %v3258, %v3258
      %3291 = vst [vmem:[%s228] sm:$0xf] %v3259
      %3292 = vst [vmem:[%s228 + $0x4] sm:$0xf] %v3260
      %3293 = vst [vmem:[%s228 + $0x8] sm:$0xf] %v3261
      %3294 = vst [vmem:[%s228 + $0xc] sm:$0xf] %v3262
      %3295 = vst [vmem:[%s228 + $0x10] sm:$0xf] %v3263
      %3296 = vst [vmem:[%s228 + $0x14] sm:$0xf] %v3264
      %3297 = vst [vmem:[%s228 + $0x18] sm:$0xf] %v3265
      %3298 = vst [vmem:[%s228 + $0x1c] sm:$0xf] %v3266
      %3299 = vst [vmem:[%s228 + $0x20] sm:$0xf] %v3267
      %3300 = vst [vmem:[%s228 + $0x24] sm:$0xf] %v3268
      %3301 = vst [vmem:[%s228 + $0x28] sm:$0xf] %v3269
      %3302 = vst [vmem:[%s228 + $0x2c] sm:$0xf] %v3270
      %3303 = vst [vmem:[%s228 + $0x30] sm:$0xf] %v3271
      %3304 = vst [vmem:[%s228 + $0x34] sm:$0xf] %v3272
      %3305 = vst [vmem:[%s228 + $0x38] sm:$0xf] %v3273
      %3306 = vst [vmem:[%s228 + $0x3c] sm:$0xf] %v3274
      %s3307 = smul.u32 8, %s21
      %p3308 = scmp.lt.s32.totalorder %s20, 1
      %s3309 = scalar_select %p3308, %s20, 1
      %p3310 = scmp.lt.s32.totalorder %s3307, 15
      %s3311 = scalar_select %p3310, %s3307, 15
      %s3312 = smul.addr %s3311, 2
      %s3313 = smul.addr %s3309, 32
      %s3314 = sadd.s32 %s3312, %s3313
      %s3315 = smul.addr %s3314, 4
      %s3316 = scalar_lea.vmem %s3, %s3315
      %p3317 = scmp.lt.s32.totalorder %s20, 1
      %s3318 = scalar_select %p3317, %s20, 1
      %s3319 = smul.addr %s3318, 2
      %s3320 = scalar_lea.vmem %s4, %s3319
      // Predicated region
      $region45: #{double_conv_nhwc.3} parent=31 // pred_check
        %p3321 = pneg %p116
      $region46: #{double_conv_nhwc.3} parent=31 // pred_check_branch
        %3323 = sbr.rel (%p3321) target = $region48
      $region47: #{double_conv_nhwc.3} parent=31 // pred_region
        %s3324 = smul.u32 8, %s21
      $region48: #{double_conv_nhwc.3} parent=31 // pred_fallthru
        _
      // Predicated region
      $region49: #{double_conv_nhwc.3} parent=31 // pred_check
        %p3325 = pneg %p142
      $region50: #{double_conv_nhwc.3} parent=31 // pred_check_branch
        %3327 = sbr.rel (%p3325) target = $region52
      $region51: #{double_conv_nhwc.3} parent=31 // pred_region
        _
      $region52: #{double_conv_nhwc.3} parent=31 // pred_fallthru
        _
    $region32: #{double_conv_nhwc.3} parent=5 // pred_fallthru
      _
    %p3328 = scmp.le.s32.totalorder 2, %s11
    // Predicated region
    $region53: #{double_conv_nhwc.3} parent=5 // pred_check
      %p3329 = pneg %p3328
    $region54: #{double_conv_nhwc.3} parent=5 // pred_check_branch
      %3331 = sbr.rel (%p3329) target = $region56
    $region55: #{double_conv_nhwc.3} parent=5 // pred_region
      %s3332 = ssub.s32 %s11, 2
      // Predicated region
      $region57: #{double_conv_nhwc.3} parent=55 // pred_check
        %p3333 = pneg %p122
      $region58: #{double_conv_nhwc.3} parent=55 // pred_check_branch
        %3335 = sbr.rel (%p3333) target = $region60
      $region59: #{double_conv_nhwc.3} parent=55 // pred_region
        %s3336 = smul.u32 8, %s23
        %p3337 = scmp.lt.s32.totalorder %s22, 1
        %s3338 = scalar_select %p3337, %s22, 1
        %p3339 = scmp.lt.s32.totalorder %s3336, 15
        %s3340 = scalar_select %p3339, %s3336, 15
        %s3341 = smul.addr %s3340, 2
        %s3342 = smul.addr %s3338, 32
        %s3343 = sadd.s32 %s3341, %s3342
        %s3344 = smul.addr %s3343, 4
        %s3345 = scalar_lea.vmem %s3, %s3344
      $region60: #{double_conv_nhwc.3} parent=55 // pred_fallthru
        _
      // Predicated region
      $region61: #{double_conv_nhwc.3} parent=55 // pred_check
        %p3346 = pneg %p148
      $region62: #{double_conv_nhwc.3} parent=55 // pred_check_branch
        %3348 = sbr.rel (%p3346) target = $region64
      $region63: #{double_conv_nhwc.3} parent=55 // pred_region
        %p3349 = scmp.lt.s32.totalorder %s22, 1
        %s3350 = scalar_select %p3349, %s22, 1
        %s3351 = smul.addr %s3350, 2
        %s3352 = scalar_lea.vmem %s4, %s3351
      $region64: #{double_conv_nhwc.3} parent=55 // pred_fallthru
        _
    $region56: #{double_conv_nhwc.3} parent=5 // pred_fallthru
      _
  $region6: #{double_conv_nhwc.3} parent=0 // loop_footer
    %s15 = sadd.s32 1, %s11
  $region7: #{double_conv_nhwc.3} parent=0 // loop_footer_branch
    %10 = sbr.rel target = $region3
  $region8: #{double_conv_nhwc.3} parent=0 // loop_exit
    _

// kernel: double_conv_nhwc.4
$region0: #{double_conv_nhwc.4}
  #allocation0 [shape = 'u32[]', space=smem, size = 0x4, offset = 0x4, fixed_abs, tag = 'smem constant byte address 0x4 - core index']
  #allocation1 [shape = 'u32[144,128]{1,0:T(1,128)}', space=vmem, size = 0x12000, scoped, tag = 'internal scratch']
  #allocation2 [shape = 'bf16[10,18,128]{2,1,0:T(8,128)(2,1)}', space=vmem, size = 0xf000, scoped, tag = 'scratch operand']
  %s0 = inlined_call_operand.vmem [shape: bf16[2,16,16,128], index: 0, kind: input, shape index: {}]
  %s1 = inlined_call_operand.vmem [shape: f32[1,128], index: 1, kind: input, shape index: {}]
  %s2 = inlined_call_operand.vmem [shape: f32[1,128], index: 2, kind: input, shape index: {}]
  %s3 = inlined_call_operand.vmem [shape: bf16[9,128,128], index: 3, kind: input, shape index: {}]
  %s4 = inlined_call_operand.vmem [shape: f32[1,128], index: 4, kind: input, shape index: {}]
  %s5 = inlined_call_operand.vmem [shape: bf16[2,16,16,128], index: 5, kind: output, shape index: {0}]
  %s6 = inlined_call_operand.vmem [shape: f32[2,2,128], index: 6, kind: output, shape index: {1}]
  %7 = xla_tuple %s5, %s6
  %s8 = sld [smem:[#allocation0]]
  $region73: #{double_conv_nhwc.4} parent=0
    _
  %s10 = ssub.s32 1, %s8
  %s11 = scalar_select 0, %s10, %s8
  loop: start=0, step=1, limit=6
  $region2: #{double_conv_nhwc.4} parent=0 // loop_pre_header
    _
  $region3: #{double_conv_nhwc.4} parent=0 // loop_header
    %s13 = sphi 0, %s17
    %p14 = scmp.ge.s32.totalorder %s13, 6
    %s20 = sphi 0, %s32
    %s21 = sphi 0, %s28
    %s22 = sphi 0, %s20
    %s23 = sphi 0, %s21
    %s24 = sphi 0, %s22
    %s25 = sphi 0, %s23
    %s35 = sphi 0, %s37
    %s38 = sphi 0, %s35
    %s39 = sphi 0, %s38
    %s55 = sphi 0, %s39
    %s59 = sphi 0, %s59
    %s61 = sphi 0, %s59
    %s62 = sphi 0, %s61
    %s76 = sphi 0, %s62
    %s80 = sphi 0, %s80
    %s82 = sphi 0, %s80
    %s83 = sphi 0, %s82
    %s97 = sphi 0, %s83
    %s101 = sphi 0, %s101
    %s103 = sphi 0, %s101
    %s104 = sphi 0, %s103
    %s118 = sphi 0, %s104
    %s122 = sphi 0, %s122
    %s124 = sphi 0, %s122
    %s125 = sphi 0, %s124
    %s139 = sphi 0, %s125
    %s147 = sphi 0, %s149
    %s150 = sphi 0, %s147
    %s151 = sphi 0, %s150
    %s167 = sphi 0, %s151
    %s173 = sphi 0, %s175
    %s176 = sphi 0, %s173
    %s177 = sphi 0, %s176
    %s193 = sphi 0, %s177
  $region4: #{double_conv_nhwc.4} parent=0 // loop_header_branch
    %16 = sbr.rel (%p14) target = $region8
  $region5: #{double_conv_nhwc.4} parent=0 // loop_body
    %s18 = ssub.s32 %s13, 1
    %s19 = ssub.s32 %s13, 2
    %s26 = sadd.s32 1, %s21
    %p27 = scmp.ge.s32.totalorder %s26, 2
    %s28 = scalar_select %p27, 0, %s26
    %s29 = sadd.s32 1, %s20
    %s30 = scalar_select %p27, %s29, %s20
    %p31 = scmp.ge.s32.totalorder %s30, 2
    %s32 = scalar_select %p31, 0, %s30
    %s33 = ssub.s32 %s20, %s32
    %p34 = scmp.eq.s32.totalorder %s33, 0
    %s36 = sadd.s32 %s35, 1
    %s37 = scalar_select %p34, %s35, %s36
    %p40 = pneg %p34
    %p41 = scmp.eq.s32.totalorder %s13, 3
    %p42 = por %p40, %p41
    %p43 = scmp.ne.s32.totalorder %s35, %s38
    %p44 = scmp.eq.s32.totalorder %s13, 0
    %p45 = por %p43, %p44
    %p46 = scmp.ne.s32.totalorder %s35, %s38
    %p47 = scmp.eq.s32.totalorder %s18, 3
    %p48 = por %p46, %p47
    %p49 = scmp.ne.s32.totalorder %s38, %s39
    %p50 = scmp.eq.s32.totalorder %s18, 0
    %p51 = por %p49, %p50
    %p52 = scmp.ne.s32.totalorder %s38, %s39
    %p53 = scmp.eq.s32.totalorder %s19, 3
    %p54 = por %p52, %p53
    %p56 = scmp.ne.s32.totalorder %s39, %s55
    %p57 = scmp.eq.s32.totalorder %s19, 0
    %p58 = por %p56, %p57
    %s60 = sadd.s32 %s59, 1
    %p63 = scmp.eq.s32.totalorder %s13, 3
    %p64 = scmp.ne.s32.totalorder %s59, %s61
    %p65 = scmp.eq.s32.totalorder %s13, 0
    %p66 = por %p64, %p65
    %p67 = scmp.ne.s32.totalorder %s59, %s61
    %p68 = scmp.eq.s32.totalorder %s18, 3
    %p69 = por %p67, %p68
    %p70 = scmp.ne.s32.totalorder %s61, %s62
    %p71 = scmp.eq.s32.totalorder %s18, 0
    %p72 = por %p70, %p71
    %p73 = scmp.ne.s32.totalorder %s61, %s62
    %p74 = scmp.eq.s32.totalorder %s19, 3
    %p75 = por %p73, %p74
    %p77 = scmp.ne.s32.totalorder %s62, %s76
    %p78 = scmp.eq.s32.totalorder %s19, 0
    %p79 = por %p77, %p78
    %s81 = sadd.s32 %s80, 1
    %p84 = scmp.eq.s32.totalorder %s13, 3
    %p85 = scmp.ne.s32.totalorder %s80, %s82
    %p86 = scmp.eq.s32.totalorder %s13, 0
    %p87 = por %p85, %p86
    %p88 = scmp.ne.s32.totalorder %s80, %s82
    %p89 = scmp.eq.s32.totalorder %s18, 3
    %p90 = por %p88, %p89
    %p91 = scmp.ne.s32.totalorder %s82, %s83
    %p92 = scmp.eq.s32.totalorder %s18, 0
    %p93 = por %p91, %p92
    %p94 = scmp.ne.s32.totalorder %s82, %s83
    %p95 = scmp.eq.s32.totalorder %s19, 3
    %p96 = por %p94, %p95
    %p98 = scmp.ne.s32.totalorder %s83, %s97
    %p99 = scmp.eq.s32.totalorder %s19, 0
    %p100 = por %p98, %p99
    %s102 = sadd.s32 %s101, 1
    %p105 = scmp.eq.s32.totalorder %s13, 3
    %p106 = scmp.ne.s32.totalorder %s101, %s103
    %p107 = scmp.eq.s32.totalorder %s13, 0
    %p108 = por %p106, %p107
    %p109 = scmp.ne.s32.totalorder %s101, %s103
    %p110 = scmp.eq.s32.totalorder %s18, 3
    %p111 = por %p109, %p110
    %p112 = scmp.ne.s32.totalorder %s103, %s104
    %p113 = scmp.eq.s32.totalorder %s18, 0
    %p114 = por %p112, %p113
    %p115 = scmp.ne.s32.totalorder %s103, %s104
    %p116 = scmp.eq.s32.totalorder %s19, 3
    %p117 = por %p115, %p116
    %p119 = scmp.ne.s32.totalorder %s104, %s118
    %p120 = scmp.eq.s32.totalorder %s19, 0
    %p121 = por %p119, %p120
    %s123 = sadd.s32 %s122, 1
    %p126 = scmp.eq.s32.totalorder %s13, 3
    %p127 = scmp.ne.s32.totalorder %s122, %s124
    %p128 = scmp.eq.s32.totalorder %s13, 0
    %p129 = por %p127, %p128
    %p130 = scmp.ne.s32.totalorder %s122, %s124
    %p131 = scmp.eq.s32.totalorder %s18, 3
    %p132 = por %p130, %p131
    %p133 = scmp.ne.s32.totalorder %s124, %s125
    %p134 = scmp.eq.s32.totalorder %s18, 0
    %p135 = por %p133, %p134
    %p136 = scmp.ne.s32.totalorder %s124, %s125
    %p137 = scmp.eq.s32.totalorder %s19, 3
    %p138 = por %p136, %p137
    %p140 = scmp.ne.s32.totalorder %s125, %s139
    %p141 = scmp.eq.s32.totalorder %s19, 0
    %p142 = por %p140, %p141
    %s143 = ssub.s32 %s20, %s32
    %s144 = ssub.s32 %s21, %s28
    %s145 = sor.u32 %s143, %s144
    %p146 = scmp.eq.s32.totalorder %s145, 0
    %s148 = sadd.s32 %s147, 1
    %s149 = scalar_select %p146, %s147, %s148
    %p152 = pneg %p146
    %p153 = scmp.eq.s32.totalorder %s13, 3
    %p154 = por %p152, %p153
    %p155 = scmp.ne.s32.totalorder %s147, %s150
    %p156 = scmp.eq.s32.totalorder %s13, 0
    %p157 = por %p155, %p156
    %p158 = scmp.ne.s32.totalorder %s147, %s150
    %p159 = scmp.eq.s32.totalorder %s18, 3
    %p160 = por %p158, %p159
    %p161 = scmp.ne.s32.totalorder %s150, %s151
    %p162 = scmp.eq.s32.totalorder %s18, 0
    %p163 = por %p161, %p162
    %p164 = scmp.ne.s32.totalorder %s150, %s151
    %p165 = scmp.eq.s32.totalorder %s19, 3
    %p166 = por %p164, %p165
    %p168 = scmp.ne.s32.totalorder %s151, %s167
    %p169 = scmp.eq.s32.totalorder %s19, 0
    %p170 = por %p168, %p169
    %s171 = ssub.s32 %s20, %s32
    %p172 = scmp.eq.s32.totalorder %s171, 0
    %s174 = sadd.s32 %s173, 1
    %s175 = scalar_select %p172, %s173, %s174
    %p178 = pneg %p172
    %p179 = scmp.eq.s32.totalorder %s13, 3
    %p180 = por %p178, %p179
    %p181 = scmp.ne.s32.totalorder %s173, %s176
    %p182 = scmp.eq.s32.totalorder %s13, 0
    %p183 = por %p181, %p182
    %p184 = scmp.ne.s32.totalorder %s173, %s176
    %p185 = scmp.eq.s32.totalorder %s18, 3
    %p186 = por %p184, %p185
    %p187 = scmp.ne.s32.totalorder %s176, %s177
    %p188 = scmp.eq.s32.totalorder %s18, 0
    %p189 = por %p187, %p188
    %p190 = scmp.ne.s32.totalorder %s176, %s177
    %p191 = scmp.eq.s32.totalorder %s19, 3
    %p192 = por %p190, %p191
    %p194 = scmp.ne.s32.totalorder %s177, %s193
    %p195 = scmp.eq.s32.totalorder %s19, 0
    %p196 = por %p194, %p195
    %p197 = scmp.le.s32.totalorder 1, %s13
    %p198 = scmp.lt.s32.totalorder %s13, 5
    %p199 = pnand %p197, %p198
    %p200 = pneg %p199
    // Predicated region
    $region9: #{double_conv_nhwc.4} parent=5 // pred_check
      _
    $region10: #{double_conv_nhwc.4} parent=5 // pred_check_branch
      %202 = sbr.rel (%p199) target = $region12
    $region11: #{double_conv_nhwc.4} parent=5 // pred_region
      %s203 = ssub.s32 %s13, 1
      // Predicated region
      $region13: #{double_conv_nhwc.4} parent=11 // pred_check
        %p204 = pneg %p72
      $region14: #{double_conv_nhwc.4} parent=11 // pred_check_branch
        %206 = sbr.rel (%p204) target = $region16
      $region15: #{double_conv_nhwc.4} parent=11 // pred_region
        _
      $region16: #{double_conv_nhwc.4} parent=11 // pred_fallthru
        _
      // Predicated region
      $region17: #{double_conv_nhwc.4} parent=11 // pred_check
        %p207 = pneg %p93
      $region18: #{double_conv_nhwc.4} parent=11 // pred_check_branch
        %209 = sbr.rel (%p207) target = $region20
      $region19: #{double_conv_nhwc.4} parent=11 // pred_region
        _
      $region20: #{double_conv_nhwc.4} parent=11 // pred_fallthru
        _
      // Predicated region
      $region21: #{double_conv_nhwc.4} parent=11 // pred_check
        %p210 = pneg %p114
      $region22: #{double_conv_nhwc.4} parent=11 // pred_check_branch
        %212 = sbr.rel (%p210) target = $region24
      $region23: #{double_conv_nhwc.4} parent=11 // pred_region
        _
      $region24: #{double_conv_nhwc.4} parent=11 // pred_fallthru
        _
      // Predicated region
      $region25: #{double_conv_nhwc.4} parent=11 // pred_check
        %p213 = pneg %p135
      $region26: #{double_conv_nhwc.4} parent=11 // pred_check_branch
        %215 = sbr.rel (%p213) target = $region28
      $region27: #{double_conv_nhwc.4} parent=11 // pred_region
        _
      $region28: #{double_conv_nhwc.4} parent=11 // pred_fallthru
        _
    $region12: #{double_conv_nhwc.4} parent=5 // pred_fallthru
      _
    %p216 = scmp.lt.s32.totalorder %s13, 4
    // Predicated region
    $region29: #{double_conv_nhwc.4} parent=5 // pred_check
      %p217 = pneg %p216
    $region30: #{double_conv_nhwc.4} parent=5 // pred_check_branch
      %219 = sbr.rel (%p217) target = $region32
    $region31: #{double_conv_nhwc.4} parent=5 // pred_region
      // Predicated region
      $region33: #{double_conv_nhwc.4} parent=31 // pred_check
        %p220 = pneg %p45
      $region34: #{double_conv_nhwc.4} parent=31 // pred_check_branch
        %222 = sbr.rel (%p220) target = $region36
      $region35: #{double_conv_nhwc.4} parent=31 // pred_region
        %p223 = scmp.lt.s32.totalorder %s20, 1
        %s224 = scalar_select %p223, %s20, 1
        %s225 = smul.addr %s224, 32
        %s226 = smul.addr %s225, 4
        %s227 = scalar_lea.vmem %s0, %s226
      $region36: #{double_conv_nhwc.4} parent=31 // pred_fallthru
        _
    $region32: #{double_conv_nhwc.4} parent=5 // pred_fallthru
      _
    %p228 = scmp.le.s32.totalorder 1, %s13
    %p229 = scmp.lt.s32.totalorder %s13, 5
    %p230 = pnand %p228, %p229
    %p231 = pneg %p230
    // Predicated region
    $region37: #{double_conv_nhwc.4} parent=5 // pred_check
      _
    $region38: #{double_conv_nhwc.4} parent=5 // pred_check_branch
      %233 = sbr.rel (%p230) target = $region40
    $region39: #{double_conv_nhwc.4} parent=5 // pred_region
      %s234 = ssub.s32 %s13, 1
      %p235 = scmp.lt.s32.totalorder %s22, 1
      %s236 = scalar_select %p235, %s22, 1
      %s237 = smul.addr %s236, 32
      %s238 = smul.addr %s237, 4
      %s239 = scalar_lea.vmem %s0, %s238
      %p240 = pneg %p51
      %p241 = pneg %p48
      %p242 = pneg %p72
      %p243 = pneg %p69
      %p244 = pneg %p93
      %p245 = pneg %p90
      %p246 = pneg %p114
      %p247 = pneg %p111
      %p248 = pneg %p135
      %p249 = pneg %p132
      %p250 = pneg %p163
      %p251 = pneg %p160
      %s252 = smul.u32 8, %s23
      %p253 = scmp.lt.s32.totalorder %s22, 1
      %s254 = scalar_select %p253, %s22, 1
      %p255 = scmp.lt.s32.totalorder %s252, 15
      %s256 = scalar_select %p255, %s252, 15
      %s257 = smul.addr %s256, 2
      %s258 = smul.addr %s254, 32
      %s259 = sadd.s32 %s257, %s258
      %s260 = smul.addr %s259, 4
      %s261 = scalar_lea.vmem %s5, %s260
      %p262 = pneg %p189
      %p263 = pneg %p186
      %p264 = scmp.lt.s32.totalorder %s22, 1
      %s265 = scalar_select %p264, %s22, 1
      %s266 = smul.addr %s265, 2
      %s267 = scalar_lea.vmem %s6, %s266
      %p268 = scmp.lt.s32.totalorder %s22, 1
      %s269 = scalar_select %p268, %s22, 1
      %s270 = smul.addr %s269, 32
      %s271 = smul.addr %s270, 4
      %s272 = scalar_lea.vmem %s0, %s271
      %s273 = smul.u32 8, %s23
      %p274 = scmp.lt.s32.totalorder %s22, 1
      %s275 = scalar_select %p274, %s22, 1
      %p276 = scmp.lt.s32.totalorder %s273, 15
      %s277 = scalar_select %p276, %s273, 15
      %s278 = smul.addr %s277, 2
      %s279 = smul.addr %s275, 32
      %s280 = sadd.s32 %s278, %s279
      %s281 = smul.addr %s280, 4
      %s282 = scalar_lea.vmem %s5, %s281
      %s283 = smul.u32 8, %s23
      %p284 = scmp.lt.s32.totalorder %s22, 1
      %s285 = scalar_select %p284, %s22, 1
      %s286 = smul.addr %s285, 2
      %s287 = scalar_lea.vmem %s6, %s286
      %v289 = vld [vmem:[%s1] sm:$0x1]
      %v290 = vld [vmem:[%s2] sm:$0x1]
      %291 = vst [vmem:[#allocation2] sm:$0xf] 0
      %292 = vst [vmem:[#allocation2 + $0x4] sm:$0xf] 0
      %293 = vst [vmem:[#allocation2 + $0x8] sm:$0x1] 0
      %s294 = scalar_lea.vmem [#allocation2], 108
      %295 = vst [vmem:[%s294] sm:$0xf] 0
      %296 = vst [vmem:[%s294 + $0x4] sm:$0xf] 0
      %297 = vst [vmem:[%s294 + $0x8] sm:$0x1] 0
      %vm298 = vcmask 1040384
      %vm299 = vsmask.f32 256
      %vm300 = vmand %vm298, %vm299
      %v301 = vld [vmem:[#allocation2] sm:$0x1]
      %v302 = vsel %vm300, 0, %v301
      %303 = vst [vmem:[#allocation2] sm:$0x1] %v302
      %v304 = vld [vmem:[#allocation2 + $0xc] sm:$0x1]
      %v305 = vsel %vm300, 0, %v304
      %306 = vst [vmem:[#allocation2 + $0xc] sm:$0x1] %v305
      %v307 = vld [vmem:[#allocation2 + $0x18] sm:$0x1]
      %v308 = vsel %vm300, 0, %v307
      %309 = vst [vmem:[#allocation2 + $0x18] sm:$0x1] %v308
      %v310 = vld [vmem:[#allocation2 + $0x24] sm:$0x1]
      %v311 = vsel %vm300, 0, %v310
      %312 = vst [vmem:[#allocation2 + $0x24] sm:$0x1] %v311
      %v313 = vld [vmem:[#allocation2 + $0x30] sm:$0x1]
      %v314 = vsel %vm300, 0, %v313
      %315 = vst [vmem:[#allocation2 + $0x30] sm:$0x1] %v314
      %v316 = vld [vmem:[#allocation2 + $0x3c] sm:$0x1]
      %v317 = vsel %vm300, 0, %v316
      %318 = vst [vmem:[#allocation2 + $0x3c] sm:$0x1] %v317
      %v319 = vld [vmem:[#allocation2 + $0x48] sm:$0x1]
      %v320 = vsel %vm300, 0, %v319
      %321 = vst [vmem:[#allocation2 + $0x48] sm:$0x1] %v320
      %v322 = vld [vmem:[#allocation2 + $0x54] sm:$0x1]
      %v323 = vsel %vm300, 0, %v322
      %324 = vst [vmem:[#allocation2 + $0x54] sm:$0x1] %v323
      %v325 = vld [vmem:[#allocation2 + $0x60] sm:$0x1]
      %v326 = vsel %vm300, 0, %v325
      %327 = vst [vmem:[#allocation2 + $0x60] sm:$0x1] %v326
      %v328 = vld [vmem:[#allocation2 + $0x6c] sm:$0x1]
      %v329 = vsel %vm300, 0, %v328
      %330 = vst [vmem:[#allocation2 + $0x6c] sm:$0x1] %v329
      %vm331 = vsmask.f32 7938
      %vm332 = vmand %vm298, %vm331
      %v333 = vld [vmem:[#allocation2 + $0x8] sm:$0x1]
      %v334 = vsel %vm332, 0, %v333
      %335 = vst [vmem:[#allocation2 + $0x8] sm:$0x1] %v334
      %v336 = vld [vmem:[#allocation2 + $0x14] sm:$0x1]
      %v337 = vsel %vm332, 0, %v336
      %338 = vst [vmem:[#allocation2 + $0x14] sm:$0x1] %v337
      %v339 = vld [vmem:[#allocation2 + $0x20] sm:$0x1]
      %v340 = vsel %vm332, 0, %v339
      %341 = vst [vmem:[#allocation2 + $0x20] sm:$0x1] %v340
      %v342 = vld [vmem:[#allocation2 + $0x2c] sm:$0x1]
      %v343 = vsel %vm332, 0, %v342
      %344 = vst [vmem:[#allocation2 + $0x2c] sm:$0x1] %v343
      %v345 = vld [vmem:[#allocation2 + $0x38] sm:$0x1]
      %v346 = vsel %vm332, 0, %v345
      %347 = vst [vmem:[#allocation2 + $0x38] sm:$0x1] %v346
      %v348 = vld [vmem:[#allocation2 + $0x44] sm:$0x1]
      %v349 = vsel %vm332, 0, %v348
      %350 = vst [vmem:[#allocation2 + $0x44] sm:$0x1] %v349
      %v351 = vld [vmem:[#allocation2 + $0x50] sm:$0x1]
      %v352 = vsel %vm332, 0, %v351
      %353 = vst [vmem:[#allocation2 + $0x50] sm:$0x1] %v352
      %v354 = vld [vmem:[#allocation2 + $0x5c] sm:$0x1]
      %v355 = vsel %vm332, 0, %v354
      %356 = vst [vmem:[#allocation2 + $0x5c] sm:$0x1] %v355
      %v357 = vld [vmem:[#allocation2 + $0x68] sm:$0x1]
      %v358 = vsel %vm332, 0, %v357
      %359 = vst [vmem:[#allocation2 + $0x68] sm:$0x1] %v358
      %v360 = vld [vmem:[#allocation2 + $0x74] sm:$0x1]
      %v361 = vsel %vm332, 0, %v360
      %362 = vst [vmem:[#allocation2 + $0x74] sm:$0x1] %v361
      %s363 = smul.u32 %s23, 8
      %s364 = smul.u32 %s363, 2
      %s365 = smul.addr %s364, 4
      %s366 = scalar_lea.vmem %s272, %s365
      %v367 = vld [vmem:[%s366] sm:$0xf]
      %v368 = vld [vmem:[%s366 + $0x4] sm:$0xf]
      %v369 = vld [vmem:[%s366 + $0x8] sm:$0xf]
      %v370 = vld [vmem:[%s366 + $0xc] sm:$0xf]
      %v371 = vld [vmem:[%s366 + $0x10] sm:$0xf]
      %v372 = vld [vmem:[%s366 + $0x14] sm:$0xf]
      %v373 = vld [vmem:[%s366 + $0x18] sm:$0xf]
      %v374 = vld [vmem:[%s366 + $0x1c] sm:$0xf]
      %v375 = vld [vmem:[%s366 + $0x20] sm:$0xf]
      %v376 = vld [vmem:[%s366 + $0x24] sm:$0xf]
      %v377 = vld [vmem:[%s366 + $0x28] sm:$0xf]
      %v378 = vld [vmem:[%s366 + $0x2c] sm:$0xf]
      %v379 = vld [vmem:[%s366 + $0x30] sm:$0xf]
      %v380 = vld [vmem:[%s366 + $0x34] sm:$0xf]
      %v381 = vld [vmem:[%s366 + $0x38] sm:$0xf]
      %v382 = vld [vmem:[%s366 + $0x3c] sm:$0xf]
      %v383 = vunpack.c.l.bf16 %v367
      %v384 = vunpack.c.l.bf16 %v368
      %v385 = vunpack.c.l.bf16 %v369
      %v386 = vunpack.c.l.bf16 %v370
      %v387 = vunpack.c.l.bf16 %v371
      %v388 = vunpack.c.l.bf16 %v372
      %v389 = vunpack.c.l.bf16 %v373
      %v390 = vunpack.c.l.bf16 %v374
      %v391 = vunpack.c.l.bf16 %v375
      %v392 = vunpack.c.l.bf16 %v376
      %v393 = vunpack.c.l.bf16 %v377
      %v394 = vunpack.c.l.bf16 %v378
      %v395 = vunpack.c.l.bf16 %v379
      %v396 = vunpack.c.l.bf16 %v380
      %v397 = vunpack.c.l.bf16 %v381
      %v398 = vunpack.c.l.bf16 %v382
      %v400 = vlaneseq
      %v401 = vshrl.u32 %v400, 7
      %v402 = vsub.s32 0, %v401
      %v403 = vrot.slane %v289, %v402
      %v405 = vmul.f32 %v383, %v403
      %v406 = vmul.f32 %v384, %v403
      %v407 = vmul.f32 %v385, %v403
      %v408 = vmul.f32 %v386, %v403
      %v409 = vmul.f32 %v387, %v403
      %v410 = vmul.f32 %v388, %v403
      %v411 = vmul.f32 %v389, %v403
      %v412 = vmul.f32 %v390, %v403
      %v413 = vmul.f32 %v391, %v403
      %v414 = vmul.f32 %v392, %v403
      %v415 = vmul.f32 %v393, %v403
      %v416 = vmul.f32 %v394, %v403
      %v417 = vmul.f32 %v395, %v403
      %v418 = vmul.f32 %v396, %v403
      %v419 = vmul.f32 %v397, %v403
      %v420 = vmul.f32 %v398, %v403
      %v422 = vlaneseq
      %v423 = vshrl.u32 %v422, 7
      %v424 = vsub.s32 0, %v423
      %v425 = vrot.slane %v290, %v424
      %v427 = vadd.f32 %v405, %v425
      %v428 = vadd.f32 %v406, %v425
      %v429 = vadd.f32 %v407, %v425
      %v430 = vadd.f32 %v408, %v425
      %v431 = vadd.f32 %v409, %v425
      %v432 = vadd.f32 %v410, %v425
      %v433 = vadd.f32 %v411, %v425
      %v434 = vadd.f32 %v412, %v425
      %v435 = vadd.f32 %v413, %v425
      %v436 = vadd.f32 %v414, %v425
      %v437 = vadd.f32 %v415, %v425
      %v438 = vadd.f32 %v416, %v425
      %v439 = vadd.f32 %v417, %v425
      %v440 = vadd.f32 %v418, %v425
      %v441 = vadd.f32 %v419, %v425
      %v442 = vadd.f32 %v420, %v425
      %v443 = vmax.f32 %v427, 0.0
      %v444 = vmax.f32 %v428, 0.0
      %v445 = vmax.f32 %v429, 0.0
      %v446 = vmax.f32 %v430, 0.0
      %v447 = vmax.f32 %v431, 0.0
      %v448 = vmax.f32 %v432, 0.0
      %v449 = vmax.f32 %v433, 0.0
      %v450 = vmax.f32 %v434, 0.0
      %v451 = vmax.f32 %v435, 0.0
      %v452 = vmax.f32 %v436, 0.0
      %v453 = vmax.f32 %v437, 0.0
      %v454 = vmax.f32 %v438, 0.0
      %v455 = vmax.f32 %v439, 0.0
      %v456 = vmax.f32 %v440, 0.0
      %v457 = vmax.f32 %v441, 0.0
      %v458 = vmax.f32 %v442, 0.0
      %v459 = vpack.c.bf16 %v444, %v443
      %v460 = vpack.c.bf16 %v446, %v445
      %v461 = vpack.c.bf16 %v448, %v447
      %v462 = vpack.c.bf16 %v450, %v449
      %v463 = vpack.c.bf16 %v452, %v451
      %v464 = vpack.c.bf16 %v454, %v453
      %v465 = vpack.c.bf16 %v456, %v455
      %v466 = vpack.c.bf16 %v458, %v457
      %v475 = vunpack.c.l.b16 %v459
      %v476 = vunpack.c.h.b16 %v459
      %v477 = vunpack.c.l.b16 %v460
      %v478 = vunpack.c.h.b16 %v460
      %v479 = vunpack.c.l.b16 %v461
      %v480 = vunpack.c.h.b16 %v461
      %v481 = vunpack.c.l.b16 %v462
      %v482 = vunpack.c.h.b16 %v462
      %v483 = vunpack.c.l.b16 %v463
      %v484 = vunpack.c.h.b16 %v463
      %v485 = vunpack.c.l.b16 %v464
      %v486 = vunpack.c.h.b16 %v464
      %v487 = vunpack.c.l.b16 %v465
      %v488 = vunpack.c.h.b16 %v465
      %v489 = vunpack.c.l.b16 %v466
      %v490 = vunpack.c.h.b16 %v466
      %v491 = vpack.c.b16 %v475, %v475
      %v492 = vpack.c.b16 %v476, %v476
      %v493 = vpack.c.b16 %v477, %v477
      %v494 = vpack.c.b16 %v478, %v478
      %v495 = vpack.c.b16 %v479, %v479
      %v496 = vpack.c.b16 %v480, %v480
      %v497 = vpack.c.b16 %v481, %v481
      %v498 = vpack.c.b16 %v482, %v482
      %v499 = vpack.c.b16 %v483, %v483
      %v500 = vpack.c.b16 %v484, %v484
      %v501 = vpack.c.b16 %v485, %v485
      %v502 = vpack.c.b16 %v486, %v486
      %v503 = vpack.c.b16 %v487, %v487
      %v504 = vpack.c.b16 %v488, %v488
      %v505 = vpack.c.b16 %v489, %v489
      %v506 = vpack.c.b16 %v490, %v490
      %vm507 = vsmask.f32 4368
      %vm508 = vmor %vm299, %vm507
      %v510 = vshrl.u32 %v491, 16
      %v512 = vrot.slane %v510, 7
      %v513 = vshll.u32 %v491, 16
      %v515 = vor.u32 %v512, %v513
      %v516 = vrot.slane %v512, 4
      %v518 = vshrl.u32 %v492, 16
      %v520 = vrot.slane %v518, 7
      %v521 = vshll.u32 %v492, 16
      %v523 = vor.u32 %v520, %v521
      %v524 = vsel %vm508, %v516, %v523
      %v525 = vrot.slane %v520, 4
      %v527 = vshrl.u32 %v493, 16
      %v529 = vrot.slane %v527, 7
      %v530 = vshll.u32 %v493, 16
      %v532 = vor.u32 %v529, %v530
      %v533 = vrot.slane %v529, 4
      %v535 = vshrl.u32 %v494, 16
      %v537 = vrot.slane %v535, 7
      %v538 = vshll.u32 %v494, 16
      %v540 = vor.u32 %v537, %v538
      %v541 = vsel %vm508, %v533, %v540
      %v542 = vrot.slane %v537, 4
      %v544 = vshrl.u32 %v495, 16
      %v546 = vrot.slane %v544, 7
      %v547 = vshll.u32 %v495, 16
      %v549 = vor.u32 %v546, %v547
      %v550 = vrot.slane %v546, 4
      %v552 = vshrl.u32 %v496, 16
      %v554 = vrot.slane %v552, 7
      %v555 = vshll.u32 %v496, 16
      %v557 = vor.u32 %v554, %v555
      %v558 = vsel %vm508, %v550, %v557
      %v559 = vrot.slane %v554, 4
      %v561 = vshrl.u32 %v497, 16
      %v563 = vrot.slane %v561, 7
      %v564 = vshll.u32 %v497, 16
      %v566 = vor.u32 %v563, %v564
      %v567 = vrot.slane %v563, 4
      %v569 = vshrl.u32 %v498, 16
      %v571 = vrot.slane %v569, 7
      %v572 = vshll.u32 %v498, 16
      %v574 = vor.u32 %v571, %v572
      %v575 = vsel %vm508, %v567, %v574
      %v576 = vrot.slane %v571, 4
      %v578 = vshrl.u32 %v499, 16
      %v580 = vrot.slane %v578, 7
      %v581 = vshll.u32 %v499, 16
      %v583 = vor.u32 %v580, %v581
      %v584 = vrot.slane %v580, 4
      %v586 = vshrl.u32 %v500, 16
      %v588 = vrot.slane %v586, 7
      %v589 = vshll.u32 %v500, 16
      %v591 = vor.u32 %v588, %v589
      %v592 = vsel %vm508, %v584, %v591
      %v593 = vrot.slane %v588, 4
      %v595 = vshrl.u32 %v501, 16
      %v597 = vrot.slane %v595, 7
      %v598 = vshll.u32 %v501, 16
      %v600 = vor.u32 %v597, %v598
      %v601 = vrot.slane %v597, 4
      %v603 = vshrl.u32 %v502, 16
      %v605 = vrot.slane %v603, 7
      %v606 = vshll.u32 %v502, 16
      %v608 = vor.u32 %v605, %v606
      %v609 = vsel %vm508, %v601, %v608
      %v610 = vrot.slane %v605, 4
      %v612 = vshrl.u32 %v503, 16
      %v614 = vrot.slane %v612, 7
      %v615 = vshll.u32 %v503, 16
      %v617 = vor.u32 %v614, %v615
      %v618 = vrot.slane %v614, 4
      %v620 = vshrl.u32 %v504, 16
      %v622 = vrot.slane %v620, 7
      %v623 = vshll.u32 %v504, 16
      %v625 = vor.u32 %v622, %v623
      %v626 = vsel %vm508, %v618, %v625
      %v627 = vrot.slane %v622, 4
      %v629 = vshrl.u32 %v505, 16
      %v631 = vrot.slane %v629, 7
      %v632 = vshll.u32 %v505, 16
      %v634 = vor.u32 %v631, %v632
      %v635 = vrot.slane %v631, 4
      %v637 = vshrl.u32 %v506, 16
      %v639 = vrot.slane %v637, 7
      %v640 = vshll.u32 %v506, 16
      %v642 = vor.u32 %v639, %v640
      %v643 = vsel %vm508, %v635, %v642
      %v644 = vrot.slane %v639, 4
      %s669 = scalar_lea.vmem [#allocation2], 12
      %vm670 = vcmask 1043456
      %vm671 = vmand %vm670, %vm331
      %v672 = vld [vmem:[%s669] sm:$0xf]
      %v673 = vsel %vm671, %v515, %v672
      %674 = vst [vmem:[%s669] sm:$0xf] %v673
      %675 = vst [vmem:[%s669 + $0x4] sm:$0xf] %v524
      %v676 = vld [vmem:[%s669 + $0x8] sm:$0x1]
      %v677 = vsel %vm300, %v525, %v676
      %678 = vst [vmem:[%s669 + $0x8] sm:$0x1] %v677
      %v679 = vld [vmem:[%s669 + $0xc] sm:$0xf]
      %v680 = vsel %vm671, %v532, %v679
      %681 = vst [vmem:[%s669 + $0xc] sm:$0xf] %v680
      %682 = vst [vmem:[%s669 + $0x10] sm:$0xf] %v541
      %v683 = vld [vmem:[%s669 + $0x14] sm:$0x1]
      %v684 = vsel %vm300, %v542, %v683
      %685 = vst [vmem:[%s669 + $0x14] sm:$0x1] %v684
      %v686 = vld [vmem:[%s669 + $0x18] sm:$0xf]
      %v687 = vsel %vm671, %v549, %v686
      %688 = vst [vmem:[%s669 + $0x18] sm:$0xf] %v687
      %689 = vst [vmem:[%s669 + $0x1c] sm:$0xf] %v558
      %v690 = vld [vmem:[%s669 + $0x20] sm:$0x1]
      %v691 = vsel %vm300, %v559, %v690
      %692 = vst [vmem:[%s669 + $0x20] sm:$0x1] %v691
      %v693 = vld [vmem:[%s669 + $0x24] sm:$0xf]
      %v694 = vsel %vm671, %v566, %v693
      %695 = vst [vmem:[%s669 + $0x24] sm:$0xf] %v694
      %696 = vst [vmem:[%s669 + $0x28] sm:$0xf] %v575
      %v697 = vld [vmem:[%s669 + $0x2c] sm:$0x1]
      %v698 = vsel %vm300, %v576, %v697
      %699 = vst [vmem:[%s669 + $0x2c] sm:$0x1] %v698
      %v700 = vld [vmem:[%s669 + $0x30] sm:$0xf]
      %v701 = vsel %vm671, %v583, %v700
      %702 = vst [vmem:[%s669 + $0x30] sm:$0xf] %v701
      %703 = vst [vmem:[%s669 + $0x34] sm:$0xf] %v592
      %v704 = vld [vmem:[%s669 + $0x38] sm:$0x1]
      %v705 = vsel %vm300, %v593, %v704
      %706 = vst [vmem:[%s669 + $0x38] sm:$0x1] %v705
      %v707 = vld [vmem:[%s669 + $0x3c] sm:$0xf]
      %v708 = vsel %vm671, %v600, %v707
      %709 = vst [vmem:[%s669 + $0x3c] sm:$0xf] %v708
      %710 = vst [vmem:[%s669 + $0x40] sm:$0xf] %v609
      %v711 = vld [vmem:[%s669 + $0x44] sm:$0x1]
      %v712 = vsel %vm300, %v610, %v711
      %713 = vst [vmem:[%s669 + $0x44] sm:$0x1] %v712
      %v714 = vld [vmem:[%s669 + $0x48] sm:$0xf]
      %v715 = vsel %vm671, %v617, %v714
      %716 = vst [vmem:[%s669 + $0x48] sm:$0xf] %v715
      %717 = vst [vmem:[%s669 + $0x4c] sm:$0xf] %v626
      %v718 = vld [vmem:[%s669 + $0x50] sm:$0x1]
      %v719 = vsel %vm300, %v627, %v718
      %720 = vst [vmem:[%s669 + $0x50] sm:$0x1] %v719
      %v721 = vld [vmem:[%s669 + $0x54] sm:$0xf]
      %v722 = vsel %vm671, %v634, %v721
      %723 = vst [vmem:[%s669 + $0x54] sm:$0xf] %v722
      %724 = vst [vmem:[%s669 + $0x58] sm:$0xf] %v643
      %v725 = vld [vmem:[%s669 + $0x5c] sm:$0x1]
      %v726 = vsel %vm300, %v644, %v725
      %727 = vst [vmem:[%s669 + $0x5c] sm:$0x1] %v726
      %p728 = scmp.gt.s32.totalorder %s23, 0
      // Predicated region
      $region41: #{double_conv_nhwc.4} parent=39 // pred_check
        %p729 = pneg %p728
      $region42: #{double_conv_nhwc.4} parent=39 // pred_check_branch
        %731 = sbr.rel (%p729) target = $region44
      $region43: #{double_conv_nhwc.4} parent=39 // pred_region
        %s732 = ssub.s32 %s363, 1
        %s733 = smul.u32 %s732, 2
        %s734 = smul.addr %s733, 4
        %s735 = scalar_lea.vmem %s272, %s734
        %v736 = vld [vmem:[%s735] sm:$0xf]
        %v737 = vld [vmem:[%s735 + $0x4] sm:$0xf]
        %v738 = vunpack.c.l.bf16 %v736
        %v739 = vunpack.c.l.bf16 %v737
        %v740 = vmul.f32 %v738, %v403
        %v741 = vmul.f32 %v739, %v403
        %v742 = vadd.f32 %v740, %v425
        %v743 = vadd.f32 %v741, %v425
        %v744 = vmax.f32 %v742, 0.0
        %v745 = vmax.f32 %v743, 0.0
        %v746 = vpack.c.bf16 %v745, %v744
        %v748 = vunpack.c.l.b16 %v746
        %v749 = vunpack.c.h.b16 %v746
        %v750 = vpack.c.b16 %v748, %v748
        %v751 = vpack.c.b16 %v749, %v749
        %v753 = vshrl.u32 %v750, 16
        %v755 = vrot.slane %v753, 7
        %v756 = vshll.u32 %v750, 16
        %v758 = vor.u32 %v755, %v756
        %v759 = vrot.slane %v755, 4
        %v761 = vshrl.u32 %v751, 16
        %v763 = vrot.slane %v761, 7
        %v764 = vshll.u32 %v751, 16
        %v766 = vor.u32 %v763, %v764
        %v767 = vsel %vm508, %v759, %v766
        %v768 = vrot.slane %v763, 4
        %v772 = vld [vmem:[#allocation2] sm:$0xf]
        %v773 = vsel %vm671, %v758, %v772
        %774 = vst [vmem:[#allocation2] sm:$0xf] %v773
        %775 = vst [vmem:[#allocation2 + $0x4] sm:$0xf] %v767
        %v776 = vld [vmem:[#allocation2 + $0x8] sm:$0x1]
        %v777 = vsel %vm300, %v768, %v776
        %778 = vst [vmem:[#allocation2 + $0x8] sm:$0x1] %v777
      $region44: #{double_conv_nhwc.4} parent=39 // pred_fallthru
        _
      %p779 = scmp.lt.s32.totalorder %s23, 1
      // Predicated region
      $region45: #{double_conv_nhwc.4} parent=39 // pred_check
        %p780 = pneg %p779
      $region46: #{double_conv_nhwc.4} parent=39 // pred_check_branch
        %782 = sbr.rel (%p780) target = $region48
      $region47: #{double_conv_nhwc.4} parent=39 // pred_region
        %s783 = sadd.s32 %s363, 8
        %s784 = smul.u32 %s783, 2
        %s785 = smul.addr %s784, 4
        %s786 = scalar_lea.vmem %s272, %s785
        %v787 = vld [vmem:[%s786] sm:$0xf]
        %v788 = vld [vmem:[%s786 + $0x4] sm:$0xf]
        %v789 = vunpack.c.l.bf16 %v787
        %v790 = vunpack.c.l.bf16 %v788
        %v791 = vmul.f32 %v789, %v403
        %v792 = vmul.f32 %v790, %v403
        %v793 = vadd.f32 %v791, %v425
        %v794 = vadd.f32 %v792, %v425
        %v795 = vmax.f32 %v793, 0.0
        %v796 = vmax.f32 %v794, 0.0
        %v797 = vpack.c.bf16 %v796, %v795
        %v799 = vunpack.c.l.b16 %v797
        %v800 = vunpack.c.h.b16 %v797
        %v801 = vpack.c.b16 %v799, %v799
        %v802 = vpack.c.b16 %v800, %v800
        %v804 = vshrl.u32 %v801, 16
        %v806 = vrot.slane %v804, 7
        %v807 = vshll.u32 %v801, 16
        %v809 = vor.u32 %v806, %v807
        %v810 = vrot.slane %v806, 4
        %v812 = vshrl.u32 %v802, 16
        %v814 = vrot.slane %v812, 7
        %v815 = vshll.u32 %v802, 16
        %v817 = vor.u32 %v814, %v815
        %v818 = vsel %vm508, %v810, %v817
        %v819 = vrot.slane %v814, 4
        %v823 = vld [vmem:[%s294] sm:$0xf]
        %v824 = vsel %vm671, %v809, %v823
        %825 = vst [vmem:[%s294] sm:$0xf] %v824
        %826 = vst [vmem:[%s294 + $0x4] sm:$0xf] %v818
        %v827 = vld [vmem:[%s294 + $0x8] sm:$0x1]
        %v828 = vsel %vm300, %v819, %v827
        %829 = vst [vmem:[%s294 + $0x8] sm:$0x1] %v828
      $region48: #{double_conv_nhwc.4} parent=39 // pred_fallthru
        _
      %v830 = vld [vmem:[#allocation2] sm:$0xf]
      %v831 = vld [vmem:[#allocation2 + $0x4] sm:$0xf]
      %v832 = vld [vmem:[#allocation2 + $0xc] sm:$0xf]
      %v833 = vld [vmem:[#allocation2 + $0x10] sm:$0xf]
      %v834 = vld [vmem:[#allocation2 + $0x18] sm:$0xf]
      %v835 = vld [vmem:[#allocation2 + $0x1c] sm:$0xf]
      %v836 = vld [vmem:[#allocation2 + $0x24] sm:$0xf]
      %v837 = vld [vmem:[#allocation2 + $0x28] sm:$0xf]
      %v838 = vld [vmem:[#allocation2 + $0x30] sm:$0xf]
      %v839 = vld [vmem:[#allocation2 + $0x34] sm:$0xf]
      %v840 = vld [vmem:[#allocation2 + $0x3c] sm:$0xf]
      %v841 = vld [vmem:[#allocation2 + $0x40] sm:$0xf]
      %v842 = vld [vmem:[#allocation2 + $0x48] sm:$0xf]
      %v843 = vld [vmem:[#allocation2 + $0x4c] sm:$0xf]
      %v844 = vld [vmem:[#allocation2 + $0x54] sm:$0xf]
      %v845 = vld [vmem:[#allocation2 + $0x58] sm:$0xf]
      %v846 = vld [vmem:[%s3] sm:$0xf]
      %v847 = vld [vmem:[%s3 + $0x4] sm:$0xf]
      %v848 = vld [vmem:[%s3 + $0x8] sm:$0xf]
      %v849 = vld [vmem:[%s3 + $0xc] sm:$0xf]
      %v850 = vld [vmem:[%s3 + $0x10] sm:$0xf]
      %v851 = vld [vmem:[%s3 + $0x14] sm:$0xf]
      %v852 = vld [vmem:[%s3 + $0x18] sm:$0xf]
      %v853 = vld [vmem:[%s3 + $0x1c] sm:$0xf]
      %v854 = vld [vmem:[%s3 + $0x20] sm:$0xf]
      %v855 = vld [vmem:[%s3 + $0x24] sm:$0xf]
      %v856 = vld [vmem:[%s3 + $0x28] sm:$0xf]
      %v857 = vld [vmem:[%s3 + $0x2c] sm:$0xf]
      %v858 = vld [vmem:[%s3 + $0x30] sm:$0xf]
      %v859 = vld [vmem:[%s3 + $0x34] sm:$0xf]
      %v860 = vld [vmem:[%s3 + $0x38] sm:$0xf]
      %v861 = vld [vmem:[%s3 + $0x3c] sm:$0xf]
      %v862 = vld [vmem:[#allocation2 + $0x8] sm:$0x1]
      %v863 = vld [vmem:[#allocation2 + $0x14] sm:$0x1]
      %v864 = vld [vmem:[#allocation2 + $0x20] sm:$0x1]
      %v865 = vld [vmem:[#allocation2 + $0x2c] sm:$0x1]
      %v866 = vld [vmem:[#allocation2 + $0x38] sm:$0x1]
      %v867 = vld [vmem:[#allocation2 + $0x44] sm:$0x1]
      %v868 = vld [vmem:[#allocation2 + $0x50] sm:$0x1]
      %v869 = vld [vmem:[#allocation2 + $0x5c] sm:$0x1]
      %vm870 = vsmask.f32 3328
      %vm871 = vsmask.f32 7440
      %vm872 = vmor %vm870, %vm871
      %v874 = vshrl.u32 %v830, 16
      %v876 = vrot.slane %v874, 4
      %v877 = vshll.u32 %v830, 16
      %v879 = vrot.slane %v877, 5
      %v880 = vor.u32 %v876, %v879
      %v881 = vrot.slane %v880, 4
      %v883 = vshll.u32 %v831, 16
      %v885 = vrot.slane %v883, 5
      %v886 = vsel %vm872, %v881, %v885
      %v887 = vshrl.u32 %v831, 16
      %v889 = vrot.slane %v887, 4
      %v890 = vor.u32 %v889, %v885
      %v891 = vrot.slane %v890, 4
      %v893 = vshll.u32 %v862, 16
      %v895 = vrot.slane %v893, 5
      %v896 = vsel %vm872, %v891, %v895
      %v898 = vshrl.u32 %v832, 16
      %v900 = vrot.slane %v898, 4
      %v901 = vshll.u32 %v832, 16
      %v903 = vrot.slane %v901, 5
      %v904 = vor.u32 %v900, %v903
      %v905 = vrot.slane %v904, 4
      %v907 = vshll.u32 %v833, 16
      %v909 = vrot.slane %v907, 5
      %v910 = vsel %vm872, %v905, %v909
      %v911 = vshrl.u32 %v833, 16
      %v913 = vrot.slane %v911, 4
      %v914 = vor.u32 %v913, %v909
      %v915 = vrot.slane %v914, 4
      %v917 = vshll.u32 %v863, 16
      %v919 = vrot.slane %v917, 5
      %v920 = vsel %vm872, %v915, %v919
      %v922 = vshrl.u32 %v834, 16
      %v924 = vrot.slane %v922, 4
      %v925 = vshll.u32 %v834, 16
      %v927 = vrot.slane %v925, 5
      %v928 = vor.u32 %v924, %v927
      %v929 = vrot.slane %v928, 4
      %v931 = vshll.u32 %v835, 16
      %v933 = vrot.slane %v931, 5
      %v934 = vsel %vm872, %v929, %v933
      %v935 = vshrl.u32 %v835, 16
      %v937 = vrot.slane %v935, 4
      %v938 = vor.u32 %v937, %v933
      %v939 = vrot.slane %v938, 4
      %v941 = vshll.u32 %v864, 16
      %v943 = vrot.slane %v941, 5
      %v944 = vsel %vm872, %v939, %v943
      %v946 = vshrl.u32 %v836, 16
      %v948 = vrot.slane %v946, 4
      %v949 = vshll.u32 %v836, 16
      %v951 = vrot.slane %v949, 5
      %v952 = vor.u32 %v948, %v951
      %v953 = vrot.slane %v952, 4
      %v955 = vshll.u32 %v837, 16
      %v957 = vrot.slane %v955, 5
      %v958 = vsel %vm872, %v953, %v957
      %v959 = vshrl.u32 %v837, 16
      %v961 = vrot.slane %v959, 4
      %v962 = vor.u32 %v961, %v957
      %v963 = vrot.slane %v962, 4
      %v965 = vshll.u32 %v865, 16
      %v967 = vrot.slane %v965, 5
      %v968 = vsel %vm872, %v963, %v967
      %v970 = vshrl.u32 %v838, 16
      %v972 = vrot.slane %v970, 4
      %v973 = vshll.u32 %v838, 16
      %v975 = vrot.slane %v973, 5
      %v976 = vor.u32 %v972, %v975
      %v977 = vrot.slane %v976, 4
      %v979 = vshll.u32 %v839, 16
      %v981 = vrot.slane %v979, 5
      %v982 = vsel %vm872, %v977, %v981
      %v983 = vshrl.u32 %v839, 16
      %v985 = vrot.slane %v983, 4
      %v986 = vor.u32 %v985, %v981
      %v987 = vrot.slane %v986, 4
      %v989 = vshll.u32 %v866, 16
      %v991 = vrot.slane %v989, 5
      %v992 = vsel %vm872, %v987, %v991
      %v994 = vshrl.u32 %v840, 16
      %v996 = vrot.slane %v994, 4
      %v997 = vshll.u32 %v840, 16
      %v999 = vrot.slane %v997, 5
      %v1000 = vor.u32 %v996, %v999
      %v1001 = vrot.slane %v1000, 4
      %v1003 = vshll.u32 %v841, 16
      %v1005 = vrot.slane %v1003, 5
      %v1006 = vsel %vm872, %v1001, %v1005
      %v1007 = vshrl.u32 %v841, 16
      %v1009 = vrot.slane %v1007, 4
      %v1010 = vor.u32 %v1009, %v1005
      %v1011 = vrot.slane %v1010, 4
      %v1013 = vshll.u32 %v867, 16
      %v1015 = vrot.slane %v1013, 5
      %v1016 = vsel %vm872, %v1011, %v1015
      %v1018 = vshrl.u32 %v842, 16
      %v1020 = vrot.slane %v1018, 4
      %v1021 = vshll.u32 %v842, 16
      %v1023 = vrot.slane %v1021, 5
      %v1024 = vor.u32 %v1020, %v1023
      %v1025 = vrot.slane %v1024, 4
      %v1027 = vshll.u32 %v843, 16
      %v1029 = vrot.slane %v1027, 5
      %v1030 = vsel %vm872, %v1025, %v1029
      %v1031 = vshrl.u32 %v843, 16
      %v1033 = vrot.slane %v1031, 4
      %v1034 = vor.u32 %v1033, %v1029
      %v1035 = vrot.slane %v1034, 4
      %v1037 = vshll.u32 %v868, 16
      %v1039 = vrot.slane %v1037, 5
      %v1040 = vsel %vm872, %v1035, %v1039
      %v1042 = vshrl.u32 %v844, 16
      %v1044 = vrot.slane %v1042, 4
      %v1045 = vshll.u32 %v844, 16
      %v1047 = vrot.slane %v1045, 5
      %v1048 = vor.u32 %v1044, %v1047
      %v1049 = vrot.slane %v1048, 4
      %v1051 = vshll.u32 %v845, 16
      %v1053 = vrot.slane %v1051, 5
      %v1054 = vsel %vm872, %v1049, %v1053
      %v1055 = vshrl.u32 %v845, 16
      %v1057 = vrot.slane %v1055, 4
      %v1058 = vor.u32 %v1057, %v1053
      %v1059 = vrot.slane %v1058, 4
      %v1061 = vshll.u32 %v869, 16
      %v1063 = vrot.slane %v1061, 5
      %v1064 = vsel %vm872, %v1059, %v1063
      %s1065 = scalar_lea.vmem %s3, 64
      %v1066 = vld [vmem:[%s1065] sm:$0xf]
      %v1067 = vld [vmem:[%s1065 + $0x4] sm:$0xf]
      %v1068 = vld [vmem:[%s1065 + $0x8] sm:$0xf]
      %v1069 = vld [vmem:[%s1065 + $0xc] sm:$0xf]
      %v1070 = vld [vmem:[%s1065 + $0x10] sm:$0xf]
      %v1071 = vld [vmem:[%s1065 + $0x14] sm:$0xf]
      %v1072 = vld [vmem:[%s1065 + $0x18] sm:$0xf]
      %v1073 = vld [vmem:[%s1065 + $0x1c] sm:$0xf]
      %v1074 = vld [vmem:[%s1065 + $0x20] sm:$0xf]
      %v1075 = vld [vmem:[%s1065 + $0x24] sm:$0xf]
      %v1076 = vld [vmem:[%s1065 + $0x28] sm:$0xf]
      %v1077 = vld [vmem:[%s1065 + $0x2c] sm:$0xf]
      %v1078 = vld [vmem:[%s1065 + $0x30] sm:$0xf]
      %v1079 = vld [vmem:[%s1065 + $0x34] sm:$0xf]
      %v1080 = vld [vmem:[%s1065 + $0x38] sm:$0xf]
      %v1081 = vld [vmem:[%s1065 + $0x3c] sm:$0xf]
      %v1082 = vunpack.c.l.b16 %v886
      %v1083 = vunpack.c.l.b16 %v896
      %v1084 = vunpack.c.l.b16 %v910
      %v1085 = vunpack.c.l.b16 %v920
      %v1086 = vunpack.c.l.b16 %v934
      %v1087 = vunpack.c.l.b16 %v944
      %v1088 = vunpack.c.l.b16 %v958
      %v1089 = vunpack.c.l.b16 %v968
      %v1090 = vunpack.c.l.b16 %v982
      %v1091 = vunpack.c.l.b16 %v992
      %v1092 = vunpack.c.l.b16 %v1006
      %v1093 = vunpack.c.l.b16 %v1016
      %v1094 = vunpack.c.l.b16 %v1030
      %v1095 = vunpack.c.l.b16 %v1040
      %v1096 = vunpack.c.l.b16 %v1054
      %v1097 = vunpack.c.l.b16 %v1064
      %v1098 = vpack.c.b16 %v1083, %v1082
      %v1099 = vpack.c.b16 %v1085, %v1084
      %v1100 = vpack.c.b16 %v1087, %v1086
      %v1101 = vpack.c.b16 %v1089, %v1088
      %v1102 = vpack.c.b16 %v1091, %v1090
      %v1103 = vpack.c.b16 %v1093, %v1092
      %v1104 = vpack.c.b16 %v1095, %v1094
      %v1105 = vpack.c.b16 %v1097, %v1096
      %v1130 = vunpack.c.l.b16 %v1066
      %v1131 = vunpack.c.l.b16 %v1067
      %v1132 = vunpack.c.l.b16 %v1068
      %v1133 = vunpack.c.l.b16 %v1069
      %v1134 = vunpack.c.l.b16 %v1070
      %v1135 = vunpack.c.l.b16 %v1071
      %v1136 = vunpack.c.l.b16 %v1072
      %v1137 = vunpack.c.l.b16 %v1073
      %v1138 = vunpack.c.l.b16 %v1074
      %v1139 = vunpack.c.l.b16 %v1075
      %v1140 = vunpack.c.l.b16 %v1076
      %v1141 = vunpack.c.l.b16 %v1077
      %v1142 = vunpack.c.l.b16 %v1078
      %v1143 = vunpack.c.l.b16 %v1079
      %v1144 = vunpack.c.l.b16 %v1080
      %v1145 = vunpack.c.l.b16 %v1081
      %v1146 = vpack.c.b16 %v1131, %v1130
      %v1147 = vpack.c.b16 %v1133, %v1132
      %v1148 = vpack.c.b16 %v1135, %v1134
      %v1149 = vpack.c.b16 %v1137, %v1136
      %v1150 = vpack.c.b16 %v1139, %v1138
      %v1151 = vpack.c.b16 %v1141, %v1140
      %v1152 = vpack.c.b16 %v1143, %v1142
      %v1153 = vpack.c.b16 %v1145, %v1144
      %1162 = vmatprep.subr.bf16.mxu0 0
      %1163 = vmatpush1.bf16.msra.mxu0 %v1153
      %1164 = vmatprep.subr.bf16.mxu0 0
      %1165 = vmatpush1.bf16.msra.mxu0 %v1152
      %1166 = vmatprep.subr.bf16.mxu0 0
      %1167 = vmatpush1.bf16.msra.mxu0 %v1151
      %1168 = vmatprep.subr.bf16.mxu0 0
      %1169 = vmatpush1.bf16.msra.mxu0 %v1150
      %1170 = vmatprep.subr.bf16.mxu0 0
      %1171 = vmatpush1.bf16.msra.mxu0 %v1149
      %1172 = vmatprep.subr.bf16.mxu0 0
      %1173 = vmatpush1.bf16.msra.mxu0 %v1148
      %1174 = vmatprep.subr.bf16.mxu0 0
      %1175 = vmatpush1.bf16.msra.mxu0 %v1147
      %1176 = vmatprep.subr.bf16.mxu0 0
      %1177 = vmatpush1.bf16.msra.mxu0 %v1146
      %1178 = vmatprep.subr.bf16.mxu0 0
      %1179 = vmatpush2.bf16.msra.mxu0 0
      %1180 = vmatprep.subr.bf16.mxu0 0
      %1181 = vmatpush2.bf16.msra.mxu0 0
      %1182 = vmatprep.subr.bf16.mxu0 0
      %1183 = vmatpush2.bf16.msra.mxu0 0
      %1184 = vmatprep.subr.bf16.mxu0 0
      %1185 = vmatpush2.bf16.msra.mxu0 0
      %1186 = vmatprep.subr.bf16.mxu0 0
      %1187 = vmatpush2.bf16.msra.mxu0 0
      %1188 = vmatprep.subr.bf16.mxu0 0
      %1189 = vmatpush2.bf16.msra.mxu0 0
      %1190 = vmatprep.subr.bf16.mxu0 0
      %1191 = vmatpush2.bf16.msra.mxu0 0
      %1192 = vmatprep.subr.bf16.mxu0 0
      %1193 = vmatpush2.bf16.msra.mxu0 0
      %1194 = vmatprep.mubr.bf16.mxu0 0
      %1195 = vmatmul.mubr.bf16.gmra.mxu0 %v1098
      %v1196 = vpop.f32.mrf.mxu0
      %v1197 = vadd.f32 0.0, %v1196
      %v1198 = vpop.f32.mrf.mxu0
      %v1199 = vpop.f32.mrf.mxu0
      %v1200 = vadd.f32 0.0, %v1199
      %v1201 = vpop.f32.mrf.mxu0
      %1202 = vmatprep.mubr.bf16.mxu0 0
      %1203 = vmatmul.mubr.bf16.gmra.mxu0 %v1099
      %v1204 = vpop.f32.mrf.mxu0
      %v1205 = vadd.f32 0.0, %v1204
      %v1206 = vpop.f32.mrf.mxu0
      %v1207 = vpop.f32.mrf.mxu0
      %v1208 = vadd.f32 0.0, %v1207
      %v1209 = vpop.f32.mrf.mxu0
      %1210 = vmatprep.mubr.bf16.mxu0 0
      %1211 = vmatmul.mubr.bf16.gmra.mxu0 %v1100
      %v1212 = vpop.f32.mrf.mxu0
      %v1213 = vadd.f32 0.0, %v1212
      %v1214 = vpop.f32.mrf.mxu0
      %v1215 = vpop.f32.mrf.mxu0
      %v1216 = vadd.f32 0.0, %v1215
      %v1217 = vpop.f32.mrf.mxu0
      %1218 = vmatprep.mubr.bf16.mxu0 0
      %1219 = vmatmul.mubr.bf16.gmra.mxu0 %v1101
      %v1220 = vpop.f32.mrf.mxu0
      %v1221 = vadd.f32 0.0, %v1220
      %v1222 = vpop.f32.mrf.mxu0
      %v1223 = vpop.f32.mrf.mxu0
      %v1224 = vadd.f32 0.0, %v1223
      %v1225 = vpop.f32.mrf.mxu0
      %1226 = vmatprep.mubr.bf16.mxu0 0
      %1227 = vmatmul.mubr.bf16.gmra.mxu0 %v1102
      %v1228 = vpop.f32.mrf.mxu0
      %v1229 = vadd.f32 0.0, %v1228
      %v1230 = vpop.f32.mrf.mxu0
      %v1231 = vpop.f32.mrf.mxu0
      %v1232 = vadd.f32 0.0, %v1231
      %v1233 = vpop.f32.mrf.mxu0
      %1234 = vmatprep.mubr.bf16.mxu0 0
      %1235 = vmatmul.mubr.bf16.gmra.mxu0 %v1103
      %v1236 = vpop.f32.mrf.mxu0
      %v1237 = vadd.f32 0.0, %v1236
      %v1238 = vpop.f32.mrf.mxu0
      %v1239 = vpop.f32.mrf.mxu0
      %v1240 = vadd.f32 0.0, %v1239
      %v1241 = vpop.f32.mrf.mxu0
      %1242 = vmatprep.mubr.bf16.mxu0 0
      %1243 = vmatmul.mubr.bf16.gmra.mxu0 %v1104
      %v1244 = vpop.f32.mrf.mxu0
      %v1245 = vadd.f32 0.0, %v1244
      %v1246 = vpop.f32.mrf.mxu0
      %v1247 = vpop.f32.mrf.mxu0
      %v1248 = vadd.f32 0.0, %v1247
      %v1249 = vpop.f32.mrf.mxu0
      %1250 = vmatprep.mubr.bf16.mxu0 0
      %1251 = vmatmul.mubr.bf16.gmra.mxu0 %v1105
      %v1252 = vpop.f32.mrf.mxu0
      %v1253 = vadd.f32 0.0, %v1252
      %v1254 = vpop.f32.mrf.mxu0
      %v1255 = vpop.f32.mrf.mxu0
      %v1256 = vadd.f32 0.0, %v1255
      %v1257 = vpop.f32.mrf.mxu0
      %1258 = vdwg.mxu0
      %v1275 = vunpack.c.l.b16 %v830
      %v1276 = vunpack.c.l.b16 %v831
      %v1277 = vunpack.c.l.b16 %v832
      %v1278 = vunpack.c.l.b16 %v833
      %v1279 = vunpack.c.l.b16 %v834
      %v1280 = vunpack.c.l.b16 %v835
      %v1281 = vunpack.c.l.b16 %v836
      %v1282 = vunpack.c.l.b16 %v837
      %v1283 = vunpack.c.l.b16 %v838
      %v1284 = vunpack.c.l.b16 %v839
      %v1285 = vunpack.c.l.b16 %v840
      %v1286 = vunpack.c.l.b16 %v841
      %v1287 = vunpack.c.l.b16 %v842
      %v1288 = vunpack.c.l.b16 %v843
      %v1289 = vunpack.c.l.b16 %v844
      %v1290 = vunpack.c.l.b16 %v845
      %v1291 = vpack.c.b16 %v1276, %v1275
      %v1292 = vpack.c.b16 %v1278, %v1277
      %v1293 = vpack.c.b16 %v1280, %v1279
      %v1294 = vpack.c.b16 %v1282, %v1281
      %v1295 = vpack.c.b16 %v1284, %v1283
      %v1296 = vpack.c.b16 %v1286, %v1285
      %v1297 = vpack.c.b16 %v1288, %v1287
      %v1298 = vpack.c.b16 %v1290, %v1289
      %v1323 = vunpack.c.l.b16 %v846
      %v1324 = vunpack.c.l.b16 %v847
      %v1325 = vunpack.c.l.b16 %v848
      %v1326 = vunpack.c.l.b16 %v849
      %v1327 = vunpack.c.l.b16 %v850
      %v1328 = vunpack.c.l.b16 %v851
      %v1329 = vunpack.c.l.b16 %v852
      %v1330 = vunpack.c.l.b16 %v853
      %v1331 = vunpack.c.l.b16 %v854
      %v1332 = vunpack.c.l.b16 %v855
      %v1333 = vunpack.c.l.b16 %v856
      %v1334 = vunpack.c.l.b16 %v857
      %v1335 = vunpack.c.l.b16 %v858
      %v1336 = vunpack.c.l.b16 %v859
      %v1337 = vunpack.c.l.b16 %v860
      %v1338 = vunpack.c.l.b16 %v861
      %v1339 = vpack.c.b16 %v1324, %v1323
      %v1340 = vpack.c.b16 %v1326, %v1325
      %v1341 = vpack.c.b16 %v1328, %v1327
      %v1342 = vpack.c.b16 %v1330, %v1329
      %v1343 = vpack.c.b16 %v1332, %v1331
      %v1344 = vpack.c.b16 %v1334, %v1333
      %v1345 = vpack.c.b16 %v1336, %v1335
      %v1346 = vpack.c.b16 %v1338, %v1337
      %1355 = vmatprep.subr.bf16.mxu0 0
      %1356 = vmatpush1.bf16.msra.mxu0 %v1346
      %1357 = vmatprep.subr.bf16.mxu0 0
      %1358 = vmatpush1.bf16.msra.mxu0 %v1345
      %1359 = vmatprep.subr.bf16.mxu0 0
      %1360 = vmatpush1.bf16.msra.mxu0 %v1344
      %1361 = vmatprep.subr.bf16.mxu0 0
      %1362 = vmatpush1.bf16.msra.mxu0 %v1343
      %1363 = vmatprep.subr.bf16.mxu0 0
      %1364 = vmatpush1.bf16.msra.mxu0 %v1342
      %1365 = vmatprep.subr.bf16.mxu0 0
      %1366 = vmatpush1.bf16.msra.mxu0 %v1341
      %1367 = vmatprep.subr.bf16.mxu0 0
      %1368 = vmatpush1.bf16.msra.mxu0 %v1340
      %1369 = vmatprep.subr.bf16.mxu0 0
      %1370 = vmatpush1.bf16.msra.mxu0 %v1339
      %1371 = vmatprep.subr.bf16.mxu0 0
      %1372 = vmatpush2.bf16.msra.mxu0 0
      %1373 = vmatprep.subr.bf16.mxu0 0
      %1374 = vmatpush2.bf16.msra.mxu0 0
      %1375 = vmatprep.subr.bf16.mxu0 0
      %1376 = vmatpush2.bf16.msra.mxu0 0
      %1377 = vmatprep.subr.bf16.mxu0 0
      %1378 = vmatpush2.bf16.msra.mxu0 0
      %1379 = vmatprep.subr.bf16.mxu0 0
      %1380 = vmatpush2.bf16.msra.mxu0 0
      %1381 = vmatprep.subr.bf16.mxu0 0
      %1382 = vmatpush2.bf16.msra.mxu0 0
      %1383 = vmatprep.subr.bf16.mxu0 0
      %1384 = vmatpush2.bf16.msra.mxu0 0
      %1385 = vmatprep.subr.bf16.mxu0 0
      %1386 = vmatpush2.bf16.msra.mxu0 0
      %1387 = vmatprep.mubr.bf16.mxu0 0
      %1388 = vmatmul.mubr.bf16.gmra.mxu0 %v1291
      %v1389 = vpop.f32.mrf.mxu0
      %v1390 = vadd.f32 %v1197, %v1389
      %v1391 = vpop.f32.mrf.mxu0
      %v1392 = vpop.f32.mrf.mxu0
      %v1393 = vadd.f32 %v1200, %v1392
      %v1394 = vpop.f32.mrf.mxu0
      %1395 = vmatprep.mubr.bf16.mxu0 0
      %1396 = vmatmul.mubr.bf16.gmra.mxu0 %v1292
      %v1397 = vpop.f32.mrf.mxu0
      %v1398 = vadd.f32 %v1205, %v1397
      %v1399 = vpop.f32.mrf.mxu0
      %v1400 = vpop.f32.mrf.mxu0
      %v1401 = vadd.f32 %v1208, %v1400
      %v1402 = vpop.f32.mrf.mxu0
      %1403 = vmatprep.mubr.bf16.mxu0 0
      %1404 = vmatmul.mubr.bf16.gmra.mxu0 %v1293
      %v1405 = vpop.f32.mrf.mxu0
      %v1406 = vadd.f32 %v1213, %v1405
      %v1407 = vpop.f32.mrf.mxu0
      %v1408 = vpop.f32.mrf.mxu0
      %v1409 = vadd.f32 %v1216, %v1408
      %v1410 = vpop.f32.mrf.mxu0
      %1411 = vmatprep.mubr.bf16.mxu0 0
      %1412 = vmatmul.mubr.bf16.gmra.mxu0 %v1294
      %v1413 = vpop.f32.mrf.mxu0
      %v1414 = vadd.f32 %v1221, %v1413
      %v1415 = vpop.f32.mrf.mxu0
      %v1416 = vpop.f32.mrf.mxu0
      %v1417 = vadd.f32 %v1224, %v1416
      %v1418 = vpop.f32.mrf.mxu0
      %1419 = vmatprep.mubr.bf16.mxu0 0
      %1420 = vmatmul.mubr.bf16.gmra.mxu0 %v1295
      %v1421 = vpop.f32.mrf.mxu0
      %v1422 = vadd.f32 %v1229, %v1421
      %v1423 = vpop.f32.mrf.mxu0
      %v1424 = vpop.f32.mrf.mxu0
      %v1425 = vadd.f32 %v1232, %v1424
      %v1426 = vpop.f32.mrf.mxu0
      %1427 = vmatprep.mubr.bf16.mxu0 0
      %1428 = vmatmul.mubr.bf16.gmra.mxu0 %v1296
      %v1429 = vpop.f32.mrf.mxu0
      %v1430 = vadd.f32 %v1237, %v1429
      %v1431 = vpop.f32.mrf.mxu0
      %v1432 = vpop.f32.mrf.mxu0
      %v1433 = vadd.f32 %v1240, %v1432
      %v1434 = vpop.f32.mrf.mxu0
      %1435 = vmatprep.mubr.bf16.mxu0 0
      %1436 = vmatmul.mubr.bf16.gmra.mxu0 %v1297
      %v1437 = vpop.f32.mrf.mxu0
      %v1438 = vadd.f32 %v1245, %v1437
      %v1439 = vpop.f32.mrf.mxu0
      %v1440 = vpop.f32.mrf.mxu0
      %v1441 = vadd.f32 %v1248, %v1440
      %v1442 = vpop.f32.mrf.mxu0
      %1443 = vmatprep.mubr.bf16.mxu0 0
      %1444 = vmatmul.mubr.bf16.gmra.mxu0 %v1298
      %v1445 = vpop.f32.mrf.mxu0
      %v1446 = vadd.f32 %v1253, %v1445
      %v1447 = vpop.f32.mrf.mxu0
      %v1448 = vpop.f32.mrf.mxu0
      %v1449 = vadd.f32 %v1256, %v1448
      %v1450 = vpop.f32.mrf.mxu0
      %1451 = vdwg.mxu0
      %v1452 = vld [vmem:[#allocation2] sm:$0xe]
      %v1453 = vld [vmem:[#allocation2 + $0xc] sm:$0xe]
      %v1454 = vld [vmem:[#allocation2 + $0x18] sm:$0xe]
      %v1455 = vld [vmem:[#allocation2 + $0x24] sm:$0xe]
      %v1456 = vld [vmem:[#allocation2 + $0x30] sm:$0xe]
      %v1457 = vld [vmem:[#allocation2 + $0x3c] sm:$0xe]
      %v1458 = vld [vmem:[#allocation2 + $0x48] sm:$0xe]
      %v1459 = vld [vmem:[#allocation2 + $0x54] sm:$0xe]
      %vm1476 = vcmask 1042432
      %vm1477 = vcmask 1046532
      %vm1478 = vmor %vm1476, %vm1477
      %v1479 = vrot.slane %v1452, 5
      %v1480 = vrot.slane %v1479, 4
      %v1481 = vrot.slane %v831, 5
      %v1482 = vsel %vm1478, %v1480, %v1481
      %v1483 = vrot.slane %v1481, 4
      %v1484 = vrot.slane %v862, 5
      %v1485 = vsel %vm1478, %v1483, %v1484
      %v1486 = vrot.slane %v1453, 5
      %v1487 = vrot.slane %v1486, 4
      %v1488 = vrot.slane %v833, 5
      %v1489 = vsel %vm1478, %v1487, %v1488
      %v1490 = vrot.slane %v1488, 4
      %v1491 = vrot.slane %v863, 5
      %v1492 = vsel %vm1478, %v1490, %v1491
      %v1493 = vrot.slane %v1454, 5
      %v1494 = vrot.slane %v1493, 4
      %v1495 = vrot.slane %v835, 5
      %v1496 = vsel %vm1478, %v1494, %v1495
      %v1497 = vrot.slane %v1495, 4
      %v1498 = vrot.slane %v864, 5
      %v1499 = vsel %vm1478, %v1497, %v1498
      %v1500 = vrot.slane %v1455, 5
      %v1501 = vrot.slane %v1500, 4
      %v1502 = vrot.slane %v837, 5
      %v1503 = vsel %vm1478, %v1501, %v1502
      %v1504 = vrot.slane %v1502, 4
      %v1505 = vrot.slane %v865, 5
      %v1506 = vsel %vm1478, %v1504, %v1505
      %v1507 = vrot.slane %v1456, 5
      %v1508 = vrot.slane %v1507, 4
      %v1509 = vrot.slane %v839, 5
      %v1510 = vsel %vm1478, %v1508, %v1509
      %v1511 = vrot.slane %v1509, 4
      %v1512 = vrot.slane %v866, 5
      %v1513 = vsel %vm1478, %v1511, %v1512
      %v1514 = vrot.slane %v1457, 5
      %v1515 = vrot.slane %v1514, 4
      %v1516 = vrot.slane %v841, 5
      %v1517 = vsel %vm1478, %v1515, %v1516
      %v1518 = vrot.slane %v1516, 4
      %v1519 = vrot.slane %v867, 5
      %v1520 = vsel %vm1478, %v1518, %v1519
      %v1521 = vrot.slane %v1458, 5
      %v1522 = vrot.slane %v1521, 4
      %v1523 = vrot.slane %v843, 5
      %v1524 = vsel %vm1478, %v1522, %v1523
      %v1525 = vrot.slane %v1523, 4
      %v1526 = vrot.slane %v868, 5
      %v1527 = vsel %vm1478, %v1525, %v1526
      %v1528 = vrot.slane %v1459, 5
      %v1529 = vrot.slane %v1528, 4
      %v1530 = vrot.slane %v845, 5
      %v1531 = vsel %vm1478, %v1529, %v1530
      %v1532 = vrot.slane %v1530, 4
      %v1533 = vrot.slane %v869, 5
      %v1534 = vsel %vm1478, %v1532, %v1533
      %s1535 = scalar_lea.vmem %s3, 128
      %v1536 = vld [vmem:[%s1535] sm:$0xf]
      %v1537 = vld [vmem:[%s1535 + $0x4] sm:$0xf]
      %v1538 = vld [vmem:[%s1535 + $0x8] sm:$0xf]
      %v1539 = vld [vmem:[%s1535 + $0xc] sm:$0xf]
      %v1540 = vld [vmem:[%s1535 + $0x10] sm:$0xf]
      %v1541 = vld [vmem:[%s1535 + $0x14] sm:$0xf]
      %v1542 = vld [vmem:[%s1535 + $0x18] sm:$0xf]
      %v1543 = vld [vmem:[%s1535 + $0x1c] sm:$0xf]
      %v1544 = vld [vmem:[%s1535 + $0x20] sm:$0xf]
      %v1545 = vld [vmem:[%s1535 + $0x24] sm:$0xf]
      %v1546 = vld [vmem:[%s1535 + $0x28] sm:$0xf]
      %v1547 = vld [vmem:[%s1535 + $0x2c] sm:$0xf]
      %v1548 = vld [vmem:[%s1535 + $0x30] sm:$0xf]
      %v1549 = vld [vmem:[%s1535 + $0x34] sm:$0xf]
      %v1550 = vld [vmem:[%s1535 + $0x38] sm:$0xf]
      %v1551 = vld [vmem:[%s1535 + $0x3c] sm:$0xf]
      %v1552 = vunpack.c.l.b16 %v1482
      %v1553 = vunpack.c.l.b16 %v1485
      %v1554 = vunpack.c.l.b16 %v1489
      %v1555 = vunpack.c.l.b16 %v1492
      %v1556 = vunpack.c.l.b16 %v1496
      %v1557 = vunpack.c.l.b16 %v1499
      %v1558 = vunpack.c.l.b16 %v1503
      %v1559 = vunpack.c.l.b16 %v1506
      %v1560 = vunpack.c.l.b16 %v1510
      %v1561 = vunpack.c.l.b16 %v1513
      %v1562 = vunpack.c.l.b16 %v1517
      %v1563 = vunpack.c.l.b16 %v1520
      %v1564 = vunpack.c.l.b16 %v1524
      %v1565 = vunpack.c.l.b16 %v1527
      %v1566 = vunpack.c.l.b16 %v1531
      %v1567 = vunpack.c.l.b16 %v1534
      %v1568 = vpack.c.b16 %v1553, %v1552
      %v1569 = vpack.c.b16 %v1555, %v1554
      %v1570 = vpack.c.b16 %v1557, %v1556
      %v1571 = vpack.c.b16 %v1559, %v1558
      %v1572 = vpack.c.b16 %v1561, %v1560
      %v1573 = vpack.c.b16 %v1563, %v1562
      %v1574 = vpack.c.b16 %v1565, %v1564
      %v1575 = vpack.c.b16 %v1567, %v1566
      %v1600 = vunpack.c.l.b16 %v1536
      %v1601 = vunpack.c.l.b16 %v1537
      %v1602 = vunpack.c.l.b16 %v1538
      %v1603 = vunpack.c.l.b16 %v1539
      %v1604 = vunpack.c.l.b16 %v1540
      %v1605 = vunpack.c.l.b16 %v1541
      %v1606 = vunpack.c.l.b16 %v1542
      %v1607 = vunpack.c.l.b16 %v1543
      %v1608 = vunpack.c.l.b16 %v1544
      %v1609 = vunpack.c.l.b16 %v1545
      %v1610 = vunpack.c.l.b16 %v1546
      %v1611 = vunpack.c.l.b16 %v1547
      %v1612 = vunpack.c.l.b16 %v1548
      %v1613 = vunpack.c.l.b16 %v1549
      %v1614 = vunpack.c.l.b16 %v1550
      %v1615 = vunpack.c.l.b16 %v1551
      %v1616 = vpack.c.b16 %v1601, %v1600
      %v1617 = vpack.c.b16 %v1603, %v1602
      %v1618 = vpack.c.b16 %v1605, %v1604
      %v1619 = vpack.c.b16 %v1607, %v1606
      %v1620 = vpack.c.b16 %v1609, %v1608
      %v1621 = vpack.c.b16 %v1611, %v1610
      %v1622 = vpack.c.b16 %v1613, %v1612
      %v1623 = vpack.c.b16 %v1615, %v1614
      %1632 = vmatprep.subr.bf16.mxu0 0
      %1633 = vmatpush1.bf16.msra.mxu0 %v1623
      %1634 = vmatprep.subr.bf16.mxu0 0
      %1635 = vmatpush1.bf16.msra.mxu0 %v1622
      %1636 = vmatprep.subr.bf16.mxu0 0
      %1637 = vmatpush1.bf16.msra.mxu0 %v1621
      %1638 = vmatprep.subr.bf16.mxu0 0
      %1639 = vmatpush1.bf16.msra.mxu0 %v1620
      %1640 = vmatprep.subr.bf16.mxu0 0
      %1641 = vmatpush1.bf16.msra.mxu0 %v1619
      %1642 = vmatprep.subr.bf16.mxu0 0
      %1643 = vmatpush1.bf16.msra.mxu0 %v1618
      %1644 = vmatprep.subr.bf16.mxu0 0
      %1645 = vmatpush1.bf16.msra.mxu0 %v1617
      %1646 = vmatprep.subr.bf16.mxu0 0
      %1647 = vmatpush1.bf16.msra.mxu0 %v1616
      %1648 = vmatprep.subr.bf16.mxu0 0
      %1649 = vmatpush2.bf16.msra.mxu0 0
      %1650 = vmatprep.subr.bf16.mxu0 0
      %1651 = vmatpush2.bf16.msra.mxu0 0
      %1652 = vmatprep.subr.bf16.mxu0 0
      %1653 = vmatpush2.bf16.msra.mxu0 0
      %1654 = vmatprep.subr.bf16.mxu0 0
      %1655 = vmatpush2.bf16.msra.mxu0 0
      %1656 = vmatprep.subr.bf16.mxu0 0
      %1657 = vmatpush2.bf16.msra.mxu0 0
      %1658 = vmatprep.subr.bf16.mxu0 0
      %1659 = vmatpush2.bf16.msra.mxu0 0
      %1660 = vmatprep.subr.bf16.mxu0 0
      %1661 = vmatpush2.bf16.msra.mxu0 0
      %1662 = vmatprep.subr.bf16.mxu0 0
      %1663 = vmatpush2.bf16.msra.mxu0 0
      %1664 = vmatprep.mubr.bf16.mxu0 0
      %1665 = vmatmul.mubr.bf16.gmra.mxu0 %v1568
      %v1666 = vpop.f32.mrf.mxu0
      %v1667 = vadd.f32 0.0, %v1666
      %v1668 = vpop.f32.mrf.mxu0
      %v1669 = vpop.f32.mrf.mxu0
      %v1670 = vadd.f32 0.0, %v1669
      %v1671 = vpop.f32.mrf.mxu0
      %1672 = vmatprep.mubr.bf16.mxu0 0
      %1673 = vmatmul.mubr.bf16.gmra.mxu0 %v1569
      %v1674 = vpop.f32.mrf.mxu0
      %v1675 = vadd.f32 0.0, %v1674
      %v1676 = vpop.f32.mrf.mxu0
      %v1677 = vpop.f32.mrf.mxu0
      %v1678 = vadd.f32 0.0, %v1677
      %v1679 = vpop.f32.mrf.mxu0
      %1680 = vmatprep.mubr.bf16.mxu0 0
      %1681 = vmatmul.mubr.bf16.gmra.mxu0 %v1570
      %v1682 = vpop.f32.mrf.mxu0
      %v1683 = vadd.f32 0.0, %v1682
      %v1684 = vpop.f32.mrf.mxu0
      %v1685 = vpop.f32.mrf.mxu0
      %v1686 = vadd.f32 0.0, %v1685
      %v1687 = vpop.f32.mrf.mxu0
      %1688 = vmatprep.mubr.bf16.mxu0 0
      %1689 = vmatmul.mubr.bf16.gmra.mxu0 %v1571
      %v1690 = vpop.f32.mrf.mxu0
      %v1691 = vadd.f32 0.0, %v1690
      %v1692 = vpop.f32.mrf.mxu0
      %v1693 = vpop.f32.mrf.mxu0
      %v1694 = vadd.f32 0.0, %v1693
      %v1695 = vpop.f32.mrf.mxu0
      %1696 = vmatprep.mubr.bf16.mxu0 0
      %1697 = vmatmul.mubr.bf16.gmra.mxu0 %v1572
      %v1698 = vpop.f32.mrf.mxu0
      %v1699 = vadd.f32 0.0, %v1698
      %v1700 = vpop.f32.mrf.mxu0
      %v1701 = vpop.f32.mrf.mxu0
      %v1702 = vadd.f32 0.0, %v1701
      %v1703 = vpop.f32.mrf.mxu0
      %1704 = vmatprep.mubr.bf16.mxu0 0
      %1705 = vmatmul.mubr.bf16.gmra.mxu0 %v1573
      %v1706 = vpop.f32.mrf.mxu0
      %v1707 = vadd.f32 0.0, %v1706
      %v1708 = vpop.f32.mrf.mxu0
      %v1709 = vpop.f32.mrf.mxu0
      %v1710 = vadd.f32 0.0, %v1709
      %v1711 = vpop.f32.mrf.mxu0
      %1712 = vmatprep.mubr.bf16.mxu0 0
      %1713 = vmatmul.mubr.bf16.gmra.mxu0 %v1574
      %v1714 = vpop.f32.mrf.mxu0
      %v1715 = vadd.f32 0.0, %v1714
      %v1716 = vpop.f32.mrf.mxu0
      %v1717 = vpop.f32.mrf.mxu0
      %v1718 = vadd.f32 0.0, %v1717
      %v1719 = vpop.f32.mrf.mxu0
      %1720 = vmatprep.mubr.bf16.mxu0 0
      %1721 = vmatmul.mubr.bf16.gmra.mxu0 %v1575
      %v1722 = vpop.f32.mrf.mxu0
      %v1723 = vadd.f32 0.0, %v1722
      %v1724 = vpop.f32.mrf.mxu0
      %v1725 = vpop.f32.mrf.mxu0
      %v1726 = vadd.f32 0.0, %v1725
      %v1727 = vpop.f32.mrf.mxu0
      %1728 = vdwg.mxu0
      %v1729 = vadd.f32 %v1390, %v1667
      %v1730 = vadd.f32 %v1393, %v1670
      %v1731 = vadd.f32 %v1398, %v1675
      %v1732 = vadd.f32 %v1401, %v1678
      %v1733 = vadd.f32 %v1406, %v1683
      %v1734 = vadd.f32 %v1409, %v1686
      %v1735 = vadd.f32 %v1414, %v1691
      %v1736 = vadd.f32 %v1417, %v1694
      %v1737 = vadd.f32 %v1422, %v1699
      %v1738 = vadd.f32 %v1425, %v1702
      %v1739 = vadd.f32 %v1430, %v1707
      %v1740 = vadd.f32 %v1433, %v1710
      %v1741 = vadd.f32 %v1438, %v1715
      %v1742 = vadd.f32 %v1441, %v1718
      %v1743 = vadd.f32 %v1446, %v1723
      %v1744 = vadd.f32 %v1449, %v1726
      %v1745 = vld [vmem:[%s669] sm:$0xf]
      %v1746 = vld [vmem:[%s669 + $0x4] sm:$0xf]
      %v1747 = vld [vmem:[%s669 + $0xc] sm:$0xf]
      %v1748 = vld [vmem:[%s669 + $0x10] sm:$0xf]
      %v1749 = vld [vmem:[%s669 + $0x18] sm:$0xf]
      %v1750 = vld [vmem:[%s669 + $0x1c] sm:$0xf]
      %v1751 = vld [vmem:[%s669 + $0x24] sm:$0xf]
      %v1752 = vld [vmem:[%s669 + $0x28] sm:$0xf]
      %v1753 = vld [vmem:[%s669 + $0x30] sm:$0xf]
      %v1754 = vld [vmem:[%s669 + $0x34] sm:$0xf]
      %v1755 = vld [vmem:[%s669 + $0x3c] sm:$0xf]
      %v1756 = vld [vmem:[%s669 + $0x40] sm:$0xf]
      %v1757 = vld [vmem:[%s669 + $0x48] sm:$0xf]
      %v1758 = vld [vmem:[%s669 + $0x4c] sm:$0xf]
      %v1759 = vld [vmem:[%s669 + $0x54] sm:$0xf]
      %v1760 = vld [vmem:[%s669 + $0x58] sm:$0xf]
      %s1761 = scalar_lea.vmem %s3, 192
      %v1762 = vld [vmem:[%s1761] sm:$0xf]
      %v1763 = vld [vmem:[%s1761 + $0x4] sm:$0xf]
      %v1764 = vld [vmem:[%s1761 + $0x8] sm:$0xf]
      %v1765 = vld [vmem:[%s1761 + $0xc] sm:$0xf]
      %v1766 = vld [vmem:[%s1761 + $0x10] sm:$0xf]
      %v1767 = vld [vmem:[%s1761 + $0x14] sm:$0xf]
      %v1768 = vld [vmem:[%s1761 + $0x18] sm:$0xf]
      %v1769 = vld [vmem:[%s1761 + $0x1c] sm:$0xf]
      %v1770 = vld [vmem:[%s1761 + $0x20] sm:$0xf]
      %v1771 = vld [vmem:[%s1761 + $0x24] sm:$0xf]
      %v1772 = vld [vmem:[%s1761 + $0x28] sm:$0xf]
      %v1773 = vld [vmem:[%s1761 + $0x2c] sm:$0xf]
      %v1774 = vld [vmem:[%s1761 + $0x30] sm:$0xf]
      %v1775 = vld [vmem:[%s1761 + $0x34] sm:$0xf]
      %v1776 = vld [vmem:[%s1761 + $0x38] sm:$0xf]
      %v1777 = vld [vmem:[%s1761 + $0x3c] sm:$0xf]
      %v1794 = vunpack.c.l.b16 %v1745
      %v1795 = vunpack.c.l.b16 %v1746
      %v1796 = vunpack.c.l.b16 %v1747
      %v1797 = vunpack.c.l.b16 %v1748
      %v1798 = vunpack.c.l.b16 %v1749
      %v1799 = vunpack.c.l.b16 %v1750
      %v1800 = vunpack.c.l.b16 %v1751
      %v1801 = vunpack.c.l.b16 %v1752
      %v1802 = vunpack.c.l.b16 %v1753
      %v1803 = vunpack.c.l.b16 %v1754
      %v1804 = vunpack.c.l.b16 %v1755
      %v1805 = vunpack.c.l.b16 %v1756
      %v1806 = vunpack.c.l.b16 %v1757
      %v1807 = vunpack.c.l.b16 %v1758
      %v1808 = vunpack.c.l.b16 %v1759
      %v1809 = vunpack.c.l.b16 %v1760
      %v1810 = vpack.c.b16 %v1795, %v1794
      %v1811 = vpack.c.b16 %v1797, %v1796
      %v1812 = vpack.c.b16 %v1799, %v1798
      %v1813 = vpack.c.b16 %v1801, %v1800
      %v1814 = vpack.c.b16 %v1803, %v1802
      %v1815 = vpack.c.b16 %v1805, %v1804
      %v1816 = vpack.c.b16 %v1807, %v1806
      %v1817 = vpack.c.b16 %v1809, %v1808
      %v1842 = vunpack.c.l.b16 %v1762
      %v1843 = vunpack.c.l.b16 %v1763
      %v1844 = vunpack.c.l.b16 %v1764
      %v1845 = vunpack.c.l.b16 %v1765
      %v1846 = vunpack.c.l.b16 %v1766
      %v1847 = vunpack.c.l.b16 %v1767
      %v1848 = vunpack.c.l.b16 %v1768
      %v1849 = vunpack.c.l.b16 %v1769
      %v1850 = vunpack.c.l.b16 %v1770
      %v1851 = vunpack.c.l.b16 %v1771
      %v1852 = vunpack.c.l.b16 %v1772
      %v1853 = vunpack.c.l.b16 %v1773
      %v1854 = vunpack.c.l.b16 %v1774
      %v1855 = vunpack.c.l.b16 %v1775
      %v1856 = vunpack.c.l.b16 %v1776
      %v1857 = vunpack.c.l.b16 %v1777
      %v1858 = vpack.c.b16 %v1843, %v1842
      %v1859 = vpack.c.b16 %v1845, %v1844
      %v1860 = vpack.c.b16 %v1847, %v1846
      %v1861 = vpack.c.b16 %v1849, %v1848
      %v1862 = vpack.c.b16 %v1851, %v1850
      %v1863 = vpack.c.b16 %v1853, %v1852
      %v1864 = vpack.c.b16 %v1855, %v1854
      %v1865 = vpack.c.b16 %v1857, %v1856
      %1874 = vmatprep.subr.bf16.mxu0 0
      %1875 = vmatpush1.bf16.msra.mxu0 %v1865
      %1876 = vmatprep.subr.bf16.mxu0 0
      %1877 = vmatpush1.bf16.msra.mxu0 %v1864
      %1878 = vmatprep.subr.bf16.mxu0 0
      %1879 = vmatpush1.bf16.msra.mxu0 %v1863
      %1880 = vmatprep.subr.bf16.mxu0 0
      %1881 = vmatpush1.bf16.msra.mxu0 %v1862
      %1882 = vmatprep.subr.bf16.mxu0 0
      %1883 = vmatpush1.bf16.msra.mxu0 %v1861
      %1884 = vmatprep.subr.bf16.mxu0 0
      %1885 = vmatpush1.bf16.msra.mxu0 %v1860
      %1886 = vmatprep.subr.bf16.mxu0 0
      %1887 = vmatpush1.bf16.msra.mxu0 %v1859
      %1888 = vmatprep.subr.bf16.mxu0 0
      %1889 = vmatpush1.bf16.msra.mxu0 %v1858
      %1890 = vmatprep.subr.bf16.mxu0 0
      %1891 = vmatpush2.bf16.msra.mxu0 0
      %1892 = vmatprep.subr.bf16.mxu0 0
      %1893 = vmatpush2.bf16.msra.mxu0 0
      %1894 = vmatprep.subr.bf16.mxu0 0
      %1895 = vmatpush2.bf16.msra.mxu0 0
      %1896 = vmatprep.subr.bf16.mxu0 0
      %1897 = vmatpush2.bf16.msra.mxu0 0
      %1898 = vmatprep.subr.bf16.mxu0 0
      %1899 = vmatpush2.bf16.msra.mxu0 0
      %1900 = vmatprep.subr.bf16.mxu0 0
      %1901 = vmatpush2.bf16.msra.mxu0 0
      %1902 = vmatprep.subr.bf16.mxu0 0
      %1903 = vmatpush2.bf16.msra.mxu0 0
      %1904 = vmatprep.subr.bf16.mxu0 0
      %1905 = vmatpush2.bf16.msra.mxu0 0
      %1906 = vmatprep.mubr.bf16.mxu0 0
      %1907 = vmatmul.mubr.bf16.gmra.mxu0 %v1810
      %v1908 = vpop.f32.mrf.mxu0
      %v1909 = vadd.f32 0.0, %v1908
      %v1910 = vpop.f32.mrf.mxu0
      %v1911 = vpop.f32.mrf.mxu0
      %v1912 = vadd.f32 0.0, %v1911
      %v1913 = vpop.f32.mrf.mxu0
      %1914 = vmatprep.mubr.bf16.mxu0 0
      %1915 = vmatmul.mubr.bf16.gmra.mxu0 %v1811
      %v1916 = vpop.f32.mrf.mxu0
      %v1917 = vadd.f32 0.0, %v1916
      %v1918 = vpop.f32.mrf.mxu0
      %v1919 = vpop.f32.mrf.mxu0
      %v1920 = vadd.f32 0.0, %v1919
      %v1921 = vpop.f32.mrf.mxu0
      %1922 = vmatprep.mubr.bf16.mxu0 0
      %1923 = vmatmul.mubr.bf16.gmra.mxu0 %v1812
      %v1924 = vpop.f32.mrf.mxu0
      %v1925 = vadd.f32 0.0, %v1924
      %v1926 = vpop.f32.mrf.mxu0
      %v1927 = vpop.f32.mrf.mxu0
      %v1928 = vadd.f32 0.0, %v1927
      %v1929 = vpop.f32.mrf.mxu0
      %1930 = vmatprep.mubr.bf16.mxu0 0
      %1931 = vmatmul.mubr.bf16.gmra.mxu0 %v1813
      %v1932 = vpop.f32.mrf.mxu0
      %v1933 = vadd.f32 0.0, %v1932
      %v1934 = vpop.f32.mrf.mxu0
      %v1935 = vpop.f32.mrf.mxu0
      %v1936 = vadd.f32 0.0, %v1935
      %v1937 = vpop.f32.mrf.mxu0
      %1938 = vmatprep.mubr.bf16.mxu0 0
      %1939 = vmatmul.mubr.bf16.gmra.mxu0 %v1814
      %v1940 = vpop.f32.mrf.mxu0
      %v1941 = vadd.f32 0.0, %v1940
      %v1942 = vpop.f32.mrf.mxu0
      %v1943 = vpop.f32.mrf.mxu0
      %v1944 = vadd.f32 0.0, %v1943
      %v1945 = vpop.f32.mrf.mxu0
      %1946 = vmatprep.mubr.bf16.mxu0 0
      %1947 = vmatmul.mubr.bf16.gmra.mxu0 %v1815
      %v1948 = vpop.f32.mrf.mxu0
      %v1949 = vadd.f32 0.0, %v1948
      %v1950 = vpop.f32.mrf.mxu0
      %v1951 = vpop.f32.mrf.mxu0
      %v1952 = vadd.f32 0.0, %v1951
      %v1953 = vpop.f32.mrf.mxu0
      %1954 = vmatprep.mubr.bf16.mxu0 0
      %1955 = vmatmul.mubr.bf16.gmra.mxu0 %v1816
      %v1956 = vpop.f32.mrf.mxu0
      %v1957 = vadd.f32 0.0, %v1956
      %v1958 = vpop.f32.mrf.mxu0
      %v1959 = vpop.f32.mrf.mxu0
      %v1960 = vadd.f32 0.0, %v1959
      %v1961 = vpop.f32.mrf.mxu0
      %1962 = vmatprep.mubr.bf16.mxu0 0
      %1963 = vmatmul.mubr.bf16.gmra.mxu0 %v1817
      %v1964 = vpop.f32.mrf.mxu0
      %v1965 = vadd.f32 0.0, %v1964
      %v1966 = vpop.f32.mrf.mxu0
      %v1967 = vpop.f32.mrf.mxu0
      %v1968 = vadd.f32 0.0, %v1967
      %v1969 = vpop.f32.mrf.mxu0
      %1970 = vdwg.mxu0
      %v1971 = vadd.f32 %v1729, %v1909
      %v1972 = vadd.f32 %v1730, %v1912
      %v1973 = vadd.f32 %v1731, %v1917
      %v1974 = vadd.f32 %v1732, %v1920
      %v1975 = vadd.f32 %v1733, %v1925
      %v1976 = vadd.f32 %v1734, %v1928
      %v1977 = vadd.f32 %v1735, %v1933
      %v1978 = vadd.f32 %v1736, %v1936
      %v1979 = vadd.f32 %v1737, %v1941
      %v1980 = vadd.f32 %v1738, %v1944
      %v1981 = vadd.f32 %v1739, %v1949
      %v1982 = vadd.f32 %v1740, %v1952
      %v1983 = vadd.f32 %v1741, %v1957
      %v1984 = vadd.f32 %v1742, %v1960
      %v1985 = vadd.f32 %v1743, %v1965
      %v1986 = vadd.f32 %v1744, %v1968
      %v1987 = vld [vmem:[%s669] sm:$0xf]
      %v1988 = vld [vmem:[%s669 + $0x4] sm:$0xf]
      %v1989 = vld [vmem:[%s669 + $0x8] sm:$0x1]
      %v1990 = vld [vmem:[%s669 + $0xc] sm:$0xf]
      %v1991 = vld [vmem:[%s669 + $0x10] sm:$0xf]
      %v1992 = vld [vmem:[%s669 + $0x14] sm:$0x1]
      %v1993 = vld [vmem:[%s669 + $0x18] sm:$0xf]
      %v1994 = vld [vmem:[%s669 + $0x1c] sm:$0xf]
      %v1995 = vld [vmem:[%s669 + $0x20] sm:$0x1]
      %v1996 = vld [vmem:[%s669 + $0x24] sm:$0xf]
      %v1997 = vld [vmem:[%s669 + $0x28] sm:$0xf]
      %v1998 = vld [vmem:[%s669 + $0x2c] sm:$0x1]
      %v1999 = vld [vmem:[%s669 + $0x30] sm:$0xf]
      %v2000 = vld [vmem:[%s669 + $0x34] sm:$0xf]
      %v2001 = vld [vmem:[%s669 + $0x38] sm:$0x1]
      %v2002 = vld [vmem:[%s669 + $0x3c] sm:$0xf]
      %v2003 = vld [vmem:[%s669 + $0x40] sm:$0xf]
      %v2004 = vld [vmem:[%s669 + $0x44] sm:$0x1]
      %v2005 = vld [vmem:[%s669 + $0x48] sm:$0xf]
      %v2006 = vld [vmem:[%s669 + $0x4c] sm:$0xf]
      %v2007 = vld [vmem:[%s669 + $0x50] sm:$0x1]
      %v2008 = vld [vmem:[%s669 + $0x54] sm:$0xf]
      %v2009 = vld [vmem:[%s669 + $0x58] sm:$0xf]
      %v2010 = vld [vmem:[%s669 + $0x5c] sm:$0x1]
      %v2012 = vshrl.u32 %v1987, 16
      %v2014 = vrot.slane %v2012, 4
      %v2015 = vshll.u32 %v1987, 16
      %v2017 = vrot.slane %v2015, 5
      %v2018 = vor.u32 %v2014, %v2017
      %v2019 = vrot.slane %v2018, 4
      %v2021 = vshll.u32 %v1988, 16
      %v2023 = vrot.slane %v2021, 5
      %v2024 = vsel %vm872, %v2019, %v2023
      %v2025 = vshrl.u32 %v1988, 16
      %v2027 = vrot.slane %v2025, 4
      %v2028 = vor.u32 %v2027, %v2023
      %v2029 = vrot.slane %v2028, 4
      %v2031 = vshll.u32 %v1989, 16
      %v2033 = vrot.slane %v2031, 5
      %v2034 = vsel %vm872, %v2029, %v2033
      %v2036 = vshrl.u32 %v1990, 16
      %v2038 = vrot.slane %v2036, 4
      %v2039 = vshll.u32 %v1990, 16
      %v2041 = vrot.slane %v2039, 5
      %v2042 = vor.u32 %v2038, %v2041
      %v2043 = vrot.slane %v2042, 4
      %v2045 = vshll.u32 %v1991, 16
      %v2047 = vrot.slane %v2045, 5
      %v2048 = vsel %vm872, %v2043, %v2047
      %v2049 = vshrl.u32 %v1991, 16
      %v2051 = vrot.slane %v2049, 4
      %v2052 = vor.u32 %v2051, %v2047
      %v2053 = vrot.slane %v2052, 4
      %v2055 = vshll.u32 %v1992, 16
      %v2057 = vrot.slane %v2055, 5
      %v2058 = vsel %vm872, %v2053, %v2057
      %v2060 = vshrl.u32 %v1993, 16
      %v2062 = vrot.slane %v2060, 4
      %v2063 = vshll.u32 %v1993, 16
      %v2065 = vrot.slane %v2063, 5
      %v2066 = vor.u32 %v2062, %v2065
      %v2067 = vrot.slane %v2066, 4
      %v2069 = vshll.u32 %v1994, 16
      %v2071 = vrot.slane %v2069, 5
      %v2072 = vsel %vm872, %v2067, %v2071
      %v2073 = vshrl.u32 %v1994, 16
      %v2075 = vrot.slane %v2073, 4
      %v2076 = vor.u32 %v2075, %v2071
      %v2077 = vrot.slane %v2076, 4
      %v2079 = vshll.u32 %v1995, 16
      %v2081 = vrot.slane %v2079, 5
      %v2082 = vsel %vm872, %v2077, %v2081
      %v2084 = vshrl.u32 %v1996, 16
      %v2086 = vrot.slane %v2084, 4
      %v2087 = vshll.u32 %v1996, 16
      %v2089 = vrot.slane %v2087, 5
      %v2090 = vor.u32 %v2086, %v2089
      %v2091 = vrot.slane %v2090, 4
      %v2093 = vshll.u32 %v1997, 16
      %v2095 = vrot.slane %v2093, 5
      %v2096 = vsel %vm872, %v2091, %v2095
      %v2097 = vshrl.u32 %v1997, 16
      %v2099 = vrot.slane %v2097, 4
      %v2100 = vor.u32 %v2099, %v2095
      %v2101 = vrot.slane %v2100, 4
      %v2103 = vshll.u32 %v1998, 16
      %v2105 = vrot.slane %v2103, 5
      %v2106 = vsel %vm872, %v2101, %v2105
      %v2108 = vshrl.u32 %v1999, 16
      %v2110 = vrot.slane %v2108, 4
      %v2111 = vshll.u32 %v1999, 16
      %v2113 = vrot.slane %v2111, 5
      %v2114 = vor.u32 %v2110, %v2113
      %v2115 = vrot.slane %v2114, 4
      %v2117 = vshll.u32 %v2000, 16
      %v2119 = vrot.slane %v2117, 5
      %v2120 = vsel %vm872, %v2115, %v2119
      %v2121 = vshrl.u32 %v2000, 16
      %v2123 = vrot.slane %v2121, 4
      %v2124 = vor.u32 %v2123, %v2119
      %v2125 = vrot.slane %v2124, 4
      %v2127 = vshll.u32 %v2001, 16
      %v2129 = vrot.slane %v2127, 5
      %v2130 = vsel %vm872, %v2125, %v2129
      %v2132 = vshrl.u32 %v2002, 16
      %v2134 = vrot.slane %v2132, 4
      %v2135 = vshll.u32 %v2002, 16
      %v2137 = vrot.slane %v2135, 5
      %v2138 = vor.u32 %v2134, %v2137
      %v2139 = vrot.slane %v2138, 4
      %v2141 = vshll.u32 %v2003, 16
      %v2143 = vrot.slane %v2141, 5
      %v2144 = vsel %vm872, %v2139, %v2143
      %v2145 = vshrl.u32 %v2003, 16
      %v2147 = vrot.slane %v2145, 4
      %v2148 = vor.u32 %v2147, %v2143
      %v2149 = vrot.slane %v2148, 4
      %v2151 = vshll.u32 %v2004, 16
      %v2153 = vrot.slane %v2151, 5
      %v2154 = vsel %vm872, %v2149, %v2153
      %v2156 = vshrl.u32 %v2005, 16
      %v2158 = vrot.slane %v2156, 4
      %v2159 = vshll.u32 %v2005, 16
      %v2161 = vrot.slane %v2159, 5
      %v2162 = vor.u32 %v2158, %v2161
      %v2163 = vrot.slane %v2162, 4
      %v2165 = vshll.u32 %v2006, 16
      %v2167 = vrot.slane %v2165, 5
      %v2168 = vsel %vm872, %v2163, %v2167
      %v2169 = vshrl.u32 %v2006, 16
      %v2171 = vrot.slane %v2169, 4
      %v2172 = vor.u32 %v2171, %v2167
      %v2173 = vrot.slane %v2172, 4
      %v2175 = vshll.u32 %v2007, 16
      %v2177 = vrot.slane %v2175, 5
      %v2178 = vsel %vm872, %v2173, %v2177
      %v2180 = vshrl.u32 %v2008, 16
      %v2182 = vrot.slane %v2180, 4
      %v2183 = vshll.u32 %v2008, 16
      %v2185 = vrot.slane %v2183, 5
      %v2186 = vor.u32 %v2182, %v2185
      %v2187 = vrot.slane %v2186, 4
      %v2189 = vshll.u32 %v2009, 16
      %v2191 = vrot.slane %v2189, 5
      %v2192 = vsel %vm872, %v2187, %v2191
      %v2193 = vshrl.u32 %v2009, 16
      %v2195 = vrot.slane %v2193, 4
      %v2196 = vor.u32 %v2195, %v2191
      %v2197 = vrot.slane %v2196, 4
      %v2199 = vshll.u32 %v2010, 16
      %v2201 = vrot.slane %v2199, 5
      %v2202 = vsel %vm872, %v2197, %v2201
      %s2203 = scalar_lea.vmem %s3, 256
      %v2204 = vld [vmem:[%s2203] sm:$0xf]
      %v2205 = vld [vmem:[%s2203 + $0x4] sm:$0xf]
      %v2206 = vld [vmem:[%s2203 + $0x8] sm:$0xf]
      %v2207 = vld [vmem:[%s2203 + $0xc] sm:$0xf]
      %v2208 = vld [vmem:[%s2203 + $0x10] sm:$0xf]
      %v2209 = vld [vmem:[%s2203 + $0x14] sm:$0xf]
      %v2210 = vld [vmem:[%s2203 + $0x18] sm:$0xf]
      %v2211 = vld [vmem:[%s2203 + $0x1c] sm:$0xf]
      %v2212 = vld [vmem:[%s2203 + $0x20] sm:$0xf]
      %v2213 = vld [vmem:[%s2203 + $0x24] sm:$0xf]
      %v2214 = vld [vmem:[%s2203 + $0x28] sm:$0xf]
      %v2215 = vld [vmem:[%s2203 + $0x2c] sm:$0xf]
      %v2216 = vld [vmem:[%s2203 + $0x30] sm:$0xf]
      %v2217 = vld [vmem:[%s2203 + $0x34] sm:$0xf]
      %v2218 = vld [vmem:[%s2203 + $0x38] sm:$0xf]
      %v2219 = vld [vmem:[%s2203 + $0x3c] sm:$0xf]
      %v2220 = vunpack.c.l.b16 %v2024
      %v2221 = vunpack.c.l.b16 %v2034
      %v2222 = vunpack.c.l.b16 %v2048
      %v2223 = vunpack.c.l.b16 %v2058
      %v2224 = vunpack.c.l.b16 %v2072
      %v2225 = vunpack.c.l.b16 %v2082
      %v2226 = vunpack.c.l.b16 %v2096
      %v2227 = vunpack.c.l.b16 %v2106
      %v2228 = vunpack.c.l.b16 %v2120
      %v2229 = vunpack.c.l.b16 %v2130
      %v2230 = vunpack.c.l.b16 %v2144
      %v2231 = vunpack.c.l.b16 %v2154
      %v2232 = vunpack.c.l.b16 %v2168
      %v2233 = vunpack.c.l.b16 %v2178
      %v2234 = vunpack.c.l.b16 %v2192
      %v2235 = vunpack.c.l.b16 %v2202
      %v2236 = vpack.c.b16 %v2221, %v2220
      %v2237 = vpack.c.b16 %v2223, %v2222
      %v2238 = vpack.c.b16 %v2225, %v2224
      %v2239 = vpack.c.b16 %v2227, %v2226
      %v2240 = vpack.c.b16 %v2229, %v2228
      %v2241 = vpack.c.b16 %v2231, %v2230
      %v2242 = vpack.c.b16 %v2233, %v2232
      %v2243 = vpack.c.b16 %v2235, %v2234
      %v2268 = vunpack.c.l.b16 %v2204
      %v2269 = vunpack.c.l.b16 %v2205
      %v2270 = vunpack.c.l.b16 %v2206
      %v2271 = vunpack.c.l.b16 %v2207
      %v2272 = vunpack.c.l.b16 %v2208
      %v2273 = vunpack.c.l.b16 %v2209
      %v2274 = vunpack.c.l.b16 %v2210
      %v2275 = vunpack.c.l.b16 %v2211
      %v2276 = vunpack.c.l.b16 %v2212
      %v2277 = vunpack.c.l.b16 %v2213
      %v2278 = vunpack.c.l.b16 %v2214
      %v2279 = vunpack.c.l.b16 %v2215
      %v2280 = vunpack.c.l.b16 %v2216
      %v2281 = vunpack.c.l.b16 %v2217
      %v2282 = vunpack.c.l.b16 %v2218
      %v2283 = vunpack.c.l.b16 %v2219
      %v2284 = vpack.c.b16 %v2269, %v2268
      %v2285 = vpack.c.b16 %v2271, %v2270
      %v2286 = vpack.c.b16 %v2273, %v2272
      %v2287 = vpack.c.b16 %v2275, %v2274
      %v2288 = vpack.c.b16 %v2277, %v2276
      %v2289 = vpack.c.b16 %v2279, %v2278
      %v2290 = vpack.c.b16 %v2281, %v2280
      %v2291 = vpack.c.b16 %v2283, %v2282
      %2300 = vmatprep.subr.bf16.mxu0 0
      %2301 = vmatpush1.bf16.msra.mxu0 %v2291
      %2302 = vmatprep.subr.bf16.mxu0 0
      %2303 = vmatpush1.bf16.msra.mxu0 %v2290
      %2304 = vmatprep.subr.bf16.mxu0 0
      %2305 = vmatpush1.bf16.msra.mxu0 %v2289
      %2306 = vmatprep.subr.bf16.mxu0 0
      %2307 = vmatpush1.bf16.msra.mxu0 %v2288
      %2308 = vmatprep.subr.bf16.mxu0 0
      %2309 = vmatpush1.bf16.msra.mxu0 %v2287
      %2310 = vmatprep.subr.bf16.mxu0 0
      %2311 = vmatpush1.bf16.msra.mxu0 %v2286
      %2312 = vmatprep.subr.bf16.mxu0 0
      %2313 = vmatpush1.bf16.msra.mxu0 %v2285
      %2314 = vmatprep.subr.bf16.mxu0 0
      %2315 = vmatpush1.bf16.msra.mxu0 %v2284
      %2316 = vmatprep.subr.bf16.mxu0 0
      %2317 = vmatpush2.bf16.msra.mxu0 0
      %2318 = vmatprep.subr.bf16.mxu0 0
      %2319 = vmatpush2.bf16.msra.mxu0 0
      %2320 = vmatprep.subr.bf16.mxu0 0
      %2321 = vmatpush2.bf16.msra.mxu0 0
      %2322 = vmatprep.subr.bf16.mxu0 0
      %2323 = vmatpush2.bf16.msra.mxu0 0
      %2324 = vmatprep.subr.bf16.mxu0 0
      %2325 = vmatpush2.bf16.msra.mxu0 0
      %2326 = vmatprep.subr.bf16.mxu0 0
      %2327 = vmatpush2.bf16.msra.mxu0 0
      %2328 = vmatprep.subr.bf16.mxu0 0
      %2329 = vmatpush2.bf16.msra.mxu0 0
      %2330 = vmatprep.subr.bf16.mxu0 0
      %2331 = vmatpush2.bf16.msra.mxu0 0
      %2332 = vmatprep.mubr.bf16.mxu0 0
      %2333 = vmatmul.mubr.bf16.gmra.mxu0 %v2236
      %v2334 = vpop.f32.mrf.mxu0
      %v2335 = vadd.f32 0.0, %v2334
      %v2336 = vpop.f32.mrf.mxu0
      %v2337 = vpop.f32.mrf.mxu0
      %v2338 = vadd.f32 0.0, %v2337
      %v2339 = vpop.f32.mrf.mxu0
      %2340 = vmatprep.mubr.bf16.mxu0 0
      %2341 = vmatmul.mubr.bf16.gmra.mxu0 %v2237
      %v2342 = vpop.f32.mrf.mxu0
      %v2343 = vadd.f32 0.0, %v2342
      %v2344 = vpop.f32.mrf.mxu0
      %v2345 = vpop.f32.mrf.mxu0
      %v2346 = vadd.f32 0.0, %v2345
      %v2347 = vpop.f32.mrf.mxu0
      %2348 = vmatprep.mubr.bf16.mxu0 0
      %2349 = vmatmul.mubr.bf16.gmra.mxu0 %v2238
      %v2350 = vpop.f32.mrf.mxu0
      %v2351 = vadd.f32 0.0, %v2350
      %v2352 = vpop.f32.mrf.mxu0
      %v2353 = vpop.f32.mrf.mxu0
      %v2354 = vadd.f32 0.0, %v2353
      %v2355 = vpop.f32.mrf.mxu0
      %2356 = vmatprep.mubr.bf16.mxu0 0
      %2357 = vmatmul.mubr.bf16.gmra.mxu0 %v2239
      %v2358 = vpop.f32.mrf.mxu0
      %v2359 = vadd.f32 0.0, %v2358
      %v2360 = vpop.f32.mrf.mxu0
      %v2361 = vpop.f32.mrf.mxu0
      %v2362 = vadd.f32 0.0, %v2361
      %v2363 = vpop.f32.mrf.mxu0
      %2364 = vmatprep.mubr.bf16.mxu0 0
      %2365 = vmatmul.mubr.bf16.gmra.mxu0 %v2240
      %v2366 = vpop.f32.mrf.mxu0
      %v2367 = vadd.f32 0.0, %v2366
      %v2368 = vpop.f32.mrf.mxu0
      %v2369 = vpop.f32.mrf.mxu0
      %v2370 = vadd.f32 0.0, %v2369
      %v2371 = vpop.f32.mrf.mxu0
      %2372 = vmatprep.mubr.bf16.mxu0 0
      %2373 = vmatmul.mubr.bf16.gmra.mxu0 %v2241
      %v2374 = vpop.f32.mrf.mxu0
      %v2375 = vadd.f32 0.0, %v2374
      %v2376 = vpop.f32.mrf.mxu0
      %v2377 = vpop.f32.mrf.mxu0
      %v2378 = vadd.f32 0.0, %v2377
      %v2379 = vpop.f32.mrf.mxu0
      %2380 = vmatprep.mubr.bf16.mxu0 0
      %2381 = vmatmul.mubr.bf16.gmra.mxu0 %v2242
      %v2382 = vpop.f32.mrf.mxu0
      %v2383 = vadd.f32 0.0, %v2382
      %v2384 = vpop.f32.mrf.mxu0
      %v2385 = vpop.f32.mrf.mxu0
      %v2386 = vadd.f32 0.0, %v2385
      %v2387 = vpop.f32.mrf.mxu0
      %2388 = vmatprep.mubr.bf16.mxu0 0
      %2389 = vmatmul.mubr.bf16.gmra.mxu0 %v2243
      %v2390 = vpop.f32.mrf.mxu0
      %v2391 = vadd.f32 0.0, %v2390
      %v2392 = vpop.f32.mrf.mxu0
      %v2393 = vpop.f32.mrf.mxu0
      %v2394 = vadd.f32 0.0, %v2393
      %v2395 = vpop.f32.mrf.mxu0
      %2396 = vdwg.mxu0
      %v2397 = vadd.f32 %v1971, %v2335
      %v2398 = vadd.f32 %v1972, %v2338
      %v2399 = vadd.f32 %v1973, %v2343
      %v2400 = vadd.f32 %v1974, %v2346
      %v2401 = vadd.f32 %v1975, %v2351
      %v2402 = vadd.f32 %v1976, %v2354
      %v2403 = vadd.f32 %v1977, %v2359
      %v2404 = vadd.f32 %v1978, %v2362
      %v2405 = vadd.f32 %v1979, %v2367
      %v2406 = vadd.f32 %v1980, %v2370
      %v2407 = vadd.f32 %v1981, %v2375
      %v2408 = vadd.f32 %v1982, %v2378
      %v2409 = vadd.f32 %v1983, %v2383
      %v2410 = vadd.f32 %v1984, %v2386
      %v2411 = vadd.f32 %v1985, %v2391
      %v2412 = vadd.f32 %v1986, %v2394
      %v2413 = vld [vmem:[%s669] sm:$0xe]
      %v2414 = vld [vmem:[%s669 + $0xc] sm:$0xe]
      %v2415 = vld [vmem:[%s669 + $0x18] sm:$0xe]
      %v2416 = vld [vmem:[%s669 + $0x24] sm:$0xe]
      %v2417 = vld [vmem:[%s669 + $0x30] sm:$0xe]
      %v2418 = vld [vmem:[%s669 + $0x3c] sm:$0xe]
      %v2419 = vld [vmem:[%s669 + $0x48] sm:$0xe]
      %v2420 = vld [vmem:[%s669 + $0x54] sm:$0xe]
      %v2445 = vrot.slane %v2413, 5
      %v2446 = vrot.slane %v2445, 4
      %v2447 = vrot.slane %v1988, 5
      %v2448 = vsel %vm1478, %v2446, %v2447
      %v2449 = vrot.slane %v2447, 4
      %v2450 = vrot.slane %v1989, 5
      %v2451 = vsel %vm1478, %v2449, %v2450
      %v2452 = vrot.slane %v2414, 5
      %v2453 = vrot.slane %v2452, 4
      %v2454 = vrot.slane %v1991, 5
      %v2455 = vsel %vm1478, %v2453, %v2454
      %v2456 = vrot.slane %v2454, 4
      %v2457 = vrot.slane %v1992, 5
      %v2458 = vsel %vm1478, %v2456, %v2457
      %v2459 = vrot.slane %v2415, 5
      %v2460 = vrot.slane %v2459, 4
      %v2461 = vrot.slane %v1994, 5
      %v2462 = vsel %vm1478, %v2460, %v2461
      %v2463 = vrot.slane %v2461, 4
      %v2464 = vrot.slane %v1995, 5
      %v2465 = vsel %vm1478, %v2463, %v2464
      %v2466 = vrot.slane %v2416, 5
      %v2467 = vrot.slane %v2466, 4
      %v2468 = vrot.slane %v1997, 5
      %v2469 = vsel %vm1478, %v2467, %v2468
      %v2470 = vrot.slane %v2468, 4
      %v2471 = vrot.slane %v1998, 5
      %v2472 = vsel %vm1478, %v2470, %v2471
      %v2473 = vrot.slane %v2417, 5
      %v2474 = vrot.slane %v2473, 4
      %v2475 = vrot.slane %v2000, 5
      %v2476 = vsel %vm1478, %v2474, %v2475
      %v2477 = vrot.slane %v2475, 4
      %v2478 = vrot.slane %v2001, 5
      %v2479 = vsel %vm1478, %v2477, %v2478
      %v2480 = vrot.slane %v2418, 5
      %v2481 = vrot.slane %v2480, 4
      %v2482 = vrot.slane %v2003, 5
      %v2483 = vsel %vm1478, %v2481, %v2482
      %v2484 = vrot.slane %v2482, 4
      %v2485 = vrot.slane %v2004, 5
      %v2486 = vsel %vm1478, %v2484, %v2485
      %v2487 = vrot.slane %v2419, 5
      %v2488 = vrot.slane %v2487, 4
      %v2489 = vrot.slane %v2006, 5
      %v2490 = vsel %vm1478, %v2488, %v2489
      %v2491 = vrot.slane %v2489, 4
      %v2492 = vrot.slane %v2007, 5
      %v2493 = vsel %vm1478, %v2491, %v2492
      %v2494 = vrot.slane %v2420, 5
      %v2495 = vrot.slane %v2494, 4
      %v2496 = vrot.slane %v2009, 5
      %v2497 = vsel %vm1478, %v2495, %v2496
      %v2498 = vrot.slane %v2496, 4
      %v2499 = vrot.slane %v2010, 5
      %v2500 = vsel %vm1478, %v2498, %v2499
      %s2501 = scalar_lea.vmem %s3, 320
      %v2502 = vld [vmem:[%s2501] sm:$0xf]
      %v2503 = vld [vmem:[%s2501 + $0x4] sm:$0xf]
      %v2504 = vld [vmem:[%s2501 + $0x8] sm:$0xf]
      %v2505 = vld [vmem:[%s2501 + $0xc] sm:$0xf]
      %v2506 = vld [vmem:[%s2501 + $0x10] sm:$0xf]
      %v2507 = vld [vmem:[%s2501 + $0x14] sm:$0xf]
      %v2508 = vld [vmem:[%s2501 + $0x18] sm:$0xf]
      %v2509 = vld [vmem:[%s2501 + $0x1c] sm:$0xf]
      %v2510 = vld [vmem:[%s2501 + $0x20] sm:$0xf]
      %v2511 = vld [vmem:[%s2501 + $0x24] sm:$0xf]
      %v2512 = vld [vmem:[%s2501 + $0x28] sm:$0xf]
      %v2513 = vld [vmem:[%s2501 + $0x2c] sm:$0xf]
      %v2514 = vld [vmem:[%s2501 + $0x30] sm:$0xf]
      %v2515 = vld [vmem:[%s2501 + $0x34] sm:$0xf]
      %v2516 = vld [vmem:[%s2501 + $0x38] sm:$0xf]
      %v2517 = vld [vmem:[%s2501 + $0x3c] sm:$0xf]
      %v2518 = vunpack.c.l.b16 %v2448
      %v2519 = vunpack.c.l.b16 %v2451
      %v2520 = vunpack.c.l.b16 %v2455
      %v2521 = vunpack.c.l.b16 %v2458
      %v2522 = vunpack.c.l.b16 %v2462
      %v2523 = vunpack.c.l.b16 %v2465
      %v2524 = vunpack.c.l.b16 %v2469
      %v2525 = vunpack.c.l.b16 %v2472
      %v2526 = vunpack.c.l.b16 %v2476
      %v2527 = vunpack.c.l.b16 %v2479
      %v2528 = vunpack.c.l.b16 %v2483
      %v2529 = vunpack.c.l.b16 %v2486
      %v2530 = vunpack.c.l.b16 %v2490
      %v2531 = vunpack.c.l.b16 %v2493
      %v2532 = vunpack.c.l.b16 %v2497
      %v2533 = vunpack.c.l.b16 %v2500
      %v2534 = vpack.c.b16 %v2519, %v2518
      %v2535 = vpack.c.b16 %v2521, %v2520
      %v2536 = vpack.c.b16 %v2523, %v2522
      %v2537 = vpack.c.b16 %v2525, %v2524
      %v2538 = vpack.c.b16 %v2527, %v2526
      %v2539 = vpack.c.b16 %v2529, %v2528
      %v2540 = vpack.c.b16 %v2531, %v2530
      %v2541 = vpack.c.b16 %v2533, %v2532
      %v2566 = vunpack.c.l.b16 %v2502
      %v2567 = vunpack.c.l.b16 %v2503
      %v2568 = vunpack.c.l.b16 %v2504
      %v2569 = vunpack.c.l.b16 %v2505
      %v2570 = vunpack.c.l.b16 %v2506
      %v2571 = vunpack.c.l.b16 %v2507
      %v2572 = vunpack.c.l.b16 %v2508
      %v2573 = vunpack.c.l.b16 %v2509
      %v2574 = vunpack.c.l.b16 %v2510
      %v2575 = vunpack.c.l.b16 %v2511
      %v2576 = vunpack.c.l.b16 %v2512
      %v2577 = vunpack.c.l.b16 %v2513
      %v2578 = vunpack.c.l.b16 %v2514
      %v2579 = vunpack.c.l.b16 %v2515
      %v2580 = vunpack.c.l.b16 %v2516
      %v2581 = vunpack.c.l.b16 %v2517
      %v2582 = vpack.c.b16 %v2567, %v2566
      %v2583 = vpack.c.b16 %v2569, %v2568
      %v2584 = vpack.c.b16 %v2571, %v2570
      %v2585 = vpack.c.b16 %v2573, %v2572
      %v2586 = vpack.c.b16 %v2575, %v2574
      %v2587 = vpack.c.b16 %v2577, %v2576
      %v2588 = vpack.c.b16 %v2579, %v2578
      %v2589 = vpack.c.b16 %v2581, %v2580
      %2598 = vmatprep.subr.bf16.mxu0 0
      %2599 = vmatpush1.bf16.msra.mxu0 %v2589
      %2600 = vmatprep.subr.bf16.mxu0 0
      %2601 = vmatpush1.bf16.msra.mxu0 %v2588
      %2602 = vmatprep.subr.bf16.mxu0 0
      %2603 = vmatpush1.bf16.msra.mxu0 %v2587
      %2604 = vmatprep.subr.bf16.mxu0 0
      %2605 = vmatpush1.bf16.msra.mxu0 %v2586
      %2606 = vmatprep.subr.bf16.mxu0 0
      %2607 = vmatpush1.bf16.msra.mxu0 %v2585
      %2608 = vmatprep.subr.bf16.mxu0 0
      %2609 = vmatpush1.bf16.msra.mxu0 %v2584
      %2610 = vmatprep.subr.bf16.mxu0 0
      %2611 = vmatpush1.bf16.msra.mxu0 %v2583
      %2612 = vmatprep.subr.bf16.mxu0 0
      %2613 = vmatpush1.bf16.msra.mxu0 %v2582
      %2614 = vmatprep.subr.bf16.mxu0 0
      %2615 = vmatpush2.bf16.msra.mxu0 0
      %2616 = vmatprep.subr.bf16.mxu0 0
      %2617 = vmatpush2.bf16.msra.mxu0 0
      %2618 = vmatprep.subr.bf16.mxu0 0
      %2619 = vmatpush2.bf16.msra.mxu0 0
      %2620 = vmatprep.subr.bf16.mxu0 0
      %2621 = vmatpush2.bf16.msra.mxu0 0
      %2622 = vmatprep.subr.bf16.mxu0 0
      %2623 = vmatpush2.bf16.msra.mxu0 0
      %2624 = vmatprep.subr.bf16.mxu0 0
      %2625 = vmatpush2.bf16.msra.mxu0 0
      %2626 = vmatprep.subr.bf16.mxu0 0
      %2627 = vmatpush2.bf16.msra.mxu0 0
      %2628 = vmatprep.subr.bf16.mxu0 0
      %2629 = vmatpush2.bf16.msra.mxu0 0
      %2630 = vmatprep.mubr.bf16.mxu0 0
      %2631 = vmatmul.mubr.bf16.gmra.mxu0 %v2534
      %v2632 = vpop.f32.mrf.mxu0
      %v2633 = vadd.f32 0.0, %v2632
      %v2634 = vpop.f32.mrf.mxu0
      %v2635 = vpop.f32.mrf.mxu0
      %v2636 = vadd.f32 0.0, %v2635
      %v2637 = vpop.f32.mrf.mxu0
      %2638 = vmatprep.mubr.bf16.mxu0 0
      %2639 = vmatmul.mubr.bf16.gmra.mxu0 %v2535
      %v2640 = vpop.f32.mrf.mxu0
      %v2641 = vadd.f32 0.0, %v2640
      %v2642 = vpop.f32.mrf.mxu0
      %v2643 = vpop.f32.mrf.mxu0
      %v2644 = vadd.f32 0.0, %v2643
      %v2645 = vpop.f32.mrf.mxu0
      %2646 = vmatprep.mubr.bf16.mxu0 0
      %2647 = vmatmul.mubr.bf16.gmra.mxu0 %v2536
      %v2648 = vpop.f32.mrf.mxu0
      %v2649 = vadd.f32 0.0, %v2648
      %v2650 = vpop.f32.mrf.mxu0
      %v2651 = vpop.f32.mrf.mxu0
      %v2652 = vadd.f32 0.0, %v2651
      %v2653 = vpop.f32.mrf.mxu0
      %2654 = vmatprep.mubr.bf16.mxu0 0
      %2655 = vmatmul.mubr.bf16.gmra.mxu0 %v2537
      %v2656 = vpop.f32.mrf.mxu0
      %v2657 = vadd.f32 0.0, %v2656
      %v2658 = vpop.f32.mrf.mxu0
      %v2659 = vpop.f32.mrf.mxu0
      %v2660 = vadd.f32 0.0, %v2659
      %v2661 = vpop.f32.mrf.mxu0
      %2662 = vmatprep.mubr.bf16.mxu0 0
      %2663 = vmatmul.mubr.bf16.gmra.mxu0 %v2538
      %v2664 = vpop.f32.mrf.mxu0
      %v2665 = vadd.f32 0.0, %v2664
      %v2666 = vpop.f32.mrf.mxu0
      %v2667 = vpop.f32.mrf.mxu0
      %v2668 = vadd.f32 0.0, %v2667
      %v2669 = vpop.f32.mrf.mxu0
      %2670 = vmatprep.mubr.bf16.mxu0 0
      %2671 = vmatmul.mubr.bf16.gmra.mxu0 %v2539
      %v2672 = vpop.f32.mrf.mxu0
      %v2673 = vadd.f32 0.0, %v2672
      %v2674 = vpop.f32.mrf.mxu0
      %v2675 = vpop.f32.mrf.mxu0
      %v2676 = vadd.f32 0.0, %v2675
      %v2677 = vpop.f32.mrf.mxu0
      %2678 = vmatprep.mubr.bf16.mxu0 0
      %2679 = vmatmul.mubr.bf16.gmra.mxu0 %v2540
      %v2680 = vpop.f32.mrf.mxu0
      %v2681 = vadd.f32 0.0, %v2680
      %v2682 = vpop.f32.mrf.mxu0
      %v2683 = vpop.f32.mrf.mxu0
      %v2684 = vadd.f32 0.0, %v2683
      %v2685 = vpop.f32.mrf.mxu0
      %2686 = vmatprep.mubr.bf16.mxu0 0
      %2687 = vmatmul.mubr.bf16.gmra.mxu0 %v2541
      %v2688 = vpop.f32.mrf.mxu0
      %v2689 = vadd.f32 0.0, %v2688
      %v2690 = vpop.f32.mrf.mxu0
      %v2691 = vpop.f32.mrf.mxu0
      %v2692 = vadd.f32 0.0, %v2691
      %v2693 = vpop.f32.mrf.mxu0
      %2694 = vdwg.mxu0
      %v2695 = vadd.f32 %v2397, %v2633
      %v2696 = vadd.f32 %v2398, %v2636
      %v2697 = vadd.f32 %v2399, %v2641
      %v2698 = vadd.f32 %v2400, %v2644
      %v2699 = vadd.f32 %v2401, %v2649
      %v2700 = vadd.f32 %v2402, %v2652
      %v2701 = vadd.f32 %v2403, %v2657
      %v2702 = vadd.f32 %v2404, %v2660
      %v2703 = vadd.f32 %v2405, %v2665
      %v2704 = vadd.f32 %v2406, %v2668
      %v2705 = vadd.f32 %v2407, %v2673
      %v2706 = vadd.f32 %v2408, %v2676
      %v2707 = vadd.f32 %v2409, %v2681
      %v2708 = vadd.f32 %v2410, %v2684
      %v2709 = vadd.f32 %v2411, %v2689
      %v2710 = vadd.f32 %v2412, %v2692
      %s2711 = scalar_lea.vmem [#allocation2], 24
      %v2712 = vld [vmem:[%s2711] sm:$0xf]
      %v2713 = vld [vmem:[%s2711 + $0x4] sm:$0xf]
      %v2714 = vld [vmem:[%s2711 + $0xc] sm:$0xf]
      %v2715 = vld [vmem:[%s2711 + $0x10] sm:$0xf]
      %v2716 = vld [vmem:[%s2711 + $0x18] sm:$0xf]
      %v2717 = vld [vmem:[%s2711 + $0x1c] sm:$0xf]
      %v2718 = vld [vmem:[%s2711 + $0x24] sm:$0xf]
      %v2719 = vld [vmem:[%s2711 + $0x28] sm:$0xf]
      %v2720 = vld [vmem:[%s2711 + $0x30] sm:$0xf]
      %v2721 = vld [vmem:[%s2711 + $0x34] sm:$0xf]
      %v2722 = vld [vmem:[%s2711 + $0x3c] sm:$0xf]
      %v2723 = vld [vmem:[%s2711 + $0x40] sm:$0xf]
      %v2724 = vld [vmem:[%s2711 + $0x48] sm:$0xf]
      %v2725 = vld [vmem:[%s2711 + $0x4c] sm:$0xf]
      %v2726 = vld [vmem:[%s2711 + $0x54] sm:$0xf]
      %v2727 = vld [vmem:[%s2711 + $0x58] sm:$0xf]
      %s2728 = scalar_lea.vmem %s3, 384
      %v2729 = vld [vmem:[%s2728] sm:$0xf]
      %v2730 = vld [vmem:[%s2728 + $0x4] sm:$0xf]
      %v2731 = vld [vmem:[%s2728 + $0x8] sm:$0xf]
      %v2732 = vld [vmem:[%s2728 + $0xc] sm:$0xf]
      %v2733 = vld [vmem:[%s2728 + $0x10] sm:$0xf]
      %v2734 = vld [vmem:[%s2728 + $0x14] sm:$0xf]
      %v2735 = vld [vmem:[%s2728 + $0x18] sm:$0xf]
      %v2736 = vld [vmem:[%s2728 + $0x1c] sm:$0xf]
      %v2737 = vld [vmem:[%s2728 + $0x20] sm:$0xf]
      %v2738 = vld [vmem:[%s2728 + $0x24] sm:$0xf]
      %v2739 = vld [vmem:[%s2728 + $0x28] sm:$0xf]
      %v2740 = vld [vmem:[%s2728 + $0x2c] sm:$0xf]
      %v2741 = vld [vmem:[%s2728 + $0x30] sm:$0xf]
      %v2742 = vld [vmem:[%s2728 + $0x34] sm:$0xf]
      %v2743 = vld [vmem:[%s2728 + $0x38] sm:$0xf]
      %v2744 = vld [vmem:[%s2728 + $0x3c] sm:$0xf]
      %v2761 = vunpack.c.l.b16 %v2712
      %v2762 = vunpack.c.l.b16 %v2713
      %v2763 = vunpack.c.l.b16 %v2714
      %v2764 = vunpack.c.l.b16 %v2715
      %v2765 = vunpack.c.l.b16 %v2716
      %v2766 = vunpack.c.l.b16 %v2717
      %v2767 = vunpack.c.l.b16 %v2718
      %v2768 = vunpack.c.l.b16 %v2719
      %v2769 = vunpack.c.l.b16 %v2720
      %v2770 = vunpack.c.l.b16 %v2721
      %v2771 = vunpack.c.l.b16 %v2722
      %v2772 = vunpack.c.l.b16 %v2723
      %v2773 = vunpack.c.l.b16 %v2724
      %v2774 = vunpack.c.l.b16 %v2725
      %v2775 = vunpack.c.l.b16 %v2726
      %v2776 = vunpack.c.l.b16 %v2727
      %v2777 = vpack.c.b16 %v2762, %v2761
      %v2778 = vpack.c.b16 %v2764, %v2763
      %v2779 = vpack.c.b16 %v2766, %v2765
      %v2780 = vpack.c.b16 %v2768, %v2767
      %v2781 = vpack.c.b16 %v2770, %v2769
      %v2782 = vpack.c.b16 %v2772, %v2771
      %v2783 = vpack.c.b16 %v2774, %v2773
      %v2784 = vpack.c.b16 %v2776, %v2775
      %v2809 = vunpack.c.l.b16 %v2729
      %v2810 = vunpack.c.l.b16 %v2730
      %v2811 = vunpack.c.l.b16 %v2731
      %v2812 = vunpack.c.l.b16 %v2732
      %v2813 = vunpack.c.l.b16 %v2733
      %v2814 = vunpack.c.l.b16 %v2734
      %v2815 = vunpack.c.l.b16 %v2735
      %v2816 = vunpack.c.l.b16 %v2736
      %v2817 = vunpack.c.l.b16 %v2737
      %v2818 = vunpack.c.l.b16 %v2738
      %v2819 = vunpack.c.l.b16 %v2739
      %v2820 = vunpack.c.l.b16 %v2740
      %v2821 = vunpack.c.l.b16 %v2741
      %v2822 = vunpack.c.l.b16 %v2742
      %v2823 = vunpack.c.l.b16 %v2743
      %v2824 = vunpack.c.l.b16 %v2744
      %v2825 = vpack.c.b16 %v2810, %v2809
      %v2826 = vpack.c.b16 %v2812, %v2811
      %v2827 = vpack.c.b16 %v2814, %v2813
      %v2828 = vpack.c.b16 %v2816, %v2815
      %v2829 = vpack.c.b16 %v2818, %v2817
      %v2830 = vpack.c.b16 %v2820, %v2819
      %v2831 = vpack.c.b16 %v2822, %v2821
      %v2832 = vpack.c.b16 %v2824, %v2823
      %2841 = vmatprep.subr.bf16.mxu0 0
      %2842 = vmatpush1.bf16.msra.mxu0 %v2832
      %2843 = vmatprep.subr.bf16.mxu0 0
      %2844 = vmatpush1.bf16.msra.mxu0 %v2831
      %2845 = vmatprep.subr.bf16.mxu0 0
      %2846 = vmatpush1.bf16.msra.mxu0 %v2830
      %2847 = vmatprep.subr.bf16.mxu0 0
      %2848 = vmatpush1.bf16.msra.mxu0 %v2829
      %2849 = vmatprep.subr.bf16.mxu0 0
      %2850 = vmatpush1.bf16.msra.mxu0 %v2828
      %2851 = vmatprep.subr.bf16.mxu0 0
      %2852 = vmatpush1.bf16.msra.mxu0 %v2827
      %2853 = vmatprep.subr.bf16.mxu0 0
      %2854 = vmatpush1.bf16.msra.mxu0 %v2826
      %2855 = vmatprep.subr.bf16.mxu0 0
      %2856 = vmatpush1.bf16.msra.mxu0 %v2825
      %2857 = vmatprep.subr.bf16.mxu0 0
      %2858 = vmatpush2.bf16.msra.mxu0 0
      %2859 = vmatprep.subr.bf16.mxu0 0
      %2860 = vmatpush2.bf16.msra.mxu0 0
      %2861 = vmatprep.subr.bf16.mxu0 0
      %2862 = vmatpush2.bf16.msra.mxu0 0
      %2863 = vmatprep.subr.bf16.mxu0 0
      %2864 = vmatpush2.bf16.msra.mxu0 0
      %2865 = vmatprep.subr.bf16.mxu0 0
      %2866 = vmatpush2.bf16.msra.mxu0 0
      %2867 = vmatprep.subr.bf16.mxu0 0
      %2868 = vmatpush2.bf16.msra.mxu0 0
      %2869 = vmatprep.subr.bf16.mxu0 0
      %2870 = vmatpush2.bf16.msra.mxu0 0
      %2871 = vmatprep.subr.bf16.mxu0 0
      %2872 = vmatpush2.bf16.msra.mxu0 0
      %2873 = vmatprep.mubr.bf16.mxu0 0
      %2874 = vmatmul.mubr.bf16.gmra.mxu0 %v2777
      %v2875 = vpop.f32.mrf.mxu0
      %v2876 = vadd.f32 0.0, %v2875
      %v2877 = vpop.f32.mrf.mxu0
      %v2878 = vpop.f32.mrf.mxu0
      %v2879 = vadd.f32 0.0, %v2878
      %v2880 = vpop.f32.mrf.mxu0
      %2881 = vmatprep.mubr.bf16.mxu0 0
      %2882 = vmatmul.mubr.bf16.gmra.mxu0 %v2778
      %v2883 = vpop.f32.mrf.mxu0
      %v2884 = vadd.f32 0.0, %v2883
      %v2885 = vpop.f32.mrf.mxu0
      %v2886 = vpop.f32.mrf.mxu0
      %v2887 = vadd.f32 0.0, %v2886
      %v2888 = vpop.f32.mrf.mxu0
      %2889 = vmatprep.mubr.bf16.mxu0 0
      %2890 = vmatmul.mubr.bf16.gmra.mxu0 %v2779
      %v2891 = vpop.f32.mrf.mxu0
      %v2892 = vadd.f32 0.0, %v2891
      %v2893 = vpop.f32.mrf.mxu0
      %v2894 = vpop.f32.mrf.mxu0
      %v2895 = vadd.f32 0.0, %v2894
      %v2896 = vpop.f32.mrf.mxu0
      %2897 = vmatprep.mubr.bf16.mxu0 0
      %2898 = vmatmul.mubr.bf16.gmra.mxu0 %v2780
      %v2899 = vpop.f32.mrf.mxu0
      %v2900 = vadd.f32 0.0, %v2899
      %v2901 = vpop.f32.mrf.mxu0
      %v2902 = vpop.f32.mrf.mxu0
      %v2903 = vadd.f32 0.0, %v2902
      %v2904 = vpop.f32.mrf.mxu0
      %2905 = vmatprep.mubr.bf16.mxu0 0
      %2906 = vmatmul.mubr.bf16.gmra.mxu0 %v2781
      %v2907 = vpop.f32.mrf.mxu0
      %v2908 = vadd.f32 0.0, %v2907
      %v2909 = vpop.f32.mrf.mxu0
      %v2910 = vpop.f32.mrf.mxu0
      %v2911 = vadd.f32 0.0, %v2910
      %v2912 = vpop.f32.mrf.mxu0
      %2913 = vmatprep.mubr.bf16.mxu0 0
      %2914 = vmatmul.mubr.bf16.gmra.mxu0 %v2782
      %v2915 = vpop.f32.mrf.mxu0
      %v2916 = vadd.f32 0.0, %v2915
      %v2917 = vpop.f32.mrf.mxu0
      %v2918 = vpop.f32.mrf.mxu0
      %v2919 = vadd.f32 0.0, %v2918
      %v2920 = vpop.f32.mrf.mxu0
      %2921 = vmatprep.mubr.bf16.mxu0 0
      %2922 = vmatmul.mubr.bf16.gmra.mxu0 %v2783
      %v2923 = vpop.f32.mrf.mxu0
      %v2924 = vadd.f32 0.0, %v2923
      %v2925 = vpop.f32.mrf.mxu0
      %v2926 = vpop.f32.mrf.mxu0
      %v2927 = vadd.f32 0.0, %v2926
      %v2928 = vpop.f32.mrf.mxu0
      %2929 = vmatprep.mubr.bf16.mxu0 0
      %2930 = vmatmul.mubr.bf16.gmra.mxu0 %v2784
      %v2931 = vpop.f32.mrf.mxu0
      %v2932 = vadd.f32 0.0, %v2931
      %v2933 = vpop.f32.mrf.mxu0
      %v2934 = vpop.f32.mrf.mxu0
      %v2935 = vadd.f32 0.0, %v2934
      %v2936 = vpop.f32.mrf.mxu0
      %2937 = vdwg.mxu0
      %v2938 = vadd.f32 %v2695, %v2876
      %v2939 = vadd.f32 %v2696, %v2879
      %v2940 = vadd.f32 %v2697, %v2884
      %v2941 = vadd.f32 %v2698, %v2887
      %v2942 = vadd.f32 %v2699, %v2892
      %v2943 = vadd.f32 %v2700, %v2895
      %v2944 = vadd.f32 %v2701, %v2900
      %v2945 = vadd.f32 %v2702, %v2903
      %v2946 = vadd.f32 %v2703, %v2908
      %v2947 = vadd.f32 %v2704, %v2911
      %v2948 = vadd.f32 %v2705, %v2916
      %v2949 = vadd.f32 %v2706, %v2919
      %v2950 = vadd.f32 %v2707, %v2924
      %v2951 = vadd.f32 %v2708, %v2927
      %v2952 = vadd.f32 %v2709, %v2932
      %v2953 = vadd.f32 %v2710, %v2935
      %v2954 = vld [vmem:[%s2711] sm:$0xf]
      %v2955 = vld [vmem:[%s2711 + $0x4] sm:$0xf]
      %v2956 = vld [vmem:[%s2711 + $0x8] sm:$0x1]
      %v2957 = vld [vmem:[%s2711 + $0xc] sm:$0xf]
      %v2958 = vld [vmem:[%s2711 + $0x10] sm:$0xf]
      %v2959 = vld [vmem:[%s2711 + $0x14] sm:$0x1]
      %v2960 = vld [vmem:[%s2711 + $0x18] sm:$0xf]
      %v2961 = vld [vmem:[%s2711 + $0x1c] sm:$0xf]
      %v2962 = vld [vmem:[%s2711 + $0x20] sm:$0x1]
      %v2963 = vld [vmem:[%s2711 + $0x24] sm:$0xf]
      %v2964 = vld [vmem:[%s2711 + $0x28] sm:$0xf]
      %v2965 = vld [vmem:[%s2711 + $0x2c] sm:$0x1]
      %v2966 = vld [vmem:[%s2711 + $0x30] sm:$0xf]
      %v2967 = vld [vmem:[%s2711 + $0x34] sm:$0xf]
      %v2968 = vld [vmem:[%s2711 + $0x38] sm:$0x1]
      %v2969 = vld [vmem:[%s2711 + $0x3c] sm:$0xf]
      %v2970 = vld [vmem:[%s2711 + $0x40] sm:$0xf]
      %v2971 = vld [vmem:[%s2711 + $0x44] sm:$0x1]
      %v2972 = vld [vmem:[%s2711 + $0x48] sm:$0xf]
      %v2973 = vld [vmem:[%s2711 + $0x4c] sm:$0xf]
      %v2974 = vld [vmem:[%s2711 + $0x50] sm:$0x1]
      %v2975 = vld [vmem:[%s2711 + $0x54] sm:$0xf]
      %v2976 = vld [vmem:[%s2711 + $0x58] sm:$0xf]
      %v2977 = vld [vmem:[%s2711 + $0x5c] sm:$0x1]
      %v2979 = vshrl.u32 %v2954, 16
      %v2981 = vrot.slane %v2979, 4
      %v2982 = vshll.u32 %v2954, 16
      %v2984 = vrot.slane %v2982, 5
      %v2985 = vor.u32 %v2981, %v2984
      %v2986 = vrot.slane %v2985, 4
      %v2988 = vshll.u32 %v2955, 16
      %v2990 = vrot.slane %v2988, 5
      %v2991 = vsel %vm872, %v2986, %v2990
      %v2992 = vshrl.u32 %v2955, 16
      %v2994 = vrot.slane %v2992, 4
      %v2995 = vor.u32 %v2994, %v2990
      %v2996 = vrot.slane %v2995, 4
      %v2998 = vshll.u32 %v2956, 16
      %v3000 = vrot.slane %v2998, 5
      %v3001 = vsel %vm872, %v2996, %v3000
      %v3003 = vshrl.u32 %v2957, 16
      %v3005 = vrot.slane %v3003, 4
      %v3006 = vshll.u32 %v2957, 16
      %v3008 = vrot.slane %v3006, 5
      %v3009 = vor.u32 %v3005, %v3008
      %v3010 = vrot.slane %v3009, 4
      %v3012 = vshll.u32 %v2958, 16
      %v3014 = vrot.slane %v3012, 5
      %v3015 = vsel %vm872, %v3010, %v3014
      %v3016 = vshrl.u32 %v2958, 16
      %v3018 = vrot.slane %v3016, 4
      %v3019 = vor.u32 %v3018, %v3014
      %v3020 = vrot.slane %v3019, 4
      %v3022 = vshll.u32 %v2959, 16
      %v3024 = vrot.slane %v3022, 5
      %v3025 = vsel %vm872, %v3020, %v3024
      %v3027 = vshrl.u32 %v2960, 16
      %v3029 = vrot.slane %v3027, 4
      %v3030 = vshll.u32 %v2960, 16
      %v3032 = vrot.slane %v3030, 5
      %v3033 = vor.u32 %v3029, %v3032
      %v3034 = vrot.slane %v3033, 4
      %v3036 = vshll.u32 %v2961, 16
      %v3038 = vrot.slane %v3036, 5
      %v3039 = vsel %vm872, %v3034, %v3038
      %v3040 = vshrl.u32 %v2961, 16
      %v3042 = vrot.slane %v3040, 4
      %v3043 = vor.u32 %v3042, %v3038
      %v3044 = vrot.slane %v3043, 4
      %v3046 = vshll.u32 %v2962, 16
      %v3048 = vrot.slane %v3046, 5
      %v3049 = vsel %vm872, %v3044, %v3048
      %v3051 = vshrl.u32 %v2963, 16
      %v3053 = vrot.slane %v3051, 4
      %v3054 = vshll.u32 %v2963, 16
      %v3056 = vrot.slane %v3054, 5
      %v3057 = vor.u32 %v3053, %v3056
      %v3058 = vrot.slane %v3057, 4
      %v3060 = vshll.u32 %v2964, 16
      %v3062 = vrot.slane %v3060, 5
      %v3063 = vsel %vm872, %v3058, %v3062
      %v3064 = vshrl.u32 %v2964, 16
      %v3066 = vrot.slane %v3064, 4
      %v3067 = vor.u32 %v3066, %v3062
      %v3068 = vrot.slane %v3067, 4
      %v3070 = vshll.u32 %v2965, 16
      %v3072 = vrot.slane %v3070, 5
      %v3073 = vsel %vm872, %v3068, %v3072
      %v3075 = vshrl.u32 %v2966, 16
      %v3077 = vrot.slane %v3075, 4
      %v3078 = vshll.u32 %v2966, 16
      %v3080 = vrot.slane %v3078, 5
      %v3081 = vor.u32 %v3077, %v3080
      %v3082 = vrot.slane %v3081, 4
      %v3084 = vshll.u32 %v2967, 16
      %v3086 = vrot.slane %v3084, 5
      %v3087 = vsel %vm872, %v3082, %v3086
      %v3088 = vshrl.u32 %v2967, 16
      %v3090 = vrot.slane %v3088, 4
      %v3091 = vor.u32 %v3090, %v3086
      %v3092 = vrot.slane %v3091, 4
      %v3094 = vshll.u32 %v2968, 16
      %v3096 = vrot.slane %v3094, 5
      %v3097 = vsel %vm872, %v3092, %v3096
      %v3099 = vshrl.u32 %v2969, 16
      %v3101 = vrot.slane %v3099, 4
      %v3102 = vshll.u32 %v2969, 16
      %v3104 = vrot.slane %v3102, 5
      %v3105 = vor.u32 %v3101, %v3104
      %v3106 = vrot.slane %v3105, 4
      %v3108 = vshll.u32 %v2970, 16
      %v3110 = vrot.slane %v3108, 5
      %v3111 = vsel %vm872, %v3106, %v3110
      %v3112 = vshrl.u32 %v2970, 16
      %v3114 = vrot.slane %v3112, 4
      %v3115 = vor.u32 %v3114, %v3110
      %v3116 = vrot.slane %v3115, 4
      %v3118 = vshll.u32 %v2971, 16
      %v3120 = vrot.slane %v3118, 5
      %v3121 = vsel %vm872, %v3116, %v3120
      %v3123 = vshrl.u32 %v2972, 16
      %v3125 = vrot.slane %v3123, 4
      %v3126 = vshll.u32 %v2972, 16
      %v3128 = vrot.slane %v3126, 5
      %v3129 = vor.u32 %v3125, %v3128
      %v3130 = vrot.slane %v3129, 4
      %v3132 = vshll.u32 %v2973, 16
      %v3134 = vrot.slane %v3132, 5
      %v3135 = vsel %vm872, %v3130, %v3134
      %v3136 = vshrl.u32 %v2973, 16
      %v3138 = vrot.slane %v3136, 4
      %v3139 = vor.u32 %v3138, %v3134
      %v3140 = vrot.slane %v3139, 4
      %v3142 = vshll.u32 %v2974, 16
      %v3144 = vrot.slane %v3142, 5
      %v3145 = vsel %vm872, %v3140, %v3144
      %v3147 = vshrl.u32 %v2975, 16
      %v3149 = vrot.slane %v3147, 4
      %v3150 = vshll.u32 %v2975, 16
      %v3152 = vrot.slane %v3150, 5
      %v3153 = vor.u32 %v3149, %v3152
      %v3154 = vrot.slane %v3153, 4
      %v3156 = vshll.u32 %v2976, 16
      %v3158 = vrot.slane %v3156, 5
      %v3159 = vsel %vm872, %v3154, %v3158
      %v3160 = vshrl.u32 %v2976, 16
      %v3162 = vrot.slane %v3160, 4
      %v3163 = vor.u32 %v3162, %v3158
      %v3164 = vrot.slane %v3163, 4
      %v3166 = vshll.u32 %v2977, 16
      %v3168 = vrot.slane %v3166, 5
      %v3169 = vsel %vm872, %v3164, %v3168
      %s3170 = scalar_lea.vmem %s3, 448
      %v3171 = vld [vmem:[%s3170] sm:$0xf]
      %v3172 = vld [vmem:[%s3170 + $0x4] sm:$0xf]
      %v3173 = vld [vmem:[%s3170 + $0x8] sm:$0xf]
      %v3174 = vld [vmem:[%s3170 + $0xc] sm:$0xf]
      %v3175 = vld [vmem:[%s3170 + $0x10] sm:$0xf]
      %v3176 = vld [vmem:[%s3170 + $0x14] sm:$0xf]
      %v3177 = vld [vmem:[%s3170 + $0x18] sm:$0xf]
      %v3178 = vld [vmem:[%s3170 + $0x1c] sm:$0xf]
      %v3179 = vld [vmem:[%s3170 + $0x20] sm:$0xf]
      %v3180 = vld [vmem:[%s3170 + $0x24] sm:$0xf]
      %v3181 = vld [vmem:[%s3170 + $0x28] sm:$0xf]
      %v3182 = vld [vmem:[%s3170 + $0x2c] sm:$0xf]
      %v3183 = vld [vmem:[%s3170 + $0x30] sm:$0xf]
      %v3184 = vld [vmem:[%s3170 + $0x34] sm:$0xf]
      %v3185 = vld [vmem:[%s3170 + $0x38] sm:$0xf]
      %v3186 = vld [vmem:[%s3170 + $0x3c] sm:$0xf]
      %v3187 = vunpack.c.l.b16 %v2991
      %v3188 = vunpack.c.l.b16 %v3001
      %v3189 = vunpack.c.l.b16 %v3015
      %v3190 = vunpack.c.l.b16 %v3025
      %v3191 = vunpack.c.l.b16 %v3039
      %v3192 = vunpack.c.l.b16 %v3049
      %v3193 = vunpack.c.l.b16 %v3063
      %v3194 = vunpack.c.l.b16 %v3073
      %v3195 = vunpack.c.l.b16 %v3087
      %v3196 = vunpack.c.l.b16 %v3097
      %v3197 = vunpack.c.l.b16 %v3111
      %v3198 = vunpack.c.l.b16 %v3121
      %v3199 = vunpack.c.l.b16 %v3135
      %v3200 = vunpack.c.l.b16 %v3145
      %v3201 = vunpack.c.l.b16 %v3159
      %v3202 = vunpack.c.l.b16 %v3169
      %v3203 = vpack.c.b16 %v3188, %v3187
      %v3204 = vpack.c.b16 %v3190, %v3189
      %v3205 = vpack.c.b16 %v3192, %v3191
      %v3206 = vpack.c.b16 %v3194, %v3193
      %v3207 = vpack.c.b16 %v3196, %v3195
      %v3208 = vpack.c.b16 %v3198, %v3197
      %v3209 = vpack.c.b16 %v3200, %v3199
      %v3210 = vpack.c.b16 %v3202, %v3201
      %v3235 = vunpack.c.l.b16 %v3171
      %v3236 = vunpack.c.l.b16 %v3172
      %v3237 = vunpack.c.l.b16 %v3173
      %v3238 = vunpack.c.l.b16 %v3174
      %v3239 = vunpack.c.l.b16 %v3175
      %v3240 = vunpack.c.l.b16 %v3176
      %v3241 = vunpack.c.l.b16 %v3177
      %v3242 = vunpack.c.l.b16 %v3178
      %v3243 = vunpack.c.l.b16 %v3179
      %v3244 = vunpack.c.l.b16 %v3180
      %v3245 = vunpack.c.l.b16 %v3181
      %v3246 = vunpack.c.l.b16 %v3182
      %v3247 = vunpack.c.l.b16 %v3183
      %v3248 = vunpack.c.l.b16 %v3184
      %v3249 = vunpack.c.l.b16 %v3185
      %v3250 = vunpack.c.l.b16 %v3186
      %v3251 = vpack.c.b16 %v3236, %v3235
      %v3252 = vpack.c.b16 %v3238, %v3237
      %v3253 = vpack.c.b16 %v3240, %v3239
      %v3254 = vpack.c.b16 %v3242, %v3241
      %v3255 = vpack.c.b16 %v3244, %v3243
      %v3256 = vpack.c.b16 %v3246, %v3245
      %v3257 = vpack.c.b16 %v3248, %v3247
      %v3258 = vpack.c.b16 %v3250, %v3249
      %3267 = vmatprep.subr.bf16.mxu0 0
      %3268 = vmatpush1.bf16.msra.mxu0 %v3258
      %3269 = vmatprep.subr.bf16.mxu0 0
      %3270 = vmatpush1.bf16.msra.mxu0 %v3257
      %3271 = vmatprep.subr.bf16.mxu0 0
      %3272 = vmatpush1.bf16.msra.mxu0 %v3256
      %3273 = vmatprep.subr.bf16.mxu0 0
      %3274 = vmatpush1.bf16.msra.mxu0 %v3255
      %3275 = vmatprep.subr.bf16.mxu0 0
      %3276 = vmatpush1.bf16.msra.mxu0 %v3254
      %3277 = vmatprep.subr.bf16.mxu0 0
      %3278 = vmatpush1.bf16.msra.mxu0 %v3253
      %3279 = vmatprep.subr.bf16.mxu0 0
      %3280 = vmatpush1.bf16.msra.mxu0 %v3252
      %3281 = vmatprep.subr.bf16.mxu0 0
      %3282 = vmatpush1.bf16.msra.mxu0 %v3251
      %3283 = vmatprep.subr.bf16.mxu0 0
      %3284 = vmatpush2.bf16.msra.mxu0 0
      %3285 = vmatprep.subr.bf16.mxu0 0
      %3286 = vmatpush2.bf16.msra.mxu0 0
      %3287 = vmatprep.subr.bf16.mxu0 0
      %3288 = vmatpush2.bf16.msra.mxu0 0
      %3289 = vmatprep.subr.bf16.mxu0 0
      %3290 = vmatpush2.bf16.msra.mxu0 0
      %3291 = vmatprep.subr.bf16.mxu0 0
      %3292 = vmatpush2.bf16.msra.mxu0 0
      %3293 = vmatprep.subr.bf16.mxu0 0
      %3294 = vmatpush2.bf16.msra.mxu0 0
      %3295 = vmatprep.subr.bf16.mxu0 0
      %3296 = vmatpush2.bf16.msra.mxu0 0
      %3297 = vmatprep.subr.bf16.mxu0 0
      %3298 = vmatpush2.bf16.msra.mxu0 0
      %3299 = vmatprep.mubr.bf16.mxu0 0
      %3300 = vmatmul.mubr.bf16.gmra.mxu0 %v3203
      %v3301 = vpop.f32.mrf.mxu0
      %v3302 = vadd.f32 0.0, %v3301
      %v3303 = vpop.f32.mrf.mxu0
      %v3304 = vpop.f32.mrf.mxu0
      %v3305 = vadd.f32 0.0, %v3304
      %v3306 = vpop.f32.mrf.mxu0
      %3307 = vmatprep.mubr.bf16.mxu0 0
      %3308 = vmatmul.mubr.bf16.gmra.mxu0 %v3204
      %v3309 = vpop.f32.mrf.mxu0
      %v3310 = vadd.f32 0.0, %v3309
      %v3311 = vpop.f32.mrf.mxu0
      %v3312 = vpop.f32.mrf.mxu0
      %v3313 = vadd.f32 0.0, %v3312
      %v3314 = vpop.f32.mrf.mxu0
      %3315 = vmatprep.mubr.bf16.mxu0 0
      %3316 = vmatmul.mubr.bf16.gmra.mxu0 %v3205
      %v3317 = vpop.f32.mrf.mxu0
      %v3318 = vadd.f32 0.0, %v3317
      %v3319 = vpop.f32.mrf.mxu0
      %v3320 = vpop.f32.mrf.mxu0
      %v3321 = vadd.f32 0.0, %v3320
      %v3322 = vpop.f32.mrf.mxu0
      %3323 = vmatprep.mubr.bf16.mxu0 0
      %3324 = vmatmul.mubr.bf16.gmra.mxu0 %v3206
      %v3325 = vpop.f32.mrf.mxu0
      %v3326 = vadd.f32 0.0, %v3325
      %v3327 = vpop.f32.mrf.mxu0
      %v3328 = vpop.f32.mrf.mxu0
      %v3329 = vadd.f32 0.0, %v3328
      %v3330 = vpop.f32.mrf.mxu0
      %3331 = vmatprep.mubr.bf16.mxu0 0
      %3332 = vmatmul.mubr.bf16.gmra.mxu0 %v3207
      %v3333 = vpop.f32.mrf.mxu0
      %v3334 = vadd.f32 0.0, %v3333
      %v3335 = vpop.f32.mrf.mxu0
      %v3336 = vpop.f32.mrf.mxu0
      %v3337 = vadd.f32 0.0, %v3336
      %v3338 = vpop.f32.mrf.mxu0
      %3339 = vmatprep.mubr.bf16.mxu0 0
      %3340 = vmatmul.mubr.bf16.gmra.mxu0 %v3208
      %v3341 = vpop.f32.mrf.mxu0
      %v3342 = vadd.f32 0.0, %v3341
      %v3343 = vpop.f32.mrf.mxu0
      %v3344 = vpop.f32.mrf.mxu0
      %v3345 = vadd.f32 0.0, %v3344
      %v3346 = vpop.f32.mrf.mxu0
      %3347 = vmatprep.mubr.bf16.mxu0 0
      %3348 = vmatmul.mubr.bf16.gmra.mxu0 %v3209
      %v3349 = vpop.f32.mrf.mxu0
      %v3350 = vadd.f32 0.0, %v3349
      %v3351 = vpop.f32.mrf.mxu0
      %v3352 = vpop.f32.mrf.mxu0
      %v3353 = vadd.f32 0.0, %v3352
      %v3354 = vpop.f32.mrf.mxu0
      %3355 = vmatprep.mubr.bf16.mxu0 0
      %3356 = vmatmul.mubr.bf16.gmra.mxu0 %v3210
      %v3357 = vpop.f32.mrf.mxu0
      %v3358 = vadd.f32 0.0, %v3357
      %v3359 = vpop.f32.mrf.mxu0
      %v3360 = vpop.f32.mrf.mxu0
      %v3361 = vadd.f32 0.0, %v3360
      %v3362 = vpop.f32.mrf.mxu0
      %3363 = vdwg.mxu0
      %v3364 = vadd.f32 %v2938, %v3302
      %v3365 = vadd.f32 %v2939, %v3305
      %v3366 = vadd.f32 %v2940, %v3310
      %v3367 = vadd.f32 %v2941, %v3313
      %v3368 = vadd.f32 %v2942, %v3318
      %v3369 = vadd.f32 %v2943, %v3321
      %v3370 = vadd.f32 %v2944, %v3326
      %v3371 = vadd.f32 %v2945, %v3329
      %v3372 = vadd.f32 %v2946, %v3334
      %v3373 = vadd.f32 %v2947, %v3337
      %v3374 = vadd.f32 %v2948, %v3342
      %v3375 = vadd.f32 %v2949, %v3345
      %v3376 = vadd.f32 %v2950, %v3350
      %v3377 = vadd.f32 %v2951, %v3353
      %v3378 = vadd.f32 %v2952, %v3358
      %v3379 = vadd.f32 %v2953, %v3361
      %v3380 = vld [vmem:[%s2711] sm:$0xe]
      %v3381 = vld [vmem:[%s2711 + $0xc] sm:$0xe]
      %v3382 = vld [vmem:[%s2711 + $0x18] sm:$0xe]
      %v3383 = vld [vmem:[%s2711 + $0x24] sm:$0xe]
      %v3384 = vld [vmem:[%s2711 + $0x30] sm:$0xe]
      %v3385 = vld [vmem:[%s2711 + $0x3c] sm:$0xe]
      %v3386 = vld [vmem:[%s2711 + $0x48] sm:$0xe]
      %v3387 = vld [vmem:[%s2711 + $0x54] sm:$0xe]
      %v3412 = vrot.slane %v3380, 5
      %v3413 = vrot.slane %v3412, 4
      %v3414 = vrot.slane %v2955, 5
      %v3415 = vsel %vm1478, %v3413, %v3414
      %v3416 = vrot.slane %v3414, 4
      %v3417 = vrot.slane %v2956, 5
      %v3418 = vsel %vm1478, %v3416, %v3417
      %v3419 = vrot.slane %v3381, 5
      %v3420 = vrot.slane %v3419, 4
      %v3421 = vrot.slane %v2958, 5
      %v3422 = vsel %vm1478, %v3420, %v3421
      %v3423 = vrot.slane %v3421, 4
      %v3424 = vrot.slane %v2959, 5
      %v3425 = vsel %vm1478, %v3423, %v3424
      %v3426 = vrot.slane %v3382, 5
      %v3427 = vrot.slane %v3426, 4
      %v3428 = vrot.slane %v2961, 5
      %v3429 = vsel %vm1478, %v3427, %v3428
      %v3430 = vrot.slane %v3428, 4
      %v3431 = vrot.slane %v2962, 5
      %v3432 = vsel %vm1478, %v3430, %v3431
      %v3433 = vrot.slane %v3383, 5
      %v3434 = vrot.slane %v3433, 4
      %v3435 = vrot.slane %v2964, 5
      %v3436 = vsel %vm1478, %v3434, %v3435
      %v3437 = vrot.slane %v3435, 4
      %v3438 = vrot.slane %v2965, 5
      %v3439 = vsel %vm1478, %v3437, %v3438
      %v3440 = vrot.slane %v3384, 5
      %v3441 = vrot.slane %v3440, 4
      %v3442 = vrot.slane %v2967, 5
      %v3443 = vsel %vm1478, %v3441, %v3442
      %v3444 = vrot.slane %v3442, 4
      %v3445 = vrot.slane %v2968, 5
      %v3446 = vsel %vm1478, %v3444, %v3445
      %v3447 = vrot.slane %v3385, 5
      %v3448 = vrot.slane %v3447, 4
      %v3449 = vrot.slane %v2970, 5
      %v3450 = vsel %vm1478, %v3448, %v3449
      %v3451 = vrot.slane %v3449, 4
      %v3452 = vrot.slane %v2971, 5
      %v3453 = vsel %vm1478, %v3451, %v3452
      %v3454 = vrot.slane %v3386, 5
      %v3455 = vrot.slane %v3454, 4
      %v3456 = vrot.slane %v2973, 5
      %v3457 = vsel %vm1478, %v3455, %v3456
      %v3458 = vrot.slane %v3456, 4
      %v3459 = vrot.slane %v2974, 5
      %v3460 = vsel %vm1478, %v3458, %v3459
      %v3461 = vrot.slane %v3387, 5
      %v3462 = vrot.slane %v3461, 4
      %v3463 = vrot.slane %v2976, 5
      %v3464 = vsel %vm1478, %v3462, %v3463
      %v3465 = vrot.slane %v3463, 4
      %v3466 = vrot.slane %v2977, 5
      %v3467 = vsel %vm1478, %v3465, %v3466
      %s3468 = scalar_lea.vmem %s3, 512
      %v3469 = vld [vmem:[%s3468] sm:$0xf]
      %v3470 = vld [vmem:[%s3468 + $0x4] sm:$0xf]
      %v3471 = vld [vmem:[%s3468 + $0x8] sm:$0xf]
      %v3472 = vld [vmem:[%s3468 + $0xc] sm:$0xf]
      %v3473 = vld [vmem:[%s3468 + $0x10] sm:$0xf]
      %v3474 = vld [vmem:[%s3468 + $0x14] sm:$0xf]
      %v3475 = vld [vmem:[%s3468 + $0x18] sm:$0xf]
      %v3476 = vld [vmem:[%s3468 + $0x1c] sm:$0xf]
      %v3477 = vld [vmem:[%s3468 + $0x20] sm:$0xf]
      %v3478 = vld [vmem:[%s3468 + $0x24] sm:$0xf]
      %v3479 = vld [vmem:[%s3468 + $0x28] sm:$0xf]
      %v3480 = vld [vmem:[%s3468 + $0x2c] sm:$0xf]
      %v3481 = vld [vmem:[%s3468 + $0x30] sm:$0xf]
      %v3482 = vld [vmem:[%s3468 + $0x34] sm:$0xf]
      %v3483 = vld [vmem:[%s3468 + $0x38] sm:$0xf]
      %v3484 = vld [vmem:[%s3468 + $0x3c] sm:$0xf]
      %v3485 = vunpack.c.l.b16 %v3415
      %v3486 = vunpack.c.l.b16 %v3418
      %v3487 = vunpack.c.l.b16 %v3422
      %v3488 = vunpack.c.l.b16 %v3425
      %v3489 = vunpack.c.l.b16 %v3429
      %v3490 = vunpack.c.l.b16 %v3432
      %v3491 = vunpack.c.l.b16 %v3436
      %v3492 = vunpack.c.l.b16 %v3439
      %v3493 = vunpack.c.l.b16 %v3443
      %v3494 = vunpack.c.l.b16 %v3446
      %v3495 = vunpack.c.l.b16 %v3450
      %v3496 = vunpack.c.l.b16 %v3453
      %v3497 = vunpack.c.l.b16 %v3457
      %v3498 = vunpack.c.l.b16 %v3460
      %v3499 = vunpack.c.l.b16 %v3464
      %v3500 = vunpack.c.l.b16 %v3467
      %v3501 = vpack.c.b16 %v3486, %v3485
      %v3502 = vpack.c.b16 %v3488, %v3487
      %v3503 = vpack.c.b16 %v3490, %v3489
      %v3504 = vpack.c.b16 %v3492, %v3491
      %v3505 = vpack.c.b16 %v3494, %v3493
      %v3506 = vpack.c.b16 %v3496, %v3495
      %v3507 = vpack.c.b16 %v3498, %v3497
      %v3508 = vpack.c.b16 %v3500, %v3499
      %v3533 = vunpack.c.l.b16 %v3469
      %v3534 = vunpack.c.l.b16 %v3470
      %v3535 = vunpack.c.l.b16 %v3471
      %v3536 = vunpack.c.l.b16 %v3472
      %v3537 = vunpack.c.l.b16 %v3473
      %v3538 = vunpack.c.l.b16 %v3474
      %v3539 = vunpack.c.l.b16 %v3475
      %v3540 = vunpack.c.l.b16 %v3476
      %v3541 = vunpack.c.l.b16 %v3477
      %v3542 = vunpack.c.l.b16 %v3478
      %v3543 = vunpack.c.l.b16 %v3479
      %v3544 = vunpack.c.l.b16 %v3480
      %v3545 = vunpack.c.l.b16 %v3481
      %v3546 = vunpack.c.l.b16 %v3482
      %v3547 = vunpack.c.l.b16 %v3483
      %v3548 = vunpack.c.l.b16 %v3484
      %v3549 = vpack.c.b16 %v3534, %v3533
      %v3550 = vpack.c.b16 %v3536, %v3535
      %v3551 = vpack.c.b16 %v3538, %v3537
      %v3552 = vpack.c.b16 %v3540, %v3539
      %v3553 = vpack.c.b16 %v3542, %v3541
      %v3554 = vpack.c.b16 %v3544, %v3543
      %v3555 = vpack.c.b16 %v3546, %v3545
      %v3556 = vpack.c.b16 %v3548, %v3547
      %3565 = vmatprep.subr.bf16.mxu0 0
      %3566 = vmatpush1.bf16.msra.mxu0 %v3556
      %3567 = vmatprep.subr.bf16.mxu0 0
      %3568 = vmatpush1.bf16.msra.mxu0 %v3555
      %3569 = vmatprep.subr.bf16.mxu0 0
      %3570 = vmatpush1.bf16.msra.mxu0 %v3554
      %3571 = vmatprep.subr.bf16.mxu0 0
      %3572 = vmatpush1.bf16.msra.mxu0 %v3553
      %3573 = vmatprep.subr.bf16.mxu0 0
      %3574 = vmatpush1.bf16.msra.mxu0 %v3552
      %3575 = vmatprep.subr.bf16.mxu0 0
      %3576 = vmatpush1.bf16.msra.mxu0 %v3551
      %3577 = vmatprep.subr.bf16.mxu0 0
      %3578 = vmatpush1.bf16.msra.mxu0 %v3550
      %3579 = vmatprep.subr.bf16.mxu0 0
      %3580 = vmatpush1.bf16.msra.mxu0 %v3549
      %3581 = vmatprep.subr.bf16.mxu0 0
      %3582 = vmatpush2.bf16.msra.mxu0 0
      %3583 = vmatprep.subr.bf16.mxu0 0
      %3584 = vmatpush2.bf16.msra.mxu0 0
      %3585 = vmatprep.subr.bf16.mxu0 0
      %3586 = vmatpush2.bf16.msra.mxu0 0
      %3587 = vmatprep.subr.bf16.mxu0 0
      %3588 = vmatpush2.bf16.msra.mxu0 0
      %3589 = vmatprep.subr.bf16.mxu0 0
      %3590 = vmatpush2.bf16.msra.mxu0 0
      %3591 = vmatprep.subr.bf16.mxu0 0
      %3592 = vmatpush2.bf16.msra.mxu0 0
      %3593 = vmatprep.subr.bf16.mxu0 0
      %3594 = vmatpush2.bf16.msra.mxu0 0
      %3595 = vmatprep.subr.bf16.mxu0 0
      %3596 = vmatpush2.bf16.msra.mxu0 0
      %3597 = vmatprep.mubr.bf16.mxu0 0
      %3598 = vmatmul.mubr.bf16.gmra.mxu0 %v3501
      %v3599 = vpop.f32.mrf.mxu0
      %v3600 = vadd.f32 0.0, %v3599
      %v3601 = vpop.f32.mrf.mxu0
      %v3602 = vpop.f32.mrf.mxu0
      %v3603 = vadd.f32 0.0, %v3602
      %v3604 = vpop.f32.mrf.mxu0
      %3605 = vmatprep.mubr.bf16.mxu0 0
      %3606 = vmatmul.mubr.bf16.gmra.mxu0 %v3502
      %v3607 = vpop.f32.mrf.mxu0
      %v3608 = vadd.f32 0.0, %v3607
      %v3609 = vpop.f32.mrf.mxu0
      %v3610 = vpop.f32.mrf.mxu0
      %v3611 = vadd.f32 0.0, %v3610
      %v3612 = vpop.f32.mrf.mxu0
      %3613 = vmatprep.mubr.bf16.mxu0 0
      %3614 = vmatmul.mubr.bf16.gmra.mxu0 %v3503
      %v3615 = vpop.f32.mrf.mxu0
      %v3616 = vadd.f32 0.0, %v3615
      %v3617 = vpop.f32.mrf.mxu0
      %v3618 = vpop.f32.mrf.mxu0
      %v3619 = vadd.f32 0.0, %v3618
      %v3620 = vpop.f32.mrf.mxu0
      %3621 = vmatprep.mubr.bf16.mxu0 0
      %3622 = vmatmul.mubr.bf16.gmra.mxu0 %v3504
      %v3623 = vpop.f32.mrf.mxu0
      %v3624 = vadd.f32 0.0, %v3623
      %v3625 = vpop.f32.mrf.mxu0
      %v3626 = vpop.f32.mrf.mxu0
      %v3627 = vadd.f32 0.0, %v3626
      %v3628 = vpop.f32.mrf.mxu0
      %3629 = vmatprep.mubr.bf16.mxu0 0
      %3630 = vmatmul.mubr.bf16.gmra.mxu0 %v3505
      %v3631 = vpop.f32.mrf.mxu0
      %v3632 = vadd.f32 0.0, %v3631
      %v3633 = vpop.f32.mrf.mxu0
      %v3634 = vpop.f32.mrf.mxu0
      %v3635 = vadd.f32 0.0, %v3634
      %v3636 = vpop.f32.mrf.mxu0
      %3637 = vmatprep.mubr.bf16.mxu0 0
      %3638 = vmatmul.mubr.bf16.gmra.mxu0 %v3506
      %v3639 = vpop.f32.mrf.mxu0
      %v3640 = vadd.f32 0.0, %v3639
      %v3641 = vpop.f32.mrf.mxu0
      %v3642 = vpop.f32.mrf.mxu0
      %v3643 = vadd.f32 0.0, %v3642
      %v3644 = vpop.f32.mrf.mxu0
      %3645 = vmatprep.mubr.bf16.mxu0 0
      %3646 = vmatmul.mubr.bf16.gmra.mxu0 %v3507
      %v3647 = vpop.f32.mrf.mxu0
      %v3648 = vadd.f32 0.0, %v3647
      %v3649 = vpop.f32.mrf.mxu0
      %v3650 = vpop.f32.mrf.mxu0
      %v3651 = vadd.f32 0.0, %v3650
      %v3652 = vpop.f32.mrf.mxu0
      %3653 = vmatprep.mubr.bf16.mxu0 0
      %3654 = vmatmul.mubr.bf16.gmra.mxu0 %v3508
      %v3655 = vpop.f32.mrf.mxu0
      %v3656 = vadd.f32 0.0, %v3655
      %v3657 = vpop.f32.mrf.mxu0
      %v3658 = vpop.f32.mrf.mxu0
      %v3659 = vadd.f32 0.0, %v3658
      %v3660 = vpop.f32.mrf.mxu0
      %3661 = vdwg.mxu0
      %v3662 = vadd.f32 %v3364, %v3600
      %v3663 = vadd.f32 %v3365, %v3603
      %v3664 = vadd.f32 %v3366, %v3608
      %v3665 = vadd.f32 %v3367, %v3611
      %v3666 = vadd.f32 %v3368, %v3616
      %v3667 = vadd.f32 %v3369, %v3619
      %v3668 = vadd.f32 %v3370, %v3624
      %v3669 = vadd.f32 %v3371, %v3627
      %v3670 = vadd.f32 %v3372, %v3632
      %v3671 = vadd.f32 %v3373, %v3635
      %v3672 = vadd.f32 %v3374, %v3640
      %v3673 = vadd.f32 %v3375, %v3643
      %v3674 = vadd.f32 %v3376, %v3648
      %v3675 = vadd.f32 %v3377, %v3651
      %v3676 = vadd.f32 %v3378, %v3656
      %v3677 = vadd.f32 %v3379, %v3659
      %v3678 = vld [vmem:[%s4] sm:$0x1]
      %v3680 = vlaneseq
      %v3681 = vshrl.u32 %v3680, 7
      %v3682 = vsub.s32 0, %v3681
      %v3683 = vrot.slane %v3678, %v3682
      %v3685 = vadd.f32 %v3662, %v3683
      %v3686 = vadd.f32 %v3663, %v3683
      %v3687 = vadd.f32 %v3664, %v3683
      %v3688 = vadd.f32 %v3665, %v3683
      %v3689 = vadd.f32 %v3666, %v3683
      %v3690 = vadd.f32 %v3667, %v3683
      %v3691 = vadd.f32 %v3668, %v3683
      %v3692 = vadd.f32 %v3669, %v3683
      %v3693 = vadd.f32 %v3670, %v3683
      %v3694 = vadd.f32 %v3671, %v3683
      %v3695 = vadd.f32 %v3672, %v3683
      %v3696 = vadd.f32 %v3673, %v3683
      %v3697 = vadd.f32 %v3674, %v3683
      %v3698 = vadd.f32 %v3675, %v3683
      %v3699 = vadd.f32 %v3676, %v3683
      %v3700 = vadd.f32 %v3677, %v3683
      %p3701 = scmp.eq.s32.totalorder %s23, 0
      // Predicated region
      $region49: #{double_conv_nhwc.4} parent=39 // pred_check
        %p3702 = pneg %p3701
      $region50: #{double_conv_nhwc.4} parent=39 // pred_check_branch
        %3704 = sbr.rel (%p3702) target = $region52
      $region51: #{double_conv_nhwc.4} parent=39 // pred_region
        %3705 = vst [vmem:[%s287] sm:$0x3] 0.0
      $region52: #{double_conv_nhwc.4} parent=39 // pred_fallthru
        _
      %v3706 = vld [vmem:[%s287] sm:$0x1]
      %v3707 = vadd.f32 %v3685, %v3686
      %v3708 = vadd.f32 %v3707, %v3687
      %v3709 = vadd.f32 %v3708, %v3688
      %v3710 = vadd.f32 %v3709, %v3689
      %v3711 = vadd.f32 %v3710, %v3690
      %v3712 = vadd.f32 %v3711, %v3691
      %v3713 = vadd.f32 %v3712, %v3692
      %v3714 = vadd.f32 %v3713, %v3693
      %v3715 = vadd.f32 %v3714, %v3694
      %v3716 = vadd.f32 %v3715, %v3695
      %v3717 = vadd.f32 %v3716, %v3696
      %v3718 = vadd.f32 %v3717, %v3697
      %v3719 = vadd.f32 %v3718, %v3698
      %v3720 = vadd.f32 %v3719, %v3699
      %v3721 = vadd.f32 %v3720, %v3700
      %v3722 = vrot.slane %v3721, 4
      %v3723 = vadd.f32 %v3721, %v3722
      %v3724 = vrot.slane %v3723, 2
      %v3725 = vadd.f32 %v3723, %v3724
      %v3726 = vrot.slane %v3725, 1
      %v3727 = vadd.f32 %v3725, %v3726
      %v3728 = vadd.f32 %v3706, %v3727
      %3729 = vst [vmem:[%s287] sm:$0x1] %v3728
      %v3730 = vld [vmem:[%s287 + $0x1] sm:$0x1]
      %v3731 = vmul.f32 %v3685, %v3685
      %v3732 = vmul.f32 %v3686, %v3686
      %v3733 = vmul.f32 %v3687, %v3687
      %v3734 = vmul.f32 %v3688, %v3688
      %v3735 = vmul.f32 %v3689, %v3689
      %v3736 = vmul.f32 %v3690, %v3690
      %v3737 = vmul.f32 %v3691, %v3691
      %v3738 = vmul.f32 %v3692, %v3692
      %v3739 = vmul.f32 %v3693, %v3693
      %v3740 = vmul.f32 %v3694, %v3694
      %v3741 = vmul.f32 %v3695, %v3695
      %v3742 = vmul.f32 %v3696, %v3696
      %v3743 = vmul.f32 %v3697, %v3697
      %v3744 = vmul.f32 %v3698, %v3698
      %v3745 = vmul.f32 %v3699, %v3699
      %v3746 = vmul.f32 %v3700, %v3700
      %v3747 = vadd.f32 %v3731, %v3732
      %v3748 = vadd.f32 %v3747, %v3733
      %v3749 = vadd.f32 %v3748, %v3734
      %v3750 = vadd.f32 %v3749, %v3735
      %v3751 = vadd.f32 %v3750, %v3736
      %v3752 = vadd.f32 %v3751, %v3737
      %v3753 = vadd.f32 %v3752, %v3738
      %v3754 = vadd.f32 %v3753, %v3739
      %v3755 = vadd.f32 %v3754, %v3740
      %v3756 = vadd.f32 %v3755, %v3741
      %v3757 = vadd.f32 %v3756, %v3742
      %v3758 = vadd.f32 %v3757, %v3743
      %v3759 = vadd.f32 %v3758, %v3744
      %v3760 = vadd.f32 %v3759, %v3745
      %v3761 = vadd.f32 %v3760, %v3746
      %v3762 = vrot.slane %v3761, 4
      %v3763 = vadd.f32 %v3761, %v3762
      %v3764 = vrot.slane %v3763, 2
      %v3765 = vadd.f32 %v3763, %v3764
      %v3766 = vrot.slane %v3765, 1
      %v3767 = vadd.f32 %v3765, %v3766
      %v3768 = vadd.f32 %v3730, %v3767
      %3769 = vst [vmem:[%s287 + $0x1] sm:$0x1] %v3768
      %v3770 = vpack.c.bf16 %v3686, %v3685
      %v3771 = vpack.c.bf16 %v3688, %v3687
      %v3772 = vpack.c.bf16 %v3690, %v3689
      %v3773 = vpack.c.bf16 %v3692, %v3691
      %v3774 = vpack.c.bf16 %v3694, %v3693
      %v3775 = vpack.c.bf16 %v3696, %v3695
      %v3776 = vpack.c.bf16 %v3698, %v3697
      %v3777 = vpack.c.bf16 %v3700, %v3699
      %v3786 = vunpack.c.l.b16 %v3770
      %v3787 = vunpack.c.h.b16 %v3770
      %v3788 = vunpack.c.l.b16 %v3771
      %v3789 = vunpack.c.h.b16 %v3771
      %v3790 = vunpack.c.l.b16 %v3772
      %v3791 = vunpack.c.h.b16 %v3772
      %v3792 = vunpack.c.l.b16 %v3773
      %v3793 = vunpack.c.h.b16 %v3773
      %v3794 = vunpack.c.l.b16 %v3774
      %v3795 = vunpack.c.h.b16 %v3774
      %v3796 = vunpack.c.l.b16 %v3775
      %v3797 = vunpack.c.h.b16 %v3775
      %v3798 = vunpack.c.l.b16 %v3776
      %v3799 = vunpack.c.h.b16 %v3776
      %v3800 = vunpack.c.l.b16 %v3777
      %v3801 = vunpack.c.h.b16 %v3777
      %v3802 = vpack.c.b16 %v3786, %v3786
      %v3803 = vpack.c.b16 %v3787, %v3787
      %v3804 = vpack.c.b16 %v3788, %v3788
      %v3805 = vpack.c.b16 %v3789, %v3789
      %v3806 = vpack.c.b16 %v3790, %v3790
      %v3807 = vpack.c.b16 %v3791, %v3791
      %v3808 = vpack.c.b16 %v3792, %v3792
      %v3809 = vpack.c.b16 %v3793, %v3793
      %v3810 = vpack.c.b16 %v3794, %v3794
      %v3811 = vpack.c.b16 %v3795, %v3795
      %v3812 = vpack.c.b16 %v3796, %v3796
      %v3813 = vpack.c.b16 %v3797, %v3797
      %v3814 = vpack.c.b16 %v3798, %v3798
      %v3815 = vpack.c.b16 %v3799, %v3799
      %v3816 = vpack.c.b16 %v3800, %v3800
      %v3817 = vpack.c.b16 %v3801, %v3801
      %3834 = vst [vmem:[%s282] sm:$0xf] %v3802
      %3835 = vst [vmem:[%s282 + $0x4] sm:$0xf] %v3803
      %3836 = vst [vmem:[%s282 + $0x8] sm:$0xf] %v3804
      %3837 = vst [vmem:[%s282 + $0xc] sm:$0xf] %v3805
      %3838 = vst [vmem:[%s282 + $0x10] sm:$0xf] %v3806
      %3839 = vst [vmem:[%s282 + $0x14] sm:$0xf] %v3807
      %3840 = vst [vmem:[%s282 + $0x18] sm:$0xf] %v3808
      %3841 = vst [vmem:[%s282 + $0x1c] sm:$0xf] %v3809
      %3842 = vst [vmem:[%s282 + $0x20] sm:$0xf] %v3810
      %3843 = vst [vmem:[%s282 + $0x24] sm:$0xf] %v3811
      %3844 = vst [vmem:[%s282 + $0x28] sm:$0xf] %v3812
      %3845 = vst [vmem:[%s282 + $0x2c] sm:$0xf] %v3813
      %3846 = vst [vmem:[%s282 + $0x30] sm:$0xf] %v3814
      %3847 = vst [vmem:[%s282 + $0x34] sm:$0xf] %v3815
      %3848 = vst [vmem:[%s282 + $0x38] sm:$0xf] %v3816
      %3849 = vst [vmem:[%s282 + $0x3c] sm:$0xf] %v3817
      %s3850 = smul.u32 8, %s23
      %p3851 = scmp.lt.s32.totalorder %s22, 1
      %s3852 = scalar_select %p3851, %s22, 1
      %p3853 = scmp.lt.s32.totalorder %s3850, 15
      %s3854 = scalar_select %p3853, %s3850, 15
      %s3855 = smul.addr %s3854, 2
      %s3856 = smul.addr %s3852, 32
      %s3857 = sadd.s32 %s3855, %s3856
      %s3858 = smul.addr %s3857, 4
      %s3859 = scalar_lea.vmem %s5, %s3858
      %p3860 = scmp.lt.s32.totalorder %s22, 1
      %s3861 = scalar_select %p3860, %s22, 1
      %s3862 = smul.addr %s3861, 2
      %s3863 = scalar_lea.vmem %s6, %s3862
      // Predicated region
      $region53: #{double_conv_nhwc.4} parent=39 // pred_check
        %p3864 = pneg %p160
      $region54: #{double_conv_nhwc.4} parent=39 // pred_check_branch
        %3866 = sbr.rel (%p3864) target = $region56
      $region55: #{double_conv_nhwc.4} parent=39 // pred_region
        %s3867 = smul.u32 8, %s23
      $region56: #{double_conv_nhwc.4} parent=39 // pred_fallthru
        _
      // Predicated region
      $region57: #{double_conv_nhwc.4} parent=39 // pred_check
        %p3868 = pneg %p186
      $region58: #{double_conv_nhwc.4} parent=39 // pred_check_branch
        %3870 = sbr.rel (%p3868) target = $region60
      $region59: #{double_conv_nhwc.4} parent=39 // pred_region
        _
      $region60: #{double_conv_nhwc.4} parent=39 // pred_fallthru
        _
    $region40: #{double_conv_nhwc.4} parent=5 // pred_fallthru
      _
    %p3871 = scmp.le.s32.totalorder 2, %s13
    // Predicated region
    $region61: #{double_conv_nhwc.4} parent=5 // pred_check
      %p3872 = pneg %p3871
    $region62: #{double_conv_nhwc.4} parent=5 // pred_check_branch
      %3874 = sbr.rel (%p3872) target = $region64
    $region63: #{double_conv_nhwc.4} parent=5 // pred_region
      %s3875 = ssub.s32 %s13, 2
      // Predicated region
      $region65: #{double_conv_nhwc.4} parent=63 // pred_check
        %p3876 = pneg %p166
      $region66: #{double_conv_nhwc.4} parent=63 // pred_check_branch
        %3878 = sbr.rel (%p3876) target = $region68
      $region67: #{double_conv_nhwc.4} parent=63 // pred_region
        %s3879 = smul.u32 8, %s25
        %p3880 = scmp.lt.s32.totalorder %s24, 1
        %s3881 = scalar_select %p3880, %s24, 1
        %p3882 = scmp.lt.s32.totalorder %s3879, 15
        %s3883 = scalar_select %p3882, %s3879, 15
        %s3884 = smul.addr %s3883, 2
        %s3885 = smul.addr %s3881, 32
        %s3886 = sadd.s32 %s3884, %s3885
        %s3887 = smul.addr %s3886, 4
        %s3888 = scalar_lea.vmem %s5, %s3887
      $region68: #{double_conv_nhwc.4} parent=63 // pred_fallthru
        _
      // Predicated region
      $region69: #{double_conv_nhwc.4} parent=63 // pred_check
        %p3889 = pneg %p192
      $region70: #{double_conv_nhwc.4} parent=63 // pred_check_branch
        %3891 = sbr.rel (%p3889) target = $region72
      $region71: #{double_conv_nhwc.4} parent=63 // pred_region
        %p3892 = scmp.lt.s32.totalorder %s24, 1
        %s3893 = scalar_select %p3892, %s24, 1
        %s3894 = smul.addr %s3893, 2
        %s3895 = scalar_lea.vmem %s6, %s3894
      $region72: #{double_conv_nhwc.4} parent=63 // pred_fallthru
        _
    $region64: #{double_conv_nhwc.4} parent=5 // pred_fallthru
      _
  $region6: #{double_conv_nhwc.4} parent=0 // loop_footer
    %s17 = sadd.s32 1, %s13
  $region7: #{double_conv_nhwc.4} parent=0 // loop_footer_branch
    %12 = sbr.rel target = $region3
  $region8: #{double_conv_nhwc.4} parent=0 // loop_exit
    _

</llo_original>
